<compile_context>
chip_gen: v5e
topology: v5e:2x2
jax: 0.10.0
libtpu: 0.0.40
codegen_flags: <defaults>
</compile_context>

<pallas_src>
import functools

import jax
import jax.numpy as jnp
from jax import lax
from jax.experimental import pallas as pl
from jax.experimental.pallas import tpu as pltpu


# --------------------------------------------------------------- in-kernel helpers --

def _bn_train(y, eps, gamma=None, beta=None, axis=0):
    """Training-mode BatchNorm (per-batch stats, biased variance) in f32.

    Two-pass (mean, then centered sum-of-squares) to avoid the E[x^2]-mean^2
    cancellation issue."""
    inv_n = 1.0 / y.shape[axis]
    mean = jnp.sum(y, axis=axis, keepdims=True) * inv_n
    yc = y - mean
    var = jnp.sum(yc * yc, axis=axis, keepdims=True) * inv_n
    out = yc * lax.rsqrt(var + eps)
    if gamma is not None:
        out = out * gamma + beta
    return out


def _pad_w_cat_dx_pad_h(x):
    """(B,H,W,C) bf16 -> (B,H+2,W,3C) bf16.

    Zero-pad W, concatenate the three dx-shifted views along the lane axis, then
    zero-pad H.  This is the only staging copy the convs make (~3x the activation, in
    bf16) — the previous 9x f32 im2col is gone."""
    B, H, W, C = x.shape
    zc = jnp.zeros((B, H, 1, C), x.dtype)
    xpw = jnp.concatenate([zc, x, zc], axis=2)                        # (B,H,W+2,C)
    xw = jnp.concatenate([xpw[:, :, dx:dx + W, :] for dx in range(3)], axis=-1)
    zr = jnp.zeros((B, 1, W, 3 * C), x.dtype)
    return jnp.concatenate([zr, xw, zr], axis=1)                      # (B,H+2,W,3C)


def _conv3x3(x_bf16, w_dy):
    """3x3 stride-1 'same' conv as 3 accumulating MXU matmuls (one per dy, K=3*Cin).

    x_bf16: (B,H,W,Cin) bf16; w_dy: (3, 3*Cin, Cout) bf16 with rows ordered (dx, ci).
    The dy shifts are plain leading-dim slices (free address shifts).  Returns
    (B*H*W, Cout) f32.  No bias — see callers (cancelled by the following BN)."""
    B, H, W, C = x_bf16.shape
    xwh = _pad_w_cat_dx_pad_h(x_bf16)
    acc = None
    for dy in range(3):
        v = xwh[:, dy:dy + H, :, :].reshape(B * H * W, 3 * C)
        p = jnp.dot(v, w_dy[dy], preferred_element_type=jnp.float32)
        acc = p if acc is None else acc + p
    return acc


# ------------------------------------------------------------------------- kernels --

def linear_kernel(z_ref, w_ref, b_ref, o_ref):
    # z:(B,zdim) @ w:(zdim,F_blk) + b:(1,F_blk); bf16 operands, f32 accumulation.
    # Weight columns are pre-permuted into NHWC order and duplicated 4x, so the output
    # already *is* the nearest-2x upsampled (B, 2s, 2s, 128) map (row-major reshape
    # outside is free).  Grid axis = output-feature blocks ("parallel").
    z = z_ref[...].astype(jnp.bfloat16)
    acc = jnp.dot(z, w_ref[...], preferred_element_type=jnp.float32) + b_ref[...]
    o_ref[...] = acc.astype(o_ref.dtype)


def bn_conv_bn_lrelu_kernel(x_ref, pg_ref, pb_ref, w_ref, g_ref, b_ref, o_ref,
                            *, pre_eps, eps, slope):
    # conv_blocks0 + conv_blocks1 for one 64-channel output block:
    #   BN0(128) prologue -> 3x3 conv (128 -> this block's 64 of 128)
    #   -> BN(block, eps) -> LeakyReLU(slope).
    # Per-channel BN stats make the channel split exact; BN0 is recomputed per block
    # (cheap, identical).  Conv bias dropped (cancelled by BN mean subtraction).
    B, H, W, Cin = x_ref.shape
    Cb = o_ref.shape[-1]
    x = x_ref[...].astype(jnp.float32).reshape(B * H * W, Cin)
    x = _bn_train(x, pre_eps, pg_ref[...], pb_ref[...])          # BN0, training stats
    y = _conv3x3(x.astype(jnp.bfloat16).reshape(B, H, W, Cin), w_ref[0])
    y = _bn_train(y, eps, g_ref[0], b_ref[0])
    y = jnp.where(y >= 0.0, y, slope * y)                        # LeakyReLU
    o_ref[0] = y.reshape(B, H, W, Cb).astype(o_ref.dtype)


def conv_bn_lrelu_kernel(x_ref, w_ref, g_ref, b_ref, o_ref, *, eps, slope):
    # 3x3 conv (128 -> 64) -> BN(64, eps) -> LeakyReLU(slope).  Bias dropped (see above).
    B, H, W, Cin = x_ref.shape
    Cout = o_ref.shape[-1]
    y = _conv3x3(x_ref[...], w_ref[...])
    y = _bn_train(y, eps, g_ref[...], b_ref[...])
    y = jnp.where(y >= 0.0, y, slope * y)
    o_ref[...] = y.reshape(B, H, W, Cout).astype(o_ref.dtype)


def conv_tanh_bn_kernel(x_ref, w_ref, cb_ref, o_ref, *, eps):
    # 3x3 conv (64 -> C) -> Tanh -> BN(C, affine=False), computed lane-dense:
    # output channels (C=3) sit on sublanes and the B*H*W pixels on lanes, so tanh / BN
    # / stores use full vregs, and the result is written directly in (B, C, H*W) order
    # (free reshape to NCHW outside; no transpose).
    B, H, W, Cin = x_ref.shape
    HW = o_ref.shape[2]
    xwh = _pad_w_cat_dx_pad_h(x_ref[...])
    w = w_ref[...]                                   # (3=dy, Cout, 3*Cin) bf16
    dnums = (((1,), (1,)), ((), ()))                 # (Cout,K) x (Npix,K) -> (Cout,Npix)
    acc = None
    for dy in range(3):
        v = xwh[:, dy:dy + H, :, :].reshape(B * H * W, 3 * Cin)
        p = lax.dot_general(w[dy], v, dnums, preferred_element_type=jnp.float32)
        acc = p if acc is None else acc + p
    y = jnp.tanh(acc + cb_ref[...])                  # bias kept: tanh precedes this BN
    y = _bn_train(y, eps, axis=1)                    # per-channel stats over all pixels
    for b in range(B):                               # lane-aligned (multiple-of-128) slices
        o_ref[b] = y[:, b * HW:(b + 1) * HW].astype(o_ref.dtype)


# ------------------------------------------------------------------------- params ---

def init_params(key, zdim, in_channel, img_sz):
    """Random parameters in PyTorch-native layouts (as the nn.Module would hold them)."""
    s = img_sz // 4
    F = 128 * s * s
    ks = jax.random.split(key, 8)
    f32 = jnp.float32
    return {
        "l1_w": jax.random.normal(ks[0], (F, zdim), f32) / jnp.sqrt(zdim),   # (out, in)
        "l1_b": jax.random.normal(ks[1], (F,), f32) * 0.01,
        "bn0_g": jnp.ones((128,), f32), "bn0_b": jnp.zeros((128,), f32),
        "conv1_w": jax.random.normal(ks[2], (128, 128, 3, 3), f32) / jnp.sqrt(9 * 128),
        "conv1_b": jax.random.normal(ks[3], (128,), f32) * 0.01,
        "bn1_g": jnp.ones((128,), f32), "bn1_b": jnp.zeros((128,), f32),
        "conv2_w": jax.random.normal(ks[4], (64, 128, 3, 3), f32) / jnp.sqrt(9 * 128),
        "conv2_b": jax.random.normal(ks[5], (64,), f32) * 0.01,
        "bn2_g": jnp.ones((64,), f32), "bn2_b": jnp.zeros((64,), f32),
        "conv3_w": jax.random.normal(ks[6], (in_channel, 64, 3, 3), f32) / jnp.sqrt(9 * 64),
        "conv3_b": jax.random.normal(ks[7], (in_channel,), f32) * 0.01,
    }


def prepare_params(p, zdim, in_channel, img_sz):
    """One-time (free) layout transforms so the kernels see fusion-friendly operands."""
    s = img_sz // 4
    bf16, f32 = jnp.bfloat16, jnp.float32

    # Linear: (F, zdim) -> (zdim, F); columns permuted into NHWC order and duplicated 4x
    # for the first nearest-2x upsample.  BN commutes exactly with nearest upsampling
    # (mean and biased variance unchanged under uniform duplication), so BN0 is applied
    # afterwards in conv1's prologue with identical results.
    w = p["l1_w"].T.reshape(zdim, 128, s, s)
    w = jnp.repeat(jnp.repeat(w, 2, axis=2), 2, axis=3)
    w_up = w.transpose(0, 2, 3, 1).reshape(zdim, 4 * s * s * 128)
    b = p["l1_b"].reshape(128, s, s)
    b = jnp.repeat(jnp.repeat(b, 2, axis=1), 2, axis=2)
    b_up = b.transpose(1, 2, 0).reshape(1, 4 * s * s * 128)

    def conv_w_dy(wt):
        # (Cout, Cin, 3, 3) -> (3=dy, 3*Cin, Cout): per-dy matrices, rows ordered (dx, ci).
        cout, cin = wt.shape[0], wt.shape[1]
        return wt.transpose(2, 3, 1, 0).reshape(3, 3 * cin, cout).astype(bf16)

    # conv1 weights split into two 64-output-channel blocks for the "parallel" grid axis.
    w1 = conv_w_dy(p["conv1_w"]).reshape(3, 3 * 128, 2, 64).transpose(2, 0, 1, 3)

    # conv3 weights pre-transposed for the lane-dense final stage: (3=dy, Cout, 3*Cin).
    w3 = p["conv3_w"].transpose(2, 0, 3, 1).reshape(3, in_channel, 3 * 64).astype(bf16)

    # conv1_b / conv2_b are NOT forwarded: a per-output-channel constant immediately
    # before training-mode BN is exactly cancelled by its mean subtraction.
    return {
        "l1_w_up": w_up.astype(bf16), "l1_b_up": b_up.astype(f32),
        "bn0_g": p["bn0_g"].reshape(1, -1), "bn0_b": p["bn0_b"].reshape(1, -1),
        "conv1_w": w1,
        "bn1_g": p["bn1_g"].reshape(2, 1, 64), "bn1_b": p["bn1_b"].reshape(2, 1, 64),
        "conv2_w": conv_w_dy(p["conv2_w"]),
        "bn2_g": p["bn2_g"].reshape(1, -1), "bn2_b": p["bn2_b"].reshape(1, -1),
        "conv3_w": w3, "conv3_b": p["conv3_b"].reshape(in_channel, 1).astype(f32),
    }


# ------------------------------------------------------------------------ forward ---

def _cparams(*sem):
    return pltpu.CompilerParams(dimension_semantics=sem)


def generator_forward(params, z, *, in_channel, img_sz):
    s = img_sz // 4
    B, zdim = z.shape
    H1 = W1 = 2 * s
    H2 = W2 = img_sz
    bf16 = jnp.bfloat16

    # --- l1 (+ NHWC permutation + first nearest-2x upsample baked into the weights) ---
    F_up = H1 * W1 * 128
    n_fblk = 2
    f_blk = F_up // n_fblk
    out = pl.pallas_call(
        linear_kernel,
        out_shape=jax.ShapeDtypeStruct((B, F_up), bf16),
        grid=(n_fblk,),
        in_specs=[pl.BlockSpec((B, zdim), lambda j: (0, 0)),
                  pl.BlockSpec((zdim, f_blk), lambda j: (0, j)),
                  pl.BlockSpec((1, f_blk), lambda j: (0, j))],
        out_specs=pl.BlockSpec((B, f_blk), lambda j: (0, j)),
        compiler_params=_cparams("parallel"),
    )(z, params["l1_w_up"], params["l1_b_up"])
    out = out.reshape(B, H1, W1, 128)        # free row-major reshape (XLA metadata only)

    # --- conv_blocks0 (BN 128) + conv_blocks1 (conv 128->128, BN(0.8), LeakyReLU) ---
    # Output channels split into two 64-wide blocks on a "parallel" grid axis
    # (exact: BN stats are per-channel); on v7x this puts one block per TensorCore.
    n_cblk, cb1 = 2, 64
    out = pl.pallas_call(
        functools.partial(bn_conv_bn_lrelu_kernel, pre_eps=1e-5, eps=0.8, slope=0.2),
        out_shape=jax.ShapeDtypeStruct((n_cblk, B, H1, W1, cb1), bf16),
        grid=(n_cblk,),
        in_specs=[pl.BlockSpec((B, H1, W1, 128), lambda j: (0, 0, 0, 0)),
                  pl.BlockSpec((1, 128), lambda j: (0, 0)),
                  pl.BlockSpec((1, 128), lambda j: (0, 0)),
                  pl.BlockSpec((1, 3, 3 * 128, cb1), lambda j: (j, 0, 0, 0)),
                  pl.BlockSpec((1, 1, cb1), lambda j: (j, 0, 0)),
                  pl.BlockSpec((1, 1, cb1), lambda j: (j, 0, 0))],
        out_specs=pl.BlockSpec((1, B, H1, W1, cb1), lambda j: (j, 0, 0, 0, 0)),
        compiler_params=_cparams("parallel"),
    )(out, params["bn0_g"], params["bn0_b"],
      params["conv1_w"], params["bn1_g"], params["bn1_b"])
    out = jnp.moveaxis(out, 0, 3).reshape(B, H1, W1, 128)   # stitch channel blocks (tiny)

    # interpolate(scale_factor=2, mode='nearest') — bf16 halves this stage's HBM traffic.
    # TODO(synk): the W-direction duplication is a sublane interleave with no safe
    # in-kernel lowering; it stays as cheap bf16 XLA glue.
    out = jnp.repeat(jnp.repeat(out, 2, axis=1), 2, axis=2)

    # --- conv_blocks2 (part 1): Conv(128->64) + BN(64, 0.8) + LeakyReLU(0.2) ---
    out = pl.pallas_call(
        functools.partial(conv_bn_lrelu_kernel, eps=0.8, slope=0.2),
        out_shape=jax.ShapeDtypeStruct((B, H2, W2, 64), bf16),
        grid=(1,),
        in_specs=[pl.BlockSpec((B, H2, W2, 128), lambda i: (0, 0, 0, 0)),
                  pl.BlockSpec((3, 3 * 128, 64), lambda i: (0, 0, 0)),
                  pl.BlockSpec((1, 64), lambda i: (0, 0)),
                  pl.BlockSpec((1, 64), lambda i: (0, 0))],
        out_specs=pl.BlockSpec((B, H2, W2, 64), lambda i: (0, 0, 0, 0)),
        compiler_params=_cparams("arbitrary"),
    )(out, params["conv2_w"], params["bn2_g"], params["bn2_b"])

    # --- conv_blocks2 (part 2): Conv(64->C) + Tanh + BN(C, affine=False), lane-dense ---
    out = pl.pallas_call(
        functools.partial(conv_tanh_bn_kernel, eps=1e-5),
        out_shape=jax.ShapeDtypeStruct((B, in_channel, H2 * W2), jnp.float32),
        grid=(1,),
        in_specs=[pl.BlockSpec((B, H2, W2, 64), lambda i: (0, 0, 0, 0)),
                  pl.BlockSpec((3, in_channel, 3 * 64), lambda i: (0, 0, 0)),
                  pl.BlockSpec((in_channel, 1), lambda i: (0, 0))],
        out_specs=pl.BlockSpec((B, in_channel, H2 * W2), lambda i: (0, 0, 0)),
        compiler_params=_cparams("arbitrary"),
    )(out, params["conv3_w"], params["conv3_b"])

    # Already NCHW-ordered: only a free reshape remains (no final transpose).
    return out.reshape(B, in_channel, H2, W2)


# --------------------------------------------------------------------------- main ---

if __name__ == "__main__":
    zdim, in_channel, img_sz, batch = 32, 3, 16, 2
    key = jax.random.PRNGKey(0)
    pkey, zkey = jax.random.split(key)

    raw = init_params(pkey, zdim, in_channel, img_sz)
    params = prepare_params(raw, zdim, in_channel, img_sz)
    z = jax.random.normal(zkey, (batch, zdim), jnp.float32)

    fwd = jax.jit(functools.partial(generator_forward,
                                    in_channel=in_channel, img_sz=img_sz))
    img = jax.block_until_ready(fwd(params, z))

    assert img.shape == (batch, in_channel, img_sz, img_sz), img.shape
    assert bool(jnp.all(jnp.isfinite(img)))
    print("KERNEL_OK")
</pallas_src>

<mosaic_0001>
module attributes {stable_mosaic.version = 11 : i64} {
  func.func @bn_conv_bn_lrelu_kernel(%arg0: i32, %arg1: memref<2x8x8x128xbf16, #tpu.memory_space<vmem>>, %arg2: memref<1x128xf32, #tpu.memory_space<vmem>>, %arg3: memref<1x128xf32, #tpu.memory_space<vmem>>, %arg4: memref<1x3x384x64xbf16, #tpu.memory_space<vmem>>, %arg5: memref<1x1x64xf32, #tpu.memory_space<vmem>>, %arg6: memref<1x1x64xf32, #tpu.memory_space<vmem>>, %arg7: memref<1x2x8x8x64xbf16, #tpu.memory_space<vmem>>) attributes {dimension_semantics = [#tpu.dimension_semantics<parallel>], iteration_bounds = array<i64: 2>, scalar_prefetch = 0 : i64, scratch_operands = 0 : i64, tpu.core_type = #tpu.core_type<tc>, window_params = [{pipeline_mode = #tpu.pipeline_mode<synchronous>, transform_indices = @transform_0, window_bounds = array<i64: 2, 8, 8, 128>}, {pipeline_mode = #tpu.pipeline_mode<synchronous>, transform_indices = @transform_1, window_bounds = array<i64: 1, 128>}, {pipeline_mode = #tpu.pipeline_mode<synchronous>, transform_indices = @transform_2, window_bounds = array<i64: 1, 128>}, {transform_indices = @transform_3, window_bounds = array<i64: 1, 3, 384, 64>}, {transform_indices = @transform_4, window_bounds = array<i64: 1, 1, 64>}, {transform_indices = @transform_5, window_bounds = array<i64: 1, 1, 64>}, {transform_indices = @transform_6, window_bounds = array<i64: 1, 2, 8, 8, 64>}]} {
    %c0 = arith.constant 0 : index
    %c0_0 = arith.constant 0 : index
    %c0_1 = arith.constant 0 : index
    %c0_2 = arith.constant 0 : index
    %0 = vector.load %arg1[%c0, %c0_0, %c0_1, %c0_2] : memref<2x8x8x128xbf16, #tpu.memory_space<vmem>>, vector<2x8x8x128xbf16>
    %1 = arith.extf %0 : vector<2x8x8x128xbf16> to vector<2x8x8x128xf32>
    %2 = vector.shape_cast %1 : vector<2x8x8x128xf32> to vector<128x128xf32>
    %c0_3 = arith.constant 0 : index
    %c0_4 = arith.constant 0 : index
    %3 = vector.load %arg2[%c0_3, %c0_4] : memref<1x128xf32, #tpu.memory_space<vmem>>, vector<1x128xf32>
    %c0_5 = arith.constant 0 : index
    %c0_6 = arith.constant 0 : index
    %4 = vector.load %arg3[%c0_5, %c0_6] : memref<1x128xf32, #tpu.memory_space<vmem>>, vector<1x128xf32>
    %cst = arith.constant dense<0.000000e+00> : vector<128xf32>
    %5 = vector.multi_reduction <add>, %2, %cst [0] : vector<128x128xf32> to vector<128xf32>
    %6 = vector.shape_cast %5 : vector<128xf32> to vector<1x128xf32>
    %cst_7 = arith.constant 7.812500e-03 : f32
    %7 = vector.broadcast %cst_7 : f32 to vector<1x128xf32>
    %8 = arith.mulf %6, %7 : vector<1x128xf32>
    %9 = vector.broadcast %8 : vector<1x128xf32> to vector<128x128xf32>
    %10 = arith.subf %2, %9 : vector<128x128xf32>
    %11 = arith.mulf %10, %10 : vector<128x128xf32>
    %cst_8 = arith.constant dense<0.000000e+00> : vector<128xf32>
    %12 = vector.multi_reduction <add>, %11, %cst_8 [0] : vector<128x128xf32> to vector<128xf32>
    %13 = vector.shape_cast %12 : vector<128xf32> to vector<1x128xf32>
    %cst_9 = arith.constant 7.812500e-03 : f32
    %14 = vector.broadcast %cst_9 : f32 to vector<1x128xf32>
    %15 = arith.mulf %13, %14 : vector<1x128xf32>
    %cst_10 = arith.constant 9.99999974E-6 : f32
    %16 = vector.broadcast %cst_10 : f32 to vector<1x128xf32>
    %17 = arith.addf %15, %16 : vector<1x128xf32>
    %18 = math.rsqrt %17 : vector<1x128xf32>
    %19 = vector.broadcast %18 : vector<1x128xf32> to vector<128x128xf32>
    %20 = arith.mulf %10, %19 : vector<128x128xf32>
    %21 = vector.broadcast %3 : vector<1x128xf32> to vector<128x128xf32>
    %22 = arith.mulf %20, %21 : vector<128x128xf32>
    %23 = vector.broadcast %4 : vector<1x128xf32> to vector<128x128xf32>
    %24 = arith.addf %22, %23 : vector<128x128xf32>
    %25 = arith.truncf %24 : vector<128x128xf32> to vector<128x128xbf16>
    %26 = vector.shape_cast %25 : vector<128x128xbf16> to vector<2x8x8x128xbf16>
    %c0_11 = arith.constant 0 : index
    %c0_12 = arith.constant 0 : index
    %c0_13 = arith.constant 0 : index
    %c0_14 = arith.constant 0 : index
    %27 = vector.load %arg4[%c0_11, %c0_12, %c0_13, %c0_14] : memref<1x3x384x64xbf16, #tpu.memory_space<vmem>>, vector<1x3x384x64xbf16>
    %28 = vector.shape_cast %27 : vector<1x3x384x64xbf16> to vector<3x384x64xbf16>
    %cst_15 = arith.constant 0.000000e+00 : bf16
    %29 = vector.broadcast %cst_15 : bf16 to vector<2x8x1x128xbf16>
    %30 = tpu.concatenate %29, %26, %29 in 2 : vector<2x8x1x128xbf16>, vector<2x8x8x128xbf16>, vector<2x8x1x128xbf16> -> vector<2x8x10x128xbf16>
    %31 = vector.extract_strided_slice %30 {offsets = [0, 0, 0, 0], sizes = [2, 8, 8, 128], strides = [1, 1, 1, 1]} : vector<2x8x10x128xbf16> to vector<2x8x8x128xbf16>
    %32 = vector.extract_strided_slice %30 {offsets = [0, 0, 1, 0], sizes = [2, 8, 8, 128], strides = [1, 1, 1, 1]} : vector<2x8x10x128xbf16> to vector<2x8x8x128xbf16>
    %33 = vector.extract_strided_slice %30 {offsets = [0, 0, 2, 0], sizes = [2, 8, 8, 128], strides = [1, 1, 1, 1]} : vector<2x8x10x128xbf16> to vector<2x8x8x128xbf16>
    %34 = tpu.concatenate %31, %32, %33 in 3 : vector<2x8x8x128xbf16>, vector<2x8x8x128xbf16>, vector<2x8x8x128xbf16> -> vector<2x8x8x384xbf16>
    %cst_16 = arith.constant 0.000000e+00 : bf16
    %35 = vector.broadcast %cst_16 : bf16 to vector<2x1x8x384xbf16>
    %36 = tpu.concatenate %35, %34, %35 in 1 : vector<2x1x8x384xbf16>, vector<2x8x8x384xbf16>, vector<2x1x8x384xbf16> -> vector<2x10x8x384xbf16>
    %37 = vector.extract_strided_slice %36 {offsets = [0, 0, 0, 0], sizes = [2, 8, 8, 384], strides = [1, 1, 1, 1]} : vector<2x10x8x384xbf16> to vector<2x8x8x384xbf16>
    %38 = vector.shape_cast %37 : vector<2x8x8x384xbf16> to vector<128x384xbf16>
    %39 = vector.extract_strided_slice %28 {offsets = [0, 0, 0], sizes = [1, 384, 64], strides = [1, 1, 1]} : vector<3x384x64xbf16> to vector<1x384x64xbf16>
    %40 = vector.shape_cast %39 : vector<1x384x64xbf16> to vector<384x64xbf16>
    %cst_17 = arith.constant dense<0.000000e+00> : vector<128x64xf32>
    %41 = tpu.matmul %38, %40, %cst_17 {dimension_numbers = #tpu.dot_dimension_numbers<[1], [0], [0], [1], [0, 0, 1, 1], [], []>} : vector<128x384xbf16>, vector<384x64xbf16>, vector<128x64xf32> -> vector<128x64xf32>
    %42 = vector.extract_strided_slice %36 {offsets = [0, 1, 0, 0], sizes = [2, 8, 8, 384], strides = [1, 1, 1, 1]} : vector<2x10x8x384xbf16> to vector<2x8x8x384xbf16>
    %43 = vector.shape_cast %42 : vector<2x8x8x384xbf16> to vector<128x384xbf16>
    %44 = vector.extract_strided_slice %28 {offsets = [1, 0, 0], sizes = [1, 384, 64], strides = [1, 1, 1]} : vector<3x384x64xbf16> to vector<1x384x64xbf16>
    %45 = vector.shape_cast %44 : vector<1x384x64xbf16> to vector<384x64xbf16>
    %cst_18 = arith.constant dense<0.000000e+00> : vector<128x64xf32>
    %46 = tpu.matmul %43, %45, %cst_18 {dimension_numbers = #tpu.dot_dimension_numbers<[1], [0], [0], [1], [0, 0, 1, 1], [], []>} : vector<128x384xbf16>, vector<384x64xbf16>, vector<128x64xf32> -> vector<128x64xf32>
    %47 = arith.addf %41, %46 : vector<128x64xf32>
    %48 = vector.extract_strided_slice %36 {offsets = [0, 2, 0, 0], sizes = [2, 8, 8, 384], strides = [1, 1, 1, 1]} : vector<2x10x8x384xbf16> to vector<2x8x8x384xbf16>
    %49 = vector.shape_cast %48 : vector<2x8x8x384xbf16> to vector<128x384xbf16>
    %50 = vector.extract_strided_slice %28 {offsets = [2, 0, 0], sizes = [1, 384, 64], strides = [1, 1, 1]} : vector<3x384x64xbf16> to vector<1x384x64xbf16>
    %51 = vector.shape_cast %50 : vector<1x384x64xbf16> to vector<384x64xbf16>
    %cst_19 = arith.constant dense<0.000000e+00> : vector<128x64xf32>
    %52 = tpu.matmul %49, %51, %cst_19 {dimension_numbers = #tpu.dot_dimension_numbers<[1], [0], [0], [1], [0, 0, 1, 1], [], []>} : vector<128x384xbf16>, vector<384x64xbf16>, vector<128x64xf32> -> vector<128x64xf32>
    %53 = arith.addf %47, %52 : vector<128x64xf32>
    %c0_20 = arith.constant 0 : index
    %c0_21 = arith.constant 0 : index
    %c0_22 = arith.constant 0 : index
    %54 = vector.load %arg5[%c0_20, %c0_21, %c0_22] : memref<1x1x64xf32, #tpu.memory_space<vmem>>, vector<1x1x64xf32>
    %55 = vector.shape_cast %54 : vector<1x1x64xf32> to vector<1x64xf32>
    %c0_23 = arith.constant 0 : index
    %c0_24 = arith.constant 0 : index
    %c0_25 = arith.constant 0 : index
    %56 = vector.load %arg6[%c0_23, %c0_24, %c0_25] : memref<1x1x64xf32, #tpu.memory_space<vmem>>, vector<1x1x64xf32>
    %57 = vector.shape_cast %56 : vector<1x1x64xf32> to vector<1x64xf32>
    %cst_26 = arith.constant dense<0.000000e+00> : vector<64xf32>
    %58 = vector.multi_reduction <add>, %53, %cst_26 [0] : vector<128x64xf32> to vector<64xf32>
    %59 = vector.shape_cast %58 : vector<64xf32> to vector<1x64xf32>
    %cst_27 = arith.constant 7.812500e-03 : f32
    %60 = vector.broadcast %cst_27 : f32 to vector<1x64xf32>
    %61 = arith.mulf %59, %60 : vector<1x64xf32>
    %62 = vector.broadcast %61 : vector<1x64xf32> to vector<128x64xf32>
    %63 = arith.subf %53, %62 : vector<128x64xf32>
    %64 = arith.mulf %63, %63 : vector<128x64xf32>
    %cst_28 = arith.constant dense<0.000000e+00> : vector<64xf32>
    %65 = vector.multi_reduction <add>, %64, %cst_28 [0] : vector<128x64xf32> to vector<64xf32>
    %66 = vector.shape_cast %65 : vector<64xf32> to vector<1x64xf32>
    %cst_29 = arith.constant 7.812500e-03 : f32
    %67 = vector.broadcast %cst_29 : f32 to vector<1x64xf32>
    %68 = arith.mulf %66, %67 : vector<1x64xf32>
    %cst_30 = arith.constant 8.000000e-01 : f32
    %69 = vector.broadcast %cst_30 : f32 to vector<1x64xf32>
    %70 = arith.addf %68, %69 : vector<1x64xf32>
    %71 = math.rsqrt %70 : vector<1x64xf32>
    %72 = vector.broadcast %71 : vector<1x64xf32> to vector<128x64xf32>
    %73 = arith.mulf %63, %72 : vector<128x64xf32>
    %74 = vector.broadcast %55 : vector<1x64xf32> to vector<128x64xf32>
    %75 = arith.mulf %73, %74 : vector<128x64xf32>
    %76 = vector.broadcast %57 : vector<1x64xf32> to vector<128x64xf32>
    %77 = arith.addf %75, %76 : vector<128x64xf32>
    %cst_31 = arith.constant 0.000000e+00 : f32
    %78 = vector.broadcast %cst_31 : f32 to vector<128x64xf32>
    %79 = arith.cmpf oge, %77, %78 : vector<128x64xf32>
    %cst_32 = arith.constant 2.000000e-01 : f32
    %80 = vector.broadcast %cst_32 : f32 to vector<128x64xf32>
    %81 = arith.mulf %80, %77 : vector<128x64xf32>
    %82 = arith.select %79, %77, %81 : vector<128x64xi1>, vector<128x64xf32>
    %83 = vector.shape_cast %82 : vector<128x64xf32> to vector<2x8x8x64xf32>
    %84 = arith.truncf %83 : vector<2x8x8x64xf32> to vector<2x8x8x64xbf16>
    %c0_33 = arith.constant 0 : index
    %c0_34 = arith.constant 0 : index
    %c0_35 = arith.constant 0 : index
    %c0_36 = arith.constant 0 : index
    %c0_37 = arith.constant 0 : index
    %85 = vector.load %arg7[%c0_33, %c0_34, %c0_35, %c0_36, %c0_37] : memref<1x2x8x8x64xbf16, #tpu.memory_space<vmem>>, vector<1x2x8x8x64xbf16>
    %86 = vector.shape_cast %85 : vector<1x2x8x8x64xbf16> to vector<2x8x8x64xbf16>
    %87 = vector.shape_cast %84 : vector<2x8x8x64xbf16> to vector<1x2x8x8x64xbf16>
    tpu.vector_store %arg7[%c0_33, %c0_34, %c0_35, %c0_36, %c0_37], %87 {strides = array<i32>} : memref<1x2x8x8x64xbf16, #tpu.memory_space<vmem>>, vector<1x2x8x8x64xbf16>,
    return
  }
  func.func @transform_0(%arg0: i32) -> (i32, i32, i32, i32) {
    %c0_i32 = arith.constant 0 : i32
    %c0_i32_0 = arith.constant 0 : i32
    %c0_i32_1 = arith.constant 0 : i32
    %c0_i32_2 = arith.constant 0 : i32
    %c0_i32_3 = arith.constant 0 : i32
    return %c0_i32, %c0_i32_0, %c0_i32_1, %c0_i32_2 : i32, i32, i32, i32
  }
  func.func @transform_1(%arg0: i32) -> (i32, i32) {
    %c0_i32 = arith.constant 0 : i32
    %c0_i32_0 = arith.constant 0 : i32
    %c0_i32_1 = arith.constant 0 : i32
    return %c0_i32, %c0_i32_0 : i32, i32
  }
  func.func @transform_2(%arg0: i32) -> (i32, i32) {
    %c0_i32 = arith.constant 0 : i32
    %c0_i32_0 = arith.constant 0 : i32
    %c0_i32_1 = arith.constant 0 : i32
    return %c0_i32, %c0_i32_0 : i32, i32
  }
  func.func @transform_3(%arg0: i32) -> (i32, i32, i32, i32) {
    %c0_i32 = arith.constant 0 : i32
    %c0_i32_0 = arith.constant 0 : i32
    %c0_i32_1 = arith.constant 0 : i32
    %c0_i32_2 = arith.constant 0 : i32
    return %arg0, %c0_i32, %c0_i32_0, %c0_i32_1 : i32, i32, i32, i32
  }
  func.func @transform_4(%arg0: i32) -> (i32, i32, i32) {
    %c0_i32 = arith.constant 0 : i32
    %c0_i32_0 = arith.constant 0 : i32
    %c0_i32_1 = arith.constant 0 : i32
    return %arg0, %c0_i32, %c0_i32_0 : i32, i32, i32
  }
  func.func @transform_5(%arg0: i32) -> (i32, i32, i32) {
    %c0_i32 = arith.constant 0 : i32
    %c0_i32_0 = arith.constant 0 : i32
    %c0_i32_1 = arith.constant 0 : i32
    return %arg0, %c0_i32, %c0_i32_0 : i32, i32, i32
  }
  func.func @transform_6(%arg0: i32) -> (i32, i32, i32, i32, i32) {
    %c0_i32 = arith.constant 0 : i32
    %c0_i32_0 = arith.constant 0 : i32
    %c0_i32_1 = arith.constant 0 : i32
    %c0_i32_2 = arith.constant 0 : i32
    %c0_i32_3 = arith.constant 0 : i32
    return %arg0, %c0_i32, %c0_i32_0, %c0_i32_1, %c0_i32_2 : i32, i32, i32, i32, i32
  }
}

module attributes {stable_mosaic.version = 11 : i64} {
  func.func @linear_kernel(%arg0: i32, %arg1: memref<2x32xf32, #tpu.memory_space<vmem>>, %arg2: memref<32x4096xbf16, #tpu.memory_space<vmem>>, %arg3: memref<1x4096xf32, #tpu.memory_space<vmem>>, %arg4: memref<2x4096xbf16, #tpu.memory_space<vmem>>) attributes {dimension_semantics = [#tpu.dimension_semantics<parallel>], iteration_bounds = array<i64: 2>, scalar_prefetch = 0 : i64, scratch_operands = 0 : i64, tpu.core_type = #tpu.core_type<tc>, window_params = [{pipeline_mode = #tpu.pipeline_mode<synchronous>, transform_indices = @transform_0, window_bounds = array<i64: 2, 32>}, {transform_indices = @transform_1, window_bounds = array<i64: 32, 4096>}, {transform_indices = @transform_2, window_bounds = array<i64: 1, 4096>}, {transform_indices = @transform_3, window_bounds = array<i64: 2, 4096>}]} {
    %c0 = arith.constant 0 : index
    %c0_0 = arith.constant 0 : index
    %0 = vector.load %arg1[%c0, %c0_0] : memref<2x32xf32, #tpu.memory_space<vmem>>, vector<2x32xf32>
    %1 = arith.truncf %0 : vector<2x32xf32> to vector<2x32xbf16>
    %c0_1 = arith.constant 0 : index
    %c0_2 = arith.constant 0 : index
    %2 = vector.load %arg2[%c0_1, %c0_2] : memref<32x4096xbf16, #tpu.memory_space<vmem>>, vector<32x4096xbf16>
    %cst = arith.constant dense<0.000000e+00> : vector<2x4096xf32>
    %3 = tpu.matmul %1, %2, %cst {dimension_numbers = #tpu.dot_dimension_numbers<[1], [0], [0], [1], [0, 0, 1, 1], [], []>} : vector<2x32xbf16>, vector<32x4096xbf16>, vector<2x4096xf32> -> vector<2x4096xf32>
    %c0_3 = arith.constant 0 : index
    %c0_4 = arith.constant 0 : index
    %4 = vector.load %arg3[%c0_3, %c0_4] : memref<1x4096xf32, #tpu.memory_space<vmem>>, vector<1x4096xf32>
    %5 = vector.broadcast %4 : vector<1x4096xf32> to vector<2x4096xf32>
    %6 = arith.addf %3, %5 : vector<2x4096xf32>
    %7 = arith.truncf %6 : vector<2x4096xf32> to vector<2x4096xbf16>
    %c0_5 = arith.constant 0 : index
    %c0_6 = arith.constant 0 : index
    %8 = vector.load %arg4[%c0_5, %c0_6] : memref<2x4096xbf16, #tpu.memory_space<vmem>>, vector<2x4096xbf16>
    tpu.vector_store %arg4[%c0_5, %c0_6], %7 {strides = array<i32>} : memref<2x4096xbf16, #tpu.memory_space<vmem>>, vector<2x4096xbf16>,
    return
  }
  func.func @transform_0(%arg0: i32) -> (i32, i32) {
    %c0_i32 = arith.constant 0 : i32
    %c0_i32_0 = arith.constant 0 : i32
    %c0_i32_1 = arith.constant 0 : i32
    return %c0_i32, %c0_i32_0 : i32, i32
  }
  func.func @transform_1(%arg0: i32) -> (i32, i32) {
    %c0_i32 = arith.constant 0 : i32
    %c0_i32_0 = arith.constant 0 : i32
    return %c0_i32, %arg0 : i32, i32
  }
  func.func @transform_2(%arg0: i32) -> (i32, i32) {
    %c0_i32 = arith.constant 0 : i32
    %c0_i32_0 = arith.constant 0 : i32
    return %c0_i32, %arg0 : i32, i32
  }
  func.func @transform_3(%arg0: i32) -> (i32, i32) {
    %c0_i32 = arith.constant 0 : i32
    %c0_i32_0 = arith.constant 0 : i32
    return %c0_i32, %arg0 : i32, i32
  }
}

module attributes {stable_mosaic.version = 11 : i64} {
  func.func @conv_bn_lrelu_kernel(%arg0: i32, %arg1: memref<2x16x16x128xbf16, #tpu.memory_space<vmem>>, %arg2: memref<3x384x64xbf16, #tpu.memory_space<vmem>>, %arg3: memref<1x64xf32, #tpu.memory_space<vmem>>, %arg4: memref<1x64xf32, #tpu.memory_space<vmem>>, %arg5: memref<2x16x16x64xbf16, #tpu.memory_space<vmem>>) attributes {dimension_semantics = [#tpu.dimension_semantics<arbitrary>], iteration_bounds = array<i64: 1>, scalar_prefetch = 0 : i64, scratch_operands = 0 : i64, tpu.core_type = #tpu.core_type<tc>, window_params = [{pipeline_mode = #tpu.pipeline_mode<synchronous>, transform_indices = @transform_0, window_bounds = array<i64: 2, 16, 16, 128>}, {pipeline_mode = #tpu.pipeline_mode<synchronous>, transform_indices = @transform_1, window_bounds = array<i64: 3, 384, 64>}, {pipeline_mode = #tpu.pipeline_mode<synchronous>, transform_indices = @transform_2, window_bounds = array<i64: 1, 64>}, {pipeline_mode = #tpu.pipeline_mode<synchronous>, transform_indices = @transform_3, window_bounds = array<i64: 1, 64>}, {pipeline_mode = #tpu.pipeline_mode<synchronous>, transform_indices = @transform_4, window_bounds = array<i64: 2, 16, 16, 64>}]} {
    %c0 = arith.constant 0 : index
    %c0_0 = arith.constant 0 : index
    %c0_1 = arith.constant 0 : index
    %c0_2 = arith.constant 0 : index
    %0 = vector.load %arg1[%c0, %c0_0, %c0_1, %c0_2] : memref<2x16x16x128xbf16, #tpu.memory_space<vmem>>, vector<2x16x16x128xbf16>
    %c0_3 = arith.constant 0 : index
    %c0_4 = arith.constant 0 : index
    %c0_5 = arith.constant 0 : index
    %1 = vector.load %arg2[%c0_3, %c0_4, %c0_5] : memref<3x384x64xbf16, #tpu.memory_space<vmem>>, vector<3x384x64xbf16>
    %cst = arith.constant 0.000000e+00 : bf16
    %2 = vector.broadcast %cst : bf16 to vector<2x16x1x128xbf16>
    %3 = tpu.concatenate %2, %0, %2 in 2 : vector<2x16x1x128xbf16>, vector<2x16x16x128xbf16>, vector<2x16x1x128xbf16> -> vector<2x16x18x128xbf16>
    %4 = vector.extract_strided_slice %3 {offsets = [0, 0, 0, 0], sizes = [2, 16, 16, 128], strides = [1, 1, 1, 1]} : vector<2x16x18x128xbf16> to vector<2x16x16x128xbf16>
    %5 = vector.extract_strided_slice %3 {offsets = [0, 0, 1, 0], sizes = [2, 16, 16, 128], strides = [1, 1, 1, 1]} : vector<2x16x18x128xbf16> to vector<2x16x16x128xbf16>
    %6 = vector.extract_strided_slice %3 {offsets = [0, 0, 2, 0], sizes = [2, 16, 16, 128], strides = [1, 1, 1, 1]} : vector<2x16x18x128xbf16> to vector<2x16x16x128xbf16>
    %7 = tpu.concatenate %4, %5, %6 in 3 : vector<2x16x16x128xbf16>, vector<2x16x16x128xbf16>, vector<2x16x16x128xbf16> -> vector<2x16x16x384xbf16>
    %cst_6 = arith.constant 0.000000e+00 : bf16
    %8 = vector.broadcast %cst_6 : bf16 to vector<2x1x16x384xbf16>
    %9 = tpu.concatenate %8, %7, %8 in 1 : vector<2x1x16x384xbf16>, vector<2x16x16x384xbf16>, vector<2x1x16x384xbf16> -> vector<2x18x16x384xbf16>
    %10 = vector.extract_strided_slice %9 {offsets = [0, 0, 0, 0], sizes = [2, 16, 16, 384], strides = [1, 1, 1, 1]} : vector<2x18x16x384xbf16> to vector<2x16x16x384xbf16>
    %11 = vector.shape_cast %10 : vector<2x16x16x384xbf16> to vector<512x384xbf16>
    %12 = vector.extract_strided_slice %1 {offsets = [0, 0, 0], sizes = [1, 384, 64], strides = [1, 1, 1]} : vector<3x384x64xbf16> to vector<1x384x64xbf16>
    %13 = vector.shape_cast %12 : vector<1x384x64xbf16> to vector<384x64xbf16>
    %cst_7 = arith.constant dense<0.000000e+00> : vector<512x64xf32>
    %14 = tpu.matmul %11, %13, %cst_7 {dimension_numbers = #tpu.dot_dimension_numbers<[1], [0], [0], [1], [0, 0, 1, 1], [], []>} : vector<512x384xbf16>, vector<384x64xbf16>, vector<512x64xf32> -> vector<512x64xf32>
    %15 = vector.extract_strided_slice %9 {offsets = [0, 1, 0, 0], sizes = [2, 16, 16, 384], strides = [1, 1, 1, 1]} : vector<2x18x16x384xbf16> to vector<2x16x16x384xbf16>
    %16 = vector.shape_cast %15 : vector<2x16x16x384xbf16> to vector<512x384xbf16>
    %17 = vector.extract_strided_slice %1 {offsets = [1, 0, 0], sizes = [1, 384, 64], strides = [1, 1, 1]} : vector<3x384x64xbf16> to vector<1x384x64xbf16>
    %18 = vector.shape_cast %17 : vector<1x384x64xbf16> to vector<384x64xbf16>
    %cst_8 = arith.constant dense<0.000000e+00> : vector<512x64xf32>
    %19 = tpu.matmul %16, %18, %cst_8 {dimension_numbers = #tpu.dot_dimension_numbers<[1], [0], [0], [1], [0, 0, 1, 1], [], []>} : vector<512x384xbf16>, vector<384x64xbf16>, vector<512x64xf32> -> vector<512x64xf32>
    %20 = arith.addf %14, %19 : vector<512x64xf32>
    %21 = vector.extract_strided_slice %9 {offsets = [0, 2, 0, 0], sizes = [2, 16, 16, 384], strides = [1, 1, 1, 1]} : vector<2x18x16x384xbf16> to vector<2x16x16x384xbf16>
    %22 = vector.shape_cast %21 : vector<2x16x16x384xbf16> to vector<512x384xbf16>
    %23 = vector.extract_strided_slice %1 {offsets = [2, 0, 0], sizes = [1, 384, 64], strides = [1, 1, 1]} : vector<3x384x64xbf16> to vector<1x384x64xbf16>
    %24 = vector.shape_cast %23 : vector<1x384x64xbf16> to vector<384x64xbf16>
    %cst_9 = arith.constant dense<0.000000e+00> : vector<512x64xf32>
    %25 = tpu.matmul %22, %24, %cst_9 {dimension_numbers = #tpu.dot_dimension_numbers<[1], [0], [0], [1], [0, 0, 1, 1], [], []>} : vector<512x384xbf16>, vector<384x64xbf16>, vector<512x64xf32> -> vector<512x64xf32>
    %26 = arith.addf %20, %25 : vector<512x64xf32>
    %c0_10 = arith.constant 0 : index
    %c0_11 = arith.constant 0 : index
    %27 = vector.load %arg3[%c0_10, %c0_11] : memref<1x64xf32, #tpu.memory_space<vmem>>, vector<1x64xf32>
    %c0_12 = arith.constant 0 : index
    %c0_13 = arith.constant 0 : index
    %28 = vector.load %arg4[%c0_12, %c0_13] : memref<1x64xf32, #tpu.memory_space<vmem>>, vector<1x64xf32>
    %cst_14 = arith.constant dense<0.000000e+00> : vector<64xf32>
    %29 = vector.multi_reduction <add>, %26, %cst_14 [0] : vector<512x64xf32> to vector<64xf32>
    %30 = vector.shape_cast %29 : vector<64xf32> to vector<1x64xf32>
    %cst_15 = arith.constant 0.001953125 : f32
    %31 = vector.broadcast %cst_15 : f32 to vector<1x64xf32>
    %32 = arith.mulf %30, %31 : vector<1x64xf32>
    %33 = vector.broadcast %32 : vector<1x64xf32> to vector<512x64xf32>
    %34 = arith.subf %26, %33 : vector<512x64xf32>
    %35 = arith.mulf %34, %34 : vector<512x64xf32>
    %cst_16 = arith.constant dense<0.000000e+00> : vector<64xf32>
    %36 = vector.multi_reduction <add>, %35, %cst_16 [0] : vector<512x64xf32> to vector<64xf32>
    %37 = vector.shape_cast %36 : vector<64xf32> to vector<1x64xf32>
    %cst_17 = arith.constant 0.001953125 : f32
    %38 = vector.broadcast %cst_17 : f32 to vector<1x64xf32>
    %39 = arith.mulf %37, %38 : vector<1x64xf32>
    %cst_18 = arith.constant 8.000000e-01 : f32
    %40 = vector.broadcast %cst_18 : f32 to vector<1x64xf32>
    %41 = arith.addf %39, %40 : vector<1x64xf32>
    %42 = math.rsqrt %41 : vector<1x64xf32>
    %43 = vector.broadcast %42 : vector<1x64xf32> to vector<512x64xf32>
    %44 = arith.mulf %34, %43 : vector<512x64xf32>
    %45 = vector.broadcast %27 : vector<1x64xf32> to vector<512x64xf32>
    %46 = arith.mulf %44, %45 : vector<512x64xf32>
    %47 = vector.broadcast %28 : vector<1x64xf32> to vector<512x64xf32>
    %48 = arith.addf %46, %47 : vector<512x64xf32>
    %cst_19 = arith.constant 0.000000e+00 : f32
    %49 = vector.broadcast %cst_19 : f32 to vector<512x64xf32>
    %50 = arith.cmpf oge, %48, %49 : vector<512x64xf32>
    %cst_20 = arith.constant 2.000000e-01 : f32
    %51 = vector.broadcast %cst_20 : f32 to vector<512x64xf32>
    %52 = arith.mulf %51, %48 : vector<512x64xf32>
    %53 = arith.select %50, %48, %52 : vector<512x64xi1>, vector<512x64xf32>
    %54 = vector.shape_cast %53 : vector<512x64xf32> to vector<2x16x16x64xf32>
    %55 = arith.truncf %54 : vector<2x16x16x64xf32> to vector<2x16x16x64xbf16>
    %c0_21 = arith.constant 0 : index
    %c0_22 = arith.constant 0 : index
    %c0_23 = arith.constant 0 : index
    %c0_24 = arith.constant 0 : index
    %56 = vector.load %arg5[%c0_21, %c0_22, %c0_23, %c0_24] : memref<2x16x16x64xbf16, #tpu.memory_space<vmem>>, vector<2x16x16x64xbf16>
    tpu.vector_store %arg5[%c0_21, %c0_22, %c0_23, %c0_24], %55 {strides = array<i32>} : memref<2x16x16x64xbf16, #tpu.memory_space<vmem>>, vector<2x16x16x64xbf16>,
    return
  }
  func.func @transform_0(%arg0: i32) -> (i32, i32, i32, i32) {
    %c0_i32 = arith.constant 0 : i32
    %c0_i32_0 = arith.constant 0 : i32
    %c0_i32_1 = arith.constant 0 : i32
    %c0_i32_2 = arith.constant 0 : i32
    %c0_i32_3 = arith.constant 0 : i32
    return %c0_i32, %c0_i32_0, %c0_i32_1, %c0_i32_2 : i32, i32, i32, i32
  }
  func.func @transform_1(%arg0: i32) -> (i32, i32, i32) {
    %c0_i32 = arith.constant 0 : i32
    %c0_i32_0 = arith.constant 0 : i32
    %c0_i32_1 = arith.constant 0 : i32
    %c0_i32_2 = arith.constant 0 : i32
    return %c0_i32, %c0_i32_0, %c0_i32_1 : i32, i32, i32
  }
  func.func @transform_2(%arg0: i32) -> (i32, i32) {
    %c0_i32 = arith.constant 0 : i32
    %c0_i32_0 = arith.constant 0 : i32
    %c0_i32_1 = arith.constant 0 : i32
    return %c0_i32, %c0_i32_0 : i32, i32
  }
  func.func @transform_3(%arg0: i32) -> (i32, i32) {
    %c0_i32 = arith.constant 0 : i32
    %c0_i32_0 = arith.constant 0 : i32
    %c0_i32_1 = arith.constant 0 : i32
    return %c0_i32, %c0_i32_0 : i32, i32
  }
  func.func @transform_4(%arg0: i32) -> (i32, i32, i32, i32) {
    %c0_i32 = arith.constant 0 : i32
    %c0_i32_0 = arith.constant 0 : i32
    %c0_i32_1 = arith.constant 0 : i32
    %c0_i32_2 = arith.constant 0 : i32
    %c0_i32_3 = arith.constant 0 : i32
    return %c0_i32, %c0_i32_0, %c0_i32_1, %c0_i32_2 : i32, i32, i32, i32
  }
}

module attributes {stable_mosaic.version = 11 : i64} {
  func.func @conv_tanh_bn_kernel(%arg0: i32, %arg1: memref<2x16x16x64xbf16, #tpu.memory_space<vmem>>, %arg2: memref<3x3x192xbf16, #tpu.memory_space<vmem>>, %arg3: memref<3x1xf32, #tpu.memory_space<vmem>>, %arg4: memref<2x3x256xf32, #tpu.memory_space<vmem>>) attributes {dimension_semantics = [#tpu.dimension_semantics<arbitrary>], iteration_bounds = array<i64: 1>, scalar_prefetch = 0 : i64, scratch_operands = 0 : i64, tpu.core_type = #tpu.core_type<tc>, window_params = [{pipeline_mode = #tpu.pipeline_mode<synchronous>, transform_indices = @transform_0, window_bounds = array<i64: 2, 16, 16, 64>}, {pipeline_mode = #tpu.pipeline_mode<synchronous>, transform_indices = @transform_1, window_bounds = array<i64: 3, 3, 192>}, {pipeline_mode = #tpu.pipeline_mode<synchronous>, transform_indices = @transform_2, window_bounds = array<i64: 3, 1>}, {pipeline_mode = #tpu.pipeline_mode<synchronous>, transform_indices = @transform_3, window_bounds = array<i64: 2, 3, 256>}]} {
    %c0 = arith.constant 0 : index
    %c0_0 = arith.constant 0 : index
    %c0_1 = arith.constant 0 : index
    %c0_2 = arith.constant 0 : index
    %0 = vector.load %arg1[%c0, %c0_0, %c0_1, %c0_2] : memref<2x16x16x64xbf16, #tpu.memory_space<vmem>>, vector<2x16x16x64xbf16>
    %cst = arith.constant 0.000000e+00 : bf16
    %1 = vector.broadcast %cst : bf16 to vector<2x16x1x64xbf16>
    %2 = tpu.concatenate %1, %0, %1 in 2 : vector<2x16x1x64xbf16>, vector<2x16x16x64xbf16>, vector<2x16x1x64xbf16> -> vector<2x16x18x64xbf16>
    %3 = vector.extract_strided_slice %2 {offsets = [0, 0, 0, 0], sizes = [2, 16, 16, 64], strides = [1, 1, 1, 1]} : vector<2x16x18x64xbf16> to vector<2x16x16x64xbf16>
    %4 = vector.extract_strided_slice %2 {offsets = [0, 0, 1, 0], sizes = [2, 16, 16, 64], strides = [1, 1, 1, 1]} : vector<2x16x18x64xbf16> to vector<2x16x16x64xbf16>
    %5 = vector.extract_strided_slice %2 {offsets = [0, 0, 2, 0], sizes = [2, 16, 16, 64], strides = [1, 1, 1, 1]} : vector<2x16x18x64xbf16> to vector<2x16x16x64xbf16>
    %6 = tpu.concatenate %3, %4, %5 in 3 : vector<2x16x16x64xbf16>, vector<2x16x16x64xbf16>, vector<2x16x16x64xbf16> -> vector<2x16x16x192xbf16>
    %cst_3 = arith.constant 0.000000e+00 : bf16
    %7 = vector.broadcast %cst_3 : bf16 to vector<2x1x16x192xbf16>
    %8 = tpu.concatenate %7, %6, %7 in 1 : vector<2x1x16x192xbf16>, vector<2x16x16x192xbf16>, vector<2x1x16x192xbf16> -> vector<2x18x16x192xbf16>
    %c0_4 = arith.constant 0 : index
    %c0_5 = arith.constant 0 : index
    %c0_6 = arith.constant 0 : index
    %9 = vector.load %arg2[%c0_4, %c0_5, %c0_6] : memref<3x3x192xbf16, #tpu.memory_space<vmem>>, vector<3x3x192xbf16>
    %10 = vector.extract_strided_slice %8 {offsets = [0, 0, 0, 0], sizes = [2, 16, 16, 192], strides = [1, 1, 1, 1]} : vector<2x18x16x192xbf16> to vector<2x16x16x192xbf16>
    %11 = vector.shape_cast %10 : vector<2x16x16x192xbf16> to vector<512x192xbf16>
    %12 = vector.extract_strided_slice %9 {offsets = [0, 0, 0], sizes = [1, 3, 192], strides = [1, 1, 1]} : vector<3x3x192xbf16> to vector<1x3x192xbf16>
    %13 = vector.shape_cast %12 : vector<1x3x192xbf16> to vector<3x192xbf16>
    %cst_7 = arith.constant dense<0.000000e+00> : vector<3x512xf32>
    %14 = tpu.matmul %13, %11, %cst_7 {dimension_numbers = #tpu.dot_dimension_numbers<[1], [1], [0], [0], [0, 0, 1, 0], [], []>} : vector<3x192xbf16>, vector<512x192xbf16>, vector<3x512xf32> -> vector<3x512xf32>
    %15 = vector.extract_strided_slice %8 {offsets = [0, 1, 0, 0], sizes = [2, 16, 16, 192], strides = [1, 1, 1, 1]} : vector<2x18x16x192xbf16> to vector<2x16x16x192xbf16>
    %16 = vector.shape_cast %15 : vector<2x16x16x192xbf16> to vector<512x192xbf16>
    %17 = vector.extract_strided_slice %9 {offsets = [1, 0, 0], sizes = [1, 3, 192], strides = [1, 1, 1]} : vector<3x3x192xbf16> to vector<1x3x192xbf16>
    %18 = vector.shape_cast %17 : vector<1x3x192xbf16> to vector<3x192xbf16>
    %cst_8 = arith.constant dense<0.000000e+00> : vector<3x512xf32>
    %19 = tpu.matmul %18, %16, %cst_8 {dimension_numbers = #tpu.dot_dimension_numbers<[1], [1], [0], [0], [0, 0, 1, 0], [], []>} : vector<3x192xbf16>, vector<512x192xbf16>, vector<3x512xf32> -> vector<3x512xf32>
    %20 = arith.addf %14, %19 : vector<3x512xf32>
    %21 = vector.extract_strided_slice %8 {offsets = [0, 2, 0, 0], sizes = [2, 16, 16, 192], strides = [1, 1, 1, 1]} : vector<2x18x16x192xbf16> to vector<2x16x16x192xbf16>
    %22 = vector.shape_cast %21 : vector<2x16x16x192xbf16> to vector<512x192xbf16>
    %23 = vector.extract_strided_slice %9 {offsets = [2, 0, 0], sizes = [1, 3, 192], strides = [1, 1, 1]} : vector<3x3x192xbf16> to vector<1x3x192xbf16>
    %24 = vector.shape_cast %23 : vector<1x3x192xbf16> to vector<3x192xbf16>
    %cst_9 = arith.constant dense<0.000000e+00> : vector<3x512xf32>
    %25 = tpu.matmul %24, %22, %cst_9 {dimension_numbers = #tpu.dot_dimension_numbers<[1], [1], [0], [0], [0, 0, 1, 0], [], []>} : vector<3x192xbf16>, vector<512x192xbf16>, vector<3x512xf32> -> vector<3x512xf32>
    %26 = arith.addf %20, %25 : vector<3x512xf32>
    %c0_10 = arith.constant 0 : index
    %c0_11 = arith.constant 0 : index
    %27 = vector.load %arg3[%c0_10, %c0_11] : memref<3x1xf32, #tpu.memory_space<vmem>>, vector<3x1xf32>
    %28 = vector.broadcast %27 : vector<3x1xf32> to vector<3x512xf32>
    %29 = arith.addf %26, %28 : vector<3x512xf32>
    %30 = math.tanh %29 : vector<3x512xf32>
    %cst_12 = arith.constant dense<0.000000e+00> : vector<3xf32>
    %31 = vector.multi_reduction <add>, %30, %cst_12 [1] : vector<3x512xf32> to vector<3xf32>
    %32 = vector.shape_cast %31 : vector<3xf32> to vector<3x1xf32>
    %cst_13 = arith.constant 0.001953125 : f32
    %33 = vector.broadcast %cst_13 : f32 to vector<3x1xf32>
    %34 = arith.mulf %32, %33 : vector<3x1xf32>
    %35 = vector.broadcast %34 : vector<3x1xf32> to vector<3x512xf32>
    %36 = arith.subf %30, %35 : vector<3x512xf32>
    %37 = arith.mulf %36, %36 : vector<3x512xf32>
    %cst_14 = arith.constant dense<0.000000e+00> : vector<3xf32>
    %38 = vector.multi_reduction <add>, %37, %cst_14 [1] : vector<3x512xf32> to vector<3xf32>
    %39 = vector.shape_cast %38 : vector<3xf32> to vector<3x1xf32>
    %cst_15 = arith.constant 0.001953125 : f32
    %40 = vector.broadcast %cst_15 : f32 to vector<3x1xf32>
    %41 = arith.mulf %39, %40 : vector<3x1xf32>
    %cst_16 = arith.constant 9.99999974E-6 : f32
    %42 = vector.broadcast %cst_16 : f32 to vector<3x1xf32>
    %43 = arith.addf %41, %42 : vector<3x1xf32>
    %44 = math.rsqrt %43 : vector<3x1xf32>
    %45 = vector.broadcast %44 : vector<3x1xf32> to vector<3x512xf32>
    %46 = arith.mulf %36, %45 : vector<3x512xf32>
    %47 = vector.extract_strided_slice %46 {offsets = [0, 0], sizes = [3, 256], strides = [1, 1]} : vector<3x512xf32> to vector<3x256xf32>
    %c0_17 = arith.constant 0 : index
    %c0_18 = arith.constant 0 : index
    %c0_19 = arith.constant 0 : index
    %48 = vector.load %arg4[%c0_17, %c0_18, %c0_19] : memref<2x3x256xf32, #tpu.memory_space<vmem>>, vector<1x3x256xf32>
    %49 = vector.shape_cast %48 : vector<1x3x256xf32> to vector<3x256xf32>
    %50 = vector.shape_cast %47 : vector<3x256xf32> to vector<1x3x256xf32>
    tpu.vector_store %arg4[%c0_17, %c0_18, %c0_19], %50 {strides = array<i32>} : memref<2x3x256xf32, #tpu.memory_space<vmem>>, vector<1x3x256xf32>,
    %51 = vector.extract_strided_slice %46 {offsets = [0, 256], sizes = [3, 256], strides = [1, 1]} : vector<3x512xf32> to vector<3x256xf32>
    %c1 = arith.constant 1 : index
    %c0_20 = arith.constant 0 : index
    %c0_21 = arith.constant 0 : index
    %52 = vector.load %arg4[%c1, %c0_20, %c0_21] : memref<2x3x256xf32, #tpu.memory_space<vmem>>, vector<1x3x256xf32>
    %53 = vector.shape_cast %52 : vector<1x3x256xf32> to vector<3x256xf32>
    %54 = vector.shape_cast %51 : vector<3x256xf32> to vector<1x3x256xf32>
    tpu.vector_store %arg4[%c1, %c0_20, %c0_21], %54 {strides = array<i32>} : memref<2x3x256xf32, #tpu.memory_space<vmem>>, vector<1x3x256xf32>,
    return
  }
  func.func @transform_0(%arg0: i32) -> (i32, i32, i32, i32) {
    %c0_i32 = arith.constant 0 : i32
    %c0_i32_0 = arith.constant 0 : i32
    %c0_i32_1 = arith.constant 0 : i32
    %c0_i32_2 = arith.constant 0 : i32
    %c0_i32_3 = arith.constant 0 : i32
    return %c0_i32, %c0_i32_0, %c0_i32_1, %c0_i32_2 : i32, i32, i32, i32
  }
  func.func @transform_1(%arg0: i32) -> (i32, i32, i32) {
    %c0_i32 = arith.constant 0 : i32
    %c0_i32_0 = arith.constant 0 : i32
    %c0_i32_1 = arith.constant 0 : i32
    %c0_i32_2 = arith.constant 0 : i32
    return %c0_i32, %c0_i32_0, %c0_i32_1 : i32, i32, i32
  }
  func.func @transform_2(%arg0: i32) -> (i32, i32) {
    %c0_i32 = arith.constant 0 : i32
    %c0_i32_0 = arith.constant 0 : i32
    %c0_i32_1 = arith.constant 0 : i32
    return %c0_i32, %c0_i32_0 : i32, i32
  }
  func.func @transform_3(%arg0: i32) -> (i32, i32, i32) {
    %c0_i32 = arith.constant 0 : i32
    %c0_i32_0 = arith.constant 0 : i32
    %c0_i32_1 = arith.constant 0 : i32
    %c0_i32_2 = arith.constant 0 : i32
    return %c0_i32, %c0_i32_0, %c0_i32_1 : i32, i32, i32
  }
}

</mosaic_0001>

<llo_original>
// kernel: generator_forward.4
$region0: #{generator_forward.4}
  #allocation0 [shape = 'u32[]', space=smem, size = 0x4, offset = 0x4, fixed_abs, tag = 'smem constant byte address 0x4 - core index']
  #allocation1 [shape = 'u32[72,128]{1,0:T(1,128)}', space=vmem, size = 0x9000, scoped, tag = 'internal scratch']
  %s0 = inlined_call_operand.vmem [shape: f32[2,32], index: 0, kind: input, shape index: {}]
  %s1 = inlined_call_operand.vmem [shape: bf16[32,8192], index: 1, kind: input, shape index: {}]
  %s2 = inlined_call_operand.vmem [shape: f32[1,8192], index: 2, kind: input, shape index: {}]
  %s3 = inlined_call_operand.vmem [shape: bf16[2,8192], index: 3, kind: output, shape index: {}]
  %s4 = sld [smem:[#allocation0]]
  $region68: #{generator_forward.4} parent=0
    _
  %s6 = ssub.s32 1, %s4
  %s7 = scalar_select 0, %s6, %s4
  $region1: #{generator_forward.4} parent=0
    #allocation2 [shape = 'u8[524288]{0}', space=vmem, size = 0x80000, scoped, tag = 'input window, operand 1']
    loop: start=0, step=1, limit=4
    $region2: #{generator_forward.4} parent=1 // loop_pre_header
      _
    $region3: #{generator_forward.4} parent=1 // loop_header
      %s9 = sphi 0, %s13
      %p10 = scmp.ge.s32.totalorder %s9, 4
      %s17 = sphi 0, %s17
      %s19 = sphi 0, %s17
      %s20 = sphi 0, %s19
      %s34 = sphi 0, %s20
      %s40 = sphi 0, %s42
      %s43 = sphi 0, %s40
      %s44 = sphi 0, %s43
      %s60 = sphi 0, %s44
      %s66 = sphi 0, %s68
      %s69 = sphi 0, %s66
      %s70 = sphi 0, %s69
      %s86 = sphi 0, %s70
      %s92 = sphi 0, %s94
      %s95 = sphi 0, %s92
      %s96 = sphi 0, %s95
      %s112 = sphi 0, %s96
    $region4: #{generator_forward.4} parent=1 // loop_header_branch
      %12 = sbr.rel (%p10) target = $region8
    $region5: #{generator_forward.4} parent=1 // loop_body
      %s14 = ssub.s32 %s9, 1
      %s15 = ssub.s32 %s9, 2
      %s16 = sadd.s32 %s9, 1
      %s18 = sadd.s32 %s17, 1
      %p21 = scmp.eq.s32.totalorder %s9, 1
      %p22 = scmp.ne.s32.totalorder %s17, %s19
      %p23 = scmp.eq.s32.totalorder %s9, 0
      %p24 = por %p22, %p23
      %p25 = scmp.ne.s32.totalorder %s17, %s19
      %p26 = scmp.eq.s32.totalorder %s14, 1
      %p27 = por %p25, %p26
      %p28 = scmp.ne.s32.totalorder %s19, %s20
      %p29 = scmp.eq.s32.totalorder %s14, 0
      %p30 = por %p28, %p29
      %p31 = scmp.ne.s32.totalorder %s19, %s20
      %p32 = scmp.eq.s32.totalorder %s15, 1
      %p33 = por %p31, %p32
      %p35 = scmp.ne.s32.totalorder %s20, %s34
      %p36 = scmp.eq.s32.totalorder %s15, 0
      %p37 = por %p35, %p36
      %s38 = ssub.s32 %s9, %s16
      %p39 = scmp.eq.s32.totalorder %s38, 0
      %s41 = sadd.s32 %s40, 1
      %s42 = scalar_select %p39, %s40, %s41
      %p45 = pneg %p39
      %p46 = scmp.eq.s32.totalorder %s9, 1
      %p47 = por %p45, %p46
      %p48 = scmp.ne.s32.totalorder %s40, %s43
      %p49 = scmp.eq.s32.totalorder %s9, 0
      %p50 = por %p48, %p49
      %p51 = scmp.ne.s32.totalorder %s40, %s43
      %p52 = scmp.eq.s32.totalorder %s14, 1
      %p53 = por %p51, %p52
      %p54 = scmp.ne.s32.totalorder %s43, %s44
      %p55 = scmp.eq.s32.totalorder %s14, 0
      %p56 = por %p54, %p55
      %p57 = scmp.ne.s32.totalorder %s43, %s44
      %p58 = scmp.eq.s32.totalorder %s15, 1
      %p59 = por %p57, %p58
      %p61 = scmp.ne.s32.totalorder %s44, %s60
      %p62 = scmp.eq.s32.totalorder %s15, 0
      %p63 = por %p61, %p62
      %s64 = ssub.s32 %s9, %s16
      %p65 = scmp.eq.s32.totalorder %s64, 0
      %s67 = sadd.s32 %s66, 1
      %s68 = scalar_select %p65, %s66, %s67
      %p71 = pneg %p65
      %p72 = scmp.eq.s32.totalorder %s9, 1
      %p73 = por %p71, %p72
      %p74 = scmp.ne.s32.totalorder %s66, %s69
      %p75 = scmp.eq.s32.totalorder %s9, 0
      %p76 = por %p74, %p75
      %p77 = scmp.ne.s32.totalorder %s66, %s69
      %p78 = scmp.eq.s32.totalorder %s14, 1
      %p79 = por %p77, %p78
      %p80 = scmp.ne.s32.totalorder %s69, %s70
      %p81 = scmp.eq.s32.totalorder %s14, 0
      %p82 = por %p80, %p81
      %p83 = scmp.ne.s32.totalorder %s69, %s70
      %p84 = scmp.eq.s32.totalorder %s15, 1
      %p85 = por %p83, %p84
      %p87 = scmp.ne.s32.totalorder %s70, %s86
      %p88 = scmp.eq.s32.totalorder %s15, 0
      %p89 = por %p87, %p88
      %s90 = ssub.s32 %s9, %s16
      %p91 = scmp.eq.s32.totalorder %s90, 0
      %s93 = sadd.s32 %s92, 1
      %s94 = scalar_select %p91, %s92, %s93
      %p97 = pneg %p91
      %p98 = scmp.eq.s32.totalorder %s9, 1
      %p99 = por %p97, %p98
      %p100 = scmp.ne.s32.totalorder %s92, %s95
      %p101 = scmp.eq.s32.totalorder %s9, 0
      %p102 = por %p100, %p101
      %p103 = scmp.ne.s32.totalorder %s92, %s95
      %p104 = scmp.eq.s32.totalorder %s14, 1
      %p105 = por %p103, %p104
      %p106 = scmp.ne.s32.totalorder %s95, %s96
      %p107 = scmp.eq.s32.totalorder %s14, 0
      %p108 = por %p106, %p107
      %p109 = scmp.ne.s32.totalorder %s95, %s96
      %p110 = scmp.eq.s32.totalorder %s15, 1
      %p111 = por %p109, %p110
      %p113 = scmp.ne.s32.totalorder %s96, %s112
      %p114 = scmp.eq.s32.totalorder %s15, 0
      %p115 = por %p113, %p114
      %p116 = scmp.le.s32.totalorder 1, %s9
      %p117 = scmp.lt.s32.totalorder %s9, 3
      %p118 = pnand %p116, %p117
      %p119 = pneg %p118
      // Predicated region
      $region9: #{generator_forward.4} parent=5 // pred_check
        _
      $region10: #{generator_forward.4} parent=5 // pred_check_branch
        %121 = sbr.rel (%p118) target = $region12
      $region11: #{generator_forward.4} parent=5 // pred_region
        %s122 = ssub.s32 %s9, 1
        // Predicated region
        $region13: #{generator_forward.4} parent=11 // pred_check
          %p123 = pneg %p30
        $region14: #{generator_forward.4} parent=11 // pred_check_branch
          %125 = sbr.rel (%p123) target = $region16
        $region15: #{generator_forward.4} parent=11 // pred_region
          _
        $region16: #{generator_forward.4} parent=11 // pred_fallthru
          _
      $region12: #{generator_forward.4} parent=5 // pred_fallthru
        _
      %p126 = scmp.lt.s32.totalorder %s9, 2
      // Predicated region
      $region17: #{generator_forward.4} parent=5 // pred_check
        %p127 = pneg %p126
      $region18: #{generator_forward.4} parent=5 // pred_check_branch
        %129 = sbr.rel (%p127) target = $region20
      $region19: #{generator_forward.4} parent=5 // pred_region
        // Predicated region
        $region21: #{generator_forward.4} parent=19 // pred_check
          %p130 = pneg %p50
        $region22: #{generator_forward.4} parent=19 // pred_check_branch
          %132 = sbr.rel (%p130) target = $region24
        $region23: #{generator_forward.4} parent=19 // pred_region
          %s133 = sand.u32 %s40, 1
          %s134 = sand.u32 %s40, 1
          %s135 = smul.addr %s134, 512
          %s136 = scalar_lea.vmem [#allocation2], %s135
          %s137 = smul.u32 32, %s9
          %s138 = smul.addr %s137, 4
          %s139 = scalar_lea.vmem %s1, %s138
          // Predicated region
          $region25: #{generator_forward.4} parent=23 // pred_check
            _
          $region26: #{generator_forward.4} parent=23 // pred_check_branch
            %141 = sbr.rel (0) target = $region28
          $region27: #{generator_forward.4} parent=23 // pred_region
            // Predicated region
            $region29: #{generator_forward.4} parent=27 // pred_check
              _
            $region30: #{generator_forward.4} parent=27 // pred_check_branch
              %143 = sbr.rel (0) target = $region32
            $region31: #{generator_forward.4} parent=27 // pred_region
              loop: start=0, step=1, limit=1
              $region33: #{generator_forward.4} parent=31 // loop_pre_header
                _
              $region34: #{generator_forward.4} parent=31 // loop_header
                %s145 = sphi 0, %s149
                %p146 = scmp.ge.s32.totalorder %s145, 1
                %s150 = sphi %s139, %s139
                %s151 = sphi %s136, %s136
              $region35: #{generator_forward.4} parent=31 // loop_header_branch
                %148 = sbr.rel (%p146) target = $region39
              $region36: #{generator_forward.4} parent=31 // loop_body
                %v152 = vld [vmem:[%s150] sm:$0xff]
                %153 = vst [vmem:[%s151] sm:$0xff] %v152
                %v154 = vld [vmem:[%s150 + $0x8] sm:$0xff]
                %155 = vst [vmem:[%s151 + $0x8] sm:$0xff] %v154
                %v156 = vld [vmem:[%s150 + $0x10] sm:$0xff]
                %157 = vst [vmem:[%s151 + $0x10] sm:$0xff] %v156
                %v158 = vld [vmem:[%s150 + $0x18] sm:$0xff]
                %159 = vst [vmem:[%s151 + $0x18] sm:$0xff] %v158
                %v160 = vld [vmem:[%s150 + $0x20] sm:$0xff]
                %161 = vst [vmem:[%s151 + $0x20] sm:$0xff] %v160
                %v162 = vld [vmem:[%s150 + $0x28] sm:$0xff]
                %163 = vst [vmem:[%s151 + $0x28] sm:$0xff] %v162
                %v164 = vld [vmem:[%s150 + $0x30] sm:$0xff]
                %165 = vst [vmem:[%s151 + $0x30] sm:$0xff] %v164
                %v166 = vld [vmem:[%s150 + $0x38] sm:$0xff]
                %167 = vst [vmem:[%s151 + $0x38] sm:$0xff] %v166
                %v168 = vld [vmem:[%s150 + $0x40] sm:$0xff]
                %169 = vst [vmem:[%s151 + $0x40] sm:$0xff] %v168
                %v170 = vld [vmem:[%s150 + $0x48] sm:$0xff]
                %171 = vst [vmem:[%s151 + $0x48] sm:$0xff] %v170
                %v172 = vld [vmem:[%s150 + $0x50] sm:$0xff]
                %173 = vst [vmem:[%s151 + $0x50] sm:$0xff] %v172
                %v174 = vld [vmem:[%s150 + $0x58] sm:$0xff]
                %175 = vst [vmem:[%s151 + $0x58] sm:$0xff] %v174
                %v176 = vld [vmem:[%s150 + $0x60] sm:$0xff]
                %177 = vst [vmem:[%s151 + $0x60] sm:$0xff] %v176
                %v178 = vld [vmem:[%s150 + $0x68] sm:$0xff]
                %179 = vst [vmem:[%s151 + $0x68] sm:$0xff] %v178
                %v180 = vld [vmem:[%s150 + $0x70] sm:$0xff]
                %181 = vst [vmem:[%s151 + $0x70] sm:$0xff] %v180
                %v182 = vld [vmem:[%s150 + $0x78] sm:$0xff]
                %183 = vst [vmem:[%s151 + $0x78] sm:$0xff] %v182
                %v184 = vld [vmem:[%s150 + $0x100] sm:$0xff]
                %185 = vst [vmem:[%s151 + $0x80] sm:$0xff] %v184
                %v186 = vld [vmem:[%s150 + $0x108] sm:$0xff]
                %187 = vst [vmem:[%s151 + $0x88] sm:$0xff] %v186
                %v188 = vld [vmem:[%s150 + $0x110] sm:$0xff]
                %189 = vst [vmem:[%s151 + $0x90] sm:$0xff] %v188
                %v190 = vld [vmem:[%s150 + $0x118] sm:$0xff]
                %191 = vst [vmem:[%s151 + $0x98] sm:$0xff] %v190
                %v192 = vld [vmem:[%s150 + $0x120] sm:$0xff]
                %193 = vst [vmem:[%s151 + $0xa0] sm:$0xff] %v192
                %v194 = vld [vmem:[%s150 + $0x128] sm:$0xff]
                %195 = vst [vmem:[%s151 + $0xa8] sm:$0xff] %v194
                %v196 = vld [vmem:[%s150 + $0x130] sm:$0xff]
                %197 = vst [vmem:[%s151 + $0xb0] sm:$0xff] %v196
                %v198 = vld [vmem:[%s150 + $0x138] sm:$0xff]
                %199 = vst [vmem:[%s151 + $0xb8] sm:$0xff] %v198
                %v200 = vld [vmem:[%s150 + $0x140] sm:$0xff]
                %201 = vst [vmem:[%s151 + $0xc0] sm:$0xff] %v200
                %v202 = vld [vmem:[%s150 + $0x148] sm:$0xff]
                %203 = vst [vmem:[%s151 + $0xc8] sm:$0xff] %v202
                %v204 = vld [vmem:[%s150 + $0x150] sm:$0xff]
                %205 = vst [vmem:[%s151 + $0xd0] sm:$0xff] %v204
                %v206 = vld [vmem:[%s150 + $0x158] sm:$0xff]
                %207 = vst [vmem:[%s151 + $0xd8] sm:$0xff] %v206
                %v208 = vld [vmem:[%s150 + $0x160] sm:$0xff]
                %209 = vst [vmem:[%s151 + $0xe0] sm:$0xff] %v208
                %v210 = vld [vmem:[%s150 + $0x168] sm:$0xff]
                %211 = vst [vmem:[%s151 + $0xe8] sm:$0xff] %v210
                %v212 = vld [vmem:[%s150 + $0x170] sm:$0xff]
                %213 = vst [vmem:[%s151 + $0xf0] sm:$0xff] %v212
                %v214 = vld [vmem:[%s150 + $0x178] sm:$0xff]
                %215 = vst [vmem:[%s151 + $0xf8] sm:$0xff] %v214
                %v216 = vld [vmem:[%s150 + $0x200] sm:$0xff]
                %217 = vst [vmem:[%s151 + $0x100] sm:$0xff] %v216
                %v218 = vld [vmem:[%s150 + $0x208] sm:$0xff]
                %219 = vst [vmem:[%s151 + $0x108] sm:$0xff] %v218
                %v220 = vld [vmem:[%s150 + $0x210] sm:$0xff]
                %221 = vst [vmem:[%s151 + $0x110] sm:$0xff] %v220
                %v222 = vld [vmem:[%s150 + $0x218] sm:$0xff]
                %223 = vst [vmem:[%s151 + $0x118] sm:$0xff] %v222
                %v224 = vld [vmem:[%s150 + $0x220] sm:$0xff]
                %225 = vst [vmem:[%s151 + $0x120] sm:$0xff] %v224
                %v226 = vld [vmem:[%s150 + $0x228] sm:$0xff]
                %227 = vst [vmem:[%s151 + $0x128] sm:$0xff] %v226
                %v228 = vld [vmem:[%s150 + $0x230] sm:$0xff]
                %229 = vst [vmem:[%s151 + $0x130] sm:$0xff] %v228
                %v230 = vld [vmem:[%s150 + $0x238] sm:$0xff]
                %231 = vst [vmem:[%s151 + $0x138] sm:$0xff] %v230
                %v232 = vld [vmem:[%s150 + $0x240] sm:$0xff]
                %233 = vst [vmem:[%s151 + $0x140] sm:$0xff] %v232
                %v234 = vld [vmem:[%s150 + $0x248] sm:$0xff]
                %235 = vst [vmem:[%s151 + $0x148] sm:$0xff] %v234
                %v236 = vld [vmem:[%s150 + $0x250] sm:$0xff]
                %237 = vst [vmem:[%s151 + $0x150] sm:$0xff] %v236
                %v238 = vld [vmem:[%s150 + $0x258] sm:$0xff]
                %239 = vst [vmem:[%s151 + $0x158] sm:$0xff] %v238
                %v240 = vld [vmem:[%s150 + $0x260] sm:$0xff]
                %241 = vst [vmem:[%s151 + $0x160] sm:$0xff] %v240
                %v242 = vld [vmem:[%s150 + $0x268] sm:$0xff]
                %243 = vst [vmem:[%s151 + $0x168] sm:$0xff] %v242
                %v244 = vld [vmem:[%s150 + $0x270] sm:$0xff]
                %245 = vst [vmem:[%s151 + $0x170] sm:$0xff] %v244
                %v246 = vld [vmem:[%s150 + $0x278] sm:$0xff]
                %247 = vst [vmem:[%s151 + $0x178] sm:$0xff] %v246
                %v248 = vld [vmem:[%s150 + $0x300] sm:$0xff]
                %249 = vst [vmem:[%s151 + $0x180] sm:$0xff] %v248
                %v250 = vld [vmem:[%s150 + $0x308] sm:$0xff]
                %251 = vst [vmem:[%s151 + $0x188] sm:$0xff] %v250
                %v252 = vld [vmem:[%s150 + $0x310] sm:$0xff]
                %253 = vst [vmem:[%s151 + $0x190] sm:$0xff] %v252
                %v254 = vld [vmem:[%s150 + $0x318] sm:$0xff]
                %255 = vst [vmem:[%s151 + $0x198] sm:$0xff] %v254
                %v256 = vld [vmem:[%s150 + $0x320] sm:$0xff]
                %257 = vst [vmem:[%s151 + $0x1a0] sm:$0xff] %v256
                %v258 = vld [vmem:[%s150 + $0x328] sm:$0xff]
                %259 = vst [vmem:[%s151 + $0x1a8] sm:$0xff] %v258
                %v260 = vld [vmem:[%s150 + $0x330] sm:$0xff]
                %261 = vst [vmem:[%s151 + $0x1b0] sm:$0xff] %v260
                %v262 = vld [vmem:[%s150 + $0x338] sm:$0xff]
                %263 = vst [vmem:[%s151 + $0x1b8] sm:$0xff] %v262
                %v264 = vld [vmem:[%s150 + $0x340] sm:$0xff]
                %265 = vst [vmem:[%s151 + $0x1c0] sm:$0xff] %v264
                %v266 = vld [vmem:[%s150 + $0x348] sm:$0xff]
                %267 = vst [vmem:[%s151 + $0x1c8] sm:$0xff] %v266
                %v268 = vld [vmem:[%s150 + $0x350] sm:$0xff]
                %269 = vst [vmem:[%s151 + $0x1d0] sm:$0xff] %v268
                %v270 = vld [vmem:[%s150 + $0x358] sm:$0xff]
                %271 = vst [vmem:[%s151 + $0x1d8] sm:$0xff] %v270
                %v272 = vld [vmem:[%s150 + $0x360] sm:$0xff]
                %273 = vst [vmem:[%s151 + $0x1e0] sm:$0xff] %v272
                %v274 = vld [vmem:[%s150 + $0x368] sm:$0xff]
                %275 = vst [vmem:[%s151 + $0x1e8] sm:$0xff] %v274
                %v276 = vld [vmem:[%s150 + $0x370] sm:$0xff]
                %277 = vst [vmem:[%s151 + $0x1f0] sm:$0xff] %v276
                %v278 = vld [vmem:[%s150 + $0x378] sm:$0xff]
                %279 = vst [vmem:[%s151 + $0x1f8] sm:$0xff] %v278
              $region37: #{generator_forward.4} parent=31 // loop_footer
                %s149 = sadd.s32 1, %s145
              $region38: #{generator_forward.4} parent=31 // loop_footer_branch
                %144 = sbr.rel target = $region34
              $region39: #{generator_forward.4} parent=31 // loop_exit
                _
            $region32: #{generator_forward.4} parent=27 // pred_fallthru
              _
            // Predicated region
            $region40: #{generator_forward.4} parent=27 // pred_check
              _
            $region41: #{generator_forward.4} parent=27 // pred_check_branch
              %281 = sbr.rel target = $region43
            $region42: #{generator_forward.4} parent=27 // pred_region
              _
            $region43: #{generator_forward.4} parent=27 // pred_fallthru
              _
          $region28: #{generator_forward.4} parent=23 // pred_fallthru
            _
          %282 = vnop
        $region24: #{generator_forward.4} parent=19 // pred_fallthru
          _
        // Predicated region
        $region44: #{generator_forward.4} parent=19 // pred_check
          %p283 = pneg %p76
        $region45: #{generator_forward.4} parent=19 // pred_check_branch
          %285 = sbr.rel (%p283) target = $region47
        $region46: #{generator_forward.4} parent=19 // pred_region
          %s286 = smul.u32 32, %s9
          %p287 = scmp.lt.s32.totalorder %s286, 63
          %s288 = scalar_select %p287, %s286, 63
          %s289 = scalar_lea.vmem %s2, %s288
          %s290 = smul.u32 32, %s9
        $region47: #{generator_forward.4} parent=19 // pred_fallthru
          _
      $region20: #{generator_forward.4} parent=5 // pred_fallthru
        _
      %p291 = scmp.le.s32.totalorder 1, %s9
      %p292 = scmp.lt.s32.totalorder %s9, 3
      %p293 = pnand %p291, %p292
      %p294 = pneg %p293
      // Predicated region
      $region48: #{generator_forward.4} parent=5 // pred_check
        _
      $region49: #{generator_forward.4} parent=5 // pred_check_branch
        %296 = sbr.rel (%p293) target = $region51
      $region50: #{generator_forward.4} parent=5 // pred_region
        %s297 = ssub.s32 %s9, 1
        %s298 = sand.u32 %s43, 1
        %s299 = sand.u32 %s43, 1
        %s300 = smul.addr %s299, 512
        %s301 = scalar_lea.vmem [#allocation2], %s300
        // Predicated region
        $region52: #{generator_forward.4} parent=50 // pred_check
          %p302 = pneg %p56
        $region53: #{generator_forward.4} parent=50 // pred_check_branch
          %304 = sbr.rel (%p302) target = $region55
        $region54: #{generator_forward.4} parent=50 // pred_region
          _
        $region55: #{generator_forward.4} parent=50 // pred_fallthru
          _
        %p305 = pneg %p30
        %p306 = pneg %p27
        %s307 = sand.u32 %s43, 1
        %s308 = sand.u32 %s43, 1
        %s309 = smul.addr %s308, 512
        %s310 = scalar_lea.vmem [#allocation2], %s309
        %p311 = pneg %p56
        %p312 = pneg %p53
        %s313 = smul.u32 32, %s14
        %p314 = scmp.lt.s32.totalorder %s313, 63
        %s315 = scalar_select %p314, %s313, 63
        %s316 = scalar_lea.vmem %s2, %s315
        %p317 = pneg %p82
        %p318 = pneg %p79
        %p319 = pneg %p108
        %p320 = pneg %p105
        %s321 = smul.u32 32, %s14
        %p322 = scmp.lt.s32.totalorder %s321, 63
        %s323 = scalar_select %p322, %s321, 63
        %s324 = scalar_lea.vmem %s3, %s323
        %s325 = smul.u32 32, %s14
        %s326 = smul.u32 32, %s14
        %p327 = scmp.lt.s32.totalorder %s326, 63
        %s328 = scalar_select %p327, %s326, 63
        %s329 = scalar_lea.vmem %s2, %s328
        %s330 = smul.u32 32, %s14
        %s331 = smul.u32 32, %s14
        %p332 = scmp.lt.s32.totalorder %s331, 63
        %s333 = scalar_select %p332, %s331, 63
        %s334 = scalar_lea.vmem %s3, %s333
        %s335 = smul.u32 32, %s14
        %v337 = vld [vmem:[%s0] sm:$0x3]
        %v338 = vpack.c.bf16 %v337, %v337
        %v339 = vld [vmem:[%s301] sm:$0xff]
        %v340 = vld [vmem:[%s301 + $0x8] sm:$0xff]
        %v341 = vld [vmem:[%s301 + $0x10] sm:$0xff]
        %v342 = vld [vmem:[%s301 + $0x18] sm:$0xff]
        %v343 = vld [vmem:[%s301 + $0x20] sm:$0xff]
        %v344 = vld [vmem:[%s301 + $0x28] sm:$0xff]
        %v345 = vld [vmem:[%s301 + $0x30] sm:$0xff]
        %v346 = vld [vmem:[%s301 + $0x38] sm:$0xff]
        %v347 = vld [vmem:[%s301 + $0x40] sm:$0xff]
        %v348 = vld [vmem:[%s301 + $0x48] sm:$0xff]
        %v349 = vld [vmem:[%s301 + $0x50] sm:$0xff]
        %v350 = vld [vmem:[%s301 + $0x58] sm:$0xff]
        %v351 = vld [vmem:[%s301 + $0x60] sm:$0xff]
        %v352 = vld [vmem:[%s301 + $0x68] sm:$0xff]
        %v353 = vld [vmem:[%s301 + $0x70] sm:$0xff]
        %v354 = vld [vmem:[%s301 + $0x78] sm:$0xff]
        %v355 = vld [vmem:[%s301 + $0x80] sm:$0xff]
        %v356 = vld [vmem:[%s301 + $0x88] sm:$0xff]
        %v357 = vld [vmem:[%s301 + $0x90] sm:$0xff]
        %v358 = vld [vmem:[%s301 + $0x98] sm:$0xff]
        %v359 = vld [vmem:[%s301 + $0xa0] sm:$0xff]
        %v360 = vld [vmem:[%s301 + $0xa8] sm:$0xff]
        %v361 = vld [vmem:[%s301 + $0xb0] sm:$0xff]
        %v362 = vld [vmem:[%s301 + $0xb8] sm:$0xff]
        %v363 = vld [vmem:[%s301 + $0xc0] sm:$0xff]
        %v364 = vld [vmem:[%s301 + $0xc8] sm:$0xff]
        %v365 = vld [vmem:[%s301 + $0xd0] sm:$0xff]
        %v366 = vld [vmem:[%s301 + $0xd8] sm:$0xff]
        %v367 = vld [vmem:[%s301 + $0xe0] sm:$0xff]
        %v368 = vld [vmem:[%s301 + $0xe8] sm:$0xff]
        %v369 = vld [vmem:[%s301 + $0xf0] sm:$0xff]
        %v370 = vld [vmem:[%s301 + $0xf8] sm:$0xff]
        %v371 = vld [vmem:[%s301 + $0x100] sm:$0xff]
        %v372 = vld [vmem:[%s301 + $0x108] sm:$0xff]
        %v373 = vld [vmem:[%s301 + $0x110] sm:$0xff]
        %v374 = vld [vmem:[%s301 + $0x118] sm:$0xff]
        %v375 = vld [vmem:[%s301 + $0x120] sm:$0xff]
        %v376 = vld [vmem:[%s301 + $0x128] sm:$0xff]
        %v377 = vld [vmem:[%s301 + $0x130] sm:$0xff]
        %v378 = vld [vmem:[%s301 + $0x138] sm:$0xff]
        %v379 = vld [vmem:[%s301 + $0x140] sm:$0xff]
        %v380 = vld [vmem:[%s301 + $0x148] sm:$0xff]
        %v381 = vld [vmem:[%s301 + $0x150] sm:$0xff]
        %v382 = vld [vmem:[%s301 + $0x158] sm:$0xff]
        %v383 = vld [vmem:[%s301 + $0x160] sm:$0xff]
        %v384 = vld [vmem:[%s301 + $0x168] sm:$0xff]
        %v385 = vld [vmem:[%s301 + $0x170] sm:$0xff]
        %v386 = vld [vmem:[%s301 + $0x178] sm:$0xff]
        %v387 = vld [vmem:[%s301 + $0x180] sm:$0xff]
        %v388 = vld [vmem:[%s301 + $0x188] sm:$0xff]
        %v389 = vld [vmem:[%s301 + $0x190] sm:$0xff]
        %v390 = vld [vmem:[%s301 + $0x198] sm:$0xff]
        %v391 = vld [vmem:[%s301 + $0x1a0] sm:$0xff]
        %v392 = vld [vmem:[%s301 + $0x1a8] sm:$0xff]
        %v393 = vld [vmem:[%s301 + $0x1b0] sm:$0xff]
        %v394 = vld [vmem:[%s301 + $0x1b8] sm:$0xff]
        %v395 = vld [vmem:[%s301 + $0x1c0] sm:$0xff]
        %v396 = vld [vmem:[%s301 + $0x1c8] sm:$0xff]
        %v397 = vld [vmem:[%s301 + $0x1d0] sm:$0xff]
        %v398 = vld [vmem:[%s301 + $0x1d8] sm:$0xff]
        %v399 = vld [vmem:[%s301 + $0x1e0] sm:$0xff]
        %v400 = vld [vmem:[%s301 + $0x1e8] sm:$0xff]
        %v401 = vld [vmem:[%s301 + $0x1f0] sm:$0xff]
        %v402 = vld [vmem:[%s301 + $0x1f8] sm:$0xff]
        %v403 = vld [vmem:[%s329] sm:$0xff]
        %v404 = vld [vmem:[%s329 + $0x8] sm:$0xff]
        %v405 = vld [vmem:[%s329 + $0x10] sm:$0xff]
        %v406 = vld [vmem:[%s329 + $0x18] sm:$0xff]
        %v411 = vperm.slane %v403, 0
        %v412 = vperm.slane %v403, 1
        %v413 = vperm.slane %v403, 2
        %v414 = vperm.slane %v403, 3
        %v415 = vperm.slane %v403, 4
        %v416 = vperm.slane %v403, 5
        %v417 = vperm.slane %v403, 6
        %v418 = vperm.slane %v403, 7
        %v419 = vperm.slane %v404, 0
        %v420 = vperm.slane %v404, 1
        %v421 = vperm.slane %v404, 2
        %v422 = vperm.slane %v404, 3
        %v423 = vperm.slane %v404, 4
        %v424 = vperm.slane %v404, 5
        %v425 = vperm.slane %v404, 6
        %v426 = vperm.slane %v404, 7
        %v427 = vperm.slane %v405, 0
        %v428 = vperm.slane %v405, 1
        %v429 = vperm.slane %v405, 2
        %v430 = vperm.slane %v405, 3
        %v431 = vperm.slane %v405, 4
        %v432 = vperm.slane %v405, 5
        %v433 = vperm.slane %v405, 6
        %v434 = vperm.slane %v405, 7
        %v435 = vperm.slane %v406, 0
        %v436 = vperm.slane %v406, 1
        %v437 = vperm.slane %v406, 2
        %v438 = vperm.slane %v406, 3
        %v439 = vperm.slane %v406, 4
        %v440 = vperm.slane %v406, 5
        %v441 = vperm.slane %v406, 6
        %v442 = vperm.slane %v406, 7
        %v539 = vunpack.c.l.b16 %v339
        %v540 = vunpack.c.h.b16 %v339
        %v541 = vunpack.c.l.b16 %v340
        %v542 = vunpack.c.h.b16 %v340
        %v543 = vunpack.c.l.b16 %v341
        %v544 = vunpack.c.h.b16 %v341
        %v545 = vunpack.c.l.b16 %v342
        %v546 = vunpack.c.h.b16 %v342
        %v547 = vunpack.c.l.b16 %v343
        %v548 = vunpack.c.h.b16 %v343
        %v549 = vunpack.c.l.b16 %v344
        %v550 = vunpack.c.h.b16 %v344
        %v551 = vunpack.c.l.b16 %v345
        %v552 = vunpack.c.h.b16 %v345
        %v553 = vunpack.c.l.b16 %v346
        %v554 = vunpack.c.h.b16 %v346
        %v555 = vunpack.c.l.b16 %v347
        %v556 = vunpack.c.h.b16 %v347
        %v557 = vunpack.c.l.b16 %v348
        %v558 = vunpack.c.h.b16 %v348
        %v559 = vunpack.c.l.b16 %v349
        %v560 = vunpack.c.h.b16 %v349
        %v561 = vunpack.c.l.b16 %v350
        %v562 = vunpack.c.h.b16 %v350
        %v563 = vunpack.c.l.b16 %v351
        %v564 = vunpack.c.h.b16 %v351
        %v565 = vunpack.c.l.b16 %v352
        %v566 = vunpack.c.h.b16 %v352
        %v567 = vunpack.c.l.b16 %v353
        %v568 = vunpack.c.h.b16 %v353
        %v569 = vunpack.c.l.b16 %v354
        %v570 = vunpack.c.h.b16 %v354
        %v571 = vunpack.c.l.b16 %v355
        %v572 = vunpack.c.h.b16 %v355
        %v573 = vunpack.c.l.b16 %v356
        %v574 = vunpack.c.h.b16 %v356
        %v575 = vunpack.c.l.b16 %v357
        %v576 = vunpack.c.h.b16 %v357
        %v577 = vunpack.c.l.b16 %v358
        %v578 = vunpack.c.h.b16 %v358
        %v579 = vunpack.c.l.b16 %v359
        %v580 = vunpack.c.h.b16 %v359
        %v581 = vunpack.c.l.b16 %v360
        %v582 = vunpack.c.h.b16 %v360
        %v583 = vunpack.c.l.b16 %v361
        %v584 = vunpack.c.h.b16 %v361
        %v585 = vunpack.c.l.b16 %v362
        %v586 = vunpack.c.h.b16 %v362
        %v587 = vunpack.c.l.b16 %v363
        %v588 = vunpack.c.h.b16 %v363
        %v589 = vunpack.c.l.b16 %v364
        %v590 = vunpack.c.h.b16 %v364
        %v591 = vunpack.c.l.b16 %v365
        %v592 = vunpack.c.h.b16 %v365
        %v593 = vunpack.c.l.b16 %v366
        %v594 = vunpack.c.h.b16 %v366
        %v595 = vunpack.c.l.b16 %v367
        %v596 = vunpack.c.h.b16 %v367
        %v597 = vunpack.c.l.b16 %v368
        %v598 = vunpack.c.h.b16 %v368
        %v599 = vunpack.c.l.b16 %v369
        %v600 = vunpack.c.h.b16 %v369
        %v601 = vunpack.c.l.b16 %v370
        %v602 = vunpack.c.h.b16 %v370
        %v603 = vunpack.c.l.b16 %v371
        %v604 = vunpack.c.h.b16 %v371
        %v605 = vunpack.c.l.b16 %v372
        %v606 = vunpack.c.h.b16 %v372
        %v607 = vunpack.c.l.b16 %v373
        %v608 = vunpack.c.h.b16 %v373
        %v609 = vunpack.c.l.b16 %v374
        %v610 = vunpack.c.h.b16 %v374
        %v611 = vunpack.c.l.b16 %v375
        %v612 = vunpack.c.h.b16 %v375
        %v613 = vunpack.c.l.b16 %v376
        %v614 = vunpack.c.h.b16 %v376
        %v615 = vunpack.c.l.b16 %v377
        %v616 = vunpack.c.h.b16 %v377
        %v617 = vunpack.c.l.b16 %v378
        %v618 = vunpack.c.h.b16 %v378
        %v619 = vunpack.c.l.b16 %v379
        %v620 = vunpack.c.h.b16 %v379
        %v621 = vunpack.c.l.b16 %v380
        %v622 = vunpack.c.h.b16 %v380
        %v623 = vunpack.c.l.b16 %v381
        %v624 = vunpack.c.h.b16 %v381
        %v625 = vunpack.c.l.b16 %v382
        %v626 = vunpack.c.h.b16 %v382
        %v627 = vunpack.c.l.b16 %v383
        %v628 = vunpack.c.h.b16 %v383
        %v629 = vunpack.c.l.b16 %v384
        %v630 = vunpack.c.h.b16 %v384
        %v631 = vunpack.c.l.b16 %v385
        %v632 = vunpack.c.h.b16 %v385
        %v633 = vunpack.c.l.b16 %v386
        %v634 = vunpack.c.h.b16 %v386
        %v635 = vunpack.c.l.b16 %v387
        %v636 = vunpack.c.h.b16 %v387
        %v637 = vunpack.c.l.b16 %v388
        %v638 = vunpack.c.h.b16 %v388
        %v639 = vunpack.c.l.b16 %v389
        %v640 = vunpack.c.h.b16 %v389
        %v641 = vunpack.c.l.b16 %v390
        %v642 = vunpack.c.h.b16 %v390
        %v643 = vunpack.c.l.b16 %v391
        %v644 = vunpack.c.h.b16 %v391
        %v645 = vunpack.c.l.b16 %v392
        %v646 = vunpack.c.h.b16 %v392
        %v647 = vunpack.c.l.b16 %v393
        %v648 = vunpack.c.h.b16 %v393
        %v649 = vunpack.c.l.b16 %v394
        %v650 = vunpack.c.h.b16 %v394
        %v651 = vunpack.c.l.b16 %v395
        %v652 = vunpack.c.h.b16 %v395
        %v653 = vunpack.c.l.b16 %v396
        %v654 = vunpack.c.h.b16 %v396
        %v655 = vunpack.c.l.b16 %v397
        %v656 = vunpack.c.h.b16 %v397
        %v657 = vunpack.c.l.b16 %v398
        %v658 = vunpack.c.h.b16 %v398
        %v659 = vunpack.c.l.b16 %v399
        %v660 = vunpack.c.h.b16 %v399
        %v661 = vunpack.c.l.b16 %v400
        %v662 = vunpack.c.h.b16 %v400
        %v663 = vunpack.c.l.b16 %v401
        %v664 = vunpack.c.h.b16 %v401
        %v665 = vunpack.c.l.b16 %v402
        %v666 = vunpack.c.h.b16 %v402
        %v667 = vpack.c.b16 %v571, %v539
        %v668 = vpack.c.b16 %v572, %v540
        %v669 = vpack.c.b16 %v573, %v541
        %v670 = vpack.c.b16 %v574, %v542
        %v671 = vpack.c.b16 %v575, %v543
        %v672 = vpack.c.b16 %v576, %v544
        %v673 = vpack.c.b16 %v577, %v545
        %v674 = vpack.c.b16 %v578, %v546
        %v675 = vpack.c.b16 %v579, %v547
        %v676 = vpack.c.b16 %v580, %v548
        %v677 = vpack.c.b16 %v581, %v549
        %v678 = vpack.c.b16 %v582, %v550
        %v679 = vpack.c.b16 %v583, %v551
        %v680 = vpack.c.b16 %v584, %v552
        %v681 = vpack.c.b16 %v585, %v553
        %v682 = vpack.c.b16 %v586, %v554
        %v683 = vpack.c.b16 %v587, %v555
        %v684 = vpack.c.b16 %v588, %v556
        %v685 = vpack.c.b16 %v589, %v557
        %v686 = vpack.c.b16 %v590, %v558
        %v687 = vpack.c.b16 %v591, %v559
        %v688 = vpack.c.b16 %v592, %v560
        %v689 = vpack.c.b16 %v593, %v561
        %v690 = vpack.c.b16 %v594, %v562
        %v691 = vpack.c.b16 %v595, %v563
        %v692 = vpack.c.b16 %v596, %v564
        %v693 = vpack.c.b16 %v597, %v565
        %v694 = vpack.c.b16 %v598, %v566
        %v695 = vpack.c.b16 %v599, %v567
        %v696 = vpack.c.b16 %v600, %v568
        %v697 = vpack.c.b16 %v601, %v569
        %v698 = vpack.c.b16 %v602, %v570
        %v699 = vpack.c.b16 %v635, %v603
        %v700 = vpack.c.b16 %v636, %v604
        %v701 = vpack.c.b16 %v637, %v605
        %v702 = vpack.c.b16 %v638, %v606
        %v703 = vpack.c.b16 %v639, %v607
        %v704 = vpack.c.b16 %v640, %v608
        %v705 = vpack.c.b16 %v641, %v609
        %v706 = vpack.c.b16 %v642, %v610
        %v707 = vpack.c.b16 %v643, %v611
        %v708 = vpack.c.b16 %v644, %v612
        %v709 = vpack.c.b16 %v645, %v613
        %v710 = vpack.c.b16 %v646, %v614
        %v711 = vpack.c.b16 %v647, %v615
        %v712 = vpack.c.b16 %v648, %v616
        %v713 = vpack.c.b16 %v649, %v617
        %v714 = vpack.c.b16 %v650, %v618
        %v715 = vpack.c.b16 %v651, %v619
        %v716 = vpack.c.b16 %v652, %v620
        %v717 = vpack.c.b16 %v653, %v621
        %v718 = vpack.c.b16 %v654, %v622
        %v719 = vpack.c.b16 %v655, %v623
        %v720 = vpack.c.b16 %v656, %v624
        %v721 = vpack.c.b16 %v657, %v625
        %v722 = vpack.c.b16 %v658, %v626
        %v723 = vpack.c.b16 %v659, %v627
        %v724 = vpack.c.b16 %v660, %v628
        %v725 = vpack.c.b16 %v661, %v629
        %v726 = vpack.c.b16 %v662, %v630
        %v727 = vpack.c.b16 %v663, %v631
        %v728 = vpack.c.b16 %v664, %v632
        %v729 = vpack.c.b16 %v665, %v633
        %v730 = vpack.c.b16 %v666, %v634
        %vm795 = vcmask 261120
        %v797 = vsel %vm795, %v338, 0
        %799 = vmatpush.bf16.msra.mxu0 0
        %800 = vmatpush.bf16.msra.mxu0 0
        %801 = vmatpush.bf16.msra.mxu0 0
        %802 = vmatpush.bf16.msra.mxu0 0
        %803 = vmatpush.bf16.msra.mxu0 0
        %804 = vmatpush.bf16.msra.mxu0 0
        %805 = vmatpush.bf16.msra.mxu0 %v699
        %806 = vmatpush.bf16.msra.mxu0 %v667
        %807 = vmatmul.bf16.gmra.mxu0 %v797
        %v808 = vpop.f32.mrf.mxu0
        %v809 = vadd.f32 %v411, %v808
        %v810 = vpop.f32.mrf.mxu0
        %811 = vdwg.mxu0
        %812 = vmatpush.bf16.msra.mxu0 0
        %813 = vmatpush.bf16.msra.mxu0 0
        %814 = vmatpush.bf16.msra.mxu0 0
        %815 = vmatpush.bf16.msra.mxu0 0
        %816 = vmatpush.bf16.msra.mxu0 0
        %817 = vmatpush.bf16.msra.mxu0 0
        %818 = vmatpush.bf16.msra.mxu0 %v700
        %819 = vmatpush.bf16.msra.mxu0 %v668
        %820 = vmatmul.bf16.gmra.mxu0 %v797
        %v821 = vpop.f32.mrf.mxu0
        %v822 = vadd.f32 %v412, %v821
        %v823 = vpop.f32.mrf.mxu0
        %824 = vdwg.mxu0
        %825 = vmatpush.bf16.msra.mxu0 0
        %826 = vmatpush.bf16.msra.mxu0 0
        %827 = vmatpush.bf16.msra.mxu0 0
        %828 = vmatpush.bf16.msra.mxu0 0
        %829 = vmatpush.bf16.msra.mxu0 0
        %830 = vmatpush.bf16.msra.mxu0 0
        %831 = vmatpush.bf16.msra.mxu0 %v701
        %832 = vmatpush.bf16.msra.mxu0 %v669
        %833 = vmatmul.bf16.gmra.mxu0 %v797
        %v834 = vpop.f32.mrf.mxu0
        %v835 = vadd.f32 %v413, %v834
        %v836 = vpop.f32.mrf.mxu0
        %837 = vdwg.mxu0
        %838 = vmatpush.bf16.msra.mxu0 0
        %839 = vmatpush.bf16.msra.mxu0 0
        %840 = vmatpush.bf16.msra.mxu0 0
        %841 = vmatpush.bf16.msra.mxu0 0
        %842 = vmatpush.bf16.msra.mxu0 0
        %843 = vmatpush.bf16.msra.mxu0 0
        %844 = vmatpush.bf16.msra.mxu0 %v702
        %845 = vmatpush.bf16.msra.mxu0 %v670
        %846 = vmatmul.bf16.gmra.mxu0 %v797
        %v847 = vpop.f32.mrf.mxu0
        %v848 = vadd.f32 %v414, %v847
        %v849 = vpop.f32.mrf.mxu0
        %850 = vdwg.mxu0
        %851 = vmatpush.bf16.msra.mxu0 0
        %852 = vmatpush.bf16.msra.mxu0 0
        %853 = vmatpush.bf16.msra.mxu0 0
        %854 = vmatpush.bf16.msra.mxu0 0
        %855 = vmatpush.bf16.msra.mxu0 0
        %856 = vmatpush.bf16.msra.mxu0 0
        %857 = vmatpush.bf16.msra.mxu0 %v703
        %858 = vmatpush.bf16.msra.mxu0 %v671
        %859 = vmatmul.bf16.gmra.mxu0 %v797
        %v860 = vpop.f32.mrf.mxu0
        %v861 = vadd.f32 %v415, %v860
        %v862 = vpop.f32.mrf.mxu0
        %863 = vdwg.mxu0
        %864 = vmatpush.bf16.msra.mxu0 0
        %865 = vmatpush.bf16.msra.mxu0 0
        %866 = vmatpush.bf16.msra.mxu0 0
        %867 = vmatpush.bf16.msra.mxu0 0
        %868 = vmatpush.bf16.msra.mxu0 0
        %869 = vmatpush.bf16.msra.mxu0 0
        %870 = vmatpush.bf16.msra.mxu0 %v704
        %871 = vmatpush.bf16.msra.mxu0 %v672
        %872 = vmatmul.bf16.gmra.mxu0 %v797
        %v873 = vpop.f32.mrf.mxu0
        %v874 = vadd.f32 %v416, %v873
        %v875 = vpop.f32.mrf.mxu0
        %876 = vdwg.mxu0
        %877 = vmatpush.bf16.msra.mxu0 0
        %878 = vmatpush.bf16.msra.mxu0 0
        %879 = vmatpush.bf16.msra.mxu0 0
        %880 = vmatpush.bf16.msra.mxu0 0
        %881 = vmatpush.bf16.msra.mxu0 0
        %882 = vmatpush.bf16.msra.mxu0 0
        %883 = vmatpush.bf16.msra.mxu0 %v705
        %884 = vmatpush.bf16.msra.mxu0 %v673
        %885 = vmatmul.bf16.gmra.mxu0 %v797
        %v886 = vpop.f32.mrf.mxu0
        %v887 = vadd.f32 %v417, %v886
        %v888 = vpop.f32.mrf.mxu0
        %889 = vdwg.mxu0
        %890 = vmatpush.bf16.msra.mxu0 0
        %891 = vmatpush.bf16.msra.mxu0 0
        %892 = vmatpush.bf16.msra.mxu0 0
        %893 = vmatpush.bf16.msra.mxu0 0
        %894 = vmatpush.bf16.msra.mxu0 0
        %895 = vmatpush.bf16.msra.mxu0 0
        %896 = vmatpush.bf16.msra.mxu0 %v706
        %897 = vmatpush.bf16.msra.mxu0 %v674
        %898 = vmatmul.bf16.gmra.mxu0 %v797
        %v899 = vpop.f32.mrf.mxu0
        %v900 = vadd.f32 %v418, %v899
        %v901 = vpop.f32.mrf.mxu0
        %902 = vdwg.mxu0
        %903 = vmatpush.bf16.msra.mxu0 0
        %904 = vmatpush.bf16.msra.mxu0 0
        %905 = vmatpush.bf16.msra.mxu0 0
        %906 = vmatpush.bf16.msra.mxu0 0
        %907 = vmatpush.bf16.msra.mxu0 0
        %908 = vmatpush.bf16.msra.mxu0 0
        %909 = vmatpush.bf16.msra.mxu0 %v707
        %910 = vmatpush.bf16.msra.mxu0 %v675
        %911 = vmatmul.bf16.gmra.mxu0 %v797
        %v912 = vpop.f32.mrf.mxu0
        %v913 = vadd.f32 %v419, %v912
        %v914 = vpop.f32.mrf.mxu0
        %915 = vdwg.mxu0
        %916 = vmatpush.bf16.msra.mxu0 0
        %917 = vmatpush.bf16.msra.mxu0 0
        %918 = vmatpush.bf16.msra.mxu0 0
        %919 = vmatpush.bf16.msra.mxu0 0
        %920 = vmatpush.bf16.msra.mxu0 0
        %921 = vmatpush.bf16.msra.mxu0 0
        %922 = vmatpush.bf16.msra.mxu0 %v708
        %923 = vmatpush.bf16.msra.mxu0 %v676
        %924 = vmatmul.bf16.gmra.mxu0 %v797
        %v925 = vpop.f32.mrf.mxu0
        %v926 = vadd.f32 %v420, %v925
        %v927 = vpop.f32.mrf.mxu0
        %928 = vdwg.mxu0
        %929 = vmatpush.bf16.msra.mxu0 0
        %930 = vmatpush.bf16.msra.mxu0 0
        %931 = vmatpush.bf16.msra.mxu0 0
        %932 = vmatpush.bf16.msra.mxu0 0
        %933 = vmatpush.bf16.msra.mxu0 0
        %934 = vmatpush.bf16.msra.mxu0 0
        %935 = vmatpush.bf16.msra.mxu0 %v709
        %936 = vmatpush.bf16.msra.mxu0 %v677
        %937 = vmatmul.bf16.gmra.mxu0 %v797
        %v938 = vpop.f32.mrf.mxu0
        %v939 = vadd.f32 %v421, %v938
        %v940 = vpop.f32.mrf.mxu0
        %941 = vdwg.mxu0
        %942 = vmatpush.bf16.msra.mxu0 0
        %943 = vmatpush.bf16.msra.mxu0 0
        %944 = vmatpush.bf16.msra.mxu0 0
        %945 = vmatpush.bf16.msra.mxu0 0
        %946 = vmatpush.bf16.msra.mxu0 0
        %947 = vmatpush.bf16.msra.mxu0 0
        %948 = vmatpush.bf16.msra.mxu0 %v710
        %949 = vmatpush.bf16.msra.mxu0 %v678
        %950 = vmatmul.bf16.gmra.mxu0 %v797
        %v951 = vpop.f32.mrf.mxu0
        %v952 = vadd.f32 %v422, %v951
        %v953 = vpop.f32.mrf.mxu0
        %954 = vdwg.mxu0
        %955 = vmatpush.bf16.msra.mxu0 0
        %956 = vmatpush.bf16.msra.mxu0 0
        %957 = vmatpush.bf16.msra.mxu0 0
        %958 = vmatpush.bf16.msra.mxu0 0
        %959 = vmatpush.bf16.msra.mxu0 0
        %960 = vmatpush.bf16.msra.mxu0 0
        %961 = vmatpush.bf16.msra.mxu0 %v711
        %962 = vmatpush.bf16.msra.mxu0 %v679
        %963 = vmatmul.bf16.gmra.mxu0 %v797
        %v964 = vpop.f32.mrf.mxu0
        %v965 = vadd.f32 %v423, %v964
        %v966 = vpop.f32.mrf.mxu0
        %967 = vdwg.mxu0
        %968 = vmatpush.bf16.msra.mxu0 0
        %969 = vmatpush.bf16.msra.mxu0 0
        %970 = vmatpush.bf16.msra.mxu0 0
        %971 = vmatpush.bf16.msra.mxu0 0
        %972 = vmatpush.bf16.msra.mxu0 0
        %973 = vmatpush.bf16.msra.mxu0 0
        %974 = vmatpush.bf16.msra.mxu0 %v712
        %975 = vmatpush.bf16.msra.mxu0 %v680
        %976 = vmatmul.bf16.gmra.mxu0 %v797
        %v977 = vpop.f32.mrf.mxu0
        %v978 = vadd.f32 %v424, %v977
        %v979 = vpop.f32.mrf.mxu0
        %980 = vdwg.mxu0
        %981 = vmatpush.bf16.msra.mxu0 0
        %982 = vmatpush.bf16.msra.mxu0 0
        %983 = vmatpush.bf16.msra.mxu0 0
        %984 = vmatpush.bf16.msra.mxu0 0
        %985 = vmatpush.bf16.msra.mxu0 0
        %986 = vmatpush.bf16.msra.mxu0 0
        %987 = vmatpush.bf16.msra.mxu0 %v713
        %988 = vmatpush.bf16.msra.mxu0 %v681
        %989 = vmatmul.bf16.gmra.mxu0 %v797
        %v990 = vpop.f32.mrf.mxu0
        %v991 = vadd.f32 %v425, %v990
        %v992 = vpop.f32.mrf.mxu0
        %993 = vdwg.mxu0
        %994 = vmatpush.bf16.msra.mxu0 0
        %995 = vmatpush.bf16.msra.mxu0 0
        %996 = vmatpush.bf16.msra.mxu0 0
        %997 = vmatpush.bf16.msra.mxu0 0
        %998 = vmatpush.bf16.msra.mxu0 0
        %999 = vmatpush.bf16.msra.mxu0 0
        %1000 = vmatpush.bf16.msra.mxu0 %v714
        %1001 = vmatpush.bf16.msra.mxu0 %v682
        %1002 = vmatmul.bf16.gmra.mxu0 %v797
        %v1003 = vpop.f32.mrf.mxu0
        %v1004 = vadd.f32 %v426, %v1003
        %v1005 = vpop.f32.mrf.mxu0
        %1006 = vdwg.mxu0
        %1007 = vmatpush.bf16.msra.mxu0 0
        %1008 = vmatpush.bf16.msra.mxu0 0
        %1009 = vmatpush.bf16.msra.mxu0 0
        %1010 = vmatpush.bf16.msra.mxu0 0
        %1011 = vmatpush.bf16.msra.mxu0 0
        %1012 = vmatpush.bf16.msra.mxu0 0
        %1013 = vmatpush.bf16.msra.mxu0 %v715
        %1014 = vmatpush.bf16.msra.mxu0 %v683
        %1015 = vmatmul.bf16.gmra.mxu0 %v797
        %v1016 = vpop.f32.mrf.mxu0
        %v1017 = vadd.f32 %v427, %v1016
        %v1018 = vpop.f32.mrf.mxu0
        %1019 = vdwg.mxu0
        %1020 = vmatpush.bf16.msra.mxu0 0
        %1021 = vmatpush.bf16.msra.mxu0 0
        %1022 = vmatpush.bf16.msra.mxu0 0
        %1023 = vmatpush.bf16.msra.mxu0 0
        %1024 = vmatpush.bf16.msra.mxu0 0
        %1025 = vmatpush.bf16.msra.mxu0 0
        %1026 = vmatpush.bf16.msra.mxu0 %v716
        %1027 = vmatpush.bf16.msra.mxu0 %v684
        %1028 = vmatmul.bf16.gmra.mxu0 %v797
        %v1029 = vpop.f32.mrf.mxu0
        %v1030 = vadd.f32 %v428, %v1029
        %v1031 = vpop.f32.mrf.mxu0
        %1032 = vdwg.mxu0
        %1033 = vmatpush.bf16.msra.mxu0 0
        %1034 = vmatpush.bf16.msra.mxu0 0
        %1035 = vmatpush.bf16.msra.mxu0 0
        %1036 = vmatpush.bf16.msra.mxu0 0
        %1037 = vmatpush.bf16.msra.mxu0 0
        %1038 = vmatpush.bf16.msra.mxu0 0
        %1039 = vmatpush.bf16.msra.mxu0 %v717
        %1040 = vmatpush.bf16.msra.mxu0 %v685
        %1041 = vmatmul.bf16.gmra.mxu0 %v797
        %v1042 = vpop.f32.mrf.mxu0
        %v1043 = vadd.f32 %v429, %v1042
        %v1044 = vpop.f32.mrf.mxu0
        %1045 = vdwg.mxu0
        %1046 = vmatpush.bf16.msra.mxu0 0
        %1047 = vmatpush.bf16.msra.mxu0 0
        %1048 = vmatpush.bf16.msra.mxu0 0
        %1049 = vmatpush.bf16.msra.mxu0 0
        %1050 = vmatpush.bf16.msra.mxu0 0
        %1051 = vmatpush.bf16.msra.mxu0 0
        %1052 = vmatpush.bf16.msra.mxu0 %v718
        %1053 = vmatpush.bf16.msra.mxu0 %v686
        %1054 = vmatmul.bf16.gmra.mxu0 %v797
        %v1055 = vpop.f32.mrf.mxu0
        %v1056 = vadd.f32 %v430, %v1055
        %v1057 = vpop.f32.mrf.mxu0
        %1058 = vdwg.mxu0
        %1059 = vmatpush.bf16.msra.mxu0 0
        %1060 = vmatpush.bf16.msra.mxu0 0
        %1061 = vmatpush.bf16.msra.mxu0 0
        %1062 = vmatpush.bf16.msra.mxu0 0
        %1063 = vmatpush.bf16.msra.mxu0 0
        %1064 = vmatpush.bf16.msra.mxu0 0
        %1065 = vmatpush.bf16.msra.mxu0 %v719
        %1066 = vmatpush.bf16.msra.mxu0 %v687
        %1067 = vmatmul.bf16.gmra.mxu0 %v797
        %v1068 = vpop.f32.mrf.mxu0
        %v1069 = vadd.f32 %v431, %v1068
        %v1070 = vpop.f32.mrf.mxu0
        %1071 = vdwg.mxu0
        %1072 = vmatpush.bf16.msra.mxu0 0
        %1073 = vmatpush.bf16.msra.mxu0 0
        %1074 = vmatpush.bf16.msra.mxu0 0
        %1075 = vmatpush.bf16.msra.mxu0 0
        %1076 = vmatpush.bf16.msra.mxu0 0
        %1077 = vmatpush.bf16.msra.mxu0 0
        %1078 = vmatpush.bf16.msra.mxu0 %v720
        %1079 = vmatpush.bf16.msra.mxu0 %v688
        %1080 = vmatmul.bf16.gmra.mxu0 %v797
        %v1081 = vpop.f32.mrf.mxu0
        %v1082 = vadd.f32 %v432, %v1081
        %v1083 = vpop.f32.mrf.mxu0
        %1084 = vdwg.mxu0
        %1085 = vmatpush.bf16.msra.mxu0 0
        %1086 = vmatpush.bf16.msra.mxu0 0
        %1087 = vmatpush.bf16.msra.mxu0 0
        %1088 = vmatpush.bf16.msra.mxu0 0
        %1089 = vmatpush.bf16.msra.mxu0 0
        %1090 = vmatpush.bf16.msra.mxu0 0
        %1091 = vmatpush.bf16.msra.mxu0 %v721
        %1092 = vmatpush.bf16.msra.mxu0 %v689
        %1093 = vmatmul.bf16.gmra.mxu0 %v797
        %v1094 = vpop.f32.mrf.mxu0
        %v1095 = vadd.f32 %v433, %v1094
        %v1096 = vpop.f32.mrf.mxu0
        %1097 = vdwg.mxu0
        %1098 = vmatpush.bf16.msra.mxu0 0
        %1099 = vmatpush.bf16.msra.mxu0 0
        %1100 = vmatpush.bf16.msra.mxu0 0
        %1101 = vmatpush.bf16.msra.mxu0 0
        %1102 = vmatpush.bf16.msra.mxu0 0
        %1103 = vmatpush.bf16.msra.mxu0 0
        %1104 = vmatpush.bf16.msra.mxu0 %v722
        %1105 = vmatpush.bf16.msra.mxu0 %v690
        %1106 = vmatmul.bf16.gmra.mxu0 %v797
        %v1107 = vpop.f32.mrf.mxu0
        %v1108 = vadd.f32 %v434, %v1107
        %v1109 = vpop.f32.mrf.mxu0
        %1110 = vdwg.mxu0
        %1111 = vmatpush.bf16.msra.mxu0 0
        %1112 = vmatpush.bf16.msra.mxu0 0
        %1113 = vmatpush.bf16.msra.mxu0 0
        %1114 = vmatpush.bf16.msra.mxu0 0
        %1115 = vmatpush.bf16.msra.mxu0 0
        %1116 = vmatpush.bf16.msra.mxu0 0
        %1117 = vmatpush.bf16.msra.mxu0 %v723
        %1118 = vmatpush.bf16.msra.mxu0 %v691
        %1119 = vmatmul.bf16.gmra.mxu0 %v797
        %v1120 = vpop.f32.mrf.mxu0
        %v1121 = vadd.f32 %v435, %v1120
        %v1122 = vpop.f32.mrf.mxu0
        %1123 = vdwg.mxu0
        %1124 = vmatpush.bf16.msra.mxu0 0
        %1125 = vmatpush.bf16.msra.mxu0 0
        %1126 = vmatpush.bf16.msra.mxu0 0
        %1127 = vmatpush.bf16.msra.mxu0 0
        %1128 = vmatpush.bf16.msra.mxu0 0
        %1129 = vmatpush.bf16.msra.mxu0 0
        %1130 = vmatpush.bf16.msra.mxu0 %v724
        %1131 = vmatpush.bf16.msra.mxu0 %v692
        %1132 = vmatmul.bf16.gmra.mxu0 %v797
        %v1133 = vpop.f32.mrf.mxu0
        %v1134 = vadd.f32 %v436, %v1133
        %v1135 = vpop.f32.mrf.mxu0
        %1136 = vdwg.mxu0
        %1137 = vmatpush.bf16.msra.mxu0 0
        %1138 = vmatpush.bf16.msra.mxu0 0
        %1139 = vmatpush.bf16.msra.mxu0 0
        %1140 = vmatpush.bf16.msra.mxu0 0
        %1141 = vmatpush.bf16.msra.mxu0 0
        %1142 = vmatpush.bf16.msra.mxu0 0
        %1143 = vmatpush.bf16.msra.mxu0 %v725
        %1144 = vmatpush.bf16.msra.mxu0 %v693
        %1145 = vmatmul.bf16.gmra.mxu0 %v797
        %v1146 = vpop.f32.mrf.mxu0
        %v1147 = vadd.f32 %v437, %v1146
        %v1148 = vpop.f32.mrf.mxu0
        %1149 = vdwg.mxu0
        %1150 = vmatpush.bf16.msra.mxu0 0
        %1151 = vmatpush.bf16.msra.mxu0 0
        %1152 = vmatpush.bf16.msra.mxu0 0
        %1153 = vmatpush.bf16.msra.mxu0 0
        %1154 = vmatpush.bf16.msra.mxu0 0
        %1155 = vmatpush.bf16.msra.mxu0 0
        %1156 = vmatpush.bf16.msra.mxu0 %v726
        %1157 = vmatpush.bf16.msra.mxu0 %v694
        %1158 = vmatmul.bf16.gmra.mxu0 %v797
        %v1159 = vpop.f32.mrf.mxu0
        %v1160 = vadd.f32 %v438, %v1159
        %v1161 = vpop.f32.mrf.mxu0
        %1162 = vdwg.mxu0
        %1163 = vmatpush.bf16.msra.mxu0 0
        %1164 = vmatpush.bf16.msra.mxu0 0
        %1165 = vmatpush.bf16.msra.mxu0 0
        %1166 = vmatpush.bf16.msra.mxu0 0
        %1167 = vmatpush.bf16.msra.mxu0 0
        %1168 = vmatpush.bf16.msra.mxu0 0
        %1169 = vmatpush.bf16.msra.mxu0 %v727
        %1170 = vmatpush.bf16.msra.mxu0 %v695
        %1171 = vmatmul.bf16.gmra.mxu0 %v797
        %v1172 = vpop.f32.mrf.mxu0
        %v1173 = vadd.f32 %v439, %v1172
        %v1174 = vpop.f32.mrf.mxu0
        %1175 = vdwg.mxu0
        %1176 = vmatpush.bf16.msra.mxu0 0
        %1177 = vmatpush.bf16.msra.mxu0 0
        %1178 = vmatpush.bf16.msra.mxu0 0
        %1179 = vmatpush.bf16.msra.mxu0 0
        %1180 = vmatpush.bf16.msra.mxu0 0
        %1181 = vmatpush.bf16.msra.mxu0 0
        %1182 = vmatpush.bf16.msra.mxu0 %v728
        %1183 = vmatpush.bf16.msra.mxu0 %v696
        %1184 = vmatmul.bf16.gmra.mxu0 %v797
        %v1185 = vpop.f32.mrf.mxu0
        %v1186 = vadd.f32 %v440, %v1185
        %v1187 = vpop.f32.mrf.mxu0
        %1188 = vdwg.mxu0
        %1189 = vmatpush.bf16.msra.mxu0 0
        %1190 = vmatpush.bf16.msra.mxu0 0
        %1191 = vmatpush.bf16.msra.mxu0 0
        %1192 = vmatpush.bf16.msra.mxu0 0
        %1193 = vmatpush.bf16.msra.mxu0 0
        %1194 = vmatpush.bf16.msra.mxu0 0
        %1195 = vmatpush.bf16.msra.mxu0 %v729
        %1196 = vmatpush.bf16.msra.mxu0 %v697
        %1197 = vmatmul.bf16.gmra.mxu0 %v797
        %v1198 = vpop.f32.mrf.mxu0
        %v1199 = vadd.f32 %v441, %v1198
        %v1200 = vpop.f32.mrf.mxu0
        %1201 = vdwg.mxu0
        %1202 = vmatpush.bf16.msra.mxu0 0
        %1203 = vmatpush.bf16.msra.mxu0 0
        %1204 = vmatpush.bf16.msra.mxu0 0
        %1205 = vmatpush.bf16.msra.mxu0 0
        %1206 = vmatpush.bf16.msra.mxu0 0
        %1207 = vmatpush.bf16.msra.mxu0 0
        %1208 = vmatpush.bf16.msra.mxu0 %v730
        %1209 = vmatpush.bf16.msra.mxu0 %v698
        %1210 = vmatmul.bf16.gmra.mxu0 %v797
        %v1211 = vpop.f32.mrf.mxu0
        %v1212 = vadd.f32 %v442, %v1211
        %v1213 = vpop.f32.mrf.mxu0
        %1214 = vdwg.mxu0
        %v1215 = vpack.c.bf16 %v822, %v809
        %v1216 = vpack.c.bf16 %v848, %v835
        %v1217 = vpack.c.bf16 %v874, %v861
        %v1218 = vpack.c.bf16 %v900, %v887
        %v1219 = vpack.c.bf16 %v926, %v913
        %v1220 = vpack.c.bf16 %v952, %v939
        %v1221 = vpack.c.bf16 %v978, %v965
        %v1222 = vpack.c.bf16 %v1004, %v991
        %v1223 = vpack.c.bf16 %v1030, %v1017
        %v1224 = vpack.c.bf16 %v1056, %v1043
        %v1225 = vpack.c.bf16 %v1082, %v1069
        %v1226 = vpack.c.bf16 %v1108, %v1095
        %v1227 = vpack.c.bf16 %v1134, %v1121
        %v1228 = vpack.c.bf16 %v1160, %v1147
        %v1229 = vpack.c.bf16 %v1186, %v1173
        %v1230 = vpack.c.bf16 %v1212, %v1199
        %v1247 = vrot.slane %v1215, 3
        %v1248 = vrot.slane %v1216, 6
        %v1249 = vrot.slane %v1216, 1
        %v1250 = vrot.slane %v1217, 4
        %v1251 = vrot.slane %v1217, 7
        %v1252 = vrot.slane %v1218, 2
        %v1253 = vrot.slane %v1218, 5
        %v1254 = vrot.slane %v1219, 3
        %v1255 = vrot.slane %v1220, 6
        %v1256 = vrot.slane %v1220, 1
        %v1257 = vrot.slane %v1221, 4
        %v1258 = vrot.slane %v1221, 7
        %v1259 = vrot.slane %v1222, 2
        %v1260 = vrot.slane %v1222, 5
        %v1261 = vrot.slane %v1223, 3
        %v1262 = vrot.slane %v1224, 6
        %v1263 = vrot.slane %v1224, 1
        %v1264 = vrot.slane %v1225, 4
        %v1265 = vrot.slane %v1225, 7
        %v1266 = vrot.slane %v1226, 2
        %v1267 = vrot.slane %v1226, 5
        %v1268 = vrot.slane %v1227, 3
        %v1269 = vrot.slane %v1228, 6
        %v1270 = vrot.slane %v1228, 1
        %v1271 = vrot.slane %v1229, 4
        %v1272 = vrot.slane %v1229, 7
        %v1273 = vrot.slane %v1230, 2
        %v1274 = vrot.slane %v1230, 5
        %vm1275 = vcmask 1040384
        %v1278 = vsel %vm1275, %v1215, %v1247
        %vm1279 = vcmask 1042434
        %v1282 = vsel %vm1279, %v1248, %v1249
        %vm1283 = vcmask 1041408
        %v1284 = vsel %vm1283, %v1278, %v1282
        %vm1285 = vcmask 1044484
        %v1288 = vsel %vm1285, %v1250, %v1251
        %vm1289 = vcmask 1046534
        %v1292 = vsel %vm1289, %v1252, %v1253
        %vm1293 = vcmask 1045508
        %v1294 = vsel %vm1293, %v1288, %v1292
        %vm1295 = vcmask 1043456
        %v1296 = vsel %vm1295, %v1284, %v1294
        %v1299 = vsel %vm1275, %v1219, %v1254
        %v1302 = vsel %vm1279, %v1255, %v1256
        %v1303 = vsel %vm1283, %v1299, %v1302
        %v1306 = vsel %vm1285, %v1257, %v1258
        %v1309 = vsel %vm1289, %v1259, %v1260
        %v1310 = vsel %vm1293, %v1306, %v1309
        %v1311 = vsel %vm1295, %v1303, %v1310
        %v1314 = vsel %vm1275, %v1223, %v1261
        %v1317 = vsel %vm1279, %v1262, %v1263
        %v1318 = vsel %vm1283, %v1314, %v1317
        %v1321 = vsel %vm1285, %v1264, %v1265
        %v1324 = vsel %vm1289, %v1266, %v1267
        %v1325 = vsel %vm1293, %v1321, %v1324
        %v1326 = vsel %vm1295, %v1318, %v1325
        %v1329 = vsel %vm1275, %v1227, %v1268
        %v1332 = vsel %vm1279, %v1269, %v1270
        %v1333 = vsel %vm1283, %v1329, %v1332
        %v1336 = vsel %vm1285, %v1271, %v1272
        %v1339 = vsel %vm1289, %v1273, %v1274
        %v1340 = vsel %vm1293, %v1336, %v1339
        %v1341 = vsel %vm1295, %v1333, %v1340
        %1346 = vst [vmem:[%s334] sm:$0xff] %v1296
        %1347 = vst [vmem:[%s334 + $0x8] sm:$0xff] %v1311
        %1348 = vst [vmem:[%s334 + $0x10] sm:$0xff] %v1326
        %1349 = vst [vmem:[%s334 + $0x18] sm:$0xff] %v1341
        %s1350 = smul.u32 32, %s14
        %p1351 = scmp.lt.s32.totalorder %s1350, 63
        %s1352 = scalar_select %p1351, %s1350, 63
        %s1353 = scalar_lea.vmem %s3, %s1352
        // Predicated region
        $region56: #{generator_forward.4} parent=50 // pred_check
          %p1354 = pneg %p105
        $region57: #{generator_forward.4} parent=50 // pred_check_branch
          %1356 = sbr.rel (%p1354) target = $region59
        $region58: #{generator_forward.4} parent=50 // pred_region
          %s1357 = smul.u32 32, %s14
        $region59: #{generator_forward.4} parent=50 // pred_fallthru
          _
      $region51: #{generator_forward.4} parent=5 // pred_fallthru
        _
      %p1358 = scmp.le.s32.totalorder 2, %s9
      // Predicated region
      $region60: #{generator_forward.4} parent=5 // pred_check
        %p1359 = pneg %p1358
      $region61: #{generator_forward.4} parent=5 // pred_check_branch
        %1361 = sbr.rel (%p1359) target = $region63
      $region62: #{generator_forward.4} parent=5 // pred_region
        %s1362 = ssub.s32 %s9, 2
        // Predicated region
        $region64: #{generator_forward.4} parent=62 // pred_check
          %p1363 = pneg %p111
        $region65: #{generator_forward.4} parent=62 // pred_check_branch
          %1365 = sbr.rel (%p1363) target = $region67
        $region66: #{generator_forward.4} parent=62 // pred_region
          %s1366 = smul.u32 32, %s15
          %p1367 = scmp.lt.s32.totalorder %s1366, 63
          %s1368 = scalar_select %p1367, %s1366, 63
          %s1369 = scalar_lea.vmem %s3, %s1368
        $region67: #{generator_forward.4} parent=62 // pred_fallthru
          _
      $region63: #{generator_forward.4} parent=5 // pred_fallthru
        _
    $region6: #{generator_forward.4} parent=1 // loop_footer
      %s13 = sadd.s32 1, %s9
    $region7: #{generator_forward.4} parent=1 // loop_footer_branch
      %8 = sbr.rel target = $region3
    $region8: #{generator_forward.4} parent=1 // loop_exit
      _

// kernel: generator_forward.5
$region0: #{generator_forward.5}
  #allocation0 [shape = 'u32[]', space=smem, size = 0x4, offset = 0x4, fixed_abs, tag = 'smem constant byte address 0x4 - core index']
  #allocation1 [shape = 'u32[72,128]{1,0:T(1,128)}', space=vmem, size = 0x9000, scoped, tag = 'internal scratch']
  %s0 = inlined_call_operand.vmem [shape: bf16[2,8,8,128], index: 0, kind: input, shape index: {}]
  %s1 = inlined_call_operand.vmem [shape: f32[1,128], index: 1, kind: input, shape index: {}]
  %s2 = inlined_call_operand.vmem [shape: f32[1,128], index: 2, kind: input, shape index: {}]
  %s3 = inlined_call_operand.vmem [shape: bf16[2,3,384,64], index: 3, kind: input, shape index: {}]
  %s4 = inlined_call_operand.vmem [shape: f32[2,1,64], index: 4, kind: input, shape index: {}]
  %s5 = inlined_call_operand.vmem [shape: f32[2,1,64], index: 5, kind: input, shape index: {}]
  %s6 = inlined_call_operand.vmem [shape: bf16[2,2,8,8,64], index: 6, kind: output, shape index: {}]
  %s7 = sld [smem:[#allocation0]]
  $region57: #{generator_forward.5} parent=0
    _
  %s9 = ssub.s32 1, %s7
  %s10 = scalar_select 0, %s9, %s7
  loop: start=0, step=1, limit=4
  $region2: #{generator_forward.5} parent=0 // loop_pre_header
    _
  $region3: #{generator_forward.5} parent=0 // loop_header
    %s12 = sphi 0, %s16
    %p13 = scmp.ge.s32.totalorder %s12, 4
    %s20 = sphi 0, %s20
    %s22 = sphi 0, %s20
    %s23 = sphi 0, %s22
    %s37 = sphi 0, %s23
    %s41 = sphi 0, %s41
    %s43 = sphi 0, %s41
    %s44 = sphi 0, %s43
    %s58 = sphi 0, %s44
    %s62 = sphi 0, %s62
    %s64 = sphi 0, %s62
    %s65 = sphi 0, %s64
    %s79 = sphi 0, %s65
    %s85 = sphi 0, %s87
    %s88 = sphi 0, %s85
    %s89 = sphi 0, %s88
    %s105 = sphi 0, %s89
    %s111 = sphi 0, %s113
    %s114 = sphi 0, %s111
    %s115 = sphi 0, %s114
    %s131 = sphi 0, %s115
    %s137 = sphi 0, %s139
    %s140 = sphi 0, %s137
    %s141 = sphi 0, %s140
    %s157 = sphi 0, %s141
    %s163 = sphi 0, %s165
    %s166 = sphi 0, %s163
    %s167 = sphi 0, %s166
    %s183 = sphi 0, %s167
  $region4: #{generator_forward.5} parent=0 // loop_header_branch
    %15 = sbr.rel (%p13) target = $region8
  $region5: #{generator_forward.5} parent=0 // loop_body
    %s17 = ssub.s32 %s12, 1
    %s18 = ssub.s32 %s12, 2
    %s19 = sadd.s32 %s12, 1
    %s21 = sadd.s32 %s20, 1
    %p24 = scmp.eq.s32.totalorder %s12, 1
    %p25 = scmp.ne.s32.totalorder %s20, %s22
    %p26 = scmp.eq.s32.totalorder %s12, 0
    %p27 = por %p25, %p26
    %p28 = scmp.ne.s32.totalorder %s20, %s22
    %p29 = scmp.eq.s32.totalorder %s17, 1
    %p30 = por %p28, %p29
    %p31 = scmp.ne.s32.totalorder %s22, %s23
    %p32 = scmp.eq.s32.totalorder %s17, 0
    %p33 = por %p31, %p32
    %p34 = scmp.ne.s32.totalorder %s22, %s23
    %p35 = scmp.eq.s32.totalorder %s18, 1
    %p36 = por %p34, %p35
    %p38 = scmp.ne.s32.totalorder %s23, %s37
    %p39 = scmp.eq.s32.totalorder %s18, 0
    %p40 = por %p38, %p39
    %s42 = sadd.s32 %s41, 1
    %p45 = scmp.eq.s32.totalorder %s12, 1
    %p46 = scmp.ne.s32.totalorder %s41, %s43
    %p47 = scmp.eq.s32.totalorder %s12, 0
    %p48 = por %p46, %p47
    %p49 = scmp.ne.s32.totalorder %s41, %s43
    %p50 = scmp.eq.s32.totalorder %s17, 1
    %p51 = por %p49, %p50
    %p52 = scmp.ne.s32.totalorder %s43, %s44
    %p53 = scmp.eq.s32.totalorder %s17, 0
    %p54 = por %p52, %p53
    %p55 = scmp.ne.s32.totalorder %s43, %s44
    %p56 = scmp.eq.s32.totalorder %s18, 1
    %p57 = por %p55, %p56
    %p59 = scmp.ne.s32.totalorder %s44, %s58
    %p60 = scmp.eq.s32.totalorder %s18, 0
    %p61 = por %p59, %p60
    %s63 = sadd.s32 %s62, 1
    %p66 = scmp.eq.s32.totalorder %s12, 1
    %p67 = scmp.ne.s32.totalorder %s62, %s64
    %p68 = scmp.eq.s32.totalorder %s12, 0
    %p69 = por %p67, %p68
    %p70 = scmp.ne.s32.totalorder %s62, %s64
    %p71 = scmp.eq.s32.totalorder %s17, 1
    %p72 = por %p70, %p71
    %p73 = scmp.ne.s32.totalorder %s64, %s65
    %p74 = scmp.eq.s32.totalorder %s17, 0
    %p75 = por %p73, %p74
    %p76 = scmp.ne.s32.totalorder %s64, %s65
    %p77 = scmp.eq.s32.totalorder %s18, 1
    %p78 = por %p76, %p77
    %p80 = scmp.ne.s32.totalorder %s65, %s79
    %p81 = scmp.eq.s32.totalorder %s18, 0
    %p82 = por %p80, %p81
    %s83 = ssub.s32 %s12, %s19
    %p84 = scmp.eq.s32.totalorder %s83, 0
    %s86 = sadd.s32 %s85, 1
    %s87 = scalar_select %p84, %s85, %s86
    %p90 = pneg %p84
    %p91 = scmp.eq.s32.totalorder %s12, 1
    %p92 = por %p90, %p91
    %p93 = scmp.ne.s32.totalorder %s85, %s88
    %p94 = scmp.eq.s32.totalorder %s12, 0
    %p95 = por %p93, %p94
    %p96 = scmp.ne.s32.totalorder %s85, %s88
    %p97 = scmp.eq.s32.totalorder %s17, 1
    %p98 = por %p96, %p97
    %p99 = scmp.ne.s32.totalorder %s88, %s89
    %p100 = scmp.eq.s32.totalorder %s17, 0
    %p101 = por %p99, %p100
    %p102 = scmp.ne.s32.totalorder %s88, %s89
    %p103 = scmp.eq.s32.totalorder %s18, 1
    %p104 = por %p102, %p103
    %p106 = scmp.ne.s32.totalorder %s89, %s105
    %p107 = scmp.eq.s32.totalorder %s18, 0
    %p108 = por %p106, %p107
    %s109 = ssub.s32 %s12, %s19
    %p110 = scmp.eq.s32.totalorder %s109, 0
    %s112 = sadd.s32 %s111, 1
    %s113 = scalar_select %p110, %s111, %s112
    %p116 = pneg %p110
    %p117 = scmp.eq.s32.totalorder %s12, 1
    %p118 = por %p116, %p117
    %p119 = scmp.ne.s32.totalorder %s111, %s114
    %p120 = scmp.eq.s32.totalorder %s12, 0
    %p121 = por %p119, %p120
    %p122 = scmp.ne.s32.totalorder %s111, %s114
    %p123 = scmp.eq.s32.totalorder %s17, 1
    %p124 = por %p122, %p123
    %p125 = scmp.ne.s32.totalorder %s114, %s115
    %p126 = scmp.eq.s32.totalorder %s17, 0
    %p127 = por %p125, %p126
    %p128 = scmp.ne.s32.totalorder %s114, %s115
    %p129 = scmp.eq.s32.totalorder %s18, 1
    %p130 = por %p128, %p129
    %p132 = scmp.ne.s32.totalorder %s115, %s131
    %p133 = scmp.eq.s32.totalorder %s18, 0
    %p134 = por %p132, %p133
    %s135 = ssub.s32 %s12, %s19
    %p136 = scmp.eq.s32.totalorder %s135, 0
    %s138 = sadd.s32 %s137, 1
    %s139 = scalar_select %p136, %s137, %s138
    %p142 = pneg %p136
    %p143 = scmp.eq.s32.totalorder %s12, 1
    %p144 = por %p142, %p143
    %p145 = scmp.ne.s32.totalorder %s137, %s140
    %p146 = scmp.eq.s32.totalorder %s12, 0
    %p147 = por %p145, %p146
    %p148 = scmp.ne.s32.totalorder %s137, %s140
    %p149 = scmp.eq.s32.totalorder %s17, 1
    %p150 = por %p148, %p149
    %p151 = scmp.ne.s32.totalorder %s140, %s141
    %p152 = scmp.eq.s32.totalorder %s17, 0
    %p153 = por %p151, %p152
    %p154 = scmp.ne.s32.totalorder %s140, %s141
    %p155 = scmp.eq.s32.totalorder %s18, 1
    %p156 = por %p154, %p155
    %p158 = scmp.ne.s32.totalorder %s141, %s157
    %p159 = scmp.eq.s32.totalorder %s18, 0
    %p160 = por %p158, %p159
    %s161 = ssub.s32 %s12, %s19
    %p162 = scmp.eq.s32.totalorder %s161, 0
    %s164 = sadd.s32 %s163, 1
    %s165 = scalar_select %p162, %s163, %s164
    %p168 = pneg %p162
    %p169 = scmp.eq.s32.totalorder %s12, 1
    %p170 = por %p168, %p169
    %p171 = scmp.ne.s32.totalorder %s163, %s166
    %p172 = scmp.eq.s32.totalorder %s12, 0
    %p173 = por %p171, %p172
    %p174 = scmp.ne.s32.totalorder %s163, %s166
    %p175 = scmp.eq.s32.totalorder %s17, 1
    %p176 = por %p174, %p175
    %p177 = scmp.ne.s32.totalorder %s166, %s167
    %p178 = scmp.eq.s32.totalorder %s17, 0
    %p179 = por %p177, %p178
    %p180 = scmp.ne.s32.totalorder %s166, %s167
    %p181 = scmp.eq.s32.totalorder %s18, 1
    %p182 = por %p180, %p181
    %p184 = scmp.ne.s32.totalorder %s167, %s183
    %p185 = scmp.eq.s32.totalorder %s18, 0
    %p186 = por %p184, %p185
    %p187 = scmp.le.s32.totalorder 1, %s12
    %p188 = scmp.lt.s32.totalorder %s12, 3
    %p189 = pnand %p187, %p188
    %p190 = pneg %p189
    // Predicated region
    $region9: #{generator_forward.5} parent=5 // pred_check
      _
    $region10: #{generator_forward.5} parent=5 // pred_check_branch
      %192 = sbr.rel (%p189) target = $region12
    $region11: #{generator_forward.5} parent=5 // pred_region
      %s193 = ssub.s32 %s12, 1
      // Predicated region
      $region13: #{generator_forward.5} parent=11 // pred_check
        %p194 = pneg %p33
      $region14: #{generator_forward.5} parent=11 // pred_check_branch
        %196 = sbr.rel (%p194) target = $region16
      $region15: #{generator_forward.5} parent=11 // pred_region
        _
      $region16: #{generator_forward.5} parent=11 // pred_fallthru
        _
      // Predicated region
      $region17: #{generator_forward.5} parent=11 // pred_check
        %p197 = pneg %p54
      $region18: #{generator_forward.5} parent=11 // pred_check_branch
        %199 = sbr.rel (%p197) target = $region20
      $region19: #{generator_forward.5} parent=11 // pred_region
        _
      $region20: #{generator_forward.5} parent=11 // pred_fallthru
        _
      // Predicated region
      $region21: #{generator_forward.5} parent=11 // pred_check
        %p200 = pneg %p75
      $region22: #{generator_forward.5} parent=11 // pred_check_branch
        %202 = sbr.rel (%p200) target = $region24
      $region23: #{generator_forward.5} parent=11 // pred_region
        _
      $region24: #{generator_forward.5} parent=11 // pred_fallthru
        _
    $region12: #{generator_forward.5} parent=5 // pred_fallthru
      _
    %p203 = scmp.lt.s32.totalorder %s12, 2
    // Predicated region
    $region25: #{generator_forward.5} parent=5 // pred_check
      %p204 = pneg %p203
    $region26: #{generator_forward.5} parent=5 // pred_check_branch
      %206 = sbr.rel (%p204) target = $region28
    $region27: #{generator_forward.5} parent=5 // pred_region
      // Predicated region
      $region29: #{generator_forward.5} parent=27 // pred_check
        %p207 = pneg %p95
      $region30: #{generator_forward.5} parent=27 // pred_check_branch
        %209 = sbr.rel (%p207) target = $region32
      $region31: #{generator_forward.5} parent=27 // pred_region
        %p210 = scmp.lt.s32.totalorder %s12, 1
        %s211 = scalar_select %p210, %s12, 1
        %s212 = smul.addr %s211, 144
        %s213 = smul.addr %s212, 4
        %s214 = scalar_lea.vmem %s3, %s213
      $region32: #{generator_forward.5} parent=27 // pred_fallthru
        _
      // Predicated region
      $region33: #{generator_forward.5} parent=27 // pred_check
        %p215 = pneg %p121
      $region34: #{generator_forward.5} parent=27 // pred_check_branch
        %217 = sbr.rel (%p215) target = $region36
      $region35: #{generator_forward.5} parent=27 // pred_region
        %p218 = scmp.lt.s32.totalorder %s12, 1
        %s219 = scalar_select %p218, %s12, 1
        %s220 = scalar_lea.vmem %s4, %s219
      $region36: #{generator_forward.5} parent=27 // pred_fallthru
        _
      // Predicated region
      $region37: #{generator_forward.5} parent=27 // pred_check
        %p221 = pneg %p147
      $region38: #{generator_forward.5} parent=27 // pred_check_branch
        %223 = sbr.rel (%p221) target = $region40
      $region39: #{generator_forward.5} parent=27 // pred_region
        %p224 = scmp.lt.s32.totalorder %s12, 1
        %s225 = scalar_select %p224, %s12, 1
        %s226 = scalar_lea.vmem %s5, %s225
      $region40: #{generator_forward.5} parent=27 // pred_fallthru
        _
    $region28: #{generator_forward.5} parent=5 // pred_fallthru
      _
    %p227 = scmp.le.s32.totalorder 1, %s12
    %p228 = scmp.lt.s32.totalorder %s12, 3
    %p229 = pnand %p227, %p228
    %p230 = pneg %p229
    // Predicated region
    $region41: #{generator_forward.5} parent=5 // pred_check
      _
    $region42: #{generator_forward.5} parent=5 // pred_check_branch
      %232 = sbr.rel (%p229) target = $region44
    $region43: #{generator_forward.5} parent=5 // pred_region
      %s233 = ssub.s32 %s12, 1
      %p234 = pneg %p33
      %p235 = pneg %p30
      %p236 = pneg %p54
      %p237 = pneg %p51
      %p238 = pneg %p75
      %p239 = pneg %p72
      %p240 = scmp.lt.s32.totalorder %s17, 1
      %s241 = scalar_select %p240, %s17, 1
      %s242 = smul.addr %s241, 144
      %s243 = smul.addr %s242, 4
      %s244 = scalar_lea.vmem %s3, %s243
      %p245 = pneg %p101
      %p246 = pneg %p98
      %p247 = scmp.lt.s32.totalorder %s17, 1
      %s248 = scalar_select %p247, %s17, 1
      %s249 = scalar_lea.vmem %s4, %s248
      %p250 = pneg %p127
      %p251 = pneg %p124
      %p252 = scmp.lt.s32.totalorder %s17, 1
      %s253 = scalar_select %p252, %s17, 1
      %s254 = scalar_lea.vmem %s5, %s253
      %p255 = pneg %p153
      %p256 = pneg %p150
      %p257 = pneg %p179
      %p258 = pneg %p176
      %p259 = scmp.lt.s32.totalorder %s17, 1
      %s260 = scalar_select %p259, %s17, 1
      %s261 = smul.addr %s260, 16
      %s262 = smul.addr %s261, 4
      %s263 = scalar_lea.vmem %s6, %s262
      %p264 = scmp.lt.s32.totalorder %s17, 1
      %s265 = scalar_select %p264, %s17, 1
      %s266 = smul.addr %s265, 144
      %s267 = smul.addr %s266, 4
      %s268 = scalar_lea.vmem %s3, %s267
      %p269 = scmp.lt.s32.totalorder %s17, 1
      %s270 = scalar_select %p269, %s17, 1
      %s271 = scalar_lea.vmem %s4, %s270
      %p272 = scmp.lt.s32.totalorder %s17, 1
      %s273 = scalar_select %p272, %s17, 1
      %s274 = scalar_lea.vmem %s5, %s273
      %p275 = scmp.lt.s32.totalorder %s17, 1
      %s276 = scalar_select %p275, %s17, 1
      %s277 = smul.addr %s276, 16
      %s278 = smul.addr %s277, 4
      %s279 = scalar_lea.vmem %s6, %s278
      %v281 = vld [vmem:[%s0] sm:$0xf]
      %v282 = vld [vmem:[%s0 + $0x4] sm:$0xf]
      %v283 = vld [vmem:[%s0 + $0x8] sm:$0xf]
      %v284 = vld [vmem:[%s0 + $0xc] sm:$0xf]
      %v285 = vld [vmem:[%s0 + $0x10] sm:$0xf]
      %v286 = vld [vmem:[%s0 + $0x14] sm:$0xf]
      %v287 = vld [vmem:[%s0 + $0x18] sm:$0xf]
      %v288 = vld [vmem:[%s0 + $0x1c] sm:$0xf]
      %v289 = vld [vmem:[%s0 + $0x20] sm:$0xf]
      %v290 = vld [vmem:[%s0 + $0x24] sm:$0xf]
      %v291 = vld [vmem:[%s0 + $0x28] sm:$0xf]
      %v292 = vld [vmem:[%s0 + $0x2c] sm:$0xf]
      %v293 = vld [vmem:[%s0 + $0x30] sm:$0xf]
      %v294 = vld [vmem:[%s0 + $0x34] sm:$0xf]
      %v295 = vld [vmem:[%s0 + $0x38] sm:$0xf]
      %v296 = vld [vmem:[%s0 + $0x3c] sm:$0xf]
      %v297 = vunpack.c.l.bf16 %v281
      %v298 = vunpack.c.l.bf16 %v282
      %v299 = vunpack.c.l.bf16 %v283
      %v300 = vunpack.c.l.bf16 %v284
      %v301 = vunpack.c.l.bf16 %v285
      %v302 = vunpack.c.l.bf16 %v286
      %v303 = vunpack.c.l.bf16 %v287
      %v304 = vunpack.c.l.bf16 %v288
      %v305 = vunpack.c.l.bf16 %v289
      %v306 = vunpack.c.l.bf16 %v290
      %v307 = vunpack.c.l.bf16 %v291
      %v308 = vunpack.c.l.bf16 %v292
      %v309 = vunpack.c.l.bf16 %v293
      %v310 = vunpack.c.l.bf16 %v294
      %v311 = vunpack.c.l.bf16 %v295
      %v312 = vunpack.c.l.bf16 %v296
      %v313 = vld [vmem:[%s1] sm:$0x1]
      %v314 = vld [vmem:[%s2] sm:$0x1]
      %v315 = vadd.f32 %v297, %v298
      %v316 = vadd.f32 %v315, %v299
      %v317 = vadd.f32 %v316, %v300
      %v318 = vadd.f32 %v317, %v301
      %v319 = vadd.f32 %v318, %v302
      %v320 = vadd.f32 %v319, %v303
      %v321 = vadd.f32 %v320, %v304
      %v322 = vadd.f32 %v321, %v305
      %v323 = vadd.f32 %v322, %v306
      %v324 = vadd.f32 %v323, %v307
      %v325 = vadd.f32 %v324, %v308
      %v326 = vadd.f32 %v325, %v309
      %v327 = vadd.f32 %v326, %v310
      %v328 = vadd.f32 %v327, %v311
      %v329 = vadd.f32 %v328, %v312
      %v330 = vrot.slane %v329, 4
      %v331 = vadd.f32 %v329, %v330
      %v332 = vrot.slane %v331, 2
      %v333 = vadd.f32 %v331, %v332
      %v334 = vrot.slane %v333, 1
      %v335 = vadd.f32 %v333, %v334
      %v336 = vmul.f32 %v335, 0.0078125
      %v337 = vsub.f32 %v297, %v336
      %v338 = vsub.f32 %v298, %v336
      %v339 = vsub.f32 %v299, %v336
      %v340 = vsub.f32 %v300, %v336
      %v341 = vsub.f32 %v301, %v336
      %v342 = vsub.f32 %v302, %v336
      %v343 = vsub.f32 %v303, %v336
      %v344 = vsub.f32 %v304, %v336
      %v345 = vsub.f32 %v305, %v336
      %v346 = vsub.f32 %v306, %v336
      %v347 = vsub.f32 %v307, %v336
      %v348 = vsub.f32 %v308, %v336
      %v349 = vsub.f32 %v309, %v336
      %v350 = vsub.f32 %v310, %v336
      %v351 = vsub.f32 %v311, %v336
      %v352 = vsub.f32 %v312, %v336
      %v353 = vmul.f32 %v337, %v337
      %v354 = vmul.f32 %v338, %v338
      %v355 = vmul.f32 %v339, %v339
      %v356 = vmul.f32 %v340, %v340
      %v357 = vmul.f32 %v341, %v341
      %v358 = vmul.f32 %v342, %v342
      %v359 = vmul.f32 %v343, %v343
      %v360 = vmul.f32 %v344, %v344
      %v361 = vmul.f32 %v345, %v345
      %v362 = vmul.f32 %v346, %v346
      %v363 = vmul.f32 %v347, %v347
      %v364 = vmul.f32 %v348, %v348
      %v365 = vmul.f32 %v349, %v349
      %v366 = vmul.f32 %v350, %v350
      %v367 = vmul.f32 %v351, %v351
      %v368 = vmul.f32 %v352, %v352
      %v369 = vadd.f32 %v353, %v354
      %v370 = vadd.f32 %v369, %v355
      %v371 = vadd.f32 %v370, %v356
      %v372 = vadd.f32 %v371, %v357
      %v373 = vadd.f32 %v372, %v358
      %v374 = vadd.f32 %v373, %v359
      %v375 = vadd.f32 %v374, %v360
      %v376 = vadd.f32 %v375, %v361
      %v377 = vadd.f32 %v376, %v362
      %v378 = vadd.f32 %v377, %v363
      %v379 = vadd.f32 %v378, %v364
      %v380 = vadd.f32 %v379, %v365
      %v381 = vadd.f32 %v380, %v366
      %v382 = vadd.f32 %v381, %v367
      %v383 = vadd.f32 %v382, %v368
      %v384 = vrot.slane %v383, 4
      %v385 = vadd.f32 %v383, %v384
      %v386 = vrot.slane %v385, 2
      %v387 = vadd.f32 %v385, %v386
      %v388 = vrot.slane %v387, 1
      %v389 = vadd.f32 %v387, %v388
      %v390 = vmul.f32 %v389, 0.0078125
      %v391 = vadd.f32 %v390, 1e-05
      %v392 = vrsqrt.pop %v391
      %v393 = vmul.f32 %v392, %v391
      %v394 = vmul.f32 %v393, %v392
      %v395 = vmul.f32 0.5, %v394
      %v396 = vsub.f32 1.5, %v395
      %v397 = vmul.f32 %v392, %v396
      %vm398 = vweird.f32 %v391
      %vm399 = vweird.f32 %v392
      %vm400 = vmor %vm398, %vm399
      %v401 = vsel %vm400, %v392, %v397
      %v402 = vmul.f32 %v337, %v401
      %v403 = vmul.f32 %v338, %v401
      %v404 = vmul.f32 %v339, %v401
      %v405 = vmul.f32 %v340, %v401
      %v406 = vmul.f32 %v341, %v401
      %v407 = vmul.f32 %v342, %v401
      %v408 = vmul.f32 %v343, %v401
      %v409 = vmul.f32 %v344, %v401
      %v410 = vmul.f32 %v345, %v401
      %v411 = vmul.f32 %v346, %v401
      %v412 = vmul.f32 %v347, %v401
      %v413 = vmul.f32 %v348, %v401
      %v414 = vmul.f32 %v349, %v401
      %v415 = vmul.f32 %v350, %v401
      %v416 = vmul.f32 %v351, %v401
      %v417 = vmul.f32 %v352, %v401
      %v419 = vperm.slane %v313, 0
      %v421 = vmul.f32 %v402, %v419
      %v422 = vmul.f32 %v403, %v419
      %v423 = vmul.f32 %v404, %v419
      %v424 = vmul.f32 %v405, %v419
      %v425 = vmul.f32 %v406, %v419
      %v426 = vmul.f32 %v407, %v419
      %v427 = vmul.f32 %v408, %v419
      %v428 = vmul.f32 %v409, %v419
      %v429 = vmul.f32 %v410, %v419
      %v430 = vmul.f32 %v411, %v419
      %v431 = vmul.f32 %v412, %v419
      %v432 = vmul.f32 %v413, %v419
      %v433 = vmul.f32 %v414, %v419
      %v434 = vmul.f32 %v415, %v419
      %v435 = vmul.f32 %v416, %v419
      %v436 = vmul.f32 %v417, %v419
      %v438 = vperm.slane %v314, 0
      %v440 = vadd.f32 %v421, %v438
      %v441 = vadd.f32 %v422, %v438
      %v442 = vadd.f32 %v423, %v438
      %v443 = vadd.f32 %v424, %v438
      %v444 = vadd.f32 %v425, %v438
      %v445 = vadd.f32 %v426, %v438
      %v446 = vadd.f32 %v427, %v438
      %v447 = vadd.f32 %v428, %v438
      %v448 = vadd.f32 %v429, %v438
      %v449 = vadd.f32 %v430, %v438
      %v450 = vadd.f32 %v431, %v438
      %v451 = vadd.f32 %v432, %v438
      %v452 = vadd.f32 %v433, %v438
      %v453 = vadd.f32 %v434, %v438
      %v454 = vadd.f32 %v435, %v438
      %v455 = vadd.f32 %v436, %v438
      %v456 = vpack.c.bf16 %v440, %v440
      %v457 = vpack.c.bf16 %v441, %v441
      %v458 = vpack.c.bf16 %v442, %v442
      %v459 = vpack.c.bf16 %v443, %v443
      %v460 = vpack.c.bf16 %v444, %v444
      %v461 = vpack.c.bf16 %v445, %v445
      %v462 = vpack.c.bf16 %v446, %v446
      %v463 = vpack.c.bf16 %v447, %v447
      %v464 = vpack.c.bf16 %v448, %v448
      %v465 = vpack.c.bf16 %v449, %v449
      %v466 = vpack.c.bf16 %v450, %v450
      %v467 = vpack.c.bf16 %v451, %v451
      %v468 = vpack.c.bf16 %v452, %v452
      %v469 = vpack.c.bf16 %v453, %v453
      %v470 = vpack.c.bf16 %v454, %v454
      %v471 = vpack.c.bf16 %v455, %v455
      %v472 = vld [vmem:[%s268] sm:$0xf]
      %v473 = vld [vmem:[%s268 + $0x4] sm:$0xf]
      %v474 = vld [vmem:[%s268 + $0x8] sm:$0xf]
      %v475 = vld [vmem:[%s268 + $0xc] sm:$0xf]
      %v476 = vld [vmem:[%s268 + $0x10] sm:$0xf]
      %v477 = vld [vmem:[%s268 + $0x14] sm:$0xf]
      %v478 = vld [vmem:[%s268 + $0x18] sm:$0xf]
      %v479 = vld [vmem:[%s268 + $0x1c] sm:$0xf]
      %v480 = vld [vmem:[%s268 + $0x20] sm:$0xf]
      %v481 = vld [vmem:[%s268 + $0x24] sm:$0xf]
      %v482 = vld [vmem:[%s268 + $0x28] sm:$0xf]
      %v483 = vld [vmem:[%s268 + $0x2c] sm:$0xf]
      %v484 = vld [vmem:[%s268 + $0x30] sm:$0xf]
      %v485 = vld [vmem:[%s268 + $0x34] sm:$0xf]
      %v486 = vld [vmem:[%s268 + $0x38] sm:$0xf]
      %v487 = vld [vmem:[%s268 + $0x3c] sm:$0xf]
      %v488 = vld [vmem:[%s268 + $0x40] sm:$0xf]
      %v489 = vld [vmem:[%s268 + $0x44] sm:$0xf]
      %v490 = vld [vmem:[%s268 + $0x48] sm:$0xf]
      %v491 = vld [vmem:[%s268 + $0x4c] sm:$0xf]
      %v492 = vld [vmem:[%s268 + $0x50] sm:$0xf]
      %v493 = vld [vmem:[%s268 + $0x54] sm:$0xf]
      %v494 = vld [vmem:[%s268 + $0x58] sm:$0xf]
      %v495 = vld [vmem:[%s268 + $0x5c] sm:$0xf]
      %v496 = vld [vmem:[%s268 + $0x60] sm:$0xf]
      %v497 = vld [vmem:[%s268 + $0x64] sm:$0xf]
      %v498 = vld [vmem:[%s268 + $0x68] sm:$0xf]
      %v499 = vld [vmem:[%s268 + $0x6c] sm:$0xf]
      %v500 = vld [vmem:[%s268 + $0x70] sm:$0xf]
      %v501 = vld [vmem:[%s268 + $0x74] sm:$0xf]
      %v502 = vld [vmem:[%s268 + $0x78] sm:$0xf]
      %v503 = vld [vmem:[%s268 + $0x7c] sm:$0xf]
      %v504 = vld [vmem:[%s268 + $0x80] sm:$0xf]
      %v505 = vld [vmem:[%s268 + $0x84] sm:$0xf]
      %v506 = vld [vmem:[%s268 + $0x88] sm:$0xf]
      %v507 = vld [vmem:[%s268 + $0x8c] sm:$0xf]
      %v508 = vld [vmem:[%s268 + $0x90] sm:$0xf]
      %v509 = vld [vmem:[%s268 + $0x94] sm:$0xf]
      %v510 = vld [vmem:[%s268 + $0x98] sm:$0xf]
      %v511 = vld [vmem:[%s268 + $0x9c] sm:$0xf]
      %v512 = vld [vmem:[%s268 + $0xa0] sm:$0xf]
      %v513 = vld [vmem:[%s268 + $0xa4] sm:$0xf]
      %v514 = vld [vmem:[%s268 + $0xa8] sm:$0xf]
      %v515 = vld [vmem:[%s268 + $0xac] sm:$0xf]
      %v516 = vld [vmem:[%s268 + $0xb0] sm:$0xf]
      %v517 = vld [vmem:[%s268 + $0xb4] sm:$0xf]
      %v518 = vld [vmem:[%s268 + $0xb8] sm:$0xf]
      %v519 = vld [vmem:[%s268 + $0xbc] sm:$0xf]
      %v520 = vld [vmem:[%s268 + $0xc0] sm:$0xf]
      %v521 = vld [vmem:[%s268 + $0xc4] sm:$0xf]
      %v522 = vld [vmem:[%s268 + $0xc8] sm:$0xf]
      %v523 = vld [vmem:[%s268 + $0xcc] sm:$0xf]
      %v524 = vld [vmem:[%s268 + $0xd0] sm:$0xf]
      %v525 = vld [vmem:[%s268 + $0xd4] sm:$0xf]
      %v526 = vld [vmem:[%s268 + $0xd8] sm:$0xf]
      %v527 = vld [vmem:[%s268 + $0xdc] sm:$0xf]
      %v528 = vld [vmem:[%s268 + $0xe0] sm:$0xf]
      %v529 = vld [vmem:[%s268 + $0xe4] sm:$0xf]
      %v530 = vld [vmem:[%s268 + $0xe8] sm:$0xf]
      %v531 = vld [vmem:[%s268 + $0xec] sm:$0xf]
      %v532 = vld [vmem:[%s268 + $0xf0] sm:$0xf]
      %v533 = vld [vmem:[%s268 + $0xf4] sm:$0xf]
      %v534 = vld [vmem:[%s268 + $0xf8] sm:$0xf]
      %v535 = vld [vmem:[%s268 + $0xfc] sm:$0xf]
      %v536 = vld [vmem:[%s268 + $0x100] sm:$0xf]
      %v537 = vld [vmem:[%s268 + $0x104] sm:$0xf]
      %v538 = vld [vmem:[%s268 + $0x108] sm:$0xf]
      %v539 = vld [vmem:[%s268 + $0x10c] sm:$0xf]
      %v540 = vld [vmem:[%s268 + $0x110] sm:$0xf]
      %v541 = vld [vmem:[%s268 + $0x114] sm:$0xf]
      %v542 = vld [vmem:[%s268 + $0x118] sm:$0xf]
      %v543 = vld [vmem:[%s268 + $0x11c] sm:$0xf]
      %v544 = vld [vmem:[%s268 + $0x120] sm:$0xf]
      %v545 = vld [vmem:[%s268 + $0x124] sm:$0xf]
      %v546 = vld [vmem:[%s268 + $0x128] sm:$0xf]
      %v547 = vld [vmem:[%s268 + $0x12c] sm:$0xf]
      %v548 = vld [vmem:[%s268 + $0x130] sm:$0xf]
      %v549 = vld [vmem:[%s268 + $0x134] sm:$0xf]
      %v550 = vld [vmem:[%s268 + $0x138] sm:$0xf]
      %v551 = vld [vmem:[%s268 + $0x13c] sm:$0xf]
      %v552 = vld [vmem:[%s268 + $0x140] sm:$0xf]
      %v553 = vld [vmem:[%s268 + $0x144] sm:$0xf]
      %v554 = vld [vmem:[%s268 + $0x148] sm:$0xf]
      %v555 = vld [vmem:[%s268 + $0x14c] sm:$0xf]
      %v556 = vld [vmem:[%s268 + $0x150] sm:$0xf]
      %v557 = vld [vmem:[%s268 + $0x154] sm:$0xf]
      %v558 = vld [vmem:[%s268 + $0x158] sm:$0xf]
      %v559 = vld [vmem:[%s268 + $0x15c] sm:$0xf]
      %v560 = vld [vmem:[%s268 + $0x160] sm:$0xf]
      %v561 = vld [vmem:[%s268 + $0x164] sm:$0xf]
      %v562 = vld [vmem:[%s268 + $0x168] sm:$0xf]
      %v563 = vld [vmem:[%s268 + $0x16c] sm:$0xf]
      %v564 = vld [vmem:[%s268 + $0x170] sm:$0xf]
      %v565 = vld [vmem:[%s268 + $0x174] sm:$0xf]
      %v566 = vld [vmem:[%s268 + $0x178] sm:$0xf]
      %v567 = vld [vmem:[%s268 + $0x17c] sm:$0xf]
      %v568 = vld [vmem:[%s268 + $0x180] sm:$0xf]
      %v569 = vld [vmem:[%s268 + $0x184] sm:$0xf]
      %v570 = vld [vmem:[%s268 + $0x188] sm:$0xf]
      %v571 = vld [vmem:[%s268 + $0x18c] sm:$0xf]
      %v572 = vld [vmem:[%s268 + $0x190] sm:$0xf]
      %v573 = vld [vmem:[%s268 + $0x194] sm:$0xf]
      %v574 = vld [vmem:[%s268 + $0x198] sm:$0xf]
      %v575 = vld [vmem:[%s268 + $0x19c] sm:$0xf]
      %v576 = vld [vmem:[%s268 + $0x1a0] sm:$0xf]
      %v577 = vld [vmem:[%s268 + $0x1a4] sm:$0xf]
      %v578 = vld [vmem:[%s268 + $0x1a8] sm:$0xf]
      %v579 = vld [vmem:[%s268 + $0x1ac] sm:$0xf]
      %v580 = vld [vmem:[%s268 + $0x1b0] sm:$0xf]
      %v581 = vld [vmem:[%s268 + $0x1b4] sm:$0xf]
      %v582 = vld [vmem:[%s268 + $0x1b8] sm:$0xf]
      %v583 = vld [vmem:[%s268 + $0x1bc] sm:$0xf]
      %v584 = vld [vmem:[%s268 + $0x1c0] sm:$0xf]
      %v585 = vld [vmem:[%s268 + $0x1c4] sm:$0xf]
      %v586 = vld [vmem:[%s268 + $0x1c8] sm:$0xf]
      %v587 = vld [vmem:[%s268 + $0x1cc] sm:$0xf]
      %v588 = vld [vmem:[%s268 + $0x1d0] sm:$0xf]
      %v589 = vld [vmem:[%s268 + $0x1d4] sm:$0xf]
      %v590 = vld [vmem:[%s268 + $0x1d8] sm:$0xf]
      %v591 = vld [vmem:[%s268 + $0x1dc] sm:$0xf]
      %v592 = vld [vmem:[%s268 + $0x1e0] sm:$0xf]
      %v593 = vld [vmem:[%s268 + $0x1e4] sm:$0xf]
      %v594 = vld [vmem:[%s268 + $0x1e8] sm:$0xf]
      %v595 = vld [vmem:[%s268 + $0x1ec] sm:$0xf]
      %v596 = vld [vmem:[%s268 + $0x1f0] sm:$0xf]
      %v597 = vld [vmem:[%s268 + $0x1f4] sm:$0xf]
      %v598 = vld [vmem:[%s268 + $0x1f8] sm:$0xf]
      %v599 = vld [vmem:[%s268 + $0x1fc] sm:$0xf]
      %v600 = vld [vmem:[%s268 + $0x200] sm:$0xf]
      %v601 = vld [vmem:[%s268 + $0x204] sm:$0xf]
      %v602 = vld [vmem:[%s268 + $0x208] sm:$0xf]
      %v603 = vld [vmem:[%s268 + $0x20c] sm:$0xf]
      %v604 = vld [vmem:[%s268 + $0x210] sm:$0xf]
      %v605 = vld [vmem:[%s268 + $0x214] sm:$0xf]
      %v606 = vld [vmem:[%s268 + $0x218] sm:$0xf]
      %v607 = vld [vmem:[%s268 + $0x21c] sm:$0xf]
      %v608 = vld [vmem:[%s268 + $0x220] sm:$0xf]
      %v609 = vld [vmem:[%s268 + $0x224] sm:$0xf]
      %v610 = vld [vmem:[%s268 + $0x228] sm:$0xf]
      %v611 = vld [vmem:[%s268 + $0x22c] sm:$0xf]
      %v612 = vld [vmem:[%s268 + $0x230] sm:$0xf]
      %v613 = vld [vmem:[%s268 + $0x234] sm:$0xf]
      %v614 = vld [vmem:[%s268 + $0x238] sm:$0xf]
      %v615 = vld [vmem:[%s268 + $0x23c] sm:$0xf]
      %v632 = vunpack.c.l.b16 %v456
      %v633 = vunpack.c.l.b16 %v457
      %v634 = vunpack.c.l.b16 %v458
      %v635 = vunpack.c.l.b16 %v459
      %v636 = vunpack.c.l.b16 %v460
      %v637 = vunpack.c.l.b16 %v461
      %v638 = vunpack.c.l.b16 %v462
      %v639 = vunpack.c.l.b16 %v463
      %v640 = vunpack.c.l.b16 %v464
      %v641 = vunpack.c.l.b16 %v465
      %v642 = vunpack.c.l.b16 %v466
      %v643 = vunpack.c.l.b16 %v467
      %v644 = vunpack.c.l.b16 %v468
      %v645 = vunpack.c.l.b16 %v469
      %v646 = vunpack.c.l.b16 %v470
      %v647 = vunpack.c.l.b16 %v471
      %v648 = vpack.c.b16 %v632, %v632
      %v649 = vpack.c.b16 %v633, %v633
      %v650 = vpack.c.b16 %v634, %v634
      %v651 = vpack.c.b16 %v635, %v635
      %v652 = vpack.c.b16 %v636, %v636
      %v653 = vpack.c.b16 %v637, %v637
      %v654 = vpack.c.b16 %v638, %v638
      %v655 = vpack.c.b16 %v639, %v639
      %v656 = vpack.c.b16 %v640, %v640
      %v657 = vpack.c.b16 %v641, %v641
      %v658 = vpack.c.b16 %v642, %v642
      %v659 = vpack.c.b16 %v643, %v643
      %v660 = vpack.c.b16 %v644, %v644
      %v661 = vpack.c.b16 %v645, %v645
      %v662 = vpack.c.b16 %v646, %v646
      %v663 = vpack.c.b16 %v647, %v647
      %v665 = vshrl.u32 %v648, 16
      %v667 = vrot.slane %v665, 7
      %v668 = vshll.u32 %v648, 16
      %v670 = vor.u32 %v667, %v668
      %v672 = vshrl.u32 %v649, 16
      %v674 = vrot.slane %v672, 7
      %v675 = vshll.u32 %v649, 16
      %v677 = vor.u32 %v674, %v675
      %v679 = vshrl.u32 %v650, 16
      %v681 = vrot.slane %v679, 7
      %v682 = vshll.u32 %v650, 16
      %v684 = vor.u32 %v681, %v682
      %v686 = vshrl.u32 %v651, 16
      %v688 = vrot.slane %v686, 7
      %v689 = vshll.u32 %v651, 16
      %v691 = vor.u32 %v688, %v689
      %v693 = vshrl.u32 %v652, 16
      %v695 = vrot.slane %v693, 7
      %v696 = vshll.u32 %v652, 16
      %v698 = vor.u32 %v695, %v696
      %v700 = vshrl.u32 %v653, 16
      %v702 = vrot.slane %v700, 7
      %v703 = vshll.u32 %v653, 16
      %v705 = vor.u32 %v702, %v703
      %v707 = vshrl.u32 %v654, 16
      %v709 = vrot.slane %v707, 7
      %v710 = vshll.u32 %v654, 16
      %v712 = vor.u32 %v709, %v710
      %v714 = vshrl.u32 %v655, 16
      %v716 = vrot.slane %v714, 7
      %v717 = vshll.u32 %v655, 16
      %v719 = vor.u32 %v716, %v717
      %v721 = vshrl.u32 %v656, 16
      %v723 = vrot.slane %v721, 7
      %v724 = vshll.u32 %v656, 16
      %v726 = vor.u32 %v723, %v724
      %v728 = vshrl.u32 %v657, 16
      %v730 = vrot.slane %v728, 7
      %v731 = vshll.u32 %v657, 16
      %v733 = vor.u32 %v730, %v731
      %v735 = vshrl.u32 %v658, 16
      %v737 = vrot.slane %v735, 7
      %v738 = vshll.u32 %v658, 16
      %v740 = vor.u32 %v737, %v738
      %v742 = vshrl.u32 %v659, 16
      %v744 = vrot.slane %v742, 7
      %v745 = vshll.u32 %v659, 16
      %v747 = vor.u32 %v744, %v745
      %v749 = vshrl.u32 %v660, 16
      %v751 = vrot.slane %v749, 7
      %v752 = vshll.u32 %v660, 16
      %v754 = vor.u32 %v751, %v752
      %v756 = vshrl.u32 %v661, 16
      %v758 = vrot.slane %v756, 7
      %v759 = vshll.u32 %v661, 16
      %v761 = vor.u32 %v758, %v759
      %v763 = vshrl.u32 %v662, 16
      %v765 = vrot.slane %v763, 7
      %v766 = vshll.u32 %v662, 16
      %v768 = vor.u32 %v765, %v766
      %v770 = vshrl.u32 %v663, 16
      %v772 = vrot.slane %v770, 7
      %v773 = vshll.u32 %v663, 16
      %v775 = vor.u32 %v772, %v773
      %vm792 = vcmask 1040384
      %vm793 = vsmask.f32 256
      %vm794 = vmand %vm792, %vm793
      %v795 = vsel %vm794, 0, %v670
      %v796 = vsel %vm794, 0, %v677
      %v797 = vsel %vm794, 0, %v684
      %v798 = vsel %vm794, 0, %v691
      %v799 = vsel %vm794, 0, %v698
      %v800 = vsel %vm794, 0, %v705
      %v801 = vsel %vm794, 0, %v712
      %v802 = vsel %vm794, 0, %v719
      %v803 = vsel %vm794, 0, %v726
      %v804 = vsel %vm794, 0, %v733
      %v805 = vsel %vm794, 0, %v740
      %v806 = vsel %vm794, 0, %v747
      %v807 = vsel %vm794, 0, %v754
      %v808 = vsel %vm794, 0, %v761
      %v809 = vsel %vm794, 0, %v768
      %v810 = vsel %vm794, 0, %v775
      %vm811 = vcmask 1044480
      %vm812 = vsmask.f32 4352
      %vm813 = vmand %vm811, %vm812
      %v814 = vsel %vm813, %v795, 0
      %v815 = vsel %vm813, %v796, 0
      %v816 = vsel %vm813, %v797, 0
      %v817 = vsel %vm813, %v798, 0
      %v818 = vsel %vm813, %v799, 0
      %v819 = vsel %vm813, %v800, 0
      %v820 = vsel %vm813, %v801, 0
      %v821 = vsel %vm813, %v802, 0
      %v822 = vsel %vm813, %v803, 0
      %v823 = vsel %vm813, %v804, 0
      %v824 = vsel %vm813, %v805, 0
      %v825 = vsel %vm813, %v806, 0
      %v826 = vsel %vm813, %v807, 0
      %v827 = vsel %vm813, %v808, 0
      %v828 = vsel %vm813, %v809, 0
      %v829 = vsel %vm813, %v810, 0
      %v831 = vshrl.u32 %v814, 16
      %v833 = vshll.u32 %v814, 16
      %v835 = vrot.slane %v833, 1
      %v836 = vor.u32 %v831, %v835
      %v838 = vshrl.u32 %v815, 16
      %v840 = vshll.u32 %v815, 16
      %v842 = vrot.slane %v840, 1
      %v843 = vor.u32 %v838, %v842
      %v845 = vshrl.u32 %v816, 16
      %v847 = vshll.u32 %v816, 16
      %v849 = vrot.slane %v847, 1
      %v850 = vor.u32 %v845, %v849
      %v852 = vshrl.u32 %v817, 16
      %v854 = vshll.u32 %v817, 16
      %v856 = vrot.slane %v854, 1
      %v857 = vor.u32 %v852, %v856
      %v859 = vshrl.u32 %v818, 16
      %v861 = vshll.u32 %v818, 16
      %v863 = vrot.slane %v861, 1
      %v864 = vor.u32 %v859, %v863
      %v866 = vshrl.u32 %v819, 16
      %v868 = vshll.u32 %v819, 16
      %v870 = vrot.slane %v868, 1
      %v871 = vor.u32 %v866, %v870
      %v873 = vshrl.u32 %v820, 16
      %v875 = vshll.u32 %v820, 16
      %v877 = vrot.slane %v875, 1
      %v878 = vor.u32 %v873, %v877
      %v880 = vshrl.u32 %v821, 16
      %v882 = vshll.u32 %v821, 16
      %v884 = vrot.slane %v882, 1
      %v885 = vor.u32 %v880, %v884
      %v887 = vshrl.u32 %v822, 16
      %v889 = vshll.u32 %v822, 16
      %v891 = vrot.slane %v889, 1
      %v892 = vor.u32 %v887, %v891
      %v894 = vshrl.u32 %v823, 16
      %v896 = vshll.u32 %v823, 16
      %v898 = vrot.slane %v896, 1
      %v899 = vor.u32 %v894, %v898
      %v901 = vshrl.u32 %v824, 16
      %v903 = vshll.u32 %v824, 16
      %v905 = vrot.slane %v903, 1
      %v906 = vor.u32 %v901, %v905
      %v908 = vshrl.u32 %v825, 16
      %v910 = vshll.u32 %v825, 16
      %v912 = vrot.slane %v910, 1
      %v913 = vor.u32 %v908, %v912
      %v915 = vshrl.u32 %v826, 16
      %v917 = vshll.u32 %v826, 16
      %v919 = vrot.slane %v917, 1
      %v920 = vor.u32 %v915, %v919
      %v922 = vshrl.u32 %v827, 16
      %v924 = vshll.u32 %v827, 16
      %v926 = vrot.slane %v924, 1
      %v927 = vor.u32 %v922, %v926
      %v929 = vshrl.u32 %v828, 16
      %v931 = vshll.u32 %v828, 16
      %v933 = vrot.slane %v931, 1
      %v934 = vor.u32 %v929, %v933
      %v936 = vshrl.u32 %v829, 16
      %v938 = vshll.u32 %v829, 16
      %v940 = vrot.slane %v938, 1
      %v941 = vor.u32 %v936, %v940
      %v958 = vrot.slane %v814, 1
      %v959 = vrot.slane %v815, 1
      %v960 = vrot.slane %v816, 1
      %v961 = vrot.slane %v817, 1
      %v962 = vrot.slane %v818, 1
      %v963 = vrot.slane %v819, 1
      %v964 = vrot.slane %v820, 1
      %v965 = vrot.slane %v821, 1
      %v966 = vrot.slane %v822, 1
      %v967 = vrot.slane %v823, 1
      %v968 = vrot.slane %v824, 1
      %v969 = vrot.slane %v825, 1
      %v970 = vrot.slane %v826, 1
      %v971 = vrot.slane %v827, 1
      %v972 = vrot.slane %v828, 1
      %v973 = vrot.slane %v829, 1
      %v975 = vunpack.c.l.b16 0
      %v976 = vunpack.c.l.b16 %v814
      %v977 = vunpack.c.l.b16 %v836
      %v978 = vunpack.c.l.b16 %v958
      %v979 = vunpack.c.l.b16 %v815
      %v980 = vunpack.c.l.b16 %v843
      %v981 = vunpack.c.l.b16 %v959
      %v982 = vunpack.c.l.b16 %v816
      %v983 = vunpack.c.l.b16 %v850
      %v984 = vunpack.c.l.b16 %v960
      %v985 = vunpack.c.l.b16 %v817
      %v986 = vunpack.c.l.b16 %v857
      %v987 = vunpack.c.l.b16 %v961
      %v988 = vunpack.c.l.b16 %v818
      %v989 = vunpack.c.l.b16 %v864
      %v990 = vunpack.c.l.b16 %v962
      %v991 = vunpack.c.l.b16 %v819
      %v992 = vunpack.c.l.b16 %v871
      %v993 = vunpack.c.l.b16 %v963
      %v994 = vunpack.c.l.b16 %v820
      %v995 = vunpack.c.l.b16 %v878
      %v996 = vunpack.c.l.b16 %v964
      %v997 = vunpack.c.l.b16 %v822
      %v998 = vunpack.c.l.b16 %v892
      %v999 = vunpack.c.l.b16 %v966
      %v1000 = vunpack.c.l.b16 %v823
      %v1001 = vunpack.c.l.b16 %v899
      %v1002 = vunpack.c.l.b16 %v967
      %v1003 = vunpack.c.l.b16 %v824
      %v1004 = vunpack.c.l.b16 %v906
      %v1005 = vunpack.c.l.b16 %v968
      %v1006 = vunpack.c.l.b16 %v825
      %v1007 = vunpack.c.l.b16 %v913
      %v1008 = vunpack.c.l.b16 %v969
      %v1009 = vunpack.c.l.b16 %v826
      %v1010 = vunpack.c.l.b16 %v920
      %v1011 = vunpack.c.l.b16 %v970
      %v1012 = vunpack.c.l.b16 %v827
      %v1013 = vunpack.c.l.b16 %v927
      %v1014 = vunpack.c.l.b16 %v971
      %v1015 = vunpack.c.l.b16 %v828
      %v1016 = vunpack.c.l.b16 %v934
      %v1017 = vunpack.c.l.b16 %v972
      %v1018 = vunpack.c.l.b16 %v821
      %v1019 = vunpack.c.l.b16 %v885
      %v1020 = vunpack.c.l.b16 %v965
      %v1021 = vunpack.c.l.b16 %v829
      %v1022 = vunpack.c.l.b16 %v941
      %v1023 = vunpack.c.l.b16 %v973
      %v1024 = vpack.c.b16 %v979, %v976
      %v1025 = vpack.c.b16 %v980, %v977
      %v1026 = vpack.c.b16 %v981, %v978
      %v1027 = vpack.c.b16 %v985, %v982
      %v1028 = vpack.c.b16 %v986, %v983
      %v1029 = vpack.c.b16 %v987, %v984
      %v1030 = vpack.c.b16 %v991, %v988
      %v1031 = vpack.c.b16 %v992, %v989
      %v1032 = vpack.c.b16 %v993, %v990
      %v1033 = vpack.c.b16 %v1018, %v994
      %v1034 = vpack.c.b16 %v1019, %v995
      %v1035 = vpack.c.b16 %v1020, %v996
      %v1036 = vpack.c.b16 %v1000, %v997
      %v1037 = vpack.c.b16 %v1001, %v998
      %v1038 = vpack.c.b16 %v1002, %v999
      %v1039 = vpack.c.b16 %v1006, %v1003
      %v1040 = vpack.c.b16 %v1007, %v1004
      %v1041 = vpack.c.b16 %v1008, %v1005
      %v1042 = vpack.c.b16 %v1012, %v1009
      %v1043 = vpack.c.b16 %v1013, %v1010
      %v1044 = vpack.c.b16 %v1014, %v1011
      %v1045 = vpack.c.b16 %v1021, %v1015
      %v1046 = vpack.c.b16 %v1022, %v1016
      %v1047 = vpack.c.b16 %v1023, %v1017
      %v1120 = vunpack.c.l.b16 %v520
      %v1121 = vunpack.c.l.b16 %v521
      %v1122 = vunpack.c.l.b16 %v522
      %v1123 = vunpack.c.l.b16 %v523
      %v1124 = vunpack.c.l.b16 %v524
      %v1125 = vunpack.c.l.b16 %v525
      %v1126 = vunpack.c.l.b16 %v526
      %v1127 = vunpack.c.l.b16 %v527
      %v1128 = vunpack.c.l.b16 %v528
      %v1129 = vunpack.c.l.b16 %v529
      %v1130 = vunpack.c.l.b16 %v530
      %v1131 = vunpack.c.l.b16 %v531
      %v1132 = vunpack.c.l.b16 %v532
      %v1133 = vunpack.c.l.b16 %v533
      %v1134 = vunpack.c.l.b16 %v534
      %v1135 = vunpack.c.l.b16 %v535
      %v1136 = vunpack.c.l.b16 %v536
      %v1137 = vunpack.c.l.b16 %v537
      %v1138 = vunpack.c.l.b16 %v538
      %v1139 = vunpack.c.l.b16 %v539
      %v1140 = vunpack.c.l.b16 %v540
      %v1141 = vunpack.c.l.b16 %v541
      %v1142 = vunpack.c.l.b16 %v542
      %v1143 = vunpack.c.l.b16 %v543
      %v1144 = vunpack.c.l.b16 %v544
      %v1145 = vunpack.c.l.b16 %v545
      %v1146 = vunpack.c.l.b16 %v546
      %v1147 = vunpack.c.l.b16 %v547
      %v1148 = vunpack.c.l.b16 %v548
      %v1149 = vunpack.c.l.b16 %v549
      %v1150 = vunpack.c.l.b16 %v550
      %v1151 = vunpack.c.l.b16 %v551
      %v1152 = vunpack.c.l.b16 %v552
      %v1153 = vunpack.c.l.b16 %v553
      %v1154 = vunpack.c.l.b16 %v554
      %v1155 = vunpack.c.l.b16 %v555
      %v1156 = vunpack.c.l.b16 %v556
      %v1157 = vunpack.c.l.b16 %v557
      %v1158 = vunpack.c.l.b16 %v558
      %v1159 = vunpack.c.l.b16 %v559
      %v1160 = vunpack.c.l.b16 %v560
      %v1161 = vunpack.c.l.b16 %v561
      %v1162 = vunpack.c.l.b16 %v562
      %v1163 = vunpack.c.l.b16 %v563
      %v1164 = vunpack.c.l.b16 %v564
      %v1165 = vunpack.c.l.b16 %v565
      %v1166 = vunpack.c.l.b16 %v566
      %v1167 = vunpack.c.l.b16 %v567
      %v1168 = vpack.c.b16 %v1121, %v1120
      %v1169 = vpack.c.b16 %v1123, %v1122
      %v1170 = vpack.c.b16 %v1125, %v1124
      %v1171 = vpack.c.b16 %v1127, %v1126
      %v1172 = vpack.c.b16 %v1129, %v1128
      %v1173 = vpack.c.b16 %v1131, %v1130
      %v1174 = vpack.c.b16 %v1133, %v1132
      %v1175 = vpack.c.b16 %v1135, %v1134
      %v1176 = vpack.c.b16 %v1137, %v1136
      %v1177 = vpack.c.b16 %v1139, %v1138
      %v1178 = vpack.c.b16 %v1141, %v1140
      %v1179 = vpack.c.b16 %v1143, %v1142
      %v1180 = vpack.c.b16 %v1145, %v1144
      %v1181 = vpack.c.b16 %v1147, %v1146
      %v1182 = vpack.c.b16 %v1149, %v1148
      %v1183 = vpack.c.b16 %v1151, %v1150
      %v1184 = vpack.c.b16 %v1153, %v1152
      %v1185 = vpack.c.b16 %v1155, %v1154
      %v1186 = vpack.c.b16 %v1157, %v1156
      %v1187 = vpack.c.b16 %v1159, %v1158
      %v1188 = vpack.c.b16 %v1161, %v1160
      %v1189 = vpack.c.b16 %v1163, %v1162
      %v1190 = vpack.c.b16 %v1165, %v1164
      %v1191 = vpack.c.b16 %v1167, %v1166
      %1216 = vmatpush.bf16.msra.mxu0 %v1175
      %1217 = vmatpush.bf16.msra.mxu0 %v1174
      %1218 = vmatpush.bf16.msra.mxu0 %v1173
      %1219 = vmatpush.bf16.msra.mxu0 %v1172
      %1220 = vmatpush.bf16.msra.mxu0 %v1171
      %1221 = vmatpush.bf16.msra.mxu0 %v1170
      %1222 = vmatpush.bf16.msra.mxu0 %v1169
      %1223 = vmatpush.bf16.msra.mxu0 %v1168
      %1224 = vmatmul.bf16.gmra.mxu0 %v1024
      %v1225 = vpop.f32.mrf.mxu0
      %v1226 = vadd.f32 0.0, %v1225
      %v1227 = vpop.f32.mrf.mxu0
      %v1228 = vadd.f32 0.0, %v1227
      %1229 = vmatmul.bf16.gmra.mxu0 %v1027
      %v1230 = vpop.f32.mrf.mxu0
      %v1231 = vadd.f32 0.0, %v1230
      %v1232 = vpop.f32.mrf.mxu0
      %v1233 = vadd.f32 0.0, %v1232
      %1234 = vmatmul.bf16.gmra.mxu0 %v1030
      %v1235 = vpop.f32.mrf.mxu0
      %v1236 = vadd.f32 0.0, %v1235
      %v1237 = vpop.f32.mrf.mxu0
      %v1238 = vadd.f32 0.0, %v1237
      %1239 = vmatmul.bf16.gmra.mxu0 %v1033
      %v1240 = vpop.f32.mrf.mxu0
      %v1241 = vadd.f32 0.0, %v1240
      %v1242 = vpop.f32.mrf.mxu0
      %v1243 = vadd.f32 0.0, %v1242
      %1244 = vmatmul.bf16.gmra.mxu0 %v1036
      %v1245 = vpop.f32.mrf.mxu0
      %v1246 = vadd.f32 0.0, %v1245
      %v1247 = vpop.f32.mrf.mxu0
      %v1248 = vadd.f32 0.0, %v1247
      %1249 = vmatmul.bf16.gmra.mxu0 %v1039
      %v1250 = vpop.f32.mrf.mxu0
      %v1251 = vadd.f32 0.0, %v1250
      %v1252 = vpop.f32.mrf.mxu0
      %v1253 = vadd.f32 0.0, %v1252
      %1254 = vmatmul.bf16.gmra.mxu0 %v1042
      %v1255 = vpop.f32.mrf.mxu0
      %v1256 = vadd.f32 0.0, %v1255
      %v1257 = vpop.f32.mrf.mxu0
      %v1258 = vadd.f32 0.0, %v1257
      %1259 = vmatmul.bf16.gmra.mxu0 %v1045
      %v1260 = vpop.f32.mrf.mxu0
      %v1261 = vadd.f32 0.0, %v1260
      %v1262 = vpop.f32.mrf.mxu0
      %v1263 = vadd.f32 0.0, %v1262
      %1264 = vdwg.mxu0
      %1265 = vmatpush.bf16.msra.mxu0 %v1183
      %1266 = vmatpush.bf16.msra.mxu0 %v1182
      %1267 = vmatpush.bf16.msra.mxu0 %v1181
      %1268 = vmatpush.bf16.msra.mxu0 %v1180
      %1269 = vmatpush.bf16.msra.mxu0 %v1179
      %1270 = vmatpush.bf16.msra.mxu0 %v1178
      %1271 = vmatpush.bf16.msra.mxu0 %v1177
      %1272 = vmatpush.bf16.msra.mxu0 %v1176
      %1273 = vmatmul.bf16.gmra.mxu0 %v1025
      %v1274 = vpop.f32.mrf.mxu0
      %v1275 = vadd.f32 %v1226, %v1274
      %v1276 = vpop.f32.mrf.mxu0
      %v1277 = vadd.f32 %v1228, %v1276
      %1278 = vmatmul.bf16.gmra.mxu0 %v1028
      %v1279 = vpop.f32.mrf.mxu0
      %v1280 = vadd.f32 %v1231, %v1279
      %v1281 = vpop.f32.mrf.mxu0
      %v1282 = vadd.f32 %v1233, %v1281
      %1283 = vmatmul.bf16.gmra.mxu0 %v1031
      %v1284 = vpop.f32.mrf.mxu0
      %v1285 = vadd.f32 %v1236, %v1284
      %v1286 = vpop.f32.mrf.mxu0
      %v1287 = vadd.f32 %v1238, %v1286
      %1288 = vmatmul.bf16.gmra.mxu0 %v1034
      %v1289 = vpop.f32.mrf.mxu0
      %v1290 = vadd.f32 %v1241, %v1289
      %v1291 = vpop.f32.mrf.mxu0
      %v1292 = vadd.f32 %v1243, %v1291
      %1293 = vmatmul.bf16.gmra.mxu0 %v1037
      %v1294 = vpop.f32.mrf.mxu0
      %v1295 = vadd.f32 %v1246, %v1294
      %v1296 = vpop.f32.mrf.mxu0
      %v1297 = vadd.f32 %v1248, %v1296
      %1298 = vmatmul.bf16.gmra.mxu0 %v1040
      %v1299 = vpop.f32.mrf.mxu0
      %v1300 = vadd.f32 %v1251, %v1299
      %v1301 = vpop.f32.mrf.mxu0
      %v1302 = vadd.f32 %v1253, %v1301
      %1303 = vmatmul.bf16.gmra.mxu0 %v1043
      %v1304 = vpop.f32.mrf.mxu0
      %v1305 = vadd.f32 %v1256, %v1304
      %v1306 = vpop.f32.mrf.mxu0
      %v1307 = vadd.f32 %v1258, %v1306
      %1308 = vmatmul.bf16.gmra.mxu0 %v1046
      %v1309 = vpop.f32.mrf.mxu0
      %v1310 = vadd.f32 %v1261, %v1309
      %v1311 = vpop.f32.mrf.mxu0
      %v1312 = vadd.f32 %v1263, %v1311
      %1313 = vdwg.mxu0
      %1314 = vmatpush.bf16.msra.mxu0 %v1191
      %1315 = vmatpush.bf16.msra.mxu0 %v1190
      %1316 = vmatpush.bf16.msra.mxu0 %v1189
      %1317 = vmatpush.bf16.msra.mxu0 %v1188
      %1318 = vmatpush.bf16.msra.mxu0 %v1187
      %1319 = vmatpush.bf16.msra.mxu0 %v1186
      %1320 = vmatpush.bf16.msra.mxu0 %v1185
      %1321 = vmatpush.bf16.msra.mxu0 %v1184
      %1322 = vmatmul.bf16.gmra.mxu0 %v1026
      %v1323 = vpop.f32.mrf.mxu0
      %v1324 = vadd.f32 %v1275, %v1323
      %v1325 = vpop.f32.mrf.mxu0
      %v1326 = vadd.f32 %v1277, %v1325
      %1327 = vmatmul.bf16.gmra.mxu0 %v1029
      %v1328 = vpop.f32.mrf.mxu0
      %v1329 = vadd.f32 %v1280, %v1328
      %v1330 = vpop.f32.mrf.mxu0
      %v1331 = vadd.f32 %v1282, %v1330
      %1332 = vmatmul.bf16.gmra.mxu0 %v1032
      %v1333 = vpop.f32.mrf.mxu0
      %v1334 = vadd.f32 %v1285, %v1333
      %v1335 = vpop.f32.mrf.mxu0
      %v1336 = vadd.f32 %v1287, %v1335
      %1337 = vmatmul.bf16.gmra.mxu0 %v1035
      %v1338 = vpop.f32.mrf.mxu0
      %v1339 = vadd.f32 %v1290, %v1338
      %v1340 = vpop.f32.mrf.mxu0
      %v1341 = vadd.f32 %v1292, %v1340
      %1342 = vmatmul.bf16.gmra.mxu0 %v1038
      %v1343 = vpop.f32.mrf.mxu0
      %v1344 = vadd.f32 %v1295, %v1343
      %v1345 = vpop.f32.mrf.mxu0
      %v1346 = vadd.f32 %v1297, %v1345
      %1347 = vmatmul.bf16.gmra.mxu0 %v1041
      %v1348 = vpop.f32.mrf.mxu0
      %v1349 = vadd.f32 %v1300, %v1348
      %v1350 = vpop.f32.mrf.mxu0
      %v1351 = vadd.f32 %v1302, %v1350
      %1352 = vmatmul.bf16.gmra.mxu0 %v1044
      %v1353 = vpop.f32.mrf.mxu0
      %v1354 = vadd.f32 %v1305, %v1353
      %v1355 = vpop.f32.mrf.mxu0
      %v1356 = vadd.f32 %v1307, %v1355
      %1357 = vmatmul.bf16.gmra.mxu0 %v1047
      %v1358 = vpop.f32.mrf.mxu0
      %v1359 = vadd.f32 %v1310, %v1358
      %v1360 = vpop.f32.mrf.mxu0
      %v1361 = vadd.f32 %v1312, %v1360
      %1362 = vdwg.mxu0
      %v1363 = vpack.c.b16 %v976, %v975
      %v1364 = vpack.c.b16 %v977, %v975
      %v1365 = vpack.c.b16 %v978, %v975
      %v1366 = vpack.c.b16 %v982, %v979
      %v1367 = vpack.c.b16 %v983, %v980
      %v1368 = vpack.c.b16 %v984, %v981
      %v1369 = vpack.c.b16 %v988, %v985
      %v1370 = vpack.c.b16 %v989, %v986
      %v1371 = vpack.c.b16 %v990, %v987
      %v1372 = vpack.c.b16 %v994, %v991
      %v1373 = vpack.c.b16 %v995, %v992
      %v1374 = vpack.c.b16 %v996, %v993
      %v1375 = vpack.c.b16 %v997, %v975
      %v1376 = vpack.c.b16 %v998, %v975
      %v1377 = vpack.c.b16 %v999, %v975
      %v1378 = vpack.c.b16 %v1003, %v1000
      %v1379 = vpack.c.b16 %v1004, %v1001
      %v1380 = vpack.c.b16 %v1005, %v1002
      %v1381 = vpack.c.b16 %v1009, %v1006
      %v1382 = vpack.c.b16 %v1010, %v1007
      %v1383 = vpack.c.b16 %v1011, %v1008
      %v1384 = vpack.c.b16 %v1015, %v1012
      %v1385 = vpack.c.b16 %v1016, %v1013
      %v1386 = vpack.c.b16 %v1017, %v1014
      %v1459 = vunpack.c.l.b16 %v472
      %v1460 = vunpack.c.l.b16 %v473
      %v1461 = vunpack.c.l.b16 %v474
      %v1462 = vunpack.c.l.b16 %v475
      %v1463 = vunpack.c.l.b16 %v476
      %v1464 = vunpack.c.l.b16 %v477
      %v1465 = vunpack.c.l.b16 %v478
      %v1466 = vunpack.c.l.b16 %v479
      %v1467 = vunpack.c.l.b16 %v480
      %v1468 = vunpack.c.l.b16 %v481
      %v1469 = vunpack.c.l.b16 %v482
      %v1470 = vunpack.c.l.b16 %v483
      %v1471 = vunpack.c.l.b16 %v484
      %v1472 = vunpack.c.l.b16 %v485
      %v1473 = vunpack.c.l.b16 %v486
      %v1474 = vunpack.c.l.b16 %v487
      %v1475 = vunpack.c.l.b16 %v488
      %v1476 = vunpack.c.l.b16 %v489
      %v1477 = vunpack.c.l.b16 %v490
      %v1478 = vunpack.c.l.b16 %v491
      %v1479 = vunpack.c.l.b16 %v492
      %v1480 = vunpack.c.l.b16 %v493
      %v1481 = vunpack.c.l.b16 %v494
      %v1482 = vunpack.c.l.b16 %v495
      %v1483 = vunpack.c.l.b16 %v496
      %v1484 = vunpack.c.l.b16 %v497
      %v1485 = vunpack.c.l.b16 %v498
      %v1486 = vunpack.c.l.b16 %v499
      %v1487 = vunpack.c.l.b16 %v500
      %v1488 = vunpack.c.l.b16 %v501
      %v1489 = vunpack.c.l.b16 %v502
      %v1490 = vunpack.c.l.b16 %v503
      %v1491 = vunpack.c.l.b16 %v504
      %v1492 = vunpack.c.l.b16 %v505
      %v1493 = vunpack.c.l.b16 %v506
      %v1494 = vunpack.c.l.b16 %v507
      %v1495 = vunpack.c.l.b16 %v508
      %v1496 = vunpack.c.l.b16 %v509
      %v1497 = vunpack.c.l.b16 %v510
      %v1498 = vunpack.c.l.b16 %v511
      %v1499 = vunpack.c.l.b16 %v512
      %v1500 = vunpack.c.l.b16 %v513
      %v1501 = vunpack.c.l.b16 %v514
      %v1502 = vunpack.c.l.b16 %v515
      %v1503 = vunpack.c.l.b16 %v516
      %v1504 = vunpack.c.l.b16 %v517
      %v1505 = vunpack.c.l.b16 %v518
      %v1506 = vunpack.c.l.b16 %v519
      %v1507 = vpack.c.b16 %v1460, %v1459
      %v1508 = vpack.c.b16 %v1462, %v1461
      %v1509 = vpack.c.b16 %v1464, %v1463
      %v1510 = vpack.c.b16 %v1466, %v1465
      %v1511 = vpack.c.b16 %v1468, %v1467
      %v1512 = vpack.c.b16 %v1470, %v1469
      %v1513 = vpack.c.b16 %v1472, %v1471
      %v1514 = vpack.c.b16 %v1474, %v1473
      %v1515 = vpack.c.b16 %v1476, %v1475
      %v1516 = vpack.c.b16 %v1478, %v1477
      %v1517 = vpack.c.b16 %v1480, %v1479
      %v1518 = vpack.c.b16 %v1482, %v1481
      %v1519 = vpack.c.b16 %v1484, %v1483
      %v1520 = vpack.c.b16 %v1486, %v1485
      %v1521 = vpack.c.b16 %v1488, %v1487
      %v1522 = vpack.c.b16 %v1490, %v1489
      %v1523 = vpack.c.b16 %v1492, %v1491
      %v1524 = vpack.c.b16 %v1494, %v1493
      %v1525 = vpack.c.b16 %v1496, %v1495
      %v1526 = vpack.c.b16 %v1498, %v1497
      %v1527 = vpack.c.b16 %v1500, %v1499
      %v1528 = vpack.c.b16 %v1502, %v1501
      %v1529 = vpack.c.b16 %v1504, %v1503
      %v1530 = vpack.c.b16 %v1506, %v1505
      %1555 = vmatpush.bf16.msra.mxu0 %v1514
      %1556 = vmatpush.bf16.msra.mxu0 %v1513
      %1557 = vmatpush.bf16.msra.mxu0 %v1512
      %1558 = vmatpush.bf16.msra.mxu0 %v1511
      %1559 = vmatpush.bf16.msra.mxu0 %v1510
      %1560 = vmatpush.bf16.msra.mxu0 %v1509
      %1561 = vmatpush.bf16.msra.mxu0 %v1508
      %1562 = vmatpush.bf16.msra.mxu0 %v1507
      %1563 = vmatmul.bf16.gmra.mxu0 %v1363
      %v1564 = vpop.f32.mrf.mxu0
      %v1565 = vadd.f32 %v1324, %v1564
      %v1566 = vpop.f32.mrf.mxu0
      %v1567 = vadd.f32 %v1326, %v1566
      %1568 = vmatmul.bf16.gmra.mxu0 %v1366
      %v1569 = vpop.f32.mrf.mxu0
      %v1570 = vadd.f32 %v1329, %v1569
      %v1571 = vpop.f32.mrf.mxu0
      %v1572 = vadd.f32 %v1331, %v1571
      %1573 = vmatmul.bf16.gmra.mxu0 %v1369
      %v1574 = vpop.f32.mrf.mxu0
      %v1575 = vadd.f32 %v1334, %v1574
      %v1576 = vpop.f32.mrf.mxu0
      %v1577 = vadd.f32 %v1336, %v1576
      %1578 = vmatmul.bf16.gmra.mxu0 %v1372
      %v1579 = vpop.f32.mrf.mxu0
      %v1580 = vadd.f32 %v1339, %v1579
      %v1581 = vpop.f32.mrf.mxu0
      %v1582 = vadd.f32 %v1341, %v1581
      %1583 = vmatmul.bf16.gmra.mxu0 %v1375
      %v1584 = vpop.f32.mrf.mxu0
      %v1585 = vadd.f32 %v1344, %v1584
      %v1586 = vpop.f32.mrf.mxu0
      %v1587 = vadd.f32 %v1346, %v1586
      %1588 = vmatmul.bf16.gmra.mxu0 %v1378
      %v1589 = vpop.f32.mrf.mxu0
      %v1590 = vadd.f32 %v1349, %v1589
      %v1591 = vpop.f32.mrf.mxu0
      %v1592 = vadd.f32 %v1351, %v1591
      %1593 = vmatmul.bf16.gmra.mxu0 %v1381
      %v1594 = vpop.f32.mrf.mxu0
      %v1595 = vadd.f32 %v1354, %v1594
      %v1596 = vpop.f32.mrf.mxu0
      %v1597 = vadd.f32 %v1356, %v1596
      %1598 = vmatmul.bf16.gmra.mxu0 %v1384
      %v1599 = vpop.f32.mrf.mxu0
      %v1600 = vadd.f32 %v1359, %v1599
      %v1601 = vpop.f32.mrf.mxu0
      %v1602 = vadd.f32 %v1361, %v1601
      %1603 = vdwg.mxu0
      %1604 = vmatpush.bf16.msra.mxu0 %v1522
      %1605 = vmatpush.bf16.msra.mxu0 %v1521
      %1606 = vmatpush.bf16.msra.mxu0 %v1520
      %1607 = vmatpush.bf16.msra.mxu0 %v1519
      %1608 = vmatpush.bf16.msra.mxu0 %v1518
      %1609 = vmatpush.bf16.msra.mxu0 %v1517
      %1610 = vmatpush.bf16.msra.mxu0 %v1516
      %1611 = vmatpush.bf16.msra.mxu0 %v1515
      %1612 = vmatmul.bf16.gmra.mxu0 %v1364
      %v1613 = vpop.f32.mrf.mxu0
      %v1614 = vadd.f32 %v1565, %v1613
      %v1615 = vpop.f32.mrf.mxu0
      %v1616 = vadd.f32 %v1567, %v1615
      %1617 = vmatmul.bf16.gmra.mxu0 %v1367
      %v1618 = vpop.f32.mrf.mxu0
      %v1619 = vadd.f32 %v1570, %v1618
      %v1620 = vpop.f32.mrf.mxu0
      %v1621 = vadd.f32 %v1572, %v1620
      %1622 = vmatmul.bf16.gmra.mxu0 %v1370
      %v1623 = vpop.f32.mrf.mxu0
      %v1624 = vadd.f32 %v1575, %v1623
      %v1625 = vpop.f32.mrf.mxu0
      %v1626 = vadd.f32 %v1577, %v1625
      %1627 = vmatmul.bf16.gmra.mxu0 %v1373
      %v1628 = vpop.f32.mrf.mxu0
      %v1629 = vadd.f32 %v1580, %v1628
      %v1630 = vpop.f32.mrf.mxu0
      %v1631 = vadd.f32 %v1582, %v1630
      %1632 = vmatmul.bf16.gmra.mxu0 %v1376
      %v1633 = vpop.f32.mrf.mxu0
      %v1634 = vadd.f32 %v1585, %v1633
      %v1635 = vpop.f32.mrf.mxu0
      %v1636 = vadd.f32 %v1587, %v1635
      %1637 = vmatmul.bf16.gmra.mxu0 %v1379
      %v1638 = vpop.f32.mrf.mxu0
      %v1639 = vadd.f32 %v1590, %v1638
      %v1640 = vpop.f32.mrf.mxu0
      %v1641 = vadd.f32 %v1592, %v1640
      %1642 = vmatmul.bf16.gmra.mxu0 %v1382
      %v1643 = vpop.f32.mrf.mxu0
      %v1644 = vadd.f32 %v1595, %v1643
      %v1645 = vpop.f32.mrf.mxu0
      %v1646 = vadd.f32 %v1597, %v1645
      %1647 = vmatmul.bf16.gmra.mxu0 %v1385
      %v1648 = vpop.f32.mrf.mxu0
      %v1649 = vadd.f32 %v1600, %v1648
      %v1650 = vpop.f32.mrf.mxu0
      %v1651 = vadd.f32 %v1602, %v1650
      %1652 = vdwg.mxu0
      %1653 = vmatpush.bf16.msra.mxu0 %v1530
      %1654 = vmatpush.bf16.msra.mxu0 %v1529
      %1655 = vmatpush.bf16.msra.mxu0 %v1528
      %1656 = vmatpush.bf16.msra.mxu0 %v1527
      %1657 = vmatpush.bf16.msra.mxu0 %v1526
      %1658 = vmatpush.bf16.msra.mxu0 %v1525
      %1659 = vmatpush.bf16.msra.mxu0 %v1524
      %1660 = vmatpush.bf16.msra.mxu0 %v1523
      %1661 = vmatmul.bf16.gmra.mxu0 %v1365
      %v1662 = vpop.f32.mrf.mxu0
      %v1663 = vadd.f32 %v1614, %v1662
      %v1664 = vpop.f32.mrf.mxu0
      %v1665 = vadd.f32 %v1616, %v1664
      %1666 = vmatmul.bf16.gmra.mxu0 %v1368
      %v1667 = vpop.f32.mrf.mxu0
      %v1668 = vadd.f32 %v1619, %v1667
      %v1669 = vpop.f32.mrf.mxu0
      %v1670 = vadd.f32 %v1621, %v1669
      %1671 = vmatmul.bf16.gmra.mxu0 %v1371
      %v1672 = vpop.f32.mrf.mxu0
      %v1673 = vadd.f32 %v1624, %v1672
      %v1674 = vpop.f32.mrf.mxu0
      %v1675 = vadd.f32 %v1626, %v1674
      %1676 = vmatmul.bf16.gmra.mxu0 %v1374
      %v1677 = vpop.f32.mrf.mxu0
      %v1678 = vadd.f32 %v1629, %v1677
      %v1679 = vpop.f32.mrf.mxu0
      %v1680 = vadd.f32 %v1631, %v1679
      %1681 = vmatmul.bf16.gmra.mxu0 %v1377
      %v1682 = vpop.f32.mrf.mxu0
      %v1683 = vadd.f32 %v1634, %v1682
      %v1684 = vpop.f32.mrf.mxu0
      %v1685 = vadd.f32 %v1636, %v1684
      %1686 = vmatmul.bf16.gmra.mxu0 %v1380
      %v1687 = vpop.f32.mrf.mxu0
      %v1688 = vadd.f32 %v1639, %v1687
      %v1689 = vpop.f32.mrf.mxu0
      %v1690 = vadd.f32 %v1641, %v1689
      %1691 = vmatmul.bf16.gmra.mxu0 %v1383
      %v1692 = vpop.f32.mrf.mxu0
      %v1693 = vadd.f32 %v1644, %v1692
      %v1694 = vpop.f32.mrf.mxu0
      %v1695 = vadd.f32 %v1646, %v1694
      %1696 = vmatmul.bf16.gmra.mxu0 %v1386
      %v1697 = vpop.f32.mrf.mxu0
      %v1698 = vadd.f32 %v1649, %v1697
      %v1699 = vpop.f32.mrf.mxu0
      %v1700 = vadd.f32 %v1651, %v1699
      %1701 = vdwg.mxu0
      %v1702 = vpack.c.b16 %v975, %v1018
      %v1703 = vpack.c.b16 %v975, %v1019
      %v1704 = vpack.c.b16 %v975, %v1020
      %v1705 = vpack.c.b16 %v975, %v1021
      %v1706 = vpack.c.b16 %v975, %v1022
      %v1707 = vpack.c.b16 %v975, %v1023
      %v1762 = vunpack.c.l.b16 %v568
      %v1763 = vunpack.c.l.b16 %v569
      %v1764 = vunpack.c.l.b16 %v570
      %v1765 = vunpack.c.l.b16 %v571
      %v1766 = vunpack.c.l.b16 %v572
      %v1767 = vunpack.c.l.b16 %v573
      %v1768 = vunpack.c.l.b16 %v574
      %v1769 = vunpack.c.l.b16 %v575
      %v1770 = vunpack.c.l.b16 %v576
      %v1771 = vunpack.c.l.b16 %v577
      %v1772 = vunpack.c.l.b16 %v578
      %v1773 = vunpack.c.l.b16 %v579
      %v1774 = vunpack.c.l.b16 %v580
      %v1775 = vunpack.c.l.b16 %v581
      %v1776 = vunpack.c.l.b16 %v582
      %v1777 = vunpack.c.l.b16 %v583
      %v1778 = vunpack.c.l.b16 %v584
      %v1779 = vunpack.c.l.b16 %v585
      %v1780 = vunpack.c.l.b16 %v586
      %v1781 = vunpack.c.l.b16 %v587
      %v1782 = vunpack.c.l.b16 %v588
      %v1783 = vunpack.c.l.b16 %v589
      %v1784 = vunpack.c.l.b16 %v590
      %v1785 = vunpack.c.l.b16 %v591
      %v1786 = vunpack.c.l.b16 %v592
      %v1787 = vunpack.c.l.b16 %v593
      %v1788 = vunpack.c.l.b16 %v594
      %v1789 = vunpack.c.l.b16 %v595
      %v1790 = vunpack.c.l.b16 %v596
      %v1791 = vunpack.c.l.b16 %v597
      %v1792 = vunpack.c.l.b16 %v598
      %v1793 = vunpack.c.l.b16 %v599
      %v1794 = vunpack.c.l.b16 %v600
      %v1795 = vunpack.c.l.b16 %v601
      %v1796 = vunpack.c.l.b16 %v602
      %v1797 = vunpack.c.l.b16 %v603
      %v1798 = vunpack.c.l.b16 %v604
      %v1799 = vunpack.c.l.b16 %v605
      %v1800 = vunpack.c.l.b16 %v606
      %v1801 = vunpack.c.l.b16 %v607
      %v1802 = vunpack.c.l.b16 %v608
      %v1803 = vunpack.c.l.b16 %v609
      %v1804 = vunpack.c.l.b16 %v610
      %v1805 = vunpack.c.l.b16 %v611
      %v1806 = vunpack.c.l.b16 %v612
      %v1807 = vunpack.c.l.b16 %v613
      %v1808 = vunpack.c.l.b16 %v614
      %v1809 = vunpack.c.l.b16 %v615
      %v1810 = vpack.c.b16 %v1763, %v1762
      %v1811 = vpack.c.b16 %v1765, %v1764
      %v1812 = vpack.c.b16 %v1767, %v1766
      %v1813 = vpack.c.b16 %v1769, %v1768
      %v1814 = vpack.c.b16 %v1771, %v1770
      %v1815 = vpack.c.b16 %v1773, %v1772
      %v1816 = vpack.c.b16 %v1775, %v1774
      %v1817 = vpack.c.b16 %v1777, %v1776
      %v1818 = vpack.c.b16 %v1779, %v1778
      %v1819 = vpack.c.b16 %v1781, %v1780
      %v1820 = vpack.c.b16 %v1783, %v1782
      %v1821 = vpack.c.b16 %v1785, %v1784
      %v1822 = vpack.c.b16 %v1787, %v1786
      %v1823 = vpack.c.b16 %v1789, %v1788
      %v1824 = vpack.c.b16 %v1791, %v1790
      %v1825 = vpack.c.b16 %v1793, %v1792
      %v1826 = vpack.c.b16 %v1795, %v1794
      %v1827 = vpack.c.b16 %v1797, %v1796
      %v1828 = vpack.c.b16 %v1799, %v1798
      %v1829 = vpack.c.b16 %v1801, %v1800
      %v1830 = vpack.c.b16 %v1803, %v1802
      %v1831 = vpack.c.b16 %v1805, %v1804
      %v1832 = vpack.c.b16 %v1807, %v1806
      %v1833 = vpack.c.b16 %v1809, %v1808
      %1858 = vmatpush.bf16.msra.mxu0 %v1817
      %1859 = vmatpush.bf16.msra.mxu0 %v1816
      %1860 = vmatpush.bf16.msra.mxu0 %v1815
      %1861 = vmatpush.bf16.msra.mxu0 %v1814
      %1862 = vmatpush.bf16.msra.mxu0 %v1813
      %1863 = vmatpush.bf16.msra.mxu0 %v1812
      %1864 = vmatpush.bf16.msra.mxu0 %v1811
      %1865 = vmatpush.bf16.msra.mxu0 %v1810
      %1866 = vmatmul.bf16.gmra.mxu0 %v1366
      %v1867 = vpop.f32.mrf.mxu0
      %v1868 = vadd.f32 0.0, %v1867
      %v1869 = vpop.f32.mrf.mxu0
      %v1870 = vadd.f32 0.0, %v1869
      %1871 = vmatmul.bf16.gmra.mxu0 %v1369
      %v1872 = vpop.f32.mrf.mxu0
      %v1873 = vadd.f32 0.0, %v1872
      %v1874 = vpop.f32.mrf.mxu0
      %v1875 = vadd.f32 0.0, %v1874
      %1876 = vmatmul.bf16.gmra.mxu0 %v1372
      %v1877 = vpop.f32.mrf.mxu0
      %v1878 = vadd.f32 0.0, %v1877
      %v1879 = vpop.f32.mrf.mxu0
      %v1880 = vadd.f32 0.0, %v1879
      %1881 = vmatmul.bf16.gmra.mxu0 %v1702
      %v1882 = vpop.f32.mrf.mxu0
      %v1883 = vadd.f32 0.0, %v1882
      %v1884 = vpop.f32.mrf.mxu0
      %v1885 = vadd.f32 0.0, %v1884
      %1886 = vmatmul.bf16.gmra.mxu0 %v1378
      %v1887 = vpop.f32.mrf.mxu0
      %v1888 = vadd.f32 0.0, %v1887
      %v1889 = vpop.f32.mrf.mxu0
      %v1890 = vadd.f32 0.0, %v1889
      %1891 = vmatmul.bf16.gmra.mxu0 %v1381
      %v1892 = vpop.f32.mrf.mxu0
      %v1893 = vadd.f32 0.0, %v1892
      %v1894 = vpop.f32.mrf.mxu0
      %v1895 = vadd.f32 0.0, %v1894
      %1896 = vmatmul.bf16.gmra.mxu0 %v1384
      %v1897 = vpop.f32.mrf.mxu0
      %v1898 = vadd.f32 0.0, %v1897
      %v1899 = vpop.f32.mrf.mxu0
      %v1900 = vadd.f32 0.0, %v1899
      %1901 = vmatmul.bf16.gmra.mxu0 %v1705
      %v1902 = vpop.f32.mrf.mxu0
      %v1903 = vadd.f32 0.0, %v1902
      %v1904 = vpop.f32.mrf.mxu0
      %v1905 = vadd.f32 0.0, %v1904
      %1906 = vdwg.mxu0
      %1907 = vmatpush.bf16.msra.mxu0 %v1825
      %1908 = vmatpush.bf16.msra.mxu0 %v1824
      %1909 = vmatpush.bf16.msra.mxu0 %v1823
      %1910 = vmatpush.bf16.msra.mxu0 %v1822
      %1911 = vmatpush.bf16.msra.mxu0 %v1821
      %1912 = vmatpush.bf16.msra.mxu0 %v1820
      %1913 = vmatpush.bf16.msra.mxu0 %v1819
      %1914 = vmatpush.bf16.msra.mxu0 %v1818
      %1915 = vmatmul.bf16.gmra.mxu0 %v1367
      %v1916 = vpop.f32.mrf.mxu0
      %v1917 = vadd.f32 %v1868, %v1916
      %v1918 = vpop.f32.mrf.mxu0
      %v1919 = vadd.f32 %v1870, %v1918
      %1920 = vmatmul.bf16.gmra.mxu0 %v1370
      %v1921 = vpop.f32.mrf.mxu0
      %v1922 = vadd.f32 %v1873, %v1921
      %v1923 = vpop.f32.mrf.mxu0
      %v1924 = vadd.f32 %v1875, %v1923
      %1925 = vmatmul.bf16.gmra.mxu0 %v1373
      %v1926 = vpop.f32.mrf.mxu0
      %v1927 = vadd.f32 %v1878, %v1926
      %v1928 = vpop.f32.mrf.mxu0
      %v1929 = vadd.f32 %v1880, %v1928
      %1930 = vmatmul.bf16.gmra.mxu0 %v1703
      %v1931 = vpop.f32.mrf.mxu0
      %v1932 = vadd.f32 %v1883, %v1931
      %v1933 = vpop.f32.mrf.mxu0
      %v1934 = vadd.f32 %v1885, %v1933
      %1935 = vmatmul.bf16.gmra.mxu0 %v1379
      %v1936 = vpop.f32.mrf.mxu0
      %v1937 = vadd.f32 %v1888, %v1936
      %v1938 = vpop.f32.mrf.mxu0
      %v1939 = vadd.f32 %v1890, %v1938
      %1940 = vmatmul.bf16.gmra.mxu0 %v1382
      %v1941 = vpop.f32.mrf.mxu0
      %v1942 = vadd.f32 %v1893, %v1941
      %v1943 = vpop.f32.mrf.mxu0
      %v1944 = vadd.f32 %v1895, %v1943
      %1945 = vmatmul.bf16.gmra.mxu0 %v1385
      %v1946 = vpop.f32.mrf.mxu0
      %v1947 = vadd.f32 %v1898, %v1946
      %v1948 = vpop.f32.mrf.mxu0
      %v1949 = vadd.f32 %v1900, %v1948
      %1950 = vmatmul.bf16.gmra.mxu0 %v1706
      %v1951 = vpop.f32.mrf.mxu0
      %v1952 = vadd.f32 %v1903, %v1951
      %v1953 = vpop.f32.mrf.mxu0
      %v1954 = vadd.f32 %v1905, %v1953
      %1955 = vdwg.mxu0
      %1956 = vmatpush.bf16.msra.mxu0 %v1833
      %1957 = vmatpush.bf16.msra.mxu0 %v1832
      %1958 = vmatpush.bf16.msra.mxu0 %v1831
      %1959 = vmatpush.bf16.msra.mxu0 %v1830
      %1960 = vmatpush.bf16.msra.mxu0 %v1829
      %1961 = vmatpush.bf16.msra.mxu0 %v1828
      %1962 = vmatpush.bf16.msra.mxu0 %v1827
      %1963 = vmatpush.bf16.msra.mxu0 %v1826
      %1964 = vmatmul.bf16.gmra.mxu0 %v1368
      %v1965 = vpop.f32.mrf.mxu0
      %v1966 = vadd.f32 %v1917, %v1965
      %v1967 = vpop.f32.mrf.mxu0
      %v1968 = vadd.f32 %v1919, %v1967
      %1969 = vmatmul.bf16.gmra.mxu0 %v1371
      %v1970 = vpop.f32.mrf.mxu0
      %v1971 = vadd.f32 %v1922, %v1970
      %v1972 = vpop.f32.mrf.mxu0
      %v1973 = vadd.f32 %v1924, %v1972
      %1974 = vmatmul.bf16.gmra.mxu0 %v1374
      %v1975 = vpop.f32.mrf.mxu0
      %v1976 = vadd.f32 %v1927, %v1975
      %v1977 = vpop.f32.mrf.mxu0
      %v1978 = vadd.f32 %v1929, %v1977
      %1979 = vmatmul.bf16.gmra.mxu0 %v1704
      %v1980 = vpop.f32.mrf.mxu0
      %v1981 = vadd.f32 %v1932, %v1980
      %v1982 = vpop.f32.mrf.mxu0
      %v1983 = vadd.f32 %v1934, %v1982
      %1984 = vmatmul.bf16.gmra.mxu0 %v1380
      %v1985 = vpop.f32.mrf.mxu0
      %v1986 = vadd.f32 %v1937, %v1985
      %v1987 = vpop.f32.mrf.mxu0
      %v1988 = vadd.f32 %v1939, %v1987
      %1989 = vmatmul.bf16.gmra.mxu0 %v1383
      %v1990 = vpop.f32.mrf.mxu0
      %v1991 = vadd.f32 %v1942, %v1990
      %v1992 = vpop.f32.mrf.mxu0
      %v1993 = vadd.f32 %v1944, %v1992
      %1994 = vmatmul.bf16.gmra.mxu0 %v1386
      %v1995 = vpop.f32.mrf.mxu0
      %v1996 = vadd.f32 %v1947, %v1995
      %v1997 = vpop.f32.mrf.mxu0
      %v1998 = vadd.f32 %v1949, %v1997
      %1999 = vmatmul.bf16.gmra.mxu0 %v1707
      %v2000 = vpop.f32.mrf.mxu0
      %v2001 = vadd.f32 %v1952, %v2000
      %v2002 = vpop.f32.mrf.mxu0
      %v2003 = vadd.f32 %v1954, %v2002
      %2004 = vdwg.mxu0
      %v2005 = vadd.f32 %v1663, %v1966
      %v2006 = vadd.f32 %v1665, %v1968
      %v2007 = vadd.f32 %v1668, %v1971
      %v2008 = vadd.f32 %v1670, %v1973
      %v2009 = vadd.f32 %v1673, %v1976
      %v2010 = vadd.f32 %v1675, %v1978
      %v2011 = vadd.f32 %v1678, %v1981
      %v2012 = vadd.f32 %v1680, %v1983
      %v2013 = vadd.f32 %v1683, %v1986
      %v2014 = vadd.f32 %v1685, %v1988
      %v2015 = vadd.f32 %v1688, %v1991
      %v2016 = vadd.f32 %v1690, %v1993
      %v2017 = vadd.f32 %v1693, %v1996
      %v2018 = vadd.f32 %v1695, %v1998
      %v2019 = vadd.f32 %v1698, %v2001
      %v2020 = vadd.f32 %v1700, %v2003
      %v2021 = vld [vmem:[%s271] sm:$0x1]
      %v2022 = vld [vmem:[%s274] sm:$0x1]
      %vm2023 = vcmask 523264
      %v2024 = vsel %vm2023, %v2005, 0.0
      %v2025 = vsel %vm2023, %v2006, 0.0
      %v2026 = vadd.f32 %v2024, %v2025
      %v2027 = vsel %vm2023, %v2007, 0.0
      %v2028 = vadd.f32 %v2026, %v2027
      %v2029 = vsel %vm2023, %v2008, 0.0
      %v2030 = vadd.f32 %v2028, %v2029
      %v2031 = vsel %vm2023, %v2009, 0.0
      %v2032 = vadd.f32 %v2030, %v2031
      %v2033 = vsel %vm2023, %v2010, 0.0
      %v2034 = vadd.f32 %v2032, %v2033
      %v2035 = vsel %vm2023, %v2011, 0.0
      %v2036 = vadd.f32 %v2034, %v2035
      %v2037 = vsel %vm2023, %v2012, 0.0
      %v2038 = vadd.f32 %v2036, %v2037
      %v2039 = vsel %vm2023, %v2013, 0.0
      %v2040 = vadd.f32 %v2038, %v2039
      %v2041 = vsel %vm2023, %v2014, 0.0
      %v2042 = vadd.f32 %v2040, %v2041
      %v2043 = vsel %vm2023, %v2015, 0.0
      %v2044 = vadd.f32 %v2042, %v2043
      %v2045 = vsel %vm2023, %v2016, 0.0
      %v2046 = vadd.f32 %v2044, %v2045
      %v2047 = vsel %vm2023, %v2017, 0.0
      %v2048 = vadd.f32 %v2046, %v2047
      %v2049 = vsel %vm2023, %v2018, 0.0
      %v2050 = vadd.f32 %v2048, %v2049
      %v2051 = vsel %vm2023, %v2019, 0.0
      %v2052 = vadd.f32 %v2050, %v2051
      %v2053 = vsel %vm2023, %v2020, 0.0
      %v2054 = vadd.f32 %v2052, %v2053
      %v2055 = vrot.slane %v2054, 4
      %v2056 = vadd.f32 %v2054, %v2055
      %v2057 = vrot.slane %v2056, 2
      %v2058 = vadd.f32 %v2056, %v2057
      %v2059 = vrot.slane %v2058, 1
      %v2060 = vadd.f32 %v2058, %v2059
      %v2061 = vmul.f32 %v2060, 0.0078125
      %v2062 = vsub.f32 %v2005, %v2061
      %v2063 = vsub.f32 %v2006, %v2061
      %v2064 = vsub.f32 %v2007, %v2061
      %v2065 = vsub.f32 %v2008, %v2061
      %v2066 = vsub.f32 %v2009, %v2061
      %v2067 = vsub.f32 %v2010, %v2061
      %v2068 = vsub.f32 %v2011, %v2061
      %v2069 = vsub.f32 %v2012, %v2061
      %v2070 = vsub.f32 %v2013, %v2061
      %v2071 = vsub.f32 %v2014, %v2061
      %v2072 = vsub.f32 %v2015, %v2061
      %v2073 = vsub.f32 %v2016, %v2061
      %v2074 = vsub.f32 %v2017, %v2061
      %v2075 = vsub.f32 %v2018, %v2061
      %v2076 = vsub.f32 %v2019, %v2061
      %v2077 = vsub.f32 %v2020, %v2061
      %v2078 = vmul.f32 %v2062, %v2062
      %v2079 = vmul.f32 %v2063, %v2063
      %v2080 = vmul.f32 %v2064, %v2064
      %v2081 = vmul.f32 %v2065, %v2065
      %v2082 = vmul.f32 %v2066, %v2066
      %v2083 = vmul.f32 %v2067, %v2067
      %v2084 = vmul.f32 %v2068, %v2068
      %v2085 = vmul.f32 %v2069, %v2069
      %v2086 = vmul.f32 %v2070, %v2070
      %v2087 = vmul.f32 %v2071, %v2071
      %v2088 = vmul.f32 %v2072, %v2072
      %v2089 = vmul.f32 %v2073, %v2073
      %v2090 = vmul.f32 %v2074, %v2074
      %v2091 = vmul.f32 %v2075, %v2075
      %v2092 = vmul.f32 %v2076, %v2076
      %v2093 = vmul.f32 %v2077, %v2077
      %v2094 = vsel %vm2023, %v2078, 0.0
      %v2095 = vsel %vm2023, %v2079, 0.0
      %v2096 = vadd.f32 %v2094, %v2095
      %v2097 = vsel %vm2023, %v2080, 0.0
      %v2098 = vadd.f32 %v2096, %v2097
      %v2099 = vsel %vm2023, %v2081, 0.0
      %v2100 = vadd.f32 %v2098, %v2099
      %v2101 = vsel %vm2023, %v2082, 0.0
      %v2102 = vadd.f32 %v2100, %v2101
      %v2103 = vsel %vm2023, %v2083, 0.0
      %v2104 = vadd.f32 %v2102, %v2103
      %v2105 = vsel %vm2023, %v2084, 0.0
      %v2106 = vadd.f32 %v2104, %v2105
      %v2107 = vsel %vm2023, %v2085, 0.0
      %v2108 = vadd.f32 %v2106, %v2107
      %v2109 = vsel %vm2023, %v2086, 0.0
      %v2110 = vadd.f32 %v2108, %v2109
      %v2111 = vsel %vm2023, %v2087, 0.0
      %v2112 = vadd.f32 %v2110, %v2111
      %v2113 = vsel %vm2023, %v2088, 0.0
      %v2114 = vadd.f32 %v2112, %v2113
      %v2115 = vsel %vm2023, %v2089, 0.0
      %v2116 = vadd.f32 %v2114, %v2115
      %v2117 = vsel %vm2023, %v2090, 0.0
      %v2118 = vadd.f32 %v2116, %v2117
      %v2119 = vsel %vm2023, %v2091, 0.0
      %v2120 = vadd.f32 %v2118, %v2119
      %v2121 = vsel %vm2023, %v2092, 0.0
      %v2122 = vadd.f32 %v2120, %v2121
      %v2123 = vsel %vm2023, %v2093, 0.0
      %v2124 = vadd.f32 %v2122, %v2123
      %v2125 = vrot.slane %v2124, 4
      %v2126 = vadd.f32 %v2124, %v2125
      %v2127 = vrot.slane %v2126, 2
      %v2128 = vadd.f32 %v2126, %v2127
      %v2129 = vrot.slane %v2128, 1
      %v2130 = vadd.f32 %v2128, %v2129
      %v2131 = vmul.f32 %v2130, 0.0078125
      %v2132 = vadd.f32 %v2131, 0.8
      %v2133 = vrsqrt.pop %v2132
      %v2134 = vmul.f32 %v2133, %v2132
      %v2135 = vmul.f32 %v2134, %v2133
      %v2136 = vmul.f32 0.5, %v2135
      %v2137 = vsub.f32 1.5, %v2136
      %v2138 = vmul.f32 %v2133, %v2137
      %vm2139 = vweird.f32 %v2132
      %vm2140 = vweird.f32 %v2133
      %vm2141 = vmor %vm2139, %vm2140
      %v2142 = vsel %vm2141, %v2133, %v2138
      %v2143 = vmul.f32 %v2062, %v2142
      %v2144 = vmul.f32 %v2063, %v2142
      %v2145 = vmul.f32 %v2064, %v2142
      %v2146 = vmul.f32 %v2065, %v2142
      %v2147 = vmul.f32 %v2066, %v2142
      %v2148 = vmul.f32 %v2067, %v2142
      %v2149 = vmul.f32 %v2068, %v2142
      %v2150 = vmul.f32 %v2069, %v2142
      %v2151 = vmul.f32 %v2070, %v2142
      %v2152 = vmul.f32 %v2071, %v2142
      %v2153 = vmul.f32 %v2072, %v2142
      %v2154 = vmul.f32 %v2073, %v2142
      %v2155 = vmul.f32 %v2074, %v2142
      %v2156 = vmul.f32 %v2075, %v2142
      %v2157 = vmul.f32 %v2076, %v2142
      %v2158 = vmul.f32 %v2077, %v2142
      %v2160 = vperm.slane %v2021, 0
      %v2162 = vmul.f32 %v2143, %v2160
      %v2163 = vmul.f32 %v2144, %v2160
      %v2164 = vmul.f32 %v2145, %v2160
      %v2165 = vmul.f32 %v2146, %v2160
      %v2166 = vmul.f32 %v2147, %v2160
      %v2167 = vmul.f32 %v2148, %v2160
      %v2168 = vmul.f32 %v2149, %v2160
      %v2169 = vmul.f32 %v2150, %v2160
      %v2170 = vmul.f32 %v2151, %v2160
      %v2171 = vmul.f32 %v2152, %v2160
      %v2172 = vmul.f32 %v2153, %v2160
      %v2173 = vmul.f32 %v2154, %v2160
      %v2174 = vmul.f32 %v2155, %v2160
      %v2175 = vmul.f32 %v2156, %v2160
      %v2176 = vmul.f32 %v2157, %v2160
      %v2177 = vmul.f32 %v2158, %v2160
      %v2179 = vperm.slane %v2022, 0
      %v2181 = vadd.f32 %v2162, %v2179
      %v2182 = vadd.f32 %v2163, %v2179
      %v2183 = vadd.f32 %v2164, %v2179
      %v2184 = vadd.f32 %v2165, %v2179
      %v2185 = vadd.f32 %v2166, %v2179
      %v2186 = vadd.f32 %v2167, %v2179
      %v2187 = vadd.f32 %v2168, %v2179
      %v2188 = vadd.f32 %v2169, %v2179
      %v2189 = vadd.f32 %v2170, %v2179
      %v2190 = vadd.f32 %v2171, %v2179
      %v2191 = vadd.f32 %v2172, %v2179
      %v2192 = vadd.f32 %v2173, %v2179
      %v2193 = vadd.f32 %v2174, %v2179
      %v2194 = vadd.f32 %v2175, %v2179
      %v2195 = vadd.f32 %v2176, %v2179
      %v2196 = vadd.f32 %v2177, %v2179
      %vm2197 = vcmp.ge.f32.partialorder %v2181, 0.0
      %vm2198 = vcmp.ge.f32.partialorder %v2182, 0.0
      %vm2199 = vcmp.ge.f32.partialorder %v2183, 0.0
      %vm2200 = vcmp.ge.f32.partialorder %v2184, 0.0
      %vm2201 = vcmp.ge.f32.partialorder %v2185, 0.0
      %vm2202 = vcmp.ge.f32.partialorder %v2186, 0.0
      %vm2203 = vcmp.ge.f32.partialorder %v2187, 0.0
      %vm2204 = vcmp.ge.f32.partialorder %v2188, 0.0
      %vm2205 = vcmp.ge.f32.partialorder %v2189, 0.0
      %vm2206 = vcmp.ge.f32.partialorder %v2190, 0.0
      %vm2207 = vcmp.ge.f32.partialorder %v2191, 0.0
      %vm2208 = vcmp.ge.f32.partialorder %v2192, 0.0
      %vm2209 = vcmp.ge.f32.partialorder %v2193, 0.0
      %vm2210 = vcmp.ge.f32.partialorder %v2194, 0.0
      %vm2211 = vcmp.ge.f32.partialorder %v2195, 0.0
      %vm2212 = vcmp.ge.f32.partialorder %v2196, 0.0
      %v2213 = vmul.f32 %v2181, 0.2
      %v2214 = vmul.f32 %v2182, 0.2
      %v2215 = vmul.f32 %v2183, 0.2
      %v2216 = vmul.f32 %v2184, 0.2
      %v2217 = vmul.f32 %v2185, 0.2
      %v2218 = vmul.f32 %v2186, 0.2
      %v2219 = vmul.f32 %v2187, 0.2
      %v2220 = vmul.f32 %v2188, 0.2
      %v2221 = vmul.f32 %v2189, 0.2
      %v2222 = vmul.f32 %v2190, 0.2
      %v2223 = vmul.f32 %v2191, 0.2
      %v2224 = vmul.f32 %v2192, 0.2
      %v2225 = vmul.f32 %v2193, 0.2
      %v2226 = vmul.f32 %v2194, 0.2
      %v2227 = vmul.f32 %v2195, 0.2
      %v2228 = vmul.f32 %v2196, 0.2
      %v2229 = vsel %vm2197, %v2181, %v2213
      %v2230 = vsel %vm2198, %v2182, %v2214
      %v2231 = vsel %vm2199, %v2183, %v2215
      %v2232 = vsel %vm2200, %v2184, %v2216
      %v2233 = vsel %vm2201, %v2185, %v2217
      %v2234 = vsel %vm2202, %v2186, %v2218
      %v2235 = vsel %vm2203, %v2187, %v2219
      %v2236 = vsel %vm2204, %v2188, %v2220
      %v2237 = vsel %vm2205, %v2189, %v2221
      %v2238 = vsel %vm2206, %v2190, %v2222
      %v2239 = vsel %vm2207, %v2191, %v2223
      %v2240 = vsel %vm2208, %v2192, %v2224
      %v2241 = vsel %vm2209, %v2193, %v2225
      %v2242 = vsel %vm2210, %v2194, %v2226
      %v2243 = vsel %vm2211, %v2195, %v2227
      %v2244 = vsel %vm2212, %v2196, %v2228
      %v2245 = vpack.c.bf16 %v2229, %v2229
      %v2246 = vpack.c.bf16 %v2230, %v2230
      %v2247 = vpack.c.bf16 %v2231, %v2231
      %v2248 = vpack.c.bf16 %v2232, %v2232
      %v2249 = vpack.c.bf16 %v2233, %v2233
      %v2250 = vpack.c.bf16 %v2234, %v2234
      %v2251 = vpack.c.bf16 %v2235, %v2235
      %v2252 = vpack.c.bf16 %v2236, %v2236
      %v2253 = vpack.c.bf16 %v2237, %v2237
      %v2254 = vpack.c.bf16 %v2238, %v2238
      %v2255 = vpack.c.bf16 %v2239, %v2239
      %v2256 = vpack.c.bf16 %v2240, %v2240
      %v2257 = vpack.c.bf16 %v2241, %v2241
      %v2258 = vpack.c.bf16 %v2242, %v2242
      %v2259 = vpack.c.bf16 %v2243, %v2243
      %v2260 = vpack.c.bf16 %v2244, %v2244
      %vm2261 = vcmask 519168
      %2262 = vst.msk [vmem:[%s279] sm:$0xf] %vm2261, %v2245
      %2263 = vst.msk [vmem:[%s279 + $0x4] sm:$0xf] %vm2261, %v2246
      %2264 = vst.msk [vmem:[%s279 + $0x8] sm:$0xf] %vm2261, %v2247
      %2265 = vst.msk [vmem:[%s279 + $0xc] sm:$0xf] %vm2261, %v2248
      %2266 = vst.msk [vmem:[%s279 + $0x10] sm:$0xf] %vm2261, %v2249
      %2267 = vst.msk [vmem:[%s279 + $0x14] sm:$0xf] %vm2261, %v2250
      %2268 = vst.msk [vmem:[%s279 + $0x18] sm:$0xf] %vm2261, %v2251
      %2269 = vst.msk [vmem:[%s279 + $0x1c] sm:$0xf] %vm2261, %v2252
      %2270 = vst.msk [vmem:[%s279 + $0x20] sm:$0xf] %vm2261, %v2253
      %2271 = vst.msk [vmem:[%s279 + $0x24] sm:$0xf] %vm2261, %v2254
      %2272 = vst.msk [vmem:[%s279 + $0x28] sm:$0xf] %vm2261, %v2255
      %2273 = vst.msk [vmem:[%s279 + $0x2c] sm:$0xf] %vm2261, %v2256
      %2274 = vst.msk [vmem:[%s279 + $0x30] sm:$0xf] %vm2261, %v2257
      %2275 = vst.msk [vmem:[%s279 + $0x34] sm:$0xf] %vm2261, %v2258
      %2276 = vst.msk [vmem:[%s279 + $0x38] sm:$0xf] %vm2261, %v2259
      %2277 = vst.msk [vmem:[%s279 + $0x3c] sm:$0xf] %vm2261, %v2260
      %p2278 = scmp.lt.s32.totalorder %s17, 1
      %s2279 = scalar_select %p2278, %s17, 1
      %s2280 = smul.addr %s2279, 16
      %s2281 = smul.addr %s2280, 4
      %s2282 = scalar_lea.vmem %s6, %s2281
      // Predicated region
      $region45: #{generator_forward.5} parent=43 // pred_check
        %p2283 = pneg %p176
      $region46: #{generator_forward.5} parent=43 // pred_check_branch
        %2285 = sbr.rel (%p2283) target = $region48
      $region47: #{generator_forward.5} parent=43 // pred_region
        _
      $region48: #{generator_forward.5} parent=43 // pred_fallthru
        _
    $region44: #{generator_forward.5} parent=5 // pred_fallthru
      _
    %p2286 = scmp.le.s32.totalorder 2, %s12
    // Predicated region
    $region49: #{generator_forward.5} parent=5 // pred_check
      %p2287 = pneg %p2286
    $region50: #{generator_forward.5} parent=5 // pred_check_branch
      %2289 = sbr.rel (%p2287) target = $region52
    $region51: #{generator_forward.5} parent=5 // pred_region
      %s2290 = ssub.s32 %s12, 2
      // Predicated region
      $region53: #{generator_forward.5} parent=51 // pred_check
        %p2291 = pneg %p182
      $region54: #{generator_forward.5} parent=51 // pred_check_branch
        %2293 = sbr.rel (%p2291) target = $region56
      $region55: #{generator_forward.5} parent=51 // pred_region
        %p2294 = scmp.lt.s32.totalorder %s18, 1
        %s2295 = scalar_select %p2294, %s18, 1
        %s2296 = smul.addr %s2295, 16
        %s2297 = smul.addr %s2296, 4
        %s2298 = scalar_lea.vmem %s6, %s2297
      $region56: #{generator_forward.5} parent=51 // pred_fallthru
        _
    $region52: #{generator_forward.5} parent=5 // pred_fallthru
      _
  $region6: #{generator_forward.5} parent=0 // loop_footer
    %s16 = sadd.s32 1, %s12
  $region7: #{generator_forward.5} parent=0 // loop_footer_branch
    %11 = sbr.rel target = $region3
  $region8: #{generator_forward.5} parent=0 // loop_exit
    _

// kernel: generator_forward.7
$region0: #{generator_forward.7}
  #allocation0 [shape = 'u32[]', space=smem, size = 0x4, offset = 0x4, fixed_abs, tag = 'smem constant byte address 0x4 - core index']
  #allocation1 [shape = 'u32[72,128]{1,0:T(1,128)}', space=vmem, size = 0x9000, scoped, tag = 'internal scratch']
  %s0 = inlined_call_operand.vmem [shape: bf16[2,16,16,64], index: 0, kind: input, shape index: {}]
  %s1 = inlined_call_operand.vmem [shape: bf16[3,3,192], index: 1, kind: input, shape index: {}]
  %s2 = inlined_call_operand.vmem [shape: f32[3,1], index: 2, kind: input, shape index: {}]
  %s3 = inlined_call_operand.vmem [shape: f32[2,3,256], index: 3, kind: output, shape index: {}]
  %s4 = sld [smem:[#allocation0]]
  $region22: #{generator_forward.7} parent=0
    _
  %s6 = ssub.s32 1, %s4
  %s7 = scalar_select 0, %s6, %s4
  // Predicated region
  $region2: #{generator_forward.7} parent=0 // pred_check
    _
  $region3: #{generator_forward.7} parent=0 // pred_check_branch
    %9 = sbr.rel (0) target = $region5
  $region4: #{generator_forward.7} parent=0 // pred_region
    _
  $region5: #{generator_forward.7} parent=0 // pred_fallthru
    _
  // Predicated region
  $region6: #{generator_forward.7} parent=0 // pred_check
    _
  $region7: #{generator_forward.7} parent=0 // pred_check_branch
    %11 = sbr.rel (0) target = $region9
  $region8: #{generator_forward.7} parent=0 // pred_region
    _
  $region9: #{generator_forward.7} parent=0 // pred_fallthru
    _
  // Predicated region
  $region10: #{generator_forward.7} parent=0 // pred_check
    _
  $region11: #{generator_forward.7} parent=0 // pred_check_branch
    %13 = sbr.rel (0) target = $region13
  $region12: #{generator_forward.7} parent=0 // pred_region
    _
  $region13: #{generator_forward.7} parent=0 // pred_fallthru
    _
  %v15 = vld [vmem:[%s0] sm:$0xf]
  %v16 = vld [vmem:[%s0 + $0x4] sm:$0xf]
  %v17 = vld [vmem:[%s0 + $0x8] sm:$0xf]
  %v18 = vld [vmem:[%s0 + $0xc] sm:$0xf]
  %v19 = vld [vmem:[%s0 + $0x10] sm:$0xf]
  %v20 = vld [vmem:[%s0 + $0x14] sm:$0xf]
  %v21 = vld [vmem:[%s0 + $0x18] sm:$0xf]
  %v22 = vld [vmem:[%s0 + $0x1c] sm:$0xf]
  %v23 = vld [vmem:[%s0 + $0x20] sm:$0xf]
  %v24 = vld [vmem:[%s0 + $0x24] sm:$0xf]
  %v25 = vld [vmem:[%s0 + $0x28] sm:$0xf]
  %v26 = vld [vmem:[%s0 + $0x2c] sm:$0xf]
  %v27 = vld [vmem:[%s0 + $0x30] sm:$0xf]
  %v28 = vld [vmem:[%s0 + $0x34] sm:$0xf]
  %v29 = vld [vmem:[%s0 + $0x38] sm:$0xf]
  %v30 = vld [vmem:[%s0 + $0x3c] sm:$0xf]
  %v31 = vld [vmem:[%s0 + $0x40] sm:$0xf]
  %v32 = vld [vmem:[%s0 + $0x44] sm:$0xf]
  %v33 = vld [vmem:[%s0 + $0x48] sm:$0xf]
  %v34 = vld [vmem:[%s0 + $0x4c] sm:$0xf]
  %v35 = vld [vmem:[%s0 + $0x50] sm:$0xf]
  %v36 = vld [vmem:[%s0 + $0x54] sm:$0xf]
  %v37 = vld [vmem:[%s0 + $0x58] sm:$0xf]
  %v38 = vld [vmem:[%s0 + $0x5c] sm:$0xf]
  %v39 = vld [vmem:[%s0 + $0x60] sm:$0xf]
  %v40 = vld [vmem:[%s0 + $0x64] sm:$0xf]
  %v41 = vld [vmem:[%s0 + $0x68] sm:$0xf]
  %v42 = vld [vmem:[%s0 + $0x6c] sm:$0xf]
  %v43 = vld [vmem:[%s0 + $0x70] sm:$0xf]
  %v44 = vld [vmem:[%s0 + $0x74] sm:$0xf]
  %v45 = vld [vmem:[%s0 + $0x78] sm:$0xf]
  %v46 = vld [vmem:[%s0 + $0x7c] sm:$0xf]
  %v47 = vld [vmem:[%s0 + $0x80] sm:$0xf]
  %v48 = vld [vmem:[%s0 + $0x84] sm:$0xf]
  %v49 = vld [vmem:[%s0 + $0x88] sm:$0xf]
  %v50 = vld [vmem:[%s0 + $0x8c] sm:$0xf]
  %v51 = vld [vmem:[%s0 + $0x90] sm:$0xf]
  %v52 = vld [vmem:[%s0 + $0x94] sm:$0xf]
  %v53 = vld [vmem:[%s0 + $0x98] sm:$0xf]
  %v54 = vld [vmem:[%s0 + $0x9c] sm:$0xf]
  %v55 = vld [vmem:[%s0 + $0xa0] sm:$0xf]
  %v56 = vld [vmem:[%s0 + $0xa4] sm:$0xf]
  %v57 = vld [vmem:[%s0 + $0xa8] sm:$0xf]
  %v58 = vld [vmem:[%s0 + $0xac] sm:$0xf]
  %v59 = vld [vmem:[%s0 + $0xb0] sm:$0xf]
  %v60 = vld [vmem:[%s0 + $0xb4] sm:$0xf]
  %v61 = vld [vmem:[%s0 + $0xb8] sm:$0xf]
  %v62 = vld [vmem:[%s0 + $0xbc] sm:$0xf]
  %v63 = vld [vmem:[%s0 + $0xc0] sm:$0xf]
  %v64 = vld [vmem:[%s0 + $0xc4] sm:$0xf]
  %v65 = vld [vmem:[%s0 + $0xc8] sm:$0xf]
  %v66 = vld [vmem:[%s0 + $0xcc] sm:$0xf]
  %v67 = vld [vmem:[%s0 + $0xd0] sm:$0xf]
  %v68 = vld [vmem:[%s0 + $0xd4] sm:$0xf]
  %v69 = vld [vmem:[%s0 + $0xd8] sm:$0xf]
  %v70 = vld [vmem:[%s0 + $0xdc] sm:$0xf]
  %v71 = vld [vmem:[%s0 + $0xe0] sm:$0xf]
  %v72 = vld [vmem:[%s0 + $0xe4] sm:$0xf]
  %v73 = vld [vmem:[%s0 + $0xe8] sm:$0xf]
  %v74 = vld [vmem:[%s0 + $0xec] sm:$0xf]
  %v75 = vld [vmem:[%s0 + $0xf0] sm:$0xf]
  %v76 = vld [vmem:[%s0 + $0xf4] sm:$0xf]
  %v77 = vld [vmem:[%s0 + $0xf8] sm:$0xf]
  %v78 = vld [vmem:[%s0 + $0xfc] sm:$0xf]
  %v143 = vunpack.c.l.b16 %v15
  %v144 = vunpack.c.l.b16 %v16
  %v145 = vunpack.c.l.b16 %v17
  %v146 = vunpack.c.l.b16 %v18
  %v147 = vunpack.c.l.b16 %v19
  %v148 = vunpack.c.l.b16 %v20
  %v149 = vunpack.c.l.b16 %v21
  %v150 = vunpack.c.l.b16 %v22
  %v151 = vunpack.c.l.b16 %v23
  %v152 = vunpack.c.l.b16 %v24
  %v153 = vunpack.c.l.b16 %v25
  %v154 = vunpack.c.l.b16 %v26
  %v155 = vunpack.c.l.b16 %v27
  %v156 = vunpack.c.l.b16 %v28
  %v157 = vunpack.c.l.b16 %v29
  %v158 = vunpack.c.l.b16 %v30
  %v159 = vunpack.c.l.b16 %v31
  %v160 = vunpack.c.l.b16 %v32
  %v161 = vunpack.c.l.b16 %v33
  %v162 = vunpack.c.l.b16 %v34
  %v163 = vunpack.c.l.b16 %v35
  %v164 = vunpack.c.l.b16 %v36
  %v165 = vunpack.c.l.b16 %v37
  %v166 = vunpack.c.l.b16 %v38
  %v167 = vunpack.c.l.b16 %v39
  %v168 = vunpack.c.l.b16 %v40
  %v169 = vunpack.c.l.b16 %v41
  %v170 = vunpack.c.l.b16 %v42
  %v171 = vunpack.c.l.b16 %v43
  %v172 = vunpack.c.l.b16 %v44
  %v173 = vunpack.c.l.b16 %v45
  %v174 = vunpack.c.l.b16 %v46
  %v175 = vunpack.c.l.b16 %v47
  %v176 = vunpack.c.l.b16 %v48
  %v177 = vunpack.c.l.b16 %v49
  %v178 = vunpack.c.l.b16 %v50
  %v179 = vunpack.c.l.b16 %v51
  %v180 = vunpack.c.l.b16 %v52
  %v181 = vunpack.c.l.b16 %v53
  %v182 = vunpack.c.l.b16 %v54
  %v183 = vunpack.c.l.b16 %v55
  %v184 = vunpack.c.l.b16 %v56
  %v185 = vunpack.c.l.b16 %v57
  %v186 = vunpack.c.l.b16 %v58
  %v187 = vunpack.c.l.b16 %v59
  %v188 = vunpack.c.l.b16 %v60
  %v189 = vunpack.c.l.b16 %v61
  %v190 = vunpack.c.l.b16 %v62
  %v191 = vunpack.c.l.b16 %v63
  %v192 = vunpack.c.l.b16 %v64
  %v193 = vunpack.c.l.b16 %v65
  %v194 = vunpack.c.l.b16 %v66
  %v195 = vunpack.c.l.b16 %v67
  %v196 = vunpack.c.l.b16 %v68
  %v197 = vunpack.c.l.b16 %v69
  %v198 = vunpack.c.l.b16 %v70
  %v199 = vunpack.c.l.b16 %v71
  %v200 = vunpack.c.l.b16 %v72
  %v201 = vunpack.c.l.b16 %v73
  %v202 = vunpack.c.l.b16 %v74
  %v203 = vunpack.c.l.b16 %v75
  %v204 = vunpack.c.l.b16 %v76
  %v205 = vunpack.c.l.b16 %v77
  %v206 = vunpack.c.l.b16 %v78
  %v207 = vpack.c.b16 %v144, %v143
  %v208 = vpack.c.b16 %v146, %v145
  %v209 = vpack.c.b16 %v148, %v147
  %v210 = vpack.c.b16 %v150, %v149
  %v211 = vpack.c.b16 %v152, %v151
  %v212 = vpack.c.b16 %v154, %v153
  %v213 = vpack.c.b16 %v156, %v155
  %v214 = vpack.c.b16 %v158, %v157
  %v215 = vpack.c.b16 %v160, %v159
  %v216 = vpack.c.b16 %v162, %v161
  %v217 = vpack.c.b16 %v164, %v163
  %v218 = vpack.c.b16 %v166, %v165
  %v219 = vpack.c.b16 %v168, %v167
  %v220 = vpack.c.b16 %v170, %v169
  %v221 = vpack.c.b16 %v172, %v171
  %v222 = vpack.c.b16 %v174, %v173
  %v223 = vpack.c.b16 %v176, %v175
  %v224 = vpack.c.b16 %v178, %v177
  %v225 = vpack.c.b16 %v180, %v179
  %v226 = vpack.c.b16 %v182, %v181
  %v227 = vpack.c.b16 %v184, %v183
  %v228 = vpack.c.b16 %v186, %v185
  %v229 = vpack.c.b16 %v188, %v187
  %v230 = vpack.c.b16 %v190, %v189
  %v231 = vpack.c.b16 %v192, %v191
  %v232 = vpack.c.b16 %v194, %v193
  %v233 = vpack.c.b16 %v196, %v195
  %v234 = vpack.c.b16 %v198, %v197
  %v235 = vpack.c.b16 %v200, %v199
  %v236 = vpack.c.b16 %v202, %v201
  %v237 = vpack.c.b16 %v204, %v203
  %v238 = vpack.c.b16 %v206, %v205
  %v240 = vshrl.u32 %v207, 16
  %v242 = vrot.slane %v240, 7
  %v243 = vshll.u32 %v207, 16
  %v245 = vor.u32 %v242, %v243
  %v247 = vshrl.u32 %v208, 16
  %v249 = vrot.slane %v247, 7
  %v250 = vshll.u32 %v208, 16
  %v252 = vor.u32 %v249, %v250
  %v254 = vshrl.u32 %v209, 16
  %v256 = vrot.slane %v254, 7
  %v257 = vshll.u32 %v209, 16
  %v259 = vor.u32 %v256, %v257
  %v261 = vshrl.u32 %v210, 16
  %v263 = vrot.slane %v261, 7
  %v264 = vshll.u32 %v210, 16
  %v266 = vor.u32 %v263, %v264
  %v268 = vshrl.u32 %v211, 16
  %v270 = vrot.slane %v268, 7
  %v271 = vshll.u32 %v211, 16
  %v273 = vor.u32 %v270, %v271
  %v275 = vshrl.u32 %v212, 16
  %v277 = vrot.slane %v275, 7
  %v278 = vshll.u32 %v212, 16
  %v280 = vor.u32 %v277, %v278
  %v282 = vshrl.u32 %v213, 16
  %v284 = vrot.slane %v282, 7
  %v285 = vshll.u32 %v213, 16
  %v287 = vor.u32 %v284, %v285
  %v289 = vshrl.u32 %v214, 16
  %v291 = vrot.slane %v289, 7
  %v292 = vshll.u32 %v214, 16
  %v294 = vor.u32 %v291, %v292
  %v296 = vshrl.u32 %v215, 16
  %v298 = vrot.slane %v296, 7
  %v299 = vshll.u32 %v215, 16
  %v301 = vor.u32 %v298, %v299
  %v303 = vshrl.u32 %v216, 16
  %v305 = vrot.slane %v303, 7
  %v306 = vshll.u32 %v216, 16
  %v308 = vor.u32 %v305, %v306
  %v310 = vshrl.u32 %v217, 16
  %v312 = vrot.slane %v310, 7
  %v313 = vshll.u32 %v217, 16
  %v315 = vor.u32 %v312, %v313
  %v317 = vshrl.u32 %v218, 16
  %v319 = vrot.slane %v317, 7
  %v320 = vshll.u32 %v218, 16
  %v322 = vor.u32 %v319, %v320
  %v324 = vshrl.u32 %v219, 16
  %v326 = vrot.slane %v324, 7
  %v327 = vshll.u32 %v219, 16
  %v329 = vor.u32 %v326, %v327
  %v331 = vshrl.u32 %v220, 16
  %v333 = vrot.slane %v331, 7
  %v334 = vshll.u32 %v220, 16
  %v336 = vor.u32 %v333, %v334
  %v338 = vshrl.u32 %v221, 16
  %v340 = vrot.slane %v338, 7
  %v341 = vshll.u32 %v221, 16
  %v343 = vor.u32 %v340, %v341
  %v345 = vshrl.u32 %v222, 16
  %v347 = vrot.slane %v345, 7
  %v348 = vshll.u32 %v222, 16
  %v350 = vor.u32 %v347, %v348
  %v352 = vshrl.u32 %v223, 16
  %v354 = vrot.slane %v352, 7
  %v355 = vshll.u32 %v223, 16
  %v357 = vor.u32 %v354, %v355
  %v359 = vshrl.u32 %v224, 16
  %v361 = vrot.slane %v359, 7
  %v362 = vshll.u32 %v224, 16
  %v364 = vor.u32 %v361, %v362
  %v366 = vshrl.u32 %v225, 16
  %v368 = vrot.slane %v366, 7
  %v369 = vshll.u32 %v225, 16
  %v371 = vor.u32 %v368, %v369
  %v373 = vshrl.u32 %v226, 16
  %v375 = vrot.slane %v373, 7
  %v376 = vshll.u32 %v226, 16
  %v378 = vor.u32 %v375, %v376
  %v380 = vshrl.u32 %v227, 16
  %v382 = vrot.slane %v380, 7
  %v383 = vshll.u32 %v227, 16
  %v385 = vor.u32 %v382, %v383
  %v387 = vshrl.u32 %v228, 16
  %v389 = vrot.slane %v387, 7
  %v390 = vshll.u32 %v228, 16
  %v392 = vor.u32 %v389, %v390
  %v394 = vshrl.u32 %v229, 16
  %v396 = vrot.slane %v394, 7
  %v397 = vshll.u32 %v229, 16
  %v399 = vor.u32 %v396, %v397
  %v401 = vshrl.u32 %v230, 16
  %v403 = vrot.slane %v401, 7
  %v404 = vshll.u32 %v230, 16
  %v406 = vor.u32 %v403, %v404
  %v408 = vshrl.u32 %v231, 16
  %v410 = vrot.slane %v408, 7
  %v411 = vshll.u32 %v231, 16
  %v413 = vor.u32 %v410, %v411
  %v415 = vshrl.u32 %v232, 16
  %v417 = vrot.slane %v415, 7
  %v418 = vshll.u32 %v232, 16
  %v420 = vor.u32 %v417, %v418
  %v422 = vshrl.u32 %v233, 16
  %v424 = vrot.slane %v422, 7
  %v425 = vshll.u32 %v233, 16
  %v427 = vor.u32 %v424, %v425
  %v429 = vshrl.u32 %v234, 16
  %v431 = vrot.slane %v429, 7
  %v432 = vshll.u32 %v234, 16
  %v434 = vor.u32 %v431, %v432
  %v436 = vshrl.u32 %v235, 16
  %v438 = vrot.slane %v436, 7
  %v439 = vshll.u32 %v235, 16
  %v441 = vor.u32 %v438, %v439
  %v443 = vshrl.u32 %v236, 16
  %v445 = vrot.slane %v443, 7
  %v446 = vshll.u32 %v236, 16
  %v448 = vor.u32 %v445, %v446
  %v450 = vshrl.u32 %v237, 16
  %v452 = vrot.slane %v450, 7
  %v453 = vshll.u32 %v237, 16
  %v455 = vor.u32 %v452, %v453
  %v457 = vshrl.u32 %v238, 16
  %v459 = vrot.slane %v457, 7
  %v460 = vshll.u32 %v238, 16
  %v462 = vor.u32 %v459, %v460
  %vm527 = vcmask 1040384
  %vm528 = vsmask.f32 256
  %vm529 = vmand %vm527, %vm528
  %v530 = vsel %vm529, 0, %v245
  %v531 = vsel %vm529, 0, %v252
  %v532 = vsel %vm529, 0, %v259
  %v533 = vsel %vm529, 0, %v266
  %v534 = vsel %vm529, 0, %v273
  %v535 = vsel %vm529, 0, %v280
  %v536 = vsel %vm529, 0, %v287
  %v537 = vsel %vm529, 0, %v294
  %v538 = vsel %vm529, 0, %v301
  %v539 = vsel %vm529, 0, %v308
  %v540 = vsel %vm529, 0, %v315
  %v541 = vsel %vm529, 0, %v322
  %v542 = vsel %vm529, 0, %v329
  %v543 = vsel %vm529, 0, %v336
  %v544 = vsel %vm529, 0, %v343
  %v545 = vsel %vm529, 0, %v350
  %v546 = vsel %vm529, 0, %v357
  %v547 = vsel %vm529, 0, %v364
  %v548 = vsel %vm529, 0, %v371
  %v549 = vsel %vm529, 0, %v378
  %v550 = vsel %vm529, 0, %v385
  %v551 = vsel %vm529, 0, %v392
  %v552 = vsel %vm529, 0, %v399
  %v553 = vsel %vm529, 0, %v406
  %v554 = vsel %vm529, 0, %v413
  %v555 = vsel %vm529, 0, %v420
  %v556 = vsel %vm529, 0, %v427
  %v557 = vsel %vm529, 0, %v434
  %v558 = vsel %vm529, 0, %v441
  %v559 = vsel %vm529, 0, %v448
  %v560 = vsel %vm529, 0, %v455
  %v561 = vsel %vm529, 0, %v462
  %v562 = vsel %vm529, %v242, 0
  %v563 = vsel %vm529, %v249, 0
  %v564 = vsel %vm529, %v256, 0
  %v565 = vsel %vm529, %v263, 0
  %v566 = vsel %vm529, %v270, 0
  %v567 = vsel %vm529, %v277, 0
  %v568 = vsel %vm529, %v284, 0
  %v569 = vsel %vm529, %v291, 0
  %v570 = vsel %vm529, %v298, 0
  %v571 = vsel %vm529, %v305, 0
  %v572 = vsel %vm529, %v312, 0
  %v573 = vsel %vm529, %v319, 0
  %v574 = vsel %vm529, %v326, 0
  %v575 = vsel %vm529, %v333, 0
  %v576 = vsel %vm529, %v340, 0
  %v577 = vsel %vm529, %v347, 0
  %v578 = vsel %vm529, %v354, 0
  %v579 = vsel %vm529, %v361, 0
  %v580 = vsel %vm529, %v368, 0
  %v581 = vsel %vm529, %v375, 0
  %v582 = vsel %vm529, %v382, 0
  %v583 = vsel %vm529, %v389, 0
  %v584 = vsel %vm529, %v396, 0
  %v585 = vsel %vm529, %v403, 0
  %v586 = vsel %vm529, %v410, 0
  %v587 = vsel %vm529, %v417, 0
  %v588 = vsel %vm529, %v424, 0
  %v589 = vsel %vm529, %v431, 0
  %v590 = vsel %vm529, %v438, 0
  %v591 = vsel %vm529, %v445, 0
  %v592 = vsel %vm529, %v452, 0
  %v593 = vsel %vm529, %v459, 0
  %vm594 = vsmask.f32 7424
  %v596 = vshrl.u32 %v530, 16
  %v598 = vshll.u32 %v530, 16
  %v600 = vrot.slane %v598, 1
  %v601 = vor.u32 %v596, %v600
  %v603 = vshll.u32 %v562, 16
  %v605 = vrot.slane %v603, 1
  %v606 = vsel %vm594, %v601, %v605
  %v608 = vshrl.u32 %v531, 16
  %v610 = vshll.u32 %v531, 16
  %v612 = vrot.slane %v610, 1
  %v613 = vor.u32 %v608, %v612
  %v615 = vshll.u32 %v563, 16
  %v617 = vrot.slane %v615, 1
  %v618 = vsel %vm594, %v613, %v617
  %v620 = vshrl.u32 %v532, 16
  %v622 = vshll.u32 %v532, 16
  %v624 = vrot.slane %v622, 1
  %v625 = vor.u32 %v620, %v624
  %v627 = vshll.u32 %v564, 16
  %v629 = vrot.slane %v627, 1
  %v630 = vsel %vm594, %v625, %v629
  %v632 = vshrl.u32 %v533, 16
  %v634 = vshll.u32 %v533, 16
  %v636 = vrot.slane %v634, 1
  %v637 = vor.u32 %v632, %v636
  %v639 = vshll.u32 %v565, 16
  %v641 = vrot.slane %v639, 1
  %v642 = vsel %vm594, %v637, %v641
  %v644 = vshrl.u32 %v534, 16
  %v646 = vshll.u32 %v534, 16
  %v648 = vrot.slane %v646, 1
  %v649 = vor.u32 %v644, %v648
  %v651 = vshll.u32 %v566, 16
  %v653 = vrot.slane %v651, 1
  %v654 = vsel %vm594, %v649, %v653
  %v656 = vshrl.u32 %v535, 16
  %v658 = vshll.u32 %v535, 16
  %v660 = vrot.slane %v658, 1
  %v661 = vor.u32 %v656, %v660
  %v663 = vshll.u32 %v567, 16
  %v665 = vrot.slane %v663, 1
  %v666 = vsel %vm594, %v661, %v665
  %v668 = vshrl.u32 %v536, 16
  %v670 = vshll.u32 %v536, 16
  %v672 = vrot.slane %v670, 1
  %v673 = vor.u32 %v668, %v672
  %v675 = vshll.u32 %v568, 16
  %v677 = vrot.slane %v675, 1
  %v678 = vsel %vm594, %v673, %v677
  %v680 = vshrl.u32 %v537, 16
  %v682 = vshll.u32 %v537, 16
  %v684 = vrot.slane %v682, 1
  %v685 = vor.u32 %v680, %v684
  %v687 = vshll.u32 %v569, 16
  %v689 = vrot.slane %v687, 1
  %v690 = vsel %vm594, %v685, %v689
  %v692 = vshrl.u32 %v538, 16
  %v694 = vshll.u32 %v538, 16
  %v696 = vrot.slane %v694, 1
  %v697 = vor.u32 %v692, %v696
  %v699 = vshll.u32 %v570, 16
  %v701 = vrot.slane %v699, 1
  %v702 = vsel %vm594, %v697, %v701
  %v704 = vshrl.u32 %v539, 16
  %v706 = vshll.u32 %v539, 16
  %v708 = vrot.slane %v706, 1
  %v709 = vor.u32 %v704, %v708
  %v711 = vshll.u32 %v571, 16
  %v713 = vrot.slane %v711, 1
  %v714 = vsel %vm594, %v709, %v713
  %v716 = vshrl.u32 %v540, 16
  %v718 = vshll.u32 %v540, 16
  %v720 = vrot.slane %v718, 1
  %v721 = vor.u32 %v716, %v720
  %v723 = vshll.u32 %v572, 16
  %v725 = vrot.slane %v723, 1
  %v726 = vsel %vm594, %v721, %v725
  %v728 = vshrl.u32 %v541, 16
  %v730 = vshll.u32 %v541, 16
  %v732 = vrot.slane %v730, 1
  %v733 = vor.u32 %v728, %v732
  %v735 = vshll.u32 %v573, 16
  %v737 = vrot.slane %v735, 1
  %v738 = vsel %vm594, %v733, %v737
  %v740 = vshrl.u32 %v542, 16
  %v742 = vshll.u32 %v542, 16
  %v744 = vrot.slane %v742, 1
  %v745 = vor.u32 %v740, %v744
  %v747 = vshll.u32 %v574, 16
  %v749 = vrot.slane %v747, 1
  %v750 = vsel %vm594, %v745, %v749
  %v752 = vshrl.u32 %v543, 16
  %v754 = vshll.u32 %v543, 16
  %v756 = vrot.slane %v754, 1
  %v757 = vor.u32 %v752, %v756
  %v759 = vshll.u32 %v575, 16
  %v761 = vrot.slane %v759, 1
  %v762 = vsel %vm594, %v757, %v761
  %v764 = vshrl.u32 %v544, 16
  %v766 = vshll.u32 %v544, 16
  %v768 = vrot.slane %v766, 1
  %v769 = vor.u32 %v764, %v768
  %v771 = vshll.u32 %v576, 16
  %v773 = vrot.slane %v771, 1
  %v774 = vsel %vm594, %v769, %v773
  %v776 = vshrl.u32 %v545, 16
  %v778 = vshll.u32 %v545, 16
  %v780 = vrot.slane %v778, 1
  %v781 = vor.u32 %v776, %v780
  %v783 = vshll.u32 %v577, 16
  %v785 = vrot.slane %v783, 1
  %v786 = vsel %vm594, %v781, %v785
  %v788 = vshrl.u32 %v546, 16
  %v790 = vshll.u32 %v546, 16
  %v792 = vrot.slane %v790, 1
  %v793 = vor.u32 %v788, %v792
  %v795 = vshll.u32 %v578, 16
  %v797 = vrot.slane %v795, 1
  %v798 = vsel %vm594, %v793, %v797
  %v800 = vshrl.u32 %v547, 16
  %v802 = vshll.u32 %v547, 16
  %v804 = vrot.slane %v802, 1
  %v805 = vor.u32 %v800, %v804
  %v807 = vshll.u32 %v579, 16
  %v809 = vrot.slane %v807, 1
  %v810 = vsel %vm594, %v805, %v809
  %v812 = vshrl.u32 %v548, 16
  %v814 = vshll.u32 %v548, 16
  %v816 = vrot.slane %v814, 1
  %v817 = vor.u32 %v812, %v816
  %v819 = vshll.u32 %v580, 16
  %v821 = vrot.slane %v819, 1
  %v822 = vsel %vm594, %v817, %v821
  %v824 = vshrl.u32 %v549, 16
  %v826 = vshll.u32 %v549, 16
  %v828 = vrot.slane %v826, 1
  %v829 = vor.u32 %v824, %v828
  %v831 = vshll.u32 %v581, 16
  %v833 = vrot.slane %v831, 1
  %v834 = vsel %vm594, %v829, %v833
  %v836 = vshrl.u32 %v550, 16
  %v838 = vshll.u32 %v550, 16
  %v840 = vrot.slane %v838, 1
  %v841 = vor.u32 %v836, %v840
  %v843 = vshll.u32 %v582, 16
  %v845 = vrot.slane %v843, 1
  %v846 = vsel %vm594, %v841, %v845
  %v848 = vshrl.u32 %v551, 16
  %v850 = vshll.u32 %v551, 16
  %v852 = vrot.slane %v850, 1
  %v853 = vor.u32 %v848, %v852
  %v855 = vshll.u32 %v583, 16
  %v857 = vrot.slane %v855, 1
  %v858 = vsel %vm594, %v853, %v857
  %v860 = vshrl.u32 %v552, 16
  %v862 = vshll.u32 %v552, 16
  %v864 = vrot.slane %v862, 1
  %v865 = vor.u32 %v860, %v864
  %v867 = vshll.u32 %v584, 16
  %v869 = vrot.slane %v867, 1
  %v870 = vsel %vm594, %v865, %v869
  %v872 = vshrl.u32 %v553, 16
  %v874 = vshll.u32 %v553, 16
  %v876 = vrot.slane %v874, 1
  %v877 = vor.u32 %v872, %v876
  %v879 = vshll.u32 %v585, 16
  %v881 = vrot.slane %v879, 1
  %v882 = vsel %vm594, %v877, %v881
  %v884 = vshrl.u32 %v554, 16
  %v886 = vshll.u32 %v554, 16
  %v888 = vrot.slane %v886, 1
  %v889 = vor.u32 %v884, %v888
  %v891 = vshll.u32 %v586, 16
  %v893 = vrot.slane %v891, 1
  %v894 = vsel %vm594, %v889, %v893
  %v896 = vshrl.u32 %v555, 16
  %v898 = vshll.u32 %v555, 16
  %v900 = vrot.slane %v898, 1
  %v901 = vor.u32 %v896, %v900
  %v903 = vshll.u32 %v587, 16
  %v905 = vrot.slane %v903, 1
  %v906 = vsel %vm594, %v901, %v905
  %v908 = vshrl.u32 %v556, 16
  %v910 = vshll.u32 %v556, 16
  %v912 = vrot.slane %v910, 1
  %v913 = vor.u32 %v908, %v912
  %v915 = vshll.u32 %v588, 16
  %v917 = vrot.slane %v915, 1
  %v918 = vsel %vm594, %v913, %v917
  %v920 = vshrl.u32 %v557, 16
  %v922 = vshll.u32 %v557, 16
  %v924 = vrot.slane %v922, 1
  %v925 = vor.u32 %v920, %v924
  %v927 = vshll.u32 %v589, 16
  %v929 = vrot.slane %v927, 1
  %v930 = vsel %vm594, %v925, %v929
  %v932 = vshrl.u32 %v558, 16
  %v934 = vshll.u32 %v558, 16
  %v936 = vrot.slane %v934, 1
  %v937 = vor.u32 %v932, %v936
  %v939 = vshll.u32 %v590, 16
  %v941 = vrot.slane %v939, 1
  %v942 = vsel %vm594, %v937, %v941
  %v944 = vshrl.u32 %v559, 16
  %v946 = vshll.u32 %v559, 16
  %v948 = vrot.slane %v946, 1
  %v949 = vor.u32 %v944, %v948
  %v951 = vshll.u32 %v591, 16
  %v953 = vrot.slane %v951, 1
  %v954 = vsel %vm594, %v949, %v953
  %v956 = vshrl.u32 %v560, 16
  %v958 = vshll.u32 %v560, 16
  %v960 = vrot.slane %v958, 1
  %v961 = vor.u32 %v956, %v960
  %v963 = vshll.u32 %v592, 16
  %v965 = vrot.slane %v963, 1
  %v966 = vsel %vm594, %v961, %v965
  %v968 = vshrl.u32 %v561, 16
  %v970 = vshll.u32 %v561, 16
  %v972 = vrot.slane %v970, 1
  %v973 = vor.u32 %v968, %v972
  %v975 = vshll.u32 %v593, 16
  %v977 = vrot.slane %v975, 1
  %v978 = vsel %vm594, %v973, %v977
  %979 = vrot.lane.b32.xlu0 %v606, 64
  %v980 = vpop.permute.xlu0 %979
  %981 = vrot.lane.b32.xlu0 %v618, 64
  %v982 = vpop.permute.xlu0 %981
  %983 = vrot.lane.b32.xlu0 %v630, 64
  %v984 = vpop.permute.xlu0 %983
  %985 = vrot.lane.b32.xlu0 %v642, 64
  %v986 = vpop.permute.xlu0 %985
  %987 = vrot.lane.b32.xlu0 %v654, 64
  %v988 = vpop.permute.xlu0 %987
  %989 = vrot.lane.b32.xlu0 %v666, 64
  %v990 = vpop.permute.xlu0 %989
  %991 = vrot.lane.b32.xlu0 %v678, 64
  %v992 = vpop.permute.xlu0 %991
  %993 = vrot.lane.b32.xlu0 %v690, 64
  %v994 = vpop.permute.xlu0 %993
  %995 = vrot.lane.b32.xlu0 %v702, 64
  %v996 = vpop.permute.xlu0 %995
  %997 = vrot.lane.b32.xlu0 %v714, 64
  %v998 = vpop.permute.xlu0 %997
  %999 = vrot.lane.b32.xlu0 %v726, 64
  %v1000 = vpop.permute.xlu0 %999
  %1001 = vrot.lane.b32.xlu0 %v738, 64
  %v1002 = vpop.permute.xlu0 %1001
  %1003 = vrot.lane.b32.xlu0 %v750, 64
  %v1004 = vpop.permute.xlu0 %1003
  %1005 = vrot.lane.b32.xlu0 %v762, 64
  %v1006 = vpop.permute.xlu0 %1005
  %1007 = vrot.lane.b32.xlu0 %v774, 64
  %v1008 = vpop.permute.xlu0 %1007
  %1009 = vrot.lane.b32.xlu0 %v786, 64
  %v1010 = vpop.permute.xlu0 %1009
  %1011 = vrot.lane.b32.xlu0 %v798, 64
  %v1012 = vpop.permute.xlu0 %1011
  %1013 = vrot.lane.b32.xlu0 %v810, 64
  %v1014 = vpop.permute.xlu0 %1013
  %1015 = vrot.lane.b32.xlu0 %v822, 64
  %v1016 = vpop.permute.xlu0 %1015
  %1017 = vrot.lane.b32.xlu0 %v834, 64
  %v1018 = vpop.permute.xlu0 %1017
  %1019 = vrot.lane.b32.xlu0 %v846, 64
  %v1020 = vpop.permute.xlu0 %1019
  %1021 = vrot.lane.b32.xlu0 %v858, 64
  %v1022 = vpop.permute.xlu0 %1021
  %1023 = vrot.lane.b32.xlu0 %v870, 64
  %v1024 = vpop.permute.xlu0 %1023
  %1025 = vrot.lane.b32.xlu0 %v882, 64
  %v1026 = vpop.permute.xlu0 %1025
  %1027 = vrot.lane.b32.xlu0 %v894, 64
  %v1028 = vpop.permute.xlu0 %1027
  %1029 = vrot.lane.b32.xlu0 %v906, 64
  %v1030 = vpop.permute.xlu0 %1029
  %1031 = vrot.lane.b32.xlu0 %v918, 64
  %v1032 = vpop.permute.xlu0 %1031
  %1033 = vrot.lane.b32.xlu0 %v930, 64
  %v1034 = vpop.permute.xlu0 %1033
  %1035 = vrot.lane.b32.xlu0 %v942, 64
  %v1036 = vpop.permute.xlu0 %1035
  %1037 = vrot.lane.b32.xlu0 %v954, 64
  %v1038 = vpop.permute.xlu0 %1037
  %1039 = vrot.lane.b32.xlu0 %v966, 64
  %v1040 = vpop.permute.xlu0 %1039
  %1041 = vrot.lane.b32.xlu0 %v978, 64
  %v1042 = vpop.permute.xlu0 %1041
  %vm1107 = vcmask 1046528
  %v1108 = vrot.slane %v530, 1
  %v1109 = vrot.slane %v562, 1
  %v1110 = vsel %vm1107, %v1108, %v1109
  %v1111 = vrot.slane %v531, 1
  %v1112 = vrot.slane %v563, 1
  %v1113 = vsel %vm1107, %v1111, %v1112
  %v1114 = vrot.slane %v532, 1
  %v1115 = vrot.slane %v564, 1
  %v1116 = vsel %vm1107, %v1114, %v1115
  %v1117 = vrot.slane %v533, 1
  %v1118 = vrot.slane %v565, 1
  %v1119 = vsel %vm1107, %v1117, %v1118
  %v1120 = vrot.slane %v534, 1
  %v1121 = vrot.slane %v566, 1
  %v1122 = vsel %vm1107, %v1120, %v1121
  %v1123 = vrot.slane %v535, 1
  %v1124 = vrot.slane %v567, 1
  %v1125 = vsel %vm1107, %v1123, %v1124
  %v1126 = vrot.slane %v536, 1
  %v1127 = vrot.slane %v568, 1
  %v1128 = vsel %vm1107, %v1126, %v1127
  %v1129 = vrot.slane %v537, 1
  %v1130 = vrot.slane %v569, 1
  %v1131 = vsel %vm1107, %v1129, %v1130
  %v1132 = vrot.slane %v538, 1
  %v1133 = vrot.slane %v570, 1
  %v1134 = vsel %vm1107, %v1132, %v1133
  %v1135 = vrot.slane %v539, 1
  %v1136 = vrot.slane %v571, 1
  %v1137 = vsel %vm1107, %v1135, %v1136
  %v1138 = vrot.slane %v540, 1
  %v1139 = vrot.slane %v572, 1
  %v1140 = vsel %vm1107, %v1138, %v1139
  %v1141 = vrot.slane %v541, 1
  %v1142 = vrot.slane %v573, 1
  %v1143 = vsel %vm1107, %v1141, %v1142
  %v1144 = vrot.slane %v542, 1
  %v1145 = vrot.slane %v574, 1
  %v1146 = vsel %vm1107, %v1144, %v1145
  %v1147 = vrot.slane %v543, 1
  %v1148 = vrot.slane %v575, 1
  %v1149 = vsel %vm1107, %v1147, %v1148
  %v1150 = vrot.slane %v544, 1
  %v1151 = vrot.slane %v576, 1
  %v1152 = vsel %vm1107, %v1150, %v1151
  %v1153 = vrot.slane %v545, 1
  %v1154 = vrot.slane %v577, 1
  %v1155 = vsel %vm1107, %v1153, %v1154
  %v1156 = vrot.slane %v546, 1
  %v1157 = vrot.slane %v578, 1
  %v1158 = vsel %vm1107, %v1156, %v1157
  %v1159 = vrot.slane %v547, 1
  %v1160 = vrot.slane %v579, 1
  %v1161 = vsel %vm1107, %v1159, %v1160
  %v1162 = vrot.slane %v548, 1
  %v1163 = vrot.slane %v580, 1
  %v1164 = vsel %vm1107, %v1162, %v1163
  %v1165 = vrot.slane %v549, 1
  %v1166 = vrot.slane %v581, 1
  %v1167 = vsel %vm1107, %v1165, %v1166
  %v1168 = vrot.slane %v550, 1
  %v1169 = vrot.slane %v582, 1
  %v1170 = vsel %vm1107, %v1168, %v1169
  %v1171 = vrot.slane %v551, 1
  %v1172 = vrot.slane %v583, 1
  %v1173 = vsel %vm1107, %v1171, %v1172
  %v1174 = vrot.slane %v552, 1
  %v1175 = vrot.slane %v584, 1
  %v1176 = vsel %vm1107, %v1174, %v1175
  %v1177 = vrot.slane %v553, 1
  %v1178 = vrot.slane %v585, 1
  %v1179 = vsel %vm1107, %v1177, %v1178
  %v1180 = vrot.slane %v554, 1
  %v1181 = vrot.slane %v586, 1
  %v1182 = vsel %vm1107, %v1180, %v1181
  %v1183 = vrot.slane %v555, 1
  %v1184 = vrot.slane %v587, 1
  %v1185 = vsel %vm1107, %v1183, %v1184
  %v1186 = vrot.slane %v556, 1
  %v1187 = vrot.slane %v588, 1
  %v1188 = vsel %vm1107, %v1186, %v1187
  %v1189 = vrot.slane %v557, 1
  %v1190 = vrot.slane %v589, 1
  %v1191 = vsel %vm1107, %v1189, %v1190
  %v1192 = vrot.slane %v558, 1
  %v1193 = vrot.slane %v590, 1
  %v1194 = vsel %vm1107, %v1192, %v1193
  %v1195 = vrot.slane %v559, 1
  %v1196 = vrot.slane %v591, 1
  %v1197 = vsel %vm1107, %v1195, %v1196
  %v1198 = vrot.slane %v560, 1
  %v1199 = vrot.slane %v592, 1
  %v1200 = vsel %vm1107, %v1198, %v1199
  %v1201 = vrot.slane %v561, 1
  %v1202 = vrot.slane %v593, 1
  %v1203 = vsel %vm1107, %v1201, %v1202
  %vm1204 = vcmask 523264
  %v1206 = vsel %vm1204, %v530, %v980
  %v1209 = vsel %vm1204, %v531, %v982
  %v1212 = vsel %vm1204, %v532, %v984
  %v1215 = vsel %vm1204, %v533, %v986
  %v1218 = vsel %vm1204, %v534, %v988
  %v1221 = vsel %vm1204, %v535, %v990
  %v1224 = vsel %vm1204, %v536, %v992
  %v1227 = vsel %vm1204, %v537, %v994
  %v1230 = vsel %vm1204, %v538, %v996
  %v1233 = vsel %vm1204, %v539, %v998
  %v1236 = vsel %vm1204, %v540, %v1000
  %v1239 = vsel %vm1204, %v541, %v1002
  %v1242 = vsel %vm1204, %v542, %v1004
  %v1245 = vsel %vm1204, %v543, %v1006
  %v1248 = vsel %vm1204, %v544, %v1008
  %v1251 = vsel %vm1204, %v545, %v1010
  %v1254 = vsel %vm1204, %v546, %v1012
  %v1257 = vsel %vm1204, %v547, %v1014
  %v1260 = vsel %vm1204, %v548, %v1016
  %v1263 = vsel %vm1204, %v549, %v1018
  %v1266 = vsel %vm1204, %v550, %v1020
  %v1269 = vsel %vm1204, %v551, %v1022
  %v1272 = vsel %vm1204, %v552, %v1024
  %v1275 = vsel %vm1204, %v553, %v1026
  %v1278 = vsel %vm1204, %v554, %v1028
  %v1281 = vsel %vm1204, %v555, %v1030
  %v1284 = vsel %vm1204, %v556, %v1032
  %v1287 = vsel %vm1204, %v557, %v1034
  %v1290 = vsel %vm1204, %v558, %v1036
  %v1293 = vsel %vm1204, %v559, %v1038
  %v1296 = vsel %vm1204, %v560, %v1040
  %v1299 = vsel %vm1204, %v561, %v1042
  %v1301 = vld [vmem:[%s1] sm:$0xf]
  %v1302 = vld [vmem:[%s1 + $0x4] sm:$0xf]
  %v1303 = vld [vmem:[%s1 + $0x8] sm:$0xf]
  %1305 = vst [vmem:[#allocation1] ss:$4 sm:$0xff] %v1302
  %v1306 = vld.sshfl [vmem:[#allocation1] sm:$0xff pattern:$0x73625140]
  %v1307 = vld.sshfl [vmem:[#allocation1 + $0x8] sm:$0xff pattern:$0x73625140]
  %v1309 = vsel %vm1204, %v1307, 0
  %v1312 = vsel %vm1204, %v1110, 0
  %v1315 = vsel %vm1204, %v1113, 0
  %v1318 = vsel %vm1204, %v1116, 0
  %v1321 = vsel %vm1204, %v1119, 0
  %v1324 = vsel %vm1204, %v1122, 0
  %v1327 = vsel %vm1204, %v1125, 0
  %v1330 = vsel %vm1204, %v1128, 0
  %v1333 = vsel %vm1204, %v1131, 0
  %v1336 = vsel %vm1204, %v1134, 0
  %v1339 = vsel %vm1204, %v1137, 0
  %v1342 = vsel %vm1204, %v1140, 0
  %v1345 = vsel %vm1204, %v1143, 0
  %v1348 = vsel %vm1204, %v1146, 0
  %v1351 = vsel %vm1204, %v1149, 0
  %v1354 = vsel %vm1204, %v1152, 0
  %v1357 = vsel %vm1204, %v1155, 0
  %v1360 = vsel %vm1204, %v1158, 0
  %v1363 = vsel %vm1204, %v1161, 0
  %v1366 = vsel %vm1204, %v1164, 0
  %v1369 = vsel %vm1204, %v1167, 0
  %v1372 = vsel %vm1204, %v1170, 0
  %v1375 = vsel %vm1204, %v1173, 0
  %v1378 = vsel %vm1204, %v1176, 0
  %v1381 = vsel %vm1204, %v1179, 0
  %v1384 = vsel %vm1204, %v1182, 0
  %v1387 = vsel %vm1204, %v1185, 0
  %v1390 = vsel %vm1204, %v1188, 0
  %v1393 = vsel %vm1204, %v1191, 0
  %v1396 = vsel %vm1204, %v1194, 0
  %v1399 = vsel %vm1204, %v1197, 0
  %v1402 = vsel %vm1204, %v1200, 0
  %v1405 = vsel %vm1204, %v1203, 0
  %1407 = vmatpush.bf16.xpose.msra.mxu0 %v1227
  %1408 = vmatpush.bf16.xpose.msra.mxu0 %v1224
  %1409 = vmatpush.bf16.xpose.msra.mxu0 %v1221
  %1410 = vmatpush.bf16.xpose.msra.mxu0 %v1218
  %1411 = vmatpush.bf16.xpose.msra.mxu0 %v1215
  %1412 = vmatpush.bf16.xpose.msra.mxu0 %v1212
  %1413 = vmatpush.bf16.xpose.msra.mxu0 %v1209
  %1414 = vmatpush.bf16.xpose.msra.mxu0 %v1206
  %1415 = vmatmul.bf16.gmra.mxu0 %v1306
  %v1416 = vpop.f32.mrf.mxu0
  %v1417 = vadd.f32 0.0, %v1416
  %v1418 = vpop.f32.mrf.mxu0
  %1419 = vdwg.mxu0
  %1420 = vmatpush.bf16.xpose.msra.mxu0 %v1333
  %1421 = vmatpush.bf16.xpose.msra.mxu0 %v1330
  %1422 = vmatpush.bf16.xpose.msra.mxu0 %v1327
  %1423 = vmatpush.bf16.xpose.msra.mxu0 %v1324
  %1424 = vmatpush.bf16.xpose.msra.mxu0 %v1321
  %1425 = vmatpush.bf16.xpose.msra.mxu0 %v1318
  %1426 = vmatpush.bf16.xpose.msra.mxu0 %v1315
  %1427 = vmatpush.bf16.xpose.msra.mxu0 %v1312
  %1428 = vmatmul.bf16.gmra.mxu0 %v1309
  %v1429 = vpop.f32.mrf.mxu0
  %v1430 = vadd.f32 %v1417, %v1429
  %v1431 = vpop.f32.mrf.mxu0
  %1432 = vdwg.mxu0
  %1433 = vmatpush.bf16.xpose.msra.mxu0 %v1251
  %1434 = vmatpush.bf16.xpose.msra.mxu0 %v1248
  %1435 = vmatpush.bf16.xpose.msra.mxu0 %v1245
  %1436 = vmatpush.bf16.xpose.msra.mxu0 %v1242
  %1437 = vmatpush.bf16.xpose.msra.mxu0 %v1239
  %1438 = vmatpush.bf16.xpose.msra.mxu0 %v1236
  %1439 = vmatpush.bf16.xpose.msra.mxu0 %v1233
  %1440 = vmatpush.bf16.xpose.msra.mxu0 %v1230
  %1441 = vmatmul.bf16.gmra.mxu0 %v1306
  %v1442 = vpop.f32.mrf.mxu0
  %v1443 = vadd.f32 0.0, %v1442
  %v1444 = vpop.f32.mrf.mxu0
  %1445 = vdwg.mxu0
  %1446 = vmatpush.bf16.xpose.msra.mxu0 %v1357
  %1447 = vmatpush.bf16.xpose.msra.mxu0 %v1354
  %1448 = vmatpush.bf16.xpose.msra.mxu0 %v1351
  %1449 = vmatpush.bf16.xpose.msra.mxu0 %v1348
  %1450 = vmatpush.bf16.xpose.msra.mxu0 %v1345
  %1451 = vmatpush.bf16.xpose.msra.mxu0 %v1342
  %1452 = vmatpush.bf16.xpose.msra.mxu0 %v1339
  %1453 = vmatpush.bf16.xpose.msra.mxu0 %v1336
  %1454 = vmatmul.bf16.gmra.mxu0 %v1309
  %v1455 = vpop.f32.mrf.mxu0
  %v1456 = vadd.f32 %v1443, %v1455
  %v1457 = vpop.f32.mrf.mxu0
  %1458 = vdwg.mxu0
  %1459 = vmatpush.bf16.xpose.msra.mxu0 %v1275
  %1460 = vmatpush.bf16.xpose.msra.mxu0 %v1272
  %1461 = vmatpush.bf16.xpose.msra.mxu0 %v1269
  %1462 = vmatpush.bf16.xpose.msra.mxu0 %v1266
  %1463 = vmatpush.bf16.xpose.msra.mxu0 %v1263
  %1464 = vmatpush.bf16.xpose.msra.mxu0 %v1260
  %1465 = vmatpush.bf16.xpose.msra.mxu0 %v1257
  %1466 = vmatpush.bf16.xpose.msra.mxu0 %v1254
  %1467 = vmatmul.bf16.gmra.mxu0 %v1306
  %v1468 = vpop.f32.mrf.mxu0
  %v1469 = vadd.f32 0.0, %v1468
  %v1470 = vpop.f32.mrf.mxu0
  %1471 = vdwg.mxu0
  %1472 = vmatpush.bf16.xpose.msra.mxu0 %v1381
  %1473 = vmatpush.bf16.xpose.msra.mxu0 %v1378
  %1474 = vmatpush.bf16.xpose.msra.mxu0 %v1375
  %1475 = vmatpush.bf16.xpose.msra.mxu0 %v1372
  %1476 = vmatpush.bf16.xpose.msra.mxu0 %v1369
  %1477 = vmatpush.bf16.xpose.msra.mxu0 %v1366
  %1478 = vmatpush.bf16.xpose.msra.mxu0 %v1363
  %1479 = vmatpush.bf16.xpose.msra.mxu0 %v1360
  %1480 = vmatmul.bf16.gmra.mxu0 %v1309
  %v1481 = vpop.f32.mrf.mxu0
  %v1482 = vadd.f32 %v1469, %v1481
  %v1483 = vpop.f32.mrf.mxu0
  %1484 = vdwg.mxu0
  %1485 = vmatpush.bf16.xpose.msra.mxu0 %v1299
  %1486 = vmatpush.bf16.xpose.msra.mxu0 %v1296
  %1487 = vmatpush.bf16.xpose.msra.mxu0 %v1293
  %1488 = vmatpush.bf16.xpose.msra.mxu0 %v1290
  %1489 = vmatpush.bf16.xpose.msra.mxu0 %v1287
  %1490 = vmatpush.bf16.xpose.msra.mxu0 %v1284
  %1491 = vmatpush.bf16.xpose.msra.mxu0 %v1281
  %1492 = vmatpush.bf16.xpose.msra.mxu0 %v1278
  %1493 = vmatmul.bf16.gmra.mxu0 %v1306
  %v1494 = vpop.f32.mrf.mxu0
  %v1495 = vadd.f32 0.0, %v1494
  %v1496 = vpop.f32.mrf.mxu0
  %1497 = vdwg.mxu0
  %1498 = vmatpush.bf16.xpose.msra.mxu0 %v1405
  %1499 = vmatpush.bf16.xpose.msra.mxu0 %v1402
  %1500 = vmatpush.bf16.xpose.msra.mxu0 %v1399
  %1501 = vmatpush.bf16.xpose.msra.mxu0 %v1396
  %1502 = vmatpush.bf16.xpose.msra.mxu0 %v1393
  %1503 = vmatpush.bf16.xpose.msra.mxu0 %v1390
  %1504 = vmatpush.bf16.xpose.msra.mxu0 %v1387
  %1505 = vmatpush.bf16.xpose.msra.mxu0 %v1384
  %1506 = vmatmul.bf16.gmra.mxu0 %v1309
  %v1507 = vpop.f32.mrf.mxu0
  %v1508 = vadd.f32 %v1495, %v1507
  %v1509 = vpop.f32.mrf.mxu0
  %1510 = vdwg.mxu0
  %1512 = vst [vmem:[#allocation1] ss:$4 sm:$0xff] %v1301
  %v1513 = vld.sshfl [vmem:[#allocation1] sm:$0xff pattern:$0x73625140]
  %v1514 = vld.sshfl [vmem:[#allocation1 + $0x8] sm:$0xff pattern:$0x73625140]
  %v1516 = vsel %vm1204, %v1514, 0
  %v1519 = vsel %vm1204, 0, 0
  %1521 = vmatpush.bf16.xpose.msra.mxu0 %v1224
  %1522 = vmatpush.bf16.xpose.msra.mxu0 %v1221
  %1523 = vmatpush.bf16.xpose.msra.mxu0 %v1218
  %1524 = vmatpush.bf16.xpose.msra.mxu0 %v1215
  %1525 = vmatpush.bf16.xpose.msra.mxu0 %v1212
  %1526 = vmatpush.bf16.xpose.msra.mxu0 %v1209
  %1527 = vmatpush.bf16.xpose.msra.mxu0 %v1206
  %1528 = vmatpush.bf16.xpose.msra.mxu0 0
  %1529 = vmatmul.bf16.gmra.mxu0 %v1513
  %v1530 = vpop.f32.mrf.mxu0
  %v1531 = vadd.f32 %v1430, %v1530
  %v1532 = vpop.f32.mrf.mxu0
  %1533 = vdwg.mxu0
  %1534 = vmatpush.bf16.xpose.msra.mxu0 %v1330
  %1535 = vmatpush.bf16.xpose.msra.mxu0 %v1327
  %1536 = vmatpush.bf16.xpose.msra.mxu0 %v1324
  %1537 = vmatpush.bf16.xpose.msra.mxu0 %v1321
  %1538 = vmatpush.bf16.xpose.msra.mxu0 %v1318
  %1539 = vmatpush.bf16.xpose.msra.mxu0 %v1315
  %1540 = vmatpush.bf16.xpose.msra.mxu0 %v1312
  %1541 = vmatpush.bf16.xpose.msra.mxu0 %v1519
  %1542 = vmatmul.bf16.gmra.mxu0 %v1516
  %v1543 = vpop.f32.mrf.mxu0
  %v1544 = vadd.f32 %v1531, %v1543
  %v1545 = vpop.f32.mrf.mxu0
  %1546 = vdwg.mxu0
  %1547 = vmatpush.bf16.xpose.msra.mxu0 %v1248
  %1548 = vmatpush.bf16.xpose.msra.mxu0 %v1245
  %1549 = vmatpush.bf16.xpose.msra.mxu0 %v1242
  %1550 = vmatpush.bf16.xpose.msra.mxu0 %v1239
  %1551 = vmatpush.bf16.xpose.msra.mxu0 %v1236
  %1552 = vmatpush.bf16.xpose.msra.mxu0 %v1233
  %1553 = vmatpush.bf16.xpose.msra.mxu0 %v1230
  %1554 = vmatpush.bf16.xpose.msra.mxu0 %v1227
  %1555 = vmatmul.bf16.gmra.mxu0 %v1513
  %v1556 = vpop.f32.mrf.mxu0
  %v1557 = vadd.f32 %v1456, %v1556
  %v1558 = vpop.f32.mrf.mxu0
  %1559 = vdwg.mxu0
  %1560 = vmatpush.bf16.xpose.msra.mxu0 %v1354
  %1561 = vmatpush.bf16.xpose.msra.mxu0 %v1351
  %1562 = vmatpush.bf16.xpose.msra.mxu0 %v1348
  %1563 = vmatpush.bf16.xpose.msra.mxu0 %v1345
  %1564 = vmatpush.bf16.xpose.msra.mxu0 %v1342
  %1565 = vmatpush.bf16.xpose.msra.mxu0 %v1339
  %1566 = vmatpush.bf16.xpose.msra.mxu0 %v1336
  %1567 = vmatpush.bf16.xpose.msra.mxu0 %v1333
  %1568 = vmatmul.bf16.gmra.mxu0 %v1516
  %v1569 = vpop.f32.mrf.mxu0
  %v1570 = vadd.f32 %v1557, %v1569
  %v1571 = vpop.f32.mrf.mxu0
  %1572 = vdwg.mxu0
  %1573 = vmatpush.bf16.xpose.msra.mxu0 %v1272
  %1574 = vmatpush.bf16.xpose.msra.mxu0 %v1269
  %1575 = vmatpush.bf16.xpose.msra.mxu0 %v1266
  %1576 = vmatpush.bf16.xpose.msra.mxu0 %v1263
  %1577 = vmatpush.bf16.xpose.msra.mxu0 %v1260
  %1578 = vmatpush.bf16.xpose.msra.mxu0 %v1257
  %1579 = vmatpush.bf16.xpose.msra.mxu0 %v1254
  %1580 = vmatpush.bf16.xpose.msra.mxu0 0
  %1581 = vmatmul.bf16.gmra.mxu0 %v1513
  %v1582 = vpop.f32.mrf.mxu0
  %v1583 = vadd.f32 %v1482, %v1582
  %v1584 = vpop.f32.mrf.mxu0
  %1585 = vdwg.mxu0
  %1586 = vmatpush.bf16.xpose.msra.mxu0 %v1378
  %1587 = vmatpush.bf16.xpose.msra.mxu0 %v1375
  %1588 = vmatpush.bf16.xpose.msra.mxu0 %v1372
  %1589 = vmatpush.bf16.xpose.msra.mxu0 %v1369
  %1590 = vmatpush.bf16.xpose.msra.mxu0 %v1366
  %1591 = vmatpush.bf16.xpose.msra.mxu0 %v1363
  %1592 = vmatpush.bf16.xpose.msra.mxu0 %v1360
  %1593 = vmatpush.bf16.xpose.msra.mxu0 %v1519
  %1594 = vmatmul.bf16.gmra.mxu0 %v1516
  %v1595 = vpop.f32.mrf.mxu0
  %v1596 = vadd.f32 %v1583, %v1595
  %v1597 = vpop.f32.mrf.mxu0
  %1598 = vdwg.mxu0
  %1599 = vmatpush.bf16.xpose.msra.mxu0 %v1296
  %1600 = vmatpush.bf16.xpose.msra.mxu0 %v1293
  %1601 = vmatpush.bf16.xpose.msra.mxu0 %v1290
  %1602 = vmatpush.bf16.xpose.msra.mxu0 %v1287
  %1603 = vmatpush.bf16.xpose.msra.mxu0 %v1284
  %1604 = vmatpush.bf16.xpose.msra.mxu0 %v1281
  %1605 = vmatpush.bf16.xpose.msra.mxu0 %v1278
  %1606 = vmatpush.bf16.xpose.msra.mxu0 %v1275
  %1607 = vmatmul.bf16.gmra.mxu0 %v1513
  %v1608 = vpop.f32.mrf.mxu0
  %v1609 = vadd.f32 %v1508, %v1608
  %v1610 = vpop.f32.mrf.mxu0
  %1611 = vdwg.mxu0
  %1612 = vmatpush.bf16.xpose.msra.mxu0 %v1402
  %1613 = vmatpush.bf16.xpose.msra.mxu0 %v1399
  %1614 = vmatpush.bf16.xpose.msra.mxu0 %v1396
  %1615 = vmatpush.bf16.xpose.msra.mxu0 %v1393
  %1616 = vmatpush.bf16.xpose.msra.mxu0 %v1390
  %1617 = vmatpush.bf16.xpose.msra.mxu0 %v1387
  %1618 = vmatpush.bf16.xpose.msra.mxu0 %v1384
  %1619 = vmatpush.bf16.xpose.msra.mxu0 %v1381
  %1620 = vmatmul.bf16.gmra.mxu0 %v1516
  %v1621 = vpop.f32.mrf.mxu0
  %v1622 = vadd.f32 %v1609, %v1621
  %v1623 = vpop.f32.mrf.mxu0
  %1624 = vdwg.mxu0
  %1626 = vst [vmem:[#allocation1] ss:$4 sm:$0xff] %v1303
  %v1627 = vld.sshfl [vmem:[#allocation1] sm:$0xff pattern:$0x73625140]
  %v1628 = vld.sshfl [vmem:[#allocation1 + $0x8] sm:$0xff pattern:$0x73625140]
  %v1630 = vsel %vm1204, %v1628, 0
  %1632 = vmatpush.bf16.xpose.msra.mxu0 %v1230
  %1633 = vmatpush.bf16.xpose.msra.mxu0 %v1227
  %1634 = vmatpush.bf16.xpose.msra.mxu0 %v1224
  %1635 = vmatpush.bf16.xpose.msra.mxu0 %v1221
  %1636 = vmatpush.bf16.xpose.msra.mxu0 %v1218
  %1637 = vmatpush.bf16.xpose.msra.mxu0 %v1215
  %1638 = vmatpush.bf16.xpose.msra.mxu0 %v1212
  %1639 = vmatpush.bf16.xpose.msra.mxu0 %v1209
  %1640 = vmatmul.bf16.gmra.mxu0 %v1627
  %v1641 = vpop.f32.mrf.mxu0
  %v1642 = vadd.f32 0.0, %v1641
  %v1643 = vpop.f32.mrf.mxu0
  %1644 = vdwg.mxu0
  %1645 = vmatpush.bf16.xpose.msra.mxu0 %v1336
  %1646 = vmatpush.bf16.xpose.msra.mxu0 %v1333
  %1647 = vmatpush.bf16.xpose.msra.mxu0 %v1330
  %1648 = vmatpush.bf16.xpose.msra.mxu0 %v1327
  %1649 = vmatpush.bf16.xpose.msra.mxu0 %v1324
  %1650 = vmatpush.bf16.xpose.msra.mxu0 %v1321
  %1651 = vmatpush.bf16.xpose.msra.mxu0 %v1318
  %1652 = vmatpush.bf16.xpose.msra.mxu0 %v1315
  %1653 = vmatmul.bf16.gmra.mxu0 %v1630
  %v1654 = vpop.f32.mrf.mxu0
  %v1655 = vadd.f32 %v1642, %v1654
  %v1656 = vpop.f32.mrf.mxu0
  %1657 = vdwg.mxu0
  %1658 = vmatpush.bf16.xpose.msra.mxu0 0
  %1659 = vmatpush.bf16.xpose.msra.mxu0 %v1251
  %1660 = vmatpush.bf16.xpose.msra.mxu0 %v1248
  %1661 = vmatpush.bf16.xpose.msra.mxu0 %v1245
  %1662 = vmatpush.bf16.xpose.msra.mxu0 %v1242
  %1663 = vmatpush.bf16.xpose.msra.mxu0 %v1239
  %1664 = vmatpush.bf16.xpose.msra.mxu0 %v1236
  %1665 = vmatpush.bf16.xpose.msra.mxu0 %v1233
  %1666 = vmatmul.bf16.gmra.mxu0 %v1627
  %v1667 = vpop.f32.mrf.mxu0
  %v1668 = vadd.f32 0.0, %v1667
  %v1669 = vpop.f32.mrf.mxu0
  %1670 = vdwg.mxu0
  %1671 = vmatpush.bf16.xpose.msra.mxu0 %v1519
  %1672 = vmatpush.bf16.xpose.msra.mxu0 %v1357
  %1673 = vmatpush.bf16.xpose.msra.mxu0 %v1354
  %1674 = vmatpush.bf16.xpose.msra.mxu0 %v1351
  %1675 = vmatpush.bf16.xpose.msra.mxu0 %v1348
  %1676 = vmatpush.bf16.xpose.msra.mxu0 %v1345
  %1677 = vmatpush.bf16.xpose.msra.mxu0 %v1342
  %1678 = vmatpush.bf16.xpose.msra.mxu0 %v1339
  %1679 = vmatmul.bf16.gmra.mxu0 %v1630
  %v1680 = vpop.f32.mrf.mxu0
  %v1681 = vadd.f32 %v1668, %v1680
  %v1682 = vpop.f32.mrf.mxu0
  %1683 = vdwg.mxu0
  %1684 = vmatpush.bf16.xpose.msra.mxu0 %v1278
  %1685 = vmatpush.bf16.xpose.msra.mxu0 %v1275
  %1686 = vmatpush.bf16.xpose.msra.mxu0 %v1272
  %1687 = vmatpush.bf16.xpose.msra.mxu0 %v1269
  %1688 = vmatpush.bf16.xpose.msra.mxu0 %v1266
  %1689 = vmatpush.bf16.xpose.msra.mxu0 %v1263
  %1690 = vmatpush.bf16.xpose.msra.mxu0 %v1260
  %1691 = vmatpush.bf16.xpose.msra.mxu0 %v1257
  %1692 = vmatmul.bf16.gmra.mxu0 %v1627
  %v1693 = vpop.f32.mrf.mxu0
  %v1694 = vadd.f32 0.0, %v1693
  %v1695 = vpop.f32.mrf.mxu0
  %1696 = vdwg.mxu0
  %1697 = vmatpush.bf16.xpose.msra.mxu0 %v1384
  %1698 = vmatpush.bf16.xpose.msra.mxu0 %v1381
  %1699 = vmatpush.bf16.xpose.msra.mxu0 %v1378
  %1700 = vmatpush.bf16.xpose.msra.mxu0 %v1375
  %1701 = vmatpush.bf16.xpose.msra.mxu0 %v1372
  %1702 = vmatpush.bf16.xpose.msra.mxu0 %v1369
  %1703 = vmatpush.bf16.xpose.msra.mxu0 %v1366
  %1704 = vmatpush.bf16.xpose.msra.mxu0 %v1363
  %1705 = vmatmul.bf16.gmra.mxu0 %v1630
  %v1706 = vpop.f32.mrf.mxu0
  %v1707 = vadd.f32 %v1694, %v1706
  %v1708 = vpop.f32.mrf.mxu0
  %1709 = vdwg.mxu0
  %1710 = vmatpush.bf16.xpose.msra.mxu0 0
  %1711 = vmatpush.bf16.xpose.msra.mxu0 %v1299
  %1712 = vmatpush.bf16.xpose.msra.mxu0 %v1296
  %1713 = vmatpush.bf16.xpose.msra.mxu0 %v1293
  %1714 = vmatpush.bf16.xpose.msra.mxu0 %v1290
  %1715 = vmatpush.bf16.xpose.msra.mxu0 %v1287
  %1716 = vmatpush.bf16.xpose.msra.mxu0 %v1284
  %1717 = vmatpush.bf16.xpose.msra.mxu0 %v1281
  %1718 = vmatmul.bf16.gmra.mxu0 %v1627
  %v1719 = vpop.f32.mrf.mxu0
  %v1720 = vadd.f32 0.0, %v1719
  %v1721 = vpop.f32.mrf.mxu0
  %1722 = vdwg.mxu0
  %1723 = vmatpush.bf16.xpose.msra.mxu0 %v1519
  %1724 = vmatpush.bf16.xpose.msra.mxu0 %v1405
  %1725 = vmatpush.bf16.xpose.msra.mxu0 %v1402
  %1726 = vmatpush.bf16.xpose.msra.mxu0 %v1399
  %1727 = vmatpush.bf16.xpose.msra.mxu0 %v1396
  %1728 = vmatpush.bf16.xpose.msra.mxu0 %v1393
  %1729 = vmatpush.bf16.xpose.msra.mxu0 %v1390
  %1730 = vmatpush.bf16.xpose.msra.mxu0 %v1387
  %1731 = vmatmul.bf16.gmra.mxu0 %v1630
  %v1732 = vpop.f32.mrf.mxu0
  %v1733 = vadd.f32 %v1720, %v1732
  %v1734 = vpop.f32.mrf.mxu0
  %1735 = vdwg.mxu0
  %v1736 = vadd.f32 %v1544, %v1655
  %v1737 = vadd.f32 %v1570, %v1681
  %v1738 = vadd.f32 %v1596, %v1707
  %v1739 = vadd.f32 %v1622, %v1733
  %v1740 = vld [vmem:[%s2] sm:$0x7]
  %1742 = vset.pattern.permute.xlu0 0
  %1743 = vperm.xlu0 %1742, %v1740
  %v1744 = vpop.permute.xlu0 %1743
  %v1746 = vadd.f32 %v1736, %v1744
  %v1747 = vadd.f32 %v1737, %v1744
  %v1748 = vadd.f32 %v1738, %v1744
  %v1749 = vadd.f32 %v1739, %v1744
  %v1750 = vtanh.pop %v1746
  %v1751 = vtanh.pop %v1747
  %v1752 = vtanh.pop %v1748
  %v1753 = vtanh.pop %v1749
  %vm1754 = vcmask 1042432
  %v1755 = vsel %vm1754, %v1750, 0.0
  %v1756 = vsel %vm1754, %v1751, 0.0
  %v1757 = vadd.f32 %v1755, %v1756
  %v1758 = vsel %vm1754, %v1752, 0.0
  %v1759 = vadd.f32 %v1757, %v1758
  %v1760 = vsel %vm1754, %v1753, 0.0
  %v1761 = vadd.f32 %v1759, %v1760
  %1762 = vadd.xlane.f32.xlu0 %v1761
  %v1763 = vpop.xlane.xlu0 %1762
  %v1764 = vmul.f32 %v1763, 0.001953125
  %v1765 = vsub.f32 %v1750, %v1764
  %v1766 = vsub.f32 %v1751, %v1764
  %v1767 = vsub.f32 %v1752, %v1764
  %v1768 = vsub.f32 %v1753, %v1764
  %v1769 = vmul.f32 %v1765, %v1765
  %v1770 = vmul.f32 %v1766, %v1766
  %v1771 = vmul.f32 %v1767, %v1767
  %v1772 = vmul.f32 %v1768, %v1768
  %v1773 = vsel %vm1754, %v1769, 0.0
  %v1774 = vsel %vm1754, %v1770, 0.0
  %v1775 = vadd.f32 %v1773, %v1774
  %v1776 = vsel %vm1754, %v1771, 0.0
  %v1777 = vadd.f32 %v1775, %v1776
  %v1778 = vsel %vm1754, %v1772, 0.0
  %v1779 = vadd.f32 %v1777, %v1778
  %1780 = vadd.xlane.f32.xlu0 %v1779
  %v1781 = vpop.xlane.xlu0 %1780
  %v1782 = vmul.f32 %v1781, 0.001953125
  %v1783 = vadd.f32 %v1782, 1e-05
  %v1784 = vrsqrt.pop %v1783
  %v1785 = vmul.f32 %v1784, %v1783
  %v1786 = vmul.f32 %v1785, %v1784
  %v1787 = vmul.f32 0.5, %v1786
  %v1788 = vsub.f32 1.5, %v1787
  %v1789 = vmul.f32 %v1784, %v1788
  %vm1790 = vweird.f32 %v1783
  %vm1791 = vweird.f32 %v1784
  %vm1792 = vmor %vm1790, %vm1791
  %v1793 = vsel %vm1792, %v1784, %v1789
  %v1794 = vmul.f32 %v1765, %v1793
  %v1795 = vmul.f32 %v1766, %v1793
  %v1796 = vmul.f32 %v1767, %v1793
  %v1797 = vmul.f32 %v1768, %v1793
  %v1800 = vrot.slane %v1795, 4
  %vm1801 = vcmask 1043456
  %v1802 = vsel %vm1801, %v1794, %v1800
  %1804 = vst [vmem:[%s3] sm:$0x77] %v1802
  %v1807 = vrot.slane %v1797, 4
  %v1808 = vsel %vm1801, %v1796, %v1807
  %s1810 = scalar_lea.vmem %s3, 8
  %1811 = vst [vmem:[%s1810] sm:$0x77] %v1808
  // Predicated region
  $region14: #{generator_forward.7} parent=0 // pred_check
    _
  $region15: #{generator_forward.7} parent=0 // pred_check_branch
    %1813 = sbr.rel (0) target = $region17
  $region16: #{generator_forward.7} parent=0 // pred_region
    _
  $region17: #{generator_forward.7} parent=0 // pred_fallthru
    _
  // Predicated region
  $region18: #{generator_forward.7} parent=0 // pred_check
    _
  $region19: #{generator_forward.7} parent=0 // pred_check_branch
    %1815 = sbr.rel (0) target = $region21
  $region20: #{generator_forward.7} parent=0 // pred_region
    _
  $region21: #{generator_forward.7} parent=0 // pred_fallthru
    _

// kernel: generator_forward.6
$region0: #{generator_forward.6}
  #allocation0 [shape = 'u32[]', space=smem, size = 0x4, offset = 0x4, fixed_abs, tag = 'smem constant byte address 0x4 - core index']
  #allocation1 [shape = 'u32[72,128]{1,0:T(1,128)}', space=vmem, size = 0x9000, scoped, tag = 'internal scratch']
  %s0 = inlined_call_operand.vmem [shape: bf16[2,16,16,128], index: 0, kind: input, shape index: {}]
  %s1 = inlined_call_operand.vmem [shape: bf16[3,384,64], index: 1, kind: input, shape index: {}]
  %s2 = inlined_call_operand.vmem [shape: f32[1,64], index: 2, kind: input, shape index: {}]
  %s3 = inlined_call_operand.vmem [shape: f32[1,64], index: 3, kind: input, shape index: {}]
  %s4 = inlined_call_operand.vmem [shape: bf16[2,16,16,64], index: 4, kind: output, shape index: {}]
  %s5 = sld [smem:[#allocation0]]
  $region26: #{generator_forward.6} parent=0
    _
  %s7 = ssub.s32 1, %s5
  %s8 = scalar_select 0, %s7, %s5
  // Predicated region
  $region2: #{generator_forward.6} parent=0 // pred_check
    _
  $region3: #{generator_forward.6} parent=0 // pred_check_branch
    %10 = sbr.rel (0) target = $region5
  $region4: #{generator_forward.6} parent=0 // pred_region
    _
  $region5: #{generator_forward.6} parent=0 // pred_fallthru
    _
  // Predicated region
  $region6: #{generator_forward.6} parent=0 // pred_check
    _
  $region7: #{generator_forward.6} parent=0 // pred_check_branch
    %12 = sbr.rel (0) target = $region9
  $region8: #{generator_forward.6} parent=0 // pred_region
    _
  $region9: #{generator_forward.6} parent=0 // pred_fallthru
    _
  // Predicated region
  $region10: #{generator_forward.6} parent=0 // pred_check
    _
  $region11: #{generator_forward.6} parent=0 // pred_check_branch
    %14 = sbr.rel (0) target = $region13
  $region12: #{generator_forward.6} parent=0 // pred_region
    _
  $region13: #{generator_forward.6} parent=0 // pred_fallthru
    _
  // Predicated region
  $region14: #{generator_forward.6} parent=0 // pred_check
    _
  $region15: #{generator_forward.6} parent=0 // pred_check_branch
    %16 = sbr.rel (0) target = $region17
  $region16: #{generator_forward.6} parent=0 // pred_region
    _
  $region17: #{generator_forward.6} parent=0 // pred_fallthru
    _
  %v18 = vld [vmem:[%s0] sm:$0xf]
  %v19 = vld [vmem:[%s0 + $0x4] sm:$0xf]
  %v20 = vld [vmem:[%s0 + $0x8] sm:$0xf]
  %v21 = vld [vmem:[%s0 + $0xc] sm:$0xf]
  %v22 = vld [vmem:[%s0 + $0x10] sm:$0xf]
  %v23 = vld [vmem:[%s0 + $0x14] sm:$0xf]
  %v24 = vld [vmem:[%s0 + $0x18] sm:$0xf]
  %v25 = vld [vmem:[%s0 + $0x1c] sm:$0xf]
  %v26 = vld [vmem:[%s0 + $0x20] sm:$0xf]
  %v27 = vld [vmem:[%s0 + $0x24] sm:$0xf]
  %v28 = vld [vmem:[%s0 + $0x28] sm:$0xf]
  %v29 = vld [vmem:[%s0 + $0x2c] sm:$0xf]
  %v30 = vld [vmem:[%s0 + $0x30] sm:$0xf]
  %v31 = vld [vmem:[%s0 + $0x34] sm:$0xf]
  %v32 = vld [vmem:[%s0 + $0x38] sm:$0xf]
  %v33 = vld [vmem:[%s0 + $0x3c] sm:$0xf]
  %v34 = vld [vmem:[%s0 + $0x40] sm:$0xf]
  %v35 = vld [vmem:[%s0 + $0x44] sm:$0xf]
  %v36 = vld [vmem:[%s0 + $0x48] sm:$0xf]
  %v37 = vld [vmem:[%s0 + $0x4c] sm:$0xf]
  %v38 = vld [vmem:[%s0 + $0x50] sm:$0xf]
  %v39 = vld [vmem:[%s0 + $0x54] sm:$0xf]
  %v40 = vld [vmem:[%s0 + $0x58] sm:$0xf]
  %v41 = vld [vmem:[%s0 + $0x5c] sm:$0xf]
  %v42 = vld [vmem:[%s0 + $0x60] sm:$0xf]
  %v43 = vld [vmem:[%s0 + $0x64] sm:$0xf]
  %v44 = vld [vmem:[%s0 + $0x68] sm:$0xf]
  %v45 = vld [vmem:[%s0 + $0x6c] sm:$0xf]
  %v46 = vld [vmem:[%s0 + $0x70] sm:$0xf]
  %v47 = vld [vmem:[%s0 + $0x74] sm:$0xf]
  %v48 = vld [vmem:[%s0 + $0x78] sm:$0xf]
  %v49 = vld [vmem:[%s0 + $0x7c] sm:$0xf]
  %v50 = vld [vmem:[%s0 + $0x80] sm:$0xf]
  %v51 = vld [vmem:[%s0 + $0x84] sm:$0xf]
  %v52 = vld [vmem:[%s0 + $0x88] sm:$0xf]
  %v53 = vld [vmem:[%s0 + $0x8c] sm:$0xf]
  %v54 = vld [vmem:[%s0 + $0x90] sm:$0xf]
  %v55 = vld [vmem:[%s0 + $0x94] sm:$0xf]
  %v56 = vld [vmem:[%s0 + $0x98] sm:$0xf]
  %v57 = vld [vmem:[%s0 + $0x9c] sm:$0xf]
  %v58 = vld [vmem:[%s0 + $0xa0] sm:$0xf]
  %v59 = vld [vmem:[%s0 + $0xa4] sm:$0xf]
  %v60 = vld [vmem:[%s0 + $0xa8] sm:$0xf]
  %v61 = vld [vmem:[%s0 + $0xac] sm:$0xf]
  %v62 = vld [vmem:[%s0 + $0xb0] sm:$0xf]
  %v63 = vld [vmem:[%s0 + $0xb4] sm:$0xf]
  %v64 = vld [vmem:[%s0 + $0xb8] sm:$0xf]
  %v65 = vld [vmem:[%s0 + $0xbc] sm:$0xf]
  %v66 = vld [vmem:[%s0 + $0xc0] sm:$0xf]
  %v67 = vld [vmem:[%s0 + $0xc4] sm:$0xf]
  %v68 = vld [vmem:[%s0 + $0xc8] sm:$0xf]
  %v69 = vld [vmem:[%s0 + $0xcc] sm:$0xf]
  %v70 = vld [vmem:[%s0 + $0xd0] sm:$0xf]
  %v71 = vld [vmem:[%s0 + $0xd4] sm:$0xf]
  %v72 = vld [vmem:[%s0 + $0xd8] sm:$0xf]
  %v73 = vld [vmem:[%s0 + $0xdc] sm:$0xf]
  %v74 = vld [vmem:[%s0 + $0xe0] sm:$0xf]
  %v75 = vld [vmem:[%s0 + $0xe4] sm:$0xf]
  %v76 = vld [vmem:[%s0 + $0xe8] sm:$0xf]
  %v77 = vld [vmem:[%s0 + $0xec] sm:$0xf]
  %v78 = vld [vmem:[%s0 + $0xf0] sm:$0xf]
  %v79 = vld [vmem:[%s0 + $0xf4] sm:$0xf]
  %v80 = vld [vmem:[%s0 + $0xf8] sm:$0xf]
  %v81 = vld [vmem:[%s0 + $0xfc] sm:$0xf]
  %v82 = vld [vmem:[%s1] sm:$0xf]
  %v83 = vld [vmem:[%s1 + $0x4] sm:$0xf]
  %v84 = vld [vmem:[%s1 + $0x8] sm:$0xf]
  %v85 = vld [vmem:[%s1 + $0xc] sm:$0xf]
  %v86 = vld [vmem:[%s1 + $0x10] sm:$0xf]
  %v87 = vld [vmem:[%s1 + $0x14] sm:$0xf]
  %v88 = vld [vmem:[%s1 + $0x18] sm:$0xf]
  %v89 = vld [vmem:[%s1 + $0x1c] sm:$0xf]
  %v90 = vld [vmem:[%s1 + $0x20] sm:$0xf]
  %v91 = vld [vmem:[%s1 + $0x24] sm:$0xf]
  %v92 = vld [vmem:[%s1 + $0x28] sm:$0xf]
  %v93 = vld [vmem:[%s1 + $0x2c] sm:$0xf]
  %v94 = vld [vmem:[%s1 + $0x30] sm:$0xf]
  %v95 = vld [vmem:[%s1 + $0x34] sm:$0xf]
  %v96 = vld [vmem:[%s1 + $0x38] sm:$0xf]
  %v97 = vld [vmem:[%s1 + $0x3c] sm:$0xf]
  %v98 = vld [vmem:[%s1 + $0x40] sm:$0xf]
  %v99 = vld [vmem:[%s1 + $0x44] sm:$0xf]
  %v100 = vld [vmem:[%s1 + $0x48] sm:$0xf]
  %v101 = vld [vmem:[%s1 + $0x4c] sm:$0xf]
  %v102 = vld [vmem:[%s1 + $0x50] sm:$0xf]
  %v103 = vld [vmem:[%s1 + $0x54] sm:$0xf]
  %v104 = vld [vmem:[%s1 + $0x58] sm:$0xf]
  %v105 = vld [vmem:[%s1 + $0x5c] sm:$0xf]
  %v106 = vld [vmem:[%s1 + $0x60] sm:$0xf]
  %v107 = vld [vmem:[%s1 + $0x64] sm:$0xf]
  %v108 = vld [vmem:[%s1 + $0x68] sm:$0xf]
  %v109 = vld [vmem:[%s1 + $0x6c] sm:$0xf]
  %v110 = vld [vmem:[%s1 + $0x70] sm:$0xf]
  %v111 = vld [vmem:[%s1 + $0x74] sm:$0xf]
  %v112 = vld [vmem:[%s1 + $0x78] sm:$0xf]
  %v113 = vld [vmem:[%s1 + $0x7c] sm:$0xf]
  %v114 = vld [vmem:[%s1 + $0x80] sm:$0xf]
  %v115 = vld [vmem:[%s1 + $0x84] sm:$0xf]
  %v116 = vld [vmem:[%s1 + $0x88] sm:$0xf]
  %v117 = vld [vmem:[%s1 + $0x8c] sm:$0xf]
  %v118 = vld [vmem:[%s1 + $0x90] sm:$0xf]
  %v119 = vld [vmem:[%s1 + $0x94] sm:$0xf]
  %v120 = vld [vmem:[%s1 + $0x98] sm:$0xf]
  %v121 = vld [vmem:[%s1 + $0x9c] sm:$0xf]
  %v122 = vld [vmem:[%s1 + $0xa0] sm:$0xf]
  %v123 = vld [vmem:[%s1 + $0xa4] sm:$0xf]
  %v124 = vld [vmem:[%s1 + $0xa8] sm:$0xf]
  %v125 = vld [vmem:[%s1 + $0xac] sm:$0xf]
  %v126 = vld [vmem:[%s1 + $0xb0] sm:$0xf]
  %v127 = vld [vmem:[%s1 + $0xb4] sm:$0xf]
  %v128 = vld [vmem:[%s1 + $0xb8] sm:$0xf]
  %v129 = vld [vmem:[%s1 + $0xbc] sm:$0xf]
  %v130 = vld [vmem:[%s1 + $0xc0] sm:$0xf]
  %v131 = vld [vmem:[%s1 + $0xc4] sm:$0xf]
  %v132 = vld [vmem:[%s1 + $0xc8] sm:$0xf]
  %v133 = vld [vmem:[%s1 + $0xcc] sm:$0xf]
  %v134 = vld [vmem:[%s1 + $0xd0] sm:$0xf]
  %v135 = vld [vmem:[%s1 + $0xd4] sm:$0xf]
  %v136 = vld [vmem:[%s1 + $0xd8] sm:$0xf]
  %v137 = vld [vmem:[%s1 + $0xdc] sm:$0xf]
  %v138 = vld [vmem:[%s1 + $0xe0] sm:$0xf]
  %v139 = vld [vmem:[%s1 + $0xe4] sm:$0xf]
  %v140 = vld [vmem:[%s1 + $0xe8] sm:$0xf]
  %v141 = vld [vmem:[%s1 + $0xec] sm:$0xf]
  %v142 = vld [vmem:[%s1 + $0xf0] sm:$0xf]
  %v143 = vld [vmem:[%s1 + $0xf4] sm:$0xf]
  %v144 = vld [vmem:[%s1 + $0xf8] sm:$0xf]
  %v145 = vld [vmem:[%s1 + $0xfc] sm:$0xf]
  %v146 = vld [vmem:[%s1 + $0x100] sm:$0xf]
  %v147 = vld [vmem:[%s1 + $0x104] sm:$0xf]
  %v148 = vld [vmem:[%s1 + $0x108] sm:$0xf]
  %v149 = vld [vmem:[%s1 + $0x10c] sm:$0xf]
  %v150 = vld [vmem:[%s1 + $0x110] sm:$0xf]
  %v151 = vld [vmem:[%s1 + $0x114] sm:$0xf]
  %v152 = vld [vmem:[%s1 + $0x118] sm:$0xf]
  %v153 = vld [vmem:[%s1 + $0x11c] sm:$0xf]
  %v154 = vld [vmem:[%s1 + $0x120] sm:$0xf]
  %v155 = vld [vmem:[%s1 + $0x124] sm:$0xf]
  %v156 = vld [vmem:[%s1 + $0x128] sm:$0xf]
  %v157 = vld [vmem:[%s1 + $0x12c] sm:$0xf]
  %v158 = vld [vmem:[%s1 + $0x130] sm:$0xf]
  %v159 = vld [vmem:[%s1 + $0x134] sm:$0xf]
  %v160 = vld [vmem:[%s1 + $0x138] sm:$0xf]
  %v161 = vld [vmem:[%s1 + $0x13c] sm:$0xf]
  %v162 = vld [vmem:[%s1 + $0x140] sm:$0xf]
  %v163 = vld [vmem:[%s1 + $0x144] sm:$0xf]
  %v164 = vld [vmem:[%s1 + $0x148] sm:$0xf]
  %v165 = vld [vmem:[%s1 + $0x14c] sm:$0xf]
  %v166 = vld [vmem:[%s1 + $0x150] sm:$0xf]
  %v167 = vld [vmem:[%s1 + $0x154] sm:$0xf]
  %v168 = vld [vmem:[%s1 + $0x158] sm:$0xf]
  %v169 = vld [vmem:[%s1 + $0x15c] sm:$0xf]
  %v170 = vld [vmem:[%s1 + $0x160] sm:$0xf]
  %v171 = vld [vmem:[%s1 + $0x164] sm:$0xf]
  %v172 = vld [vmem:[%s1 + $0x168] sm:$0xf]
  %v173 = vld [vmem:[%s1 + $0x16c] sm:$0xf]
  %v174 = vld [vmem:[%s1 + $0x170] sm:$0xf]
  %v175 = vld [vmem:[%s1 + $0x174] sm:$0xf]
  %v176 = vld [vmem:[%s1 + $0x178] sm:$0xf]
  %v177 = vld [vmem:[%s1 + $0x17c] sm:$0xf]
  %v178 = vld [vmem:[%s1 + $0x180] sm:$0xf]
  %v179 = vld [vmem:[%s1 + $0x184] sm:$0xf]
  %v180 = vld [vmem:[%s1 + $0x188] sm:$0xf]
  %v181 = vld [vmem:[%s1 + $0x18c] sm:$0xf]
  %v182 = vld [vmem:[%s1 + $0x190] sm:$0xf]
  %v183 = vld [vmem:[%s1 + $0x194] sm:$0xf]
  %v184 = vld [vmem:[%s1 + $0x198] sm:$0xf]
  %v185 = vld [vmem:[%s1 + $0x19c] sm:$0xf]
  %v186 = vld [vmem:[%s1 + $0x1a0] sm:$0xf]
  %v187 = vld [vmem:[%s1 + $0x1a4] sm:$0xf]
  %v188 = vld [vmem:[%s1 + $0x1a8] sm:$0xf]
  %v189 = vld [vmem:[%s1 + $0x1ac] sm:$0xf]
  %v190 = vld [vmem:[%s1 + $0x1b0] sm:$0xf]
  %v191 = vld [vmem:[%s1 + $0x1b4] sm:$0xf]
  %v192 = vld [vmem:[%s1 + $0x1b8] sm:$0xf]
  %v193 = vld [vmem:[%s1 + $0x1bc] sm:$0xf]
  %v194 = vld [vmem:[%s1 + $0x1c0] sm:$0xf]
  %v195 = vld [vmem:[%s1 + $0x1c4] sm:$0xf]
  %v196 = vld [vmem:[%s1 + $0x1c8] sm:$0xf]
  %v197 = vld [vmem:[%s1 + $0x1cc] sm:$0xf]
  %v198 = vld [vmem:[%s1 + $0x1d0] sm:$0xf]
  %v199 = vld [vmem:[%s1 + $0x1d4] sm:$0xf]
  %v200 = vld [vmem:[%s1 + $0x1d8] sm:$0xf]
  %v201 = vld [vmem:[%s1 + $0x1dc] sm:$0xf]
  %v202 = vld [vmem:[%s1 + $0x1e0] sm:$0xf]
  %v203 = vld [vmem:[%s1 + $0x1e4] sm:$0xf]
  %v204 = vld [vmem:[%s1 + $0x1e8] sm:$0xf]
  %v205 = vld [vmem:[%s1 + $0x1ec] sm:$0xf]
  %v206 = vld [vmem:[%s1 + $0x1f0] sm:$0xf]
  %v207 = vld [vmem:[%s1 + $0x1f4] sm:$0xf]
  %v208 = vld [vmem:[%s1 + $0x1f8] sm:$0xf]
  %v209 = vld [vmem:[%s1 + $0x1fc] sm:$0xf]
  %v210 = vld [vmem:[%s1 + $0x200] sm:$0xf]
  %v211 = vld [vmem:[%s1 + $0x204] sm:$0xf]
  %v212 = vld [vmem:[%s1 + $0x208] sm:$0xf]
  %v213 = vld [vmem:[%s1 + $0x20c] sm:$0xf]
  %v214 = vld [vmem:[%s1 + $0x210] sm:$0xf]
  %v215 = vld [vmem:[%s1 + $0x214] sm:$0xf]
  %v216 = vld [vmem:[%s1 + $0x218] sm:$0xf]
  %v217 = vld [vmem:[%s1 + $0x21c] sm:$0xf]
  %v218 = vld [vmem:[%s1 + $0x220] sm:$0xf]
  %v219 = vld [vmem:[%s1 + $0x224] sm:$0xf]
  %v220 = vld [vmem:[%s1 + $0x228] sm:$0xf]
  %v221 = vld [vmem:[%s1 + $0x22c] sm:$0xf]
  %v222 = vld [vmem:[%s1 + $0x230] sm:$0xf]
  %v223 = vld [vmem:[%s1 + $0x234] sm:$0xf]
  %v224 = vld [vmem:[%s1 + $0x238] sm:$0xf]
  %v225 = vld [vmem:[%s1 + $0x23c] sm:$0xf]
  %v290 = vunpack.c.l.b16 %v18
  %v291 = vunpack.c.l.b16 %v19
  %v292 = vunpack.c.l.b16 %v20
  %v293 = vunpack.c.l.b16 %v21
  %v294 = vunpack.c.l.b16 %v22
  %v295 = vunpack.c.l.b16 %v23
  %v296 = vunpack.c.l.b16 %v24
  %v297 = vunpack.c.l.b16 %v25
  %v298 = vunpack.c.l.b16 %v26
  %v299 = vunpack.c.l.b16 %v27
  %v300 = vunpack.c.l.b16 %v28
  %v301 = vunpack.c.l.b16 %v29
  %v302 = vunpack.c.l.b16 %v30
  %v303 = vunpack.c.l.b16 %v31
  %v304 = vunpack.c.l.b16 %v32
  %v305 = vunpack.c.l.b16 %v33
  %v306 = vunpack.c.l.b16 %v34
  %v307 = vunpack.c.l.b16 %v35
  %v308 = vunpack.c.l.b16 %v36
  %v309 = vunpack.c.l.b16 %v37
  %v310 = vunpack.c.l.b16 %v38
  %v311 = vunpack.c.l.b16 %v39
  %v312 = vunpack.c.l.b16 %v40
  %v313 = vunpack.c.l.b16 %v41
  %v314 = vunpack.c.l.b16 %v42
  %v315 = vunpack.c.l.b16 %v43
  %v316 = vunpack.c.l.b16 %v44
  %v317 = vunpack.c.l.b16 %v45
  %v318 = vunpack.c.l.b16 %v46
  %v319 = vunpack.c.l.b16 %v47
  %v320 = vunpack.c.l.b16 %v48
  %v321 = vunpack.c.l.b16 %v49
  %v322 = vunpack.c.l.b16 %v50
  %v323 = vunpack.c.l.b16 %v51
  %v324 = vunpack.c.l.b16 %v52
  %v325 = vunpack.c.l.b16 %v53
  %v326 = vunpack.c.l.b16 %v54
  %v327 = vunpack.c.l.b16 %v55
  %v328 = vunpack.c.l.b16 %v56
  %v329 = vunpack.c.l.b16 %v57
  %v330 = vunpack.c.l.b16 %v58
  %v331 = vunpack.c.l.b16 %v59
  %v332 = vunpack.c.l.b16 %v60
  %v333 = vunpack.c.l.b16 %v61
  %v334 = vunpack.c.l.b16 %v62
  %v335 = vunpack.c.l.b16 %v63
  %v336 = vunpack.c.l.b16 %v64
  %v337 = vunpack.c.l.b16 %v65
  %v338 = vunpack.c.l.b16 %v66
  %v339 = vunpack.c.l.b16 %v67
  %v340 = vunpack.c.l.b16 %v68
  %v341 = vunpack.c.l.b16 %v69
  %v342 = vunpack.c.l.b16 %v70
  %v343 = vunpack.c.l.b16 %v71
  %v344 = vunpack.c.l.b16 %v72
  %v345 = vunpack.c.l.b16 %v73
  %v346 = vunpack.c.l.b16 %v74
  %v347 = vunpack.c.l.b16 %v75
  %v348 = vunpack.c.l.b16 %v76
  %v349 = vunpack.c.l.b16 %v77
  %v350 = vunpack.c.l.b16 %v78
  %v351 = vunpack.c.l.b16 %v79
  %v352 = vunpack.c.l.b16 %v80
  %v353 = vunpack.c.l.b16 %v81
  %v354 = vpack.c.b16 %v291, %v290
  %v355 = vpack.c.b16 %v293, %v292
  %v356 = vpack.c.b16 %v295, %v294
  %v357 = vpack.c.b16 %v297, %v296
  %v358 = vpack.c.b16 %v299, %v298
  %v359 = vpack.c.b16 %v301, %v300
  %v360 = vpack.c.b16 %v303, %v302
  %v361 = vpack.c.b16 %v305, %v304
  %v362 = vpack.c.b16 %v307, %v306
  %v363 = vpack.c.b16 %v309, %v308
  %v364 = vpack.c.b16 %v311, %v310
  %v365 = vpack.c.b16 %v313, %v312
  %v366 = vpack.c.b16 %v315, %v314
  %v367 = vpack.c.b16 %v317, %v316
  %v368 = vpack.c.b16 %v319, %v318
  %v369 = vpack.c.b16 %v321, %v320
  %v370 = vpack.c.b16 %v323, %v322
  %v371 = vpack.c.b16 %v325, %v324
  %v372 = vpack.c.b16 %v327, %v326
  %v373 = vpack.c.b16 %v329, %v328
  %v374 = vpack.c.b16 %v331, %v330
  %v375 = vpack.c.b16 %v333, %v332
  %v376 = vpack.c.b16 %v335, %v334
  %v377 = vpack.c.b16 %v337, %v336
  %v378 = vpack.c.b16 %v339, %v338
  %v379 = vpack.c.b16 %v341, %v340
  %v380 = vpack.c.b16 %v343, %v342
  %v381 = vpack.c.b16 %v345, %v344
  %v382 = vpack.c.b16 %v347, %v346
  %v383 = vpack.c.b16 %v349, %v348
  %v384 = vpack.c.b16 %v351, %v350
  %v385 = vpack.c.b16 %v353, %v352
  %v387 = vshrl.u32 %v354, 16
  %v389 = vrot.slane %v387, 7
  %v390 = vshll.u32 %v354, 16
  %v392 = vor.u32 %v389, %v390
  %v394 = vshrl.u32 %v355, 16
  %v396 = vrot.slane %v394, 7
  %v397 = vshll.u32 %v355, 16
  %v399 = vor.u32 %v396, %v397
  %v401 = vshrl.u32 %v356, 16
  %v403 = vrot.slane %v401, 7
  %v404 = vshll.u32 %v356, 16
  %v406 = vor.u32 %v403, %v404
  %v408 = vshrl.u32 %v357, 16
  %v410 = vrot.slane %v408, 7
  %v411 = vshll.u32 %v357, 16
  %v413 = vor.u32 %v410, %v411
  %v415 = vshrl.u32 %v358, 16
  %v417 = vrot.slane %v415, 7
  %v418 = vshll.u32 %v358, 16
  %v420 = vor.u32 %v417, %v418
  %v422 = vshrl.u32 %v359, 16
  %v424 = vrot.slane %v422, 7
  %v425 = vshll.u32 %v359, 16
  %v427 = vor.u32 %v424, %v425
  %v429 = vshrl.u32 %v360, 16
  %v431 = vrot.slane %v429, 7
  %v432 = vshll.u32 %v360, 16
  %v434 = vor.u32 %v431, %v432
  %v436 = vshrl.u32 %v361, 16
  %v438 = vrot.slane %v436, 7
  %v439 = vshll.u32 %v361, 16
  %v441 = vor.u32 %v438, %v439
  %v443 = vshrl.u32 %v362, 16
  %v445 = vrot.slane %v443, 7
  %v446 = vshll.u32 %v362, 16
  %v448 = vor.u32 %v445, %v446
  %v450 = vshrl.u32 %v363, 16
  %v452 = vrot.slane %v450, 7
  %v453 = vshll.u32 %v363, 16
  %v455 = vor.u32 %v452, %v453
  %v457 = vshrl.u32 %v364, 16
  %v459 = vrot.slane %v457, 7
  %v460 = vshll.u32 %v364, 16
  %v462 = vor.u32 %v459, %v460
  %v464 = vshrl.u32 %v365, 16
  %v466 = vrot.slane %v464, 7
  %v467 = vshll.u32 %v365, 16
  %v469 = vor.u32 %v466, %v467
  %v471 = vshrl.u32 %v366, 16
  %v473 = vrot.slane %v471, 7
  %v474 = vshll.u32 %v366, 16
  %v476 = vor.u32 %v473, %v474
  %v478 = vshrl.u32 %v367, 16
  %v480 = vrot.slane %v478, 7
  %v481 = vshll.u32 %v367, 16
  %v483 = vor.u32 %v480, %v481
  %v485 = vshrl.u32 %v368, 16
  %v487 = vrot.slane %v485, 7
  %v488 = vshll.u32 %v368, 16
  %v490 = vor.u32 %v487, %v488
  %v492 = vshrl.u32 %v369, 16
  %v494 = vrot.slane %v492, 7
  %v495 = vshll.u32 %v369, 16
  %v497 = vor.u32 %v494, %v495
  %v499 = vshrl.u32 %v370, 16
  %v501 = vrot.slane %v499, 7
  %v502 = vshll.u32 %v370, 16
  %v504 = vor.u32 %v501, %v502
  %v506 = vshrl.u32 %v371, 16
  %v508 = vrot.slane %v506, 7
  %v509 = vshll.u32 %v371, 16
  %v511 = vor.u32 %v508, %v509
  %v513 = vshrl.u32 %v372, 16
  %v515 = vrot.slane %v513, 7
  %v516 = vshll.u32 %v372, 16
  %v518 = vor.u32 %v515, %v516
  %v520 = vshrl.u32 %v373, 16
  %v522 = vrot.slane %v520, 7
  %v523 = vshll.u32 %v373, 16
  %v525 = vor.u32 %v522, %v523
  %v527 = vshrl.u32 %v374, 16
  %v529 = vrot.slane %v527, 7
  %v530 = vshll.u32 %v374, 16
  %v532 = vor.u32 %v529, %v530
  %v534 = vshrl.u32 %v375, 16
  %v536 = vrot.slane %v534, 7
  %v537 = vshll.u32 %v375, 16
  %v539 = vor.u32 %v536, %v537
  %v541 = vshrl.u32 %v376, 16
  %v543 = vrot.slane %v541, 7
  %v544 = vshll.u32 %v376, 16
  %v546 = vor.u32 %v543, %v544
  %v548 = vshrl.u32 %v377, 16
  %v550 = vrot.slane %v548, 7
  %v551 = vshll.u32 %v377, 16
  %v553 = vor.u32 %v550, %v551
  %v555 = vshrl.u32 %v378, 16
  %v557 = vrot.slane %v555, 7
  %v558 = vshll.u32 %v378, 16
  %v560 = vor.u32 %v557, %v558
  %v562 = vshrl.u32 %v379, 16
  %v564 = vrot.slane %v562, 7
  %v565 = vshll.u32 %v379, 16
  %v567 = vor.u32 %v564, %v565
  %v569 = vshrl.u32 %v380, 16
  %v571 = vrot.slane %v569, 7
  %v572 = vshll.u32 %v380, 16
  %v574 = vor.u32 %v571, %v572
  %v576 = vshrl.u32 %v381, 16
  %v578 = vrot.slane %v576, 7
  %v579 = vshll.u32 %v381, 16
  %v581 = vor.u32 %v578, %v579
  %v583 = vshrl.u32 %v382, 16
  %v585 = vrot.slane %v583, 7
  %v586 = vshll.u32 %v382, 16
  %v588 = vor.u32 %v585, %v586
  %v590 = vshrl.u32 %v383, 16
  %v592 = vrot.slane %v590, 7
  %v593 = vshll.u32 %v383, 16
  %v595 = vor.u32 %v592, %v593
  %v597 = vshrl.u32 %v384, 16
  %v599 = vrot.slane %v597, 7
  %v600 = vshll.u32 %v384, 16
  %v602 = vor.u32 %v599, %v600
  %v604 = vshrl.u32 %v385, 16
  %v606 = vrot.slane %v604, 7
  %v607 = vshll.u32 %v385, 16
  %v609 = vor.u32 %v606, %v607
  %vm674 = vcmask 1040384
  %vm675 = vsmask.f32 256
  %vm676 = vmand %vm674, %vm675
  %v677 = vsel %vm676, 0, %v392
  %v678 = vsel %vm676, 0, %v399
  %v679 = vsel %vm676, 0, %v406
  %v680 = vsel %vm676, 0, %v413
  %v681 = vsel %vm676, 0, %v420
  %v682 = vsel %vm676, 0, %v427
  %v683 = vsel %vm676, 0, %v434
  %v684 = vsel %vm676, 0, %v441
  %v685 = vsel %vm676, 0, %v448
  %v686 = vsel %vm676, 0, %v455
  %v687 = vsel %vm676, 0, %v462
  %v688 = vsel %vm676, 0, %v469
  %v689 = vsel %vm676, 0, %v476
  %v690 = vsel %vm676, 0, %v483
  %v691 = vsel %vm676, 0, %v490
  %v692 = vsel %vm676, 0, %v497
  %v693 = vsel %vm676, 0, %v504
  %v694 = vsel %vm676, 0, %v511
  %v695 = vsel %vm676, 0, %v518
  %v696 = vsel %vm676, 0, %v525
  %v697 = vsel %vm676, 0, %v532
  %v698 = vsel %vm676, 0, %v539
  %v699 = vsel %vm676, 0, %v546
  %v700 = vsel %vm676, 0, %v553
  %v701 = vsel %vm676, 0, %v560
  %v702 = vsel %vm676, 0, %v567
  %v703 = vsel %vm676, 0, %v574
  %v704 = vsel %vm676, 0, %v581
  %v705 = vsel %vm676, 0, %v588
  %v706 = vsel %vm676, 0, %v595
  %v707 = vsel %vm676, 0, %v602
  %v708 = vsel %vm676, 0, %v609
  %v709 = vsel %vm676, %v389, 0
  %v710 = vsel %vm676, %v396, 0
  %v711 = vsel %vm676, %v403, 0
  %v712 = vsel %vm676, %v410, 0
  %v713 = vsel %vm676, %v417, 0
  %v714 = vsel %vm676, %v424, 0
  %v715 = vsel %vm676, %v431, 0
  %v716 = vsel %vm676, %v438, 0
  %v717 = vsel %vm676, %v445, 0
  %v718 = vsel %vm676, %v452, 0
  %v719 = vsel %vm676, %v459, 0
  %v720 = vsel %vm676, %v466, 0
  %v721 = vsel %vm676, %v473, 0
  %v722 = vsel %vm676, %v480, 0
  %v723 = vsel %vm676, %v487, 0
  %v724 = vsel %vm676, %v494, 0
  %v725 = vsel %vm676, %v501, 0
  %v726 = vsel %vm676, %v508, 0
  %v727 = vsel %vm676, %v515, 0
  %v728 = vsel %vm676, %v522, 0
  %v729 = vsel %vm676, %v529, 0
  %v730 = vsel %vm676, %v536, 0
  %v731 = vsel %vm676, %v543, 0
  %v732 = vsel %vm676, %v550, 0
  %v733 = vsel %vm676, %v557, 0
  %v734 = vsel %vm676, %v564, 0
  %v735 = vsel %vm676, %v571, 0
  %v736 = vsel %vm676, %v578, 0
  %v737 = vsel %vm676, %v585, 0
  %v738 = vsel %vm676, %v592, 0
  %v739 = vsel %vm676, %v599, 0
  %v740 = vsel %vm676, %v606, 0
  %vm741 = vsmask.f32 7424
  %v743 = vshrl.u32 %v677, 16
  %v745 = vshll.u32 %v677, 16
  %v747 = vrot.slane %v745, 1
  %v748 = vor.u32 %v743, %v747
  %v750 = vshll.u32 %v709, 16
  %v752 = vrot.slane %v750, 1
  %v753 = vsel %vm741, %v748, %v752
  %v755 = vshrl.u32 %v678, 16
  %v757 = vshll.u32 %v678, 16
  %v759 = vrot.slane %v757, 1
  %v760 = vor.u32 %v755, %v759
  %v762 = vshll.u32 %v710, 16
  %v764 = vrot.slane %v762, 1
  %v765 = vsel %vm741, %v760, %v764
  %v767 = vshrl.u32 %v679, 16
  %v769 = vshll.u32 %v679, 16
  %v771 = vrot.slane %v769, 1
  %v772 = vor.u32 %v767, %v771
  %v774 = vshll.u32 %v711, 16
  %v776 = vrot.slane %v774, 1
  %v777 = vsel %vm741, %v772, %v776
  %v779 = vshrl.u32 %v680, 16
  %v781 = vshll.u32 %v680, 16
  %v783 = vrot.slane %v781, 1
  %v784 = vor.u32 %v779, %v783
  %v786 = vshll.u32 %v712, 16
  %v788 = vrot.slane %v786, 1
  %v789 = vsel %vm741, %v784, %v788
  %v791 = vshrl.u32 %v681, 16
  %v793 = vshll.u32 %v681, 16
  %v795 = vrot.slane %v793, 1
  %v796 = vor.u32 %v791, %v795
  %v798 = vshll.u32 %v713, 16
  %v800 = vrot.slane %v798, 1
  %v801 = vsel %vm741, %v796, %v800
  %v803 = vshrl.u32 %v682, 16
  %v805 = vshll.u32 %v682, 16
  %v807 = vrot.slane %v805, 1
  %v808 = vor.u32 %v803, %v807
  %v810 = vshll.u32 %v714, 16
  %v812 = vrot.slane %v810, 1
  %v813 = vsel %vm741, %v808, %v812
  %v815 = vshrl.u32 %v683, 16
  %v817 = vshll.u32 %v683, 16
  %v819 = vrot.slane %v817, 1
  %v820 = vor.u32 %v815, %v819
  %v822 = vshll.u32 %v715, 16
  %v824 = vrot.slane %v822, 1
  %v825 = vsel %vm741, %v820, %v824
  %v827 = vshrl.u32 %v684, 16
  %v829 = vshll.u32 %v684, 16
  %v831 = vrot.slane %v829, 1
  %v832 = vor.u32 %v827, %v831
  %v834 = vshll.u32 %v716, 16
  %v836 = vrot.slane %v834, 1
  %v837 = vsel %vm741, %v832, %v836
  %v839 = vshrl.u32 %v685, 16
  %v841 = vshll.u32 %v685, 16
  %v843 = vrot.slane %v841, 1
  %v844 = vor.u32 %v839, %v843
  %v846 = vshll.u32 %v717, 16
  %v848 = vrot.slane %v846, 1
  %v849 = vsel %vm741, %v844, %v848
  %v851 = vshrl.u32 %v686, 16
  %v853 = vshll.u32 %v686, 16
  %v855 = vrot.slane %v853, 1
  %v856 = vor.u32 %v851, %v855
  %v858 = vshll.u32 %v718, 16
  %v860 = vrot.slane %v858, 1
  %v861 = vsel %vm741, %v856, %v860
  %v863 = vshrl.u32 %v687, 16
  %v865 = vshll.u32 %v687, 16
  %v867 = vrot.slane %v865, 1
  %v868 = vor.u32 %v863, %v867
  %v870 = vshll.u32 %v719, 16
  %v872 = vrot.slane %v870, 1
  %v873 = vsel %vm741, %v868, %v872
  %v875 = vshrl.u32 %v688, 16
  %v877 = vshll.u32 %v688, 16
  %v879 = vrot.slane %v877, 1
  %v880 = vor.u32 %v875, %v879
  %v882 = vshll.u32 %v720, 16
  %v884 = vrot.slane %v882, 1
  %v885 = vsel %vm741, %v880, %v884
  %v887 = vshrl.u32 %v689, 16
  %v889 = vshll.u32 %v689, 16
  %v891 = vrot.slane %v889, 1
  %v892 = vor.u32 %v887, %v891
  %v894 = vshll.u32 %v721, 16
  %v896 = vrot.slane %v894, 1
  %v897 = vsel %vm741, %v892, %v896
  %v899 = vshrl.u32 %v690, 16
  %v901 = vshll.u32 %v690, 16
  %v903 = vrot.slane %v901, 1
  %v904 = vor.u32 %v899, %v903
  %v906 = vshll.u32 %v722, 16
  %v908 = vrot.slane %v906, 1
  %v909 = vsel %vm741, %v904, %v908
  %v911 = vshrl.u32 %v691, 16
  %v913 = vshll.u32 %v691, 16
  %v915 = vrot.slane %v913, 1
  %v916 = vor.u32 %v911, %v915
  %v918 = vshll.u32 %v723, 16
  %v920 = vrot.slane %v918, 1
  %v921 = vsel %vm741, %v916, %v920
  %v923 = vshrl.u32 %v692, 16
  %v925 = vshll.u32 %v692, 16
  %v927 = vrot.slane %v925, 1
  %v928 = vor.u32 %v923, %v927
  %v930 = vshll.u32 %v724, 16
  %v932 = vrot.slane %v930, 1
  %v933 = vsel %vm741, %v928, %v932
  %v935 = vshrl.u32 %v693, 16
  %v937 = vshll.u32 %v693, 16
  %v939 = vrot.slane %v937, 1
  %v940 = vor.u32 %v935, %v939
  %v942 = vshll.u32 %v725, 16
  %v944 = vrot.slane %v942, 1
  %v945 = vsel %vm741, %v940, %v944
  %v947 = vshrl.u32 %v694, 16
  %v949 = vshll.u32 %v694, 16
  %v951 = vrot.slane %v949, 1
  %v952 = vor.u32 %v947, %v951
  %v954 = vshll.u32 %v726, 16
  %v956 = vrot.slane %v954, 1
  %v957 = vsel %vm741, %v952, %v956
  %v959 = vshrl.u32 %v695, 16
  %v961 = vshll.u32 %v695, 16
  %v963 = vrot.slane %v961, 1
  %v964 = vor.u32 %v959, %v963
  %v966 = vshll.u32 %v727, 16
  %v968 = vrot.slane %v966, 1
  %v969 = vsel %vm741, %v964, %v968
  %v971 = vshrl.u32 %v696, 16
  %v973 = vshll.u32 %v696, 16
  %v975 = vrot.slane %v973, 1
  %v976 = vor.u32 %v971, %v975
  %v978 = vshll.u32 %v728, 16
  %v980 = vrot.slane %v978, 1
  %v981 = vsel %vm741, %v976, %v980
  %v983 = vshrl.u32 %v697, 16
  %v985 = vshll.u32 %v697, 16
  %v987 = vrot.slane %v985, 1
  %v988 = vor.u32 %v983, %v987
  %v990 = vshll.u32 %v729, 16
  %v992 = vrot.slane %v990, 1
  %v993 = vsel %vm741, %v988, %v992
  %v995 = vshrl.u32 %v698, 16
  %v997 = vshll.u32 %v698, 16
  %v999 = vrot.slane %v997, 1
  %v1000 = vor.u32 %v995, %v999
  %v1002 = vshll.u32 %v730, 16
  %v1004 = vrot.slane %v1002, 1
  %v1005 = vsel %vm741, %v1000, %v1004
  %v1007 = vshrl.u32 %v699, 16
  %v1009 = vshll.u32 %v699, 16
  %v1011 = vrot.slane %v1009, 1
  %v1012 = vor.u32 %v1007, %v1011
  %v1014 = vshll.u32 %v731, 16
  %v1016 = vrot.slane %v1014, 1
  %v1017 = vsel %vm741, %v1012, %v1016
  %v1019 = vshrl.u32 %v700, 16
  %v1021 = vshll.u32 %v700, 16
  %v1023 = vrot.slane %v1021, 1
  %v1024 = vor.u32 %v1019, %v1023
  %v1026 = vshll.u32 %v732, 16
  %v1028 = vrot.slane %v1026, 1
  %v1029 = vsel %vm741, %v1024, %v1028
  %v1031 = vshrl.u32 %v701, 16
  %v1033 = vshll.u32 %v701, 16
  %v1035 = vrot.slane %v1033, 1
  %v1036 = vor.u32 %v1031, %v1035
  %v1038 = vshll.u32 %v733, 16
  %v1040 = vrot.slane %v1038, 1
  %v1041 = vsel %vm741, %v1036, %v1040
  %v1043 = vshrl.u32 %v702, 16
  %v1045 = vshll.u32 %v702, 16
  %v1047 = vrot.slane %v1045, 1
  %v1048 = vor.u32 %v1043, %v1047
  %v1050 = vshll.u32 %v734, 16
  %v1052 = vrot.slane %v1050, 1
  %v1053 = vsel %vm741, %v1048, %v1052
  %v1055 = vshrl.u32 %v703, 16
  %v1057 = vshll.u32 %v703, 16
  %v1059 = vrot.slane %v1057, 1
  %v1060 = vor.u32 %v1055, %v1059
  %v1062 = vshll.u32 %v735, 16
  %v1064 = vrot.slane %v1062, 1
  %v1065 = vsel %vm741, %v1060, %v1064
  %v1067 = vshrl.u32 %v704, 16
  %v1069 = vshll.u32 %v704, 16
  %v1071 = vrot.slane %v1069, 1
  %v1072 = vor.u32 %v1067, %v1071
  %v1074 = vshll.u32 %v736, 16
  %v1076 = vrot.slane %v1074, 1
  %v1077 = vsel %vm741, %v1072, %v1076
  %v1079 = vshrl.u32 %v705, 16
  %v1081 = vshll.u32 %v705, 16
  %v1083 = vrot.slane %v1081, 1
  %v1084 = vor.u32 %v1079, %v1083
  %v1086 = vshll.u32 %v737, 16
  %v1088 = vrot.slane %v1086, 1
  %v1089 = vsel %vm741, %v1084, %v1088
  %v1091 = vshrl.u32 %v706, 16
  %v1093 = vshll.u32 %v706, 16
  %v1095 = vrot.slane %v1093, 1
  %v1096 = vor.u32 %v1091, %v1095
  %v1098 = vshll.u32 %v738, 16
  %v1100 = vrot.slane %v1098, 1
  %v1101 = vsel %vm741, %v1096, %v1100
  %v1103 = vshrl.u32 %v707, 16
  %v1105 = vshll.u32 %v707, 16
  %v1107 = vrot.slane %v1105, 1
  %v1108 = vor.u32 %v1103, %v1107
  %v1110 = vshll.u32 %v739, 16
  %v1112 = vrot.slane %v1110, 1
  %v1113 = vsel %vm741, %v1108, %v1112
  %v1115 = vshrl.u32 %v708, 16
  %v1117 = vshll.u32 %v708, 16
  %v1119 = vrot.slane %v1117, 1
  %v1120 = vor.u32 %v1115, %v1119
  %v1122 = vshll.u32 %v740, 16
  %v1124 = vrot.slane %v1122, 1
  %v1125 = vsel %vm741, %v1120, %v1124
  %vm1222 = vcmask 1046528
  %v1223 = vrot.slane %v677, 1
  %v1224 = vrot.slane %v709, 1
  %v1225 = vsel %vm1222, %v1223, %v1224
  %v1226 = vrot.slane %v678, 1
  %v1227 = vrot.slane %v710, 1
  %v1228 = vsel %vm1222, %v1226, %v1227
  %v1229 = vrot.slane %v679, 1
  %v1230 = vrot.slane %v711, 1
  %v1231 = vsel %vm1222, %v1229, %v1230
  %v1232 = vrot.slane %v680, 1
  %v1233 = vrot.slane %v712, 1
  %v1234 = vsel %vm1222, %v1232, %v1233
  %v1235 = vrot.slane %v681, 1
  %v1236 = vrot.slane %v713, 1
  %v1237 = vsel %vm1222, %v1235, %v1236
  %v1238 = vrot.slane %v682, 1
  %v1239 = vrot.slane %v714, 1
  %v1240 = vsel %vm1222, %v1238, %v1239
  %v1241 = vrot.slane %v683, 1
  %v1242 = vrot.slane %v715, 1
  %v1243 = vsel %vm1222, %v1241, %v1242
  %v1244 = vrot.slane %v684, 1
  %v1245 = vrot.slane %v716, 1
  %v1246 = vsel %vm1222, %v1244, %v1245
  %v1247 = vrot.slane %v685, 1
  %v1248 = vrot.slane %v717, 1
  %v1249 = vsel %vm1222, %v1247, %v1248
  %v1250 = vrot.slane %v686, 1
  %v1251 = vrot.slane %v718, 1
  %v1252 = vsel %vm1222, %v1250, %v1251
  %v1253 = vrot.slane %v687, 1
  %v1254 = vrot.slane %v719, 1
  %v1255 = vsel %vm1222, %v1253, %v1254
  %v1256 = vrot.slane %v688, 1
  %v1257 = vrot.slane %v720, 1
  %v1258 = vsel %vm1222, %v1256, %v1257
  %v1259 = vrot.slane %v689, 1
  %v1260 = vrot.slane %v721, 1
  %v1261 = vsel %vm1222, %v1259, %v1260
  %v1262 = vrot.slane %v690, 1
  %v1263 = vrot.slane %v722, 1
  %v1264 = vsel %vm1222, %v1262, %v1263
  %v1265 = vrot.slane %v691, 1
  %v1266 = vrot.slane %v723, 1
  %v1267 = vsel %vm1222, %v1265, %v1266
  %v1268 = vrot.slane %v692, 1
  %v1269 = vrot.slane %v724, 1
  %v1270 = vsel %vm1222, %v1268, %v1269
  %v1271 = vrot.slane %v693, 1
  %v1272 = vrot.slane %v725, 1
  %v1273 = vsel %vm1222, %v1271, %v1272
  %v1274 = vrot.slane %v694, 1
  %v1275 = vrot.slane %v726, 1
  %v1276 = vsel %vm1222, %v1274, %v1275
  %v1277 = vrot.slane %v695, 1
  %v1278 = vrot.slane %v727, 1
  %v1279 = vsel %vm1222, %v1277, %v1278
  %v1280 = vrot.slane %v696, 1
  %v1281 = vrot.slane %v728, 1
  %v1282 = vsel %vm1222, %v1280, %v1281
  %v1283 = vrot.slane %v697, 1
  %v1284 = vrot.slane %v729, 1
  %v1285 = vsel %vm1222, %v1283, %v1284
  %v1286 = vrot.slane %v698, 1
  %v1287 = vrot.slane %v730, 1
  %v1288 = vsel %vm1222, %v1286, %v1287
  %v1289 = vrot.slane %v699, 1
  %v1290 = vrot.slane %v731, 1
  %v1291 = vsel %vm1222, %v1289, %v1290
  %v1292 = vrot.slane %v700, 1
  %v1293 = vrot.slane %v732, 1
  %v1294 = vsel %vm1222, %v1292, %v1293
  %v1295 = vrot.slane %v701, 1
  %v1296 = vrot.slane %v733, 1
  %v1297 = vsel %vm1222, %v1295, %v1296
  %v1298 = vrot.slane %v702, 1
  %v1299 = vrot.slane %v734, 1
  %v1300 = vsel %vm1222, %v1298, %v1299
  %v1301 = vrot.slane %v703, 1
  %v1302 = vrot.slane %v735, 1
  %v1303 = vsel %vm1222, %v1301, %v1302
  %v1304 = vrot.slane %v704, 1
  %v1305 = vrot.slane %v736, 1
  %v1306 = vsel %vm1222, %v1304, %v1305
  %v1307 = vrot.slane %v705, 1
  %v1308 = vrot.slane %v737, 1
  %v1309 = vsel %vm1222, %v1307, %v1308
  %v1310 = vrot.slane %v706, 1
  %v1311 = vrot.slane %v738, 1
  %v1312 = vsel %vm1222, %v1310, %v1311
  %v1313 = vrot.slane %v707, 1
  %v1314 = vrot.slane %v739, 1
  %v1315 = vsel %vm1222, %v1313, %v1314
  %v1316 = vrot.slane %v708, 1
  %v1317 = vrot.slane %v740, 1
  %v1318 = vsel %vm1222, %v1316, %v1317
  %v1399 = vunpack.c.l.b16 %v130
  %v1400 = vunpack.c.l.b16 %v131
  %v1401 = vunpack.c.l.b16 %v132
  %v1402 = vunpack.c.l.b16 %v133
  %v1403 = vunpack.c.l.b16 %v134
  %v1404 = vunpack.c.l.b16 %v135
  %v1405 = vunpack.c.l.b16 %v136
  %v1406 = vunpack.c.l.b16 %v137
  %v1407 = vunpack.c.l.b16 %v138
  %v1408 = vunpack.c.l.b16 %v139
  %v1409 = vunpack.c.l.b16 %v140
  %v1410 = vunpack.c.l.b16 %v141
  %v1411 = vunpack.c.l.b16 %v142
  %v1412 = vunpack.c.l.b16 %v143
  %v1413 = vunpack.c.l.b16 %v144
  %v1414 = vunpack.c.l.b16 %v145
  %v1415 = vunpack.c.l.b16 %v146
  %v1416 = vunpack.c.l.b16 %v147
  %v1417 = vunpack.c.l.b16 %v148
  %v1418 = vunpack.c.l.b16 %v149
  %v1419 = vunpack.c.l.b16 %v150
  %v1420 = vunpack.c.l.b16 %v151
  %v1421 = vunpack.c.l.b16 %v152
  %v1422 = vunpack.c.l.b16 %v153
  %v1423 = vunpack.c.l.b16 %v154
  %v1424 = vunpack.c.l.b16 %v155
  %v1425 = vunpack.c.l.b16 %v156
  %v1426 = vunpack.c.l.b16 %v157
  %v1427 = vunpack.c.l.b16 %v158
  %v1428 = vunpack.c.l.b16 %v159
  %v1429 = vunpack.c.l.b16 %v160
  %v1430 = vunpack.c.l.b16 %v161
  %v1431 = vunpack.c.l.b16 %v162
  %v1432 = vunpack.c.l.b16 %v163
  %v1433 = vunpack.c.l.b16 %v164
  %v1434 = vunpack.c.l.b16 %v165
  %v1435 = vunpack.c.l.b16 %v166
  %v1436 = vunpack.c.l.b16 %v167
  %v1437 = vunpack.c.l.b16 %v168
  %v1438 = vunpack.c.l.b16 %v169
  %v1439 = vunpack.c.l.b16 %v170
  %v1440 = vunpack.c.l.b16 %v171
  %v1441 = vunpack.c.l.b16 %v172
  %v1442 = vunpack.c.l.b16 %v173
  %v1443 = vunpack.c.l.b16 %v174
  %v1444 = vunpack.c.l.b16 %v175
  %v1445 = vunpack.c.l.b16 %v176
  %v1446 = vunpack.c.l.b16 %v177
  %v1447 = vpack.c.b16 %v1400, %v1399
  %v1448 = vpack.c.b16 %v1402, %v1401
  %v1449 = vpack.c.b16 %v1404, %v1403
  %v1450 = vpack.c.b16 %v1406, %v1405
  %v1451 = vpack.c.b16 %v1408, %v1407
  %v1452 = vpack.c.b16 %v1410, %v1409
  %v1453 = vpack.c.b16 %v1412, %v1411
  %v1454 = vpack.c.b16 %v1414, %v1413
  %v1455 = vpack.c.b16 %v1416, %v1415
  %v1456 = vpack.c.b16 %v1418, %v1417
  %v1457 = vpack.c.b16 %v1420, %v1419
  %v1458 = vpack.c.b16 %v1422, %v1421
  %v1459 = vpack.c.b16 %v1424, %v1423
  %v1460 = vpack.c.b16 %v1426, %v1425
  %v1461 = vpack.c.b16 %v1428, %v1427
  %v1462 = vpack.c.b16 %v1430, %v1429
  %v1463 = vpack.c.b16 %v1432, %v1431
  %v1464 = vpack.c.b16 %v1434, %v1433
  %v1465 = vpack.c.b16 %v1436, %v1435
  %v1466 = vpack.c.b16 %v1438, %v1437
  %v1467 = vpack.c.b16 %v1440, %v1439
  %v1468 = vpack.c.b16 %v1442, %v1441
  %v1469 = vpack.c.b16 %v1444, %v1443
  %v1470 = vpack.c.b16 %v1446, %v1445
  %1495 = vmatpush.bf16.msra.mxu0 %v1454
  %1496 = vmatpush.bf16.msra.mxu0 %v1453
  %1497 = vmatpush.bf16.msra.mxu0 %v1452
  %1498 = vmatpush.bf16.msra.mxu0 %v1451
  %1499 = vmatpush.bf16.msra.mxu0 %v1450
  %1500 = vmatpush.bf16.msra.mxu0 %v1449
  %1501 = vmatpush.bf16.msra.mxu0 %v1448
  %1502 = vmatpush.bf16.msra.mxu0 %v1447
  %1503 = vmatmul.bf16.gmra.mxu0 %v677
  %v1504 = vpop.f32.mrf.mxu0
  %v1505 = vadd.f32 0.0, %v1504
  %v1506 = vpop.f32.mrf.mxu0
  %v1507 = vadd.f32 0.0, %v1506
  %1508 = vmatmul.bf16.gmra.mxu0 %v678
  %v1509 = vpop.f32.mrf.mxu0
  %v1510 = vadd.f32 0.0, %v1509
  %v1511 = vpop.f32.mrf.mxu0
  %v1512 = vadd.f32 0.0, %v1511
  %1513 = vmatmul.bf16.gmra.mxu0 %v679
  %v1514 = vpop.f32.mrf.mxu0
  %v1515 = vadd.f32 0.0, %v1514
  %v1516 = vpop.f32.mrf.mxu0
  %v1517 = vadd.f32 0.0, %v1516
  %1518 = vmatmul.bf16.gmra.mxu0 %v680
  %v1519 = vpop.f32.mrf.mxu0
  %v1520 = vadd.f32 0.0, %v1519
  %v1521 = vpop.f32.mrf.mxu0
  %v1522 = vadd.f32 0.0, %v1521
  %1523 = vmatmul.bf16.gmra.mxu0 %v681
  %v1524 = vpop.f32.mrf.mxu0
  %v1525 = vadd.f32 0.0, %v1524
  %v1526 = vpop.f32.mrf.mxu0
  %v1527 = vadd.f32 0.0, %v1526
  %1528 = vmatmul.bf16.gmra.mxu0 %v682
  %v1529 = vpop.f32.mrf.mxu0
  %v1530 = vadd.f32 0.0, %v1529
  %v1531 = vpop.f32.mrf.mxu0
  %v1532 = vadd.f32 0.0, %v1531
  %1533 = vmatmul.bf16.gmra.mxu0 %v683
  %v1534 = vpop.f32.mrf.mxu0
  %v1535 = vadd.f32 0.0, %v1534
  %v1536 = vpop.f32.mrf.mxu0
  %v1537 = vadd.f32 0.0, %v1536
  %1538 = vmatmul.bf16.gmra.mxu0 %v684
  %v1539 = vpop.f32.mrf.mxu0
  %v1540 = vadd.f32 0.0, %v1539
  %v1541 = vpop.f32.mrf.mxu0
  %v1542 = vadd.f32 0.0, %v1541
  %1543 = vmatmul.bf16.gmra.mxu0 %v685
  %v1544 = vpop.f32.mrf.mxu0
  %v1545 = vadd.f32 0.0, %v1544
  %v1546 = vpop.f32.mrf.mxu0
  %v1547 = vadd.f32 0.0, %v1546
  %1548 = vmatmul.bf16.gmra.mxu0 %v686
  %v1549 = vpop.f32.mrf.mxu0
  %v1550 = vadd.f32 0.0, %v1549
  %v1551 = vpop.f32.mrf.mxu0
  %v1552 = vadd.f32 0.0, %v1551
  %1553 = vmatmul.bf16.gmra.mxu0 %v687
  %v1554 = vpop.f32.mrf.mxu0
  %v1555 = vadd.f32 0.0, %v1554
  %v1556 = vpop.f32.mrf.mxu0
  %v1557 = vadd.f32 0.0, %v1556
  %1558 = vmatmul.bf16.gmra.mxu0 %v688
  %v1559 = vpop.f32.mrf.mxu0
  %v1560 = vadd.f32 0.0, %v1559
  %v1561 = vpop.f32.mrf.mxu0
  %v1562 = vadd.f32 0.0, %v1561
  %1563 = vmatmul.bf16.gmra.mxu0 %v689
  %v1564 = vpop.f32.mrf.mxu0
  %v1565 = vadd.f32 0.0, %v1564
  %v1566 = vpop.f32.mrf.mxu0
  %v1567 = vadd.f32 0.0, %v1566
  %1568 = vmatmul.bf16.gmra.mxu0 %v690
  %v1569 = vpop.f32.mrf.mxu0
  %v1570 = vadd.f32 0.0, %v1569
  %v1571 = vpop.f32.mrf.mxu0
  %v1572 = vadd.f32 0.0, %v1571
  %1573 = vmatmul.bf16.gmra.mxu0 %v691
  %v1574 = vpop.f32.mrf.mxu0
  %v1575 = vadd.f32 0.0, %v1574
  %v1576 = vpop.f32.mrf.mxu0
  %v1577 = vadd.f32 0.0, %v1576
  %1578 = vmatmul.bf16.gmra.mxu0 %v692
  %v1579 = vpop.f32.mrf.mxu0
  %v1580 = vadd.f32 0.0, %v1579
  %v1581 = vpop.f32.mrf.mxu0
  %v1582 = vadd.f32 0.0, %v1581
  %1583 = vmatmul.bf16.gmra.mxu0 %v693
  %v1584 = vpop.f32.mrf.mxu0
  %v1585 = vadd.f32 0.0, %v1584
  %v1586 = vpop.f32.mrf.mxu0
  %v1587 = vadd.f32 0.0, %v1586
  %1588 = vmatmul.bf16.gmra.mxu0 %v694
  %v1589 = vpop.f32.mrf.mxu0
  %v1590 = vadd.f32 0.0, %v1589
  %v1591 = vpop.f32.mrf.mxu0
  %v1592 = vadd.f32 0.0, %v1591
  %1593 = vmatmul.bf16.gmra.mxu0 %v695
  %v1594 = vpop.f32.mrf.mxu0
  %v1595 = vadd.f32 0.0, %v1594
  %v1596 = vpop.f32.mrf.mxu0
  %v1597 = vadd.f32 0.0, %v1596
  %1598 = vmatmul.bf16.gmra.mxu0 %v696
  %v1599 = vpop.f32.mrf.mxu0
  %v1600 = vadd.f32 0.0, %v1599
  %v1601 = vpop.f32.mrf.mxu0
  %v1602 = vadd.f32 0.0, %v1601
  %1603 = vmatmul.bf16.gmra.mxu0 %v697
  %v1604 = vpop.f32.mrf.mxu0
  %v1605 = vadd.f32 0.0, %v1604
  %v1606 = vpop.f32.mrf.mxu0
  %v1607 = vadd.f32 0.0, %v1606
  %1608 = vmatmul.bf16.gmra.mxu0 %v698
  %v1609 = vpop.f32.mrf.mxu0
  %v1610 = vadd.f32 0.0, %v1609
  %v1611 = vpop.f32.mrf.mxu0
  %v1612 = vadd.f32 0.0, %v1611
  %1613 = vmatmul.bf16.gmra.mxu0 %v699
  %v1614 = vpop.f32.mrf.mxu0
  %v1615 = vadd.f32 0.0, %v1614
  %v1616 = vpop.f32.mrf.mxu0
  %v1617 = vadd.f32 0.0, %v1616
  %1618 = vmatmul.bf16.gmra.mxu0 %v700
  %v1619 = vpop.f32.mrf.mxu0
  %v1620 = vadd.f32 0.0, %v1619
  %v1621 = vpop.f32.mrf.mxu0
  %v1622 = vadd.f32 0.0, %v1621
  %1623 = vmatmul.bf16.gmra.mxu0 %v701
  %v1624 = vpop.f32.mrf.mxu0
  %v1625 = vadd.f32 0.0, %v1624
  %v1626 = vpop.f32.mrf.mxu0
  %v1627 = vadd.f32 0.0, %v1626
  %1628 = vmatmul.bf16.gmra.mxu0 %v702
  %v1629 = vpop.f32.mrf.mxu0
  %v1630 = vadd.f32 0.0, %v1629
  %v1631 = vpop.f32.mrf.mxu0
  %v1632 = vadd.f32 0.0, %v1631
  %1633 = vmatmul.bf16.gmra.mxu0 %v703
  %v1634 = vpop.f32.mrf.mxu0
  %v1635 = vadd.f32 0.0, %v1634
  %v1636 = vpop.f32.mrf.mxu0
  %v1637 = vadd.f32 0.0, %v1636
  %1638 = vmatmul.bf16.gmra.mxu0 %v704
  %v1639 = vpop.f32.mrf.mxu0
  %v1640 = vadd.f32 0.0, %v1639
  %v1641 = vpop.f32.mrf.mxu0
  %v1642 = vadd.f32 0.0, %v1641
  %1643 = vmatmul.bf16.gmra.mxu0 %v705
  %v1644 = vpop.f32.mrf.mxu0
  %v1645 = vadd.f32 0.0, %v1644
  %v1646 = vpop.f32.mrf.mxu0
  %v1647 = vadd.f32 0.0, %v1646
  %1648 = vmatmul.bf16.gmra.mxu0 %v706
  %v1649 = vpop.f32.mrf.mxu0
  %v1650 = vadd.f32 0.0, %v1649
  %v1651 = vpop.f32.mrf.mxu0
  %v1652 = vadd.f32 0.0, %v1651
  %1653 = vmatmul.bf16.gmra.mxu0 %v707
  %v1654 = vpop.f32.mrf.mxu0
  %v1655 = vadd.f32 0.0, %v1654
  %v1656 = vpop.f32.mrf.mxu0
  %v1657 = vadd.f32 0.0, %v1656
  %1658 = vmatmul.bf16.gmra.mxu0 %v708
  %v1659 = vpop.f32.mrf.mxu0
  %v1660 = vadd.f32 0.0, %v1659
  %v1661 = vpop.f32.mrf.mxu0
  %v1662 = vadd.f32 0.0, %v1661
  %1663 = vdwg.mxu0
  %1664 = vmatpush.bf16.msra.mxu0 %v1462
  %1665 = vmatpush.bf16.msra.mxu0 %v1461
  %1666 = vmatpush.bf16.msra.mxu0 %v1460
  %1667 = vmatpush.bf16.msra.mxu0 %v1459
  %1668 = vmatpush.bf16.msra.mxu0 %v1458
  %1669 = vmatpush.bf16.msra.mxu0 %v1457
  %1670 = vmatpush.bf16.msra.mxu0 %v1456
  %1671 = vmatpush.bf16.msra.mxu0 %v1455
  %1672 = vmatmul.bf16.gmra.mxu0 %v753
  %v1673 = vpop.f32.mrf.mxu0
  %v1674 = vadd.f32 %v1505, %v1673
  %v1675 = vpop.f32.mrf.mxu0
  %v1676 = vadd.f32 %v1507, %v1675
  %1677 = vmatmul.bf16.gmra.mxu0 %v765
  %v1678 = vpop.f32.mrf.mxu0
  %v1679 = vadd.f32 %v1510, %v1678
  %v1680 = vpop.f32.mrf.mxu0
  %v1681 = vadd.f32 %v1512, %v1680
  %1682 = vmatmul.bf16.gmra.mxu0 %v777
  %v1683 = vpop.f32.mrf.mxu0
  %v1684 = vadd.f32 %v1515, %v1683
  %v1685 = vpop.f32.mrf.mxu0
  %v1686 = vadd.f32 %v1517, %v1685
  %1687 = vmatmul.bf16.gmra.mxu0 %v789
  %v1688 = vpop.f32.mrf.mxu0
  %v1689 = vadd.f32 %v1520, %v1688
  %v1690 = vpop.f32.mrf.mxu0
  %v1691 = vadd.f32 %v1522, %v1690
  %1692 = vmatmul.bf16.gmra.mxu0 %v801
  %v1693 = vpop.f32.mrf.mxu0
  %v1694 = vadd.f32 %v1525, %v1693
  %v1695 = vpop.f32.mrf.mxu0
  %v1696 = vadd.f32 %v1527, %v1695
  %1697 = vmatmul.bf16.gmra.mxu0 %v813
  %v1698 = vpop.f32.mrf.mxu0
  %v1699 = vadd.f32 %v1530, %v1698
  %v1700 = vpop.f32.mrf.mxu0
  %v1701 = vadd.f32 %v1532, %v1700
  %1702 = vmatmul.bf16.gmra.mxu0 %v825
  %v1703 = vpop.f32.mrf.mxu0
  %v1704 = vadd.f32 %v1535, %v1703
  %v1705 = vpop.f32.mrf.mxu0
  %v1706 = vadd.f32 %v1537, %v1705
  %1707 = vmatmul.bf16.gmra.mxu0 %v837
  %v1708 = vpop.f32.mrf.mxu0
  %v1709 = vadd.f32 %v1540, %v1708
  %v1710 = vpop.f32.mrf.mxu0
  %v1711 = vadd.f32 %v1542, %v1710
  %1712 = vmatmul.bf16.gmra.mxu0 %v849
  %v1713 = vpop.f32.mrf.mxu0
  %v1714 = vadd.f32 %v1545, %v1713
  %v1715 = vpop.f32.mrf.mxu0
  %v1716 = vadd.f32 %v1547, %v1715
  %1717 = vmatmul.bf16.gmra.mxu0 %v861
  %v1718 = vpop.f32.mrf.mxu0
  %v1719 = vadd.f32 %v1550, %v1718
  %v1720 = vpop.f32.mrf.mxu0
  %v1721 = vadd.f32 %v1552, %v1720
  %1722 = vmatmul.bf16.gmra.mxu0 %v873
  %v1723 = vpop.f32.mrf.mxu0
  %v1724 = vadd.f32 %v1555, %v1723
  %v1725 = vpop.f32.mrf.mxu0
  %v1726 = vadd.f32 %v1557, %v1725
  %1727 = vmatmul.bf16.gmra.mxu0 %v885
  %v1728 = vpop.f32.mrf.mxu0
  %v1729 = vadd.f32 %v1560, %v1728
  %v1730 = vpop.f32.mrf.mxu0
  %v1731 = vadd.f32 %v1562, %v1730
  %1732 = vmatmul.bf16.gmra.mxu0 %v897
  %v1733 = vpop.f32.mrf.mxu0
  %v1734 = vadd.f32 %v1565, %v1733
  %v1735 = vpop.f32.mrf.mxu0
  %v1736 = vadd.f32 %v1567, %v1735
  %1737 = vmatmul.bf16.gmra.mxu0 %v909
  %v1738 = vpop.f32.mrf.mxu0
  %v1739 = vadd.f32 %v1570, %v1738
  %v1740 = vpop.f32.mrf.mxu0
  %v1741 = vadd.f32 %v1572, %v1740
  %1742 = vmatmul.bf16.gmra.mxu0 %v921
  %v1743 = vpop.f32.mrf.mxu0
  %v1744 = vadd.f32 %v1575, %v1743
  %v1745 = vpop.f32.mrf.mxu0
  %v1746 = vadd.f32 %v1577, %v1745
  %1747 = vmatmul.bf16.gmra.mxu0 %v933
  %v1748 = vpop.f32.mrf.mxu0
  %v1749 = vadd.f32 %v1580, %v1748
  %v1750 = vpop.f32.mrf.mxu0
  %v1751 = vadd.f32 %v1582, %v1750
  %1752 = vmatmul.bf16.gmra.mxu0 %v945
  %v1753 = vpop.f32.mrf.mxu0
  %v1754 = vadd.f32 %v1585, %v1753
  %v1755 = vpop.f32.mrf.mxu0
  %v1756 = vadd.f32 %v1587, %v1755
  %1757 = vmatmul.bf16.gmra.mxu0 %v957
  %v1758 = vpop.f32.mrf.mxu0
  %v1759 = vadd.f32 %v1590, %v1758
  %v1760 = vpop.f32.mrf.mxu0
  %v1761 = vadd.f32 %v1592, %v1760
  %1762 = vmatmul.bf16.gmra.mxu0 %v969
  %v1763 = vpop.f32.mrf.mxu0
  %v1764 = vadd.f32 %v1595, %v1763
  %v1765 = vpop.f32.mrf.mxu0
  %v1766 = vadd.f32 %v1597, %v1765
  %1767 = vmatmul.bf16.gmra.mxu0 %v981
  %v1768 = vpop.f32.mrf.mxu0
  %v1769 = vadd.f32 %v1600, %v1768
  %v1770 = vpop.f32.mrf.mxu0
  %v1771 = vadd.f32 %v1602, %v1770
  %1772 = vmatmul.bf16.gmra.mxu0 %v993
  %v1773 = vpop.f32.mrf.mxu0
  %v1774 = vadd.f32 %v1605, %v1773
  %v1775 = vpop.f32.mrf.mxu0
  %v1776 = vadd.f32 %v1607, %v1775
  %1777 = vmatmul.bf16.gmra.mxu0 %v1005
  %v1778 = vpop.f32.mrf.mxu0
  %v1779 = vadd.f32 %v1610, %v1778
  %v1780 = vpop.f32.mrf.mxu0
  %v1781 = vadd.f32 %v1612, %v1780
  %1782 = vmatmul.bf16.gmra.mxu0 %v1017
  %v1783 = vpop.f32.mrf.mxu0
  %v1784 = vadd.f32 %v1615, %v1783
  %v1785 = vpop.f32.mrf.mxu0
  %v1786 = vadd.f32 %v1617, %v1785
  %1787 = vmatmul.bf16.gmra.mxu0 %v1029
  %v1788 = vpop.f32.mrf.mxu0
  %v1789 = vadd.f32 %v1620, %v1788
  %v1790 = vpop.f32.mrf.mxu0
  %v1791 = vadd.f32 %v1622, %v1790
  %1792 = vmatmul.bf16.gmra.mxu0 %v1041
  %v1793 = vpop.f32.mrf.mxu0
  %v1794 = vadd.f32 %v1625, %v1793
  %v1795 = vpop.f32.mrf.mxu0
  %v1796 = vadd.f32 %v1627, %v1795
  %1797 = vmatmul.bf16.gmra.mxu0 %v1053
  %v1798 = vpop.f32.mrf.mxu0
  %v1799 = vadd.f32 %v1630, %v1798
  %v1800 = vpop.f32.mrf.mxu0
  %v1801 = vadd.f32 %v1632, %v1800
  %1802 = vmatmul.bf16.gmra.mxu0 %v1065
  %v1803 = vpop.f32.mrf.mxu0
  %v1804 = vadd.f32 %v1635, %v1803
  %v1805 = vpop.f32.mrf.mxu0
  %v1806 = vadd.f32 %v1637, %v1805
  %1807 = vmatmul.bf16.gmra.mxu0 %v1077
  %v1808 = vpop.f32.mrf.mxu0
  %v1809 = vadd.f32 %v1640, %v1808
  %v1810 = vpop.f32.mrf.mxu0
  %v1811 = vadd.f32 %v1642, %v1810
  %1812 = vmatmul.bf16.gmra.mxu0 %v1089
  %v1813 = vpop.f32.mrf.mxu0
  %v1814 = vadd.f32 %v1645, %v1813
  %v1815 = vpop.f32.mrf.mxu0
  %v1816 = vadd.f32 %v1647, %v1815
  %1817 = vmatmul.bf16.gmra.mxu0 %v1101
  %v1818 = vpop.f32.mrf.mxu0
  %v1819 = vadd.f32 %v1650, %v1818
  %v1820 = vpop.f32.mrf.mxu0
  %v1821 = vadd.f32 %v1652, %v1820
  %1822 = vmatmul.bf16.gmra.mxu0 %v1113
  %v1823 = vpop.f32.mrf.mxu0
  %v1824 = vadd.f32 %v1655, %v1823
  %v1825 = vpop.f32.mrf.mxu0
  %v1826 = vadd.f32 %v1657, %v1825
  %1827 = vmatmul.bf16.gmra.mxu0 %v1125
  %v1828 = vpop.f32.mrf.mxu0
  %v1829 = vadd.f32 %v1660, %v1828
  %v1830 = vpop.f32.mrf.mxu0
  %v1831 = vadd.f32 %v1662, %v1830
  %1832 = vdwg.mxu0
  %1833 = vmatpush.bf16.msra.mxu0 %v1470
  %1834 = vmatpush.bf16.msra.mxu0 %v1469
  %1835 = vmatpush.bf16.msra.mxu0 %v1468
  %1836 = vmatpush.bf16.msra.mxu0 %v1467
  %1837 = vmatpush.bf16.msra.mxu0 %v1466
  %1838 = vmatpush.bf16.msra.mxu0 %v1465
  %1839 = vmatpush.bf16.msra.mxu0 %v1464
  %1840 = vmatpush.bf16.msra.mxu0 %v1463
  %1841 = vmatmul.bf16.gmra.mxu0 %v1225
  %v1842 = vpop.f32.mrf.mxu0
  %v1843 = vadd.f32 %v1674, %v1842
  %v1844 = vpop.f32.mrf.mxu0
  %v1845 = vadd.f32 %v1676, %v1844
  %1846 = vmatmul.bf16.gmra.mxu0 %v1228
  %v1847 = vpop.f32.mrf.mxu0
  %v1848 = vadd.f32 %v1679, %v1847
  %v1849 = vpop.f32.mrf.mxu0
  %v1850 = vadd.f32 %v1681, %v1849
  %1851 = vmatmul.bf16.gmra.mxu0 %v1231
  %v1852 = vpop.f32.mrf.mxu0
  %v1853 = vadd.f32 %v1684, %v1852
  %v1854 = vpop.f32.mrf.mxu0
  %v1855 = vadd.f32 %v1686, %v1854
  %1856 = vmatmul.bf16.gmra.mxu0 %v1234
  %v1857 = vpop.f32.mrf.mxu0
  %v1858 = vadd.f32 %v1689, %v1857
  %v1859 = vpop.f32.mrf.mxu0
  %v1860 = vadd.f32 %v1691, %v1859
  %1861 = vmatmul.bf16.gmra.mxu0 %v1237
  %v1862 = vpop.f32.mrf.mxu0
  %v1863 = vadd.f32 %v1694, %v1862
  %v1864 = vpop.f32.mrf.mxu0
  %v1865 = vadd.f32 %v1696, %v1864
  %1866 = vmatmul.bf16.gmra.mxu0 %v1240
  %v1867 = vpop.f32.mrf.mxu0
  %v1868 = vadd.f32 %v1699, %v1867
  %v1869 = vpop.f32.mrf.mxu0
  %v1870 = vadd.f32 %v1701, %v1869
  %1871 = vmatmul.bf16.gmra.mxu0 %v1243
  %v1872 = vpop.f32.mrf.mxu0
  %v1873 = vadd.f32 %v1704, %v1872
  %v1874 = vpop.f32.mrf.mxu0
  %v1875 = vadd.f32 %v1706, %v1874
  %1876 = vmatmul.bf16.gmra.mxu0 %v1246
  %v1877 = vpop.f32.mrf.mxu0
  %v1878 = vadd.f32 %v1709, %v1877
  %v1879 = vpop.f32.mrf.mxu0
  %v1880 = vadd.f32 %v1711, %v1879
  %1881 = vmatmul.bf16.gmra.mxu0 %v1249
  %v1882 = vpop.f32.mrf.mxu0
  %v1883 = vadd.f32 %v1714, %v1882
  %v1884 = vpop.f32.mrf.mxu0
  %v1885 = vadd.f32 %v1716, %v1884
  %1886 = vmatmul.bf16.gmra.mxu0 %v1252
  %v1887 = vpop.f32.mrf.mxu0
  %v1888 = vadd.f32 %v1719, %v1887
  %v1889 = vpop.f32.mrf.mxu0
  %v1890 = vadd.f32 %v1721, %v1889
  %1891 = vmatmul.bf16.gmra.mxu0 %v1255
  %v1892 = vpop.f32.mrf.mxu0
  %v1893 = vadd.f32 %v1724, %v1892
  %v1894 = vpop.f32.mrf.mxu0
  %v1895 = vadd.f32 %v1726, %v1894
  %1896 = vmatmul.bf16.gmra.mxu0 %v1258
  %v1897 = vpop.f32.mrf.mxu0
  %v1898 = vadd.f32 %v1729, %v1897
  %v1899 = vpop.f32.mrf.mxu0
  %v1900 = vadd.f32 %v1731, %v1899
  %1901 = vmatmul.bf16.gmra.mxu0 %v1261
  %v1902 = vpop.f32.mrf.mxu0
  %v1903 = vadd.f32 %v1734, %v1902
  %v1904 = vpop.f32.mrf.mxu0
  %v1905 = vadd.f32 %v1736, %v1904
  %1906 = vmatmul.bf16.gmra.mxu0 %v1264
  %v1907 = vpop.f32.mrf.mxu0
  %v1908 = vadd.f32 %v1739, %v1907
  %v1909 = vpop.f32.mrf.mxu0
  %v1910 = vadd.f32 %v1741, %v1909
  %1911 = vmatmul.bf16.gmra.mxu0 %v1267
  %v1912 = vpop.f32.mrf.mxu0
  %v1913 = vadd.f32 %v1744, %v1912
  %v1914 = vpop.f32.mrf.mxu0
  %v1915 = vadd.f32 %v1746, %v1914
  %1916 = vmatmul.bf16.gmra.mxu0 %v1270
  %v1917 = vpop.f32.mrf.mxu0
  %v1918 = vadd.f32 %v1749, %v1917
  %v1919 = vpop.f32.mrf.mxu0
  %v1920 = vadd.f32 %v1751, %v1919
  %1921 = vmatmul.bf16.gmra.mxu0 %v1273
  %v1922 = vpop.f32.mrf.mxu0
  %v1923 = vadd.f32 %v1754, %v1922
  %v1924 = vpop.f32.mrf.mxu0
  %v1925 = vadd.f32 %v1756, %v1924
  %1926 = vmatmul.bf16.gmra.mxu0 %v1276
  %v1927 = vpop.f32.mrf.mxu0
  %v1928 = vadd.f32 %v1759, %v1927
  %v1929 = vpop.f32.mrf.mxu0
  %v1930 = vadd.f32 %v1761, %v1929
  %1931 = vmatmul.bf16.gmra.mxu0 %v1279
  %v1932 = vpop.f32.mrf.mxu0
  %v1933 = vadd.f32 %v1764, %v1932
  %v1934 = vpop.f32.mrf.mxu0
  %v1935 = vadd.f32 %v1766, %v1934
  %1936 = vmatmul.bf16.gmra.mxu0 %v1282
  %v1937 = vpop.f32.mrf.mxu0
  %v1938 = vadd.f32 %v1769, %v1937
  %v1939 = vpop.f32.mrf.mxu0
  %v1940 = vadd.f32 %v1771, %v1939
  %1941 = vmatmul.bf16.gmra.mxu0 %v1285
  %v1942 = vpop.f32.mrf.mxu0
  %v1943 = vadd.f32 %v1774, %v1942
  %v1944 = vpop.f32.mrf.mxu0
  %v1945 = vadd.f32 %v1776, %v1944
  %1946 = vmatmul.bf16.gmra.mxu0 %v1288
  %v1947 = vpop.f32.mrf.mxu0
  %v1948 = vadd.f32 %v1779, %v1947
  %v1949 = vpop.f32.mrf.mxu0
  %v1950 = vadd.f32 %v1781, %v1949
  %1951 = vmatmul.bf16.gmra.mxu0 %v1291
  %v1952 = vpop.f32.mrf.mxu0
  %v1953 = vadd.f32 %v1784, %v1952
  %v1954 = vpop.f32.mrf.mxu0
  %v1955 = vadd.f32 %v1786, %v1954
  %1956 = vmatmul.bf16.gmra.mxu0 %v1294
  %v1957 = vpop.f32.mrf.mxu0
  %v1958 = vadd.f32 %v1789, %v1957
  %v1959 = vpop.f32.mrf.mxu0
  %v1960 = vadd.f32 %v1791, %v1959
  %1961 = vmatmul.bf16.gmra.mxu0 %v1297
  %v1962 = vpop.f32.mrf.mxu0
  %v1963 = vadd.f32 %v1794, %v1962
  %v1964 = vpop.f32.mrf.mxu0
  %v1965 = vadd.f32 %v1796, %v1964
  %1966 = vmatmul.bf16.gmra.mxu0 %v1300
  %v1967 = vpop.f32.mrf.mxu0
  %v1968 = vadd.f32 %v1799, %v1967
  %v1969 = vpop.f32.mrf.mxu0
  %v1970 = vadd.f32 %v1801, %v1969
  %1971 = vmatmul.bf16.gmra.mxu0 %v1303
  %v1972 = vpop.f32.mrf.mxu0
  %v1973 = vadd.f32 %v1804, %v1972
  %v1974 = vpop.f32.mrf.mxu0
  %v1975 = vadd.f32 %v1806, %v1974
  %1976 = vmatmul.bf16.gmra.mxu0 %v1306
  %v1977 = vpop.f32.mrf.mxu0
  %v1978 = vadd.f32 %v1809, %v1977
  %v1979 = vpop.f32.mrf.mxu0
  %v1980 = vadd.f32 %v1811, %v1979
  %1981 = vmatmul.bf16.gmra.mxu0 %v1309
  %v1982 = vpop.f32.mrf.mxu0
  %v1983 = vadd.f32 %v1814, %v1982
  %v1984 = vpop.f32.mrf.mxu0
  %v1985 = vadd.f32 %v1816, %v1984
  %1986 = vmatmul.bf16.gmra.mxu0 %v1312
  %v1987 = vpop.f32.mrf.mxu0
  %v1988 = vadd.f32 %v1819, %v1987
  %v1989 = vpop.f32.mrf.mxu0
  %v1990 = vadd.f32 %v1821, %v1989
  %1991 = vmatmul.bf16.gmra.mxu0 %v1315
  %v1992 = vpop.f32.mrf.mxu0
  %v1993 = vadd.f32 %v1824, %v1992
  %v1994 = vpop.f32.mrf.mxu0
  %v1995 = vadd.f32 %v1826, %v1994
  %1996 = vmatmul.bf16.gmra.mxu0 %v1318
  %v1997 = vpop.f32.mrf.mxu0
  %v1998 = vadd.f32 %v1829, %v1997
  %v1999 = vpop.f32.mrf.mxu0
  %v2000 = vadd.f32 %v1831, %v1999
  %2001 = vdwg.mxu0
  %v2050 = vunpack.c.l.b16 %v82
  %v2051 = vunpack.c.l.b16 %v83
  %v2052 = vunpack.c.l.b16 %v84
  %v2053 = vunpack.c.l.b16 %v85
  %v2054 = vunpack.c.l.b16 %v86
  %v2055 = vunpack.c.l.b16 %v87
  %v2056 = vunpack.c.l.b16 %v88
  %v2057 = vunpack.c.l.b16 %v89
  %v2058 = vunpack.c.l.b16 %v90
  %v2059 = vunpack.c.l.b16 %v91
  %v2060 = vunpack.c.l.b16 %v92
  %v2061 = vunpack.c.l.b16 %v93
  %v2062 = vunpack.c.l.b16 %v94
  %v2063 = vunpack.c.l.b16 %v95
  %v2064 = vunpack.c.l.b16 %v96
  %v2065 = vunpack.c.l.b16 %v97
  %v2066 = vunpack.c.l.b16 %v98
  %v2067 = vunpack.c.l.b16 %v99
  %v2068 = vunpack.c.l.b16 %v100
  %v2069 = vunpack.c.l.b16 %v101
  %v2070 = vunpack.c.l.b16 %v102
  %v2071 = vunpack.c.l.b16 %v103
  %v2072 = vunpack.c.l.b16 %v104
  %v2073 = vunpack.c.l.b16 %v105
  %v2074 = vunpack.c.l.b16 %v106
  %v2075 = vunpack.c.l.b16 %v107
  %v2076 = vunpack.c.l.b16 %v108
  %v2077 = vunpack.c.l.b16 %v109
  %v2078 = vunpack.c.l.b16 %v110
  %v2079 = vunpack.c.l.b16 %v111
  %v2080 = vunpack.c.l.b16 %v112
  %v2081 = vunpack.c.l.b16 %v113
  %v2082 = vunpack.c.l.b16 %v114
  %v2083 = vunpack.c.l.b16 %v115
  %v2084 = vunpack.c.l.b16 %v116
  %v2085 = vunpack.c.l.b16 %v117
  %v2086 = vunpack.c.l.b16 %v118
  %v2087 = vunpack.c.l.b16 %v119
  %v2088 = vunpack.c.l.b16 %v120
  %v2089 = vunpack.c.l.b16 %v121
  %v2090 = vunpack.c.l.b16 %v122
  %v2091 = vunpack.c.l.b16 %v123
  %v2092 = vunpack.c.l.b16 %v124
  %v2093 = vunpack.c.l.b16 %v125
  %v2094 = vunpack.c.l.b16 %v126
  %v2095 = vunpack.c.l.b16 %v127
  %v2096 = vunpack.c.l.b16 %v128
  %v2097 = vunpack.c.l.b16 %v129
  %v2098 = vpack.c.b16 %v2051, %v2050
  %v2099 = vpack.c.b16 %v2053, %v2052
  %v2100 = vpack.c.b16 %v2055, %v2054
  %v2101 = vpack.c.b16 %v2057, %v2056
  %v2102 = vpack.c.b16 %v2059, %v2058
  %v2103 = vpack.c.b16 %v2061, %v2060
  %v2104 = vpack.c.b16 %v2063, %v2062
  %v2105 = vpack.c.b16 %v2065, %v2064
  %v2106 = vpack.c.b16 %v2067, %v2066
  %v2107 = vpack.c.b16 %v2069, %v2068
  %v2108 = vpack.c.b16 %v2071, %v2070
  %v2109 = vpack.c.b16 %v2073, %v2072
  %v2110 = vpack.c.b16 %v2075, %v2074
  %v2111 = vpack.c.b16 %v2077, %v2076
  %v2112 = vpack.c.b16 %v2079, %v2078
  %v2113 = vpack.c.b16 %v2081, %v2080
  %v2114 = vpack.c.b16 %v2083, %v2082
  %v2115 = vpack.c.b16 %v2085, %v2084
  %v2116 = vpack.c.b16 %v2087, %v2086
  %v2117 = vpack.c.b16 %v2089, %v2088
  %v2118 = vpack.c.b16 %v2091, %v2090
  %v2119 = vpack.c.b16 %v2093, %v2092
  %v2120 = vpack.c.b16 %v2095, %v2094
  %v2121 = vpack.c.b16 %v2097, %v2096
  %2146 = vmatpush.bf16.msra.mxu0 %v2105
  %2147 = vmatpush.bf16.msra.mxu0 %v2104
  %2148 = vmatpush.bf16.msra.mxu0 %v2103
  %2149 = vmatpush.bf16.msra.mxu0 %v2102
  %2150 = vmatpush.bf16.msra.mxu0 %v2101
  %2151 = vmatpush.bf16.msra.mxu0 %v2100
  %2152 = vmatpush.bf16.msra.mxu0 %v2099
  %2153 = vmatpush.bf16.msra.mxu0 %v2098
  %2154 = vmatmul.bf16.gmra.mxu0 0
  %v2155 = vpop.f32.mrf.mxu0
  %v2156 = vadd.f32 %v1843, %v2155
  %v2157 = vpop.f32.mrf.mxu0
  %v2158 = vadd.f32 %v1845, %v2157
  %2159 = vmatmul.bf16.gmra.mxu0 %v677
  %v2160 = vpop.f32.mrf.mxu0
  %v2161 = vadd.f32 %v1848, %v2160
  %v2162 = vpop.f32.mrf.mxu0
  %v2163 = vadd.f32 %v1850, %v2162
  %2164 = vmatmul.bf16.gmra.mxu0 %v678
  %v2165 = vpop.f32.mrf.mxu0
  %v2166 = vadd.f32 %v1853, %v2165
  %v2167 = vpop.f32.mrf.mxu0
  %v2168 = vadd.f32 %v1855, %v2167
  %2169 = vmatmul.bf16.gmra.mxu0 %v679
  %v2170 = vpop.f32.mrf.mxu0
  %v2171 = vadd.f32 %v1858, %v2170
  %v2172 = vpop.f32.mrf.mxu0
  %v2173 = vadd.f32 %v1860, %v2172
  %2174 = vmatmul.bf16.gmra.mxu0 %v680
  %v2175 = vpop.f32.mrf.mxu0
  %v2176 = vadd.f32 %v1863, %v2175
  %v2177 = vpop.f32.mrf.mxu0
  %v2178 = vadd.f32 %v1865, %v2177
  %2179 = vmatmul.bf16.gmra.mxu0 %v681
  %v2180 = vpop.f32.mrf.mxu0
  %v2181 = vadd.f32 %v1868, %v2180
  %v2182 = vpop.f32.mrf.mxu0
  %v2183 = vadd.f32 %v1870, %v2182
  %2184 = vmatmul.bf16.gmra.mxu0 %v682
  %v2185 = vpop.f32.mrf.mxu0
  %v2186 = vadd.f32 %v1873, %v2185
  %v2187 = vpop.f32.mrf.mxu0
  %v2188 = vadd.f32 %v1875, %v2187
  %2189 = vmatmul.bf16.gmra.mxu0 %v683
  %v2190 = vpop.f32.mrf.mxu0
  %v2191 = vadd.f32 %v1878, %v2190
  %v2192 = vpop.f32.mrf.mxu0
  %v2193 = vadd.f32 %v1880, %v2192
  %2194 = vmatmul.bf16.gmra.mxu0 %v684
  %v2195 = vpop.f32.mrf.mxu0
  %v2196 = vadd.f32 %v1883, %v2195
  %v2197 = vpop.f32.mrf.mxu0
  %v2198 = vadd.f32 %v1885, %v2197
  %2199 = vmatmul.bf16.gmra.mxu0 %v685
  %v2200 = vpop.f32.mrf.mxu0
  %v2201 = vadd.f32 %v1888, %v2200
  %v2202 = vpop.f32.mrf.mxu0
  %v2203 = vadd.f32 %v1890, %v2202
  %2204 = vmatmul.bf16.gmra.mxu0 %v686
  %v2205 = vpop.f32.mrf.mxu0
  %v2206 = vadd.f32 %v1893, %v2205
  %v2207 = vpop.f32.mrf.mxu0
  %v2208 = vadd.f32 %v1895, %v2207
  %2209 = vmatmul.bf16.gmra.mxu0 %v687
  %v2210 = vpop.f32.mrf.mxu0
  %v2211 = vadd.f32 %v1898, %v2210
  %v2212 = vpop.f32.mrf.mxu0
  %v2213 = vadd.f32 %v1900, %v2212
  %2214 = vmatmul.bf16.gmra.mxu0 %v688
  %v2215 = vpop.f32.mrf.mxu0
  %v2216 = vadd.f32 %v1903, %v2215
  %v2217 = vpop.f32.mrf.mxu0
  %v2218 = vadd.f32 %v1905, %v2217
  %2219 = vmatmul.bf16.gmra.mxu0 %v689
  %v2220 = vpop.f32.mrf.mxu0
  %v2221 = vadd.f32 %v1908, %v2220
  %v2222 = vpop.f32.mrf.mxu0
  %v2223 = vadd.f32 %v1910, %v2222
  %2224 = vmatmul.bf16.gmra.mxu0 %v690
  %v2225 = vpop.f32.mrf.mxu0
  %v2226 = vadd.f32 %v1913, %v2225
  %v2227 = vpop.f32.mrf.mxu0
  %v2228 = vadd.f32 %v1915, %v2227
  %2229 = vmatmul.bf16.gmra.mxu0 %v691
  %v2230 = vpop.f32.mrf.mxu0
  %v2231 = vadd.f32 %v1918, %v2230
  %v2232 = vpop.f32.mrf.mxu0
  %v2233 = vadd.f32 %v1920, %v2232
  %2234 = vmatmul.bf16.gmra.mxu0 0
  %v2235 = vpop.f32.mrf.mxu0
  %v2236 = vadd.f32 %v1923, %v2235
  %v2237 = vpop.f32.mrf.mxu0
  %v2238 = vadd.f32 %v1925, %v2237
  %2239 = vmatmul.bf16.gmra.mxu0 %v693
  %v2240 = vpop.f32.mrf.mxu0
  %v2241 = vadd.f32 %v1928, %v2240
  %v2242 = vpop.f32.mrf.mxu0
  %v2243 = vadd.f32 %v1930, %v2242
  %2244 = vmatmul.bf16.gmra.mxu0 %v694
  %v2245 = vpop.f32.mrf.mxu0
  %v2246 = vadd.f32 %v1933, %v2245
  %v2247 = vpop.f32.mrf.mxu0
  %v2248 = vadd.f32 %v1935, %v2247
  %2249 = vmatmul.bf16.gmra.mxu0 %v695
  %v2250 = vpop.f32.mrf.mxu0
  %v2251 = vadd.f32 %v1938, %v2250
  %v2252 = vpop.f32.mrf.mxu0
  %v2253 = vadd.f32 %v1940, %v2252
  %2254 = vmatmul.bf16.gmra.mxu0 %v696
  %v2255 = vpop.f32.mrf.mxu0
  %v2256 = vadd.f32 %v1943, %v2255
  %v2257 = vpop.f32.mrf.mxu0
  %v2258 = vadd.f32 %v1945, %v2257
  %2259 = vmatmul.bf16.gmra.mxu0 %v697
  %v2260 = vpop.f32.mrf.mxu0
  %v2261 = vadd.f32 %v1948, %v2260
  %v2262 = vpop.f32.mrf.mxu0
  %v2263 = vadd.f32 %v1950, %v2262
  %2264 = vmatmul.bf16.gmra.mxu0 %v698
  %v2265 = vpop.f32.mrf.mxu0
  %v2266 = vadd.f32 %v1953, %v2265
  %v2267 = vpop.f32.mrf.mxu0
  %v2268 = vadd.f32 %v1955, %v2267
  %2269 = vmatmul.bf16.gmra.mxu0 %v699
  %v2270 = vpop.f32.mrf.mxu0
  %v2271 = vadd.f32 %v1958, %v2270
  %v2272 = vpop.f32.mrf.mxu0
  %v2273 = vadd.f32 %v1960, %v2272
  %2274 = vmatmul.bf16.gmra.mxu0 %v700
  %v2275 = vpop.f32.mrf.mxu0
  %v2276 = vadd.f32 %v1963, %v2275
  %v2277 = vpop.f32.mrf.mxu0
  %v2278 = vadd.f32 %v1965, %v2277
  %2279 = vmatmul.bf16.gmra.mxu0 %v701
  %v2280 = vpop.f32.mrf.mxu0
  %v2281 = vadd.f32 %v1968, %v2280
  %v2282 = vpop.f32.mrf.mxu0
  %v2283 = vadd.f32 %v1970, %v2282
  %2284 = vmatmul.bf16.gmra.mxu0 %v702
  %v2285 = vpop.f32.mrf.mxu0
  %v2286 = vadd.f32 %v1973, %v2285
  %v2287 = vpop.f32.mrf.mxu0
  %v2288 = vadd.f32 %v1975, %v2287
  %2289 = vmatmul.bf16.gmra.mxu0 %v703
  %v2290 = vpop.f32.mrf.mxu0
  %v2291 = vadd.f32 %v1978, %v2290
  %v2292 = vpop.f32.mrf.mxu0
  %v2293 = vadd.f32 %v1980, %v2292
  %2294 = vmatmul.bf16.gmra.mxu0 %v704
  %v2295 = vpop.f32.mrf.mxu0
  %v2296 = vadd.f32 %v1983, %v2295
  %v2297 = vpop.f32.mrf.mxu0
  %v2298 = vadd.f32 %v1985, %v2297
  %2299 = vmatmul.bf16.gmra.mxu0 %v705
  %v2300 = vpop.f32.mrf.mxu0
  %v2301 = vadd.f32 %v1988, %v2300
  %v2302 = vpop.f32.mrf.mxu0
  %v2303 = vadd.f32 %v1990, %v2302
  %2304 = vmatmul.bf16.gmra.mxu0 %v706
  %v2305 = vpop.f32.mrf.mxu0
  %v2306 = vadd.f32 %v1993, %v2305
  %v2307 = vpop.f32.mrf.mxu0
  %v2308 = vadd.f32 %v1995, %v2307
  %2309 = vmatmul.bf16.gmra.mxu0 %v707
  %v2310 = vpop.f32.mrf.mxu0
  %v2311 = vadd.f32 %v1998, %v2310
  %v2312 = vpop.f32.mrf.mxu0
  %v2313 = vadd.f32 %v2000, %v2312
  %2314 = vdwg.mxu0
  %2315 = vmatpush.bf16.msra.mxu0 %v2113
  %2316 = vmatpush.bf16.msra.mxu0 %v2112
  %2317 = vmatpush.bf16.msra.mxu0 %v2111
  %2318 = vmatpush.bf16.msra.mxu0 %v2110
  %2319 = vmatpush.bf16.msra.mxu0 %v2109
  %2320 = vmatpush.bf16.msra.mxu0 %v2108
  %2321 = vmatpush.bf16.msra.mxu0 %v2107
  %2322 = vmatpush.bf16.msra.mxu0 %v2106
  %2323 = vmatmul.bf16.gmra.mxu0 0
  %v2324 = vpop.f32.mrf.mxu0
  %v2325 = vadd.f32 %v2156, %v2324
  %v2326 = vpop.f32.mrf.mxu0
  %v2327 = vadd.f32 %v2158, %v2326
  %2328 = vmatmul.bf16.gmra.mxu0 %v753
  %v2329 = vpop.f32.mrf.mxu0
  %v2330 = vadd.f32 %v2161, %v2329
  %v2331 = vpop.f32.mrf.mxu0
  %v2332 = vadd.f32 %v2163, %v2331
  %2333 = vmatmul.bf16.gmra.mxu0 %v765
  %v2334 = vpop.f32.mrf.mxu0
  %v2335 = vadd.f32 %v2166, %v2334
  %v2336 = vpop.f32.mrf.mxu0
  %v2337 = vadd.f32 %v2168, %v2336
  %2338 = vmatmul.bf16.gmra.mxu0 %v777
  %v2339 = vpop.f32.mrf.mxu0
  %v2340 = vadd.f32 %v2171, %v2339
  %v2341 = vpop.f32.mrf.mxu0
  %v2342 = vadd.f32 %v2173, %v2341
  %2343 = vmatmul.bf16.gmra.mxu0 %v789
  %v2344 = vpop.f32.mrf.mxu0
  %v2345 = vadd.f32 %v2176, %v2344
  %v2346 = vpop.f32.mrf.mxu0
  %v2347 = vadd.f32 %v2178, %v2346
  %2348 = vmatmul.bf16.gmra.mxu0 %v801
  %v2349 = vpop.f32.mrf.mxu0
  %v2350 = vadd.f32 %v2181, %v2349
  %v2351 = vpop.f32.mrf.mxu0
  %v2352 = vadd.f32 %v2183, %v2351
  %2353 = vmatmul.bf16.gmra.mxu0 %v813
  %v2354 = vpop.f32.mrf.mxu0
  %v2355 = vadd.f32 %v2186, %v2354
  %v2356 = vpop.f32.mrf.mxu0
  %v2357 = vadd.f32 %v2188, %v2356
  %2358 = vmatmul.bf16.gmra.mxu0 %v825
  %v2359 = vpop.f32.mrf.mxu0
  %v2360 = vadd.f32 %v2191, %v2359
  %v2361 = vpop.f32.mrf.mxu0
  %v2362 = vadd.f32 %v2193, %v2361
  %2363 = vmatmul.bf16.gmra.mxu0 %v837
  %v2364 = vpop.f32.mrf.mxu0
  %v2365 = vadd.f32 %v2196, %v2364
  %v2366 = vpop.f32.mrf.mxu0
  %v2367 = vadd.f32 %v2198, %v2366
  %2368 = vmatmul.bf16.gmra.mxu0 %v849
  %v2369 = vpop.f32.mrf.mxu0
  %v2370 = vadd.f32 %v2201, %v2369
  %v2371 = vpop.f32.mrf.mxu0
  %v2372 = vadd.f32 %v2203, %v2371
  %2373 = vmatmul.bf16.gmra.mxu0 %v861
  %v2374 = vpop.f32.mrf.mxu0
  %v2375 = vadd.f32 %v2206, %v2374
  %v2376 = vpop.f32.mrf.mxu0
  %v2377 = vadd.f32 %v2208, %v2376
  %2378 = vmatmul.bf16.gmra.mxu0 %v873
  %v2379 = vpop.f32.mrf.mxu0
  %v2380 = vadd.f32 %v2211, %v2379
  %v2381 = vpop.f32.mrf.mxu0
  %v2382 = vadd.f32 %v2213, %v2381
  %2383 = vmatmul.bf16.gmra.mxu0 %v885
  %v2384 = vpop.f32.mrf.mxu0
  %v2385 = vadd.f32 %v2216, %v2384
  %v2386 = vpop.f32.mrf.mxu0
  %v2387 = vadd.f32 %v2218, %v2386
  %2388 = vmatmul.bf16.gmra.mxu0 %v897
  %v2389 = vpop.f32.mrf.mxu0
  %v2390 = vadd.f32 %v2221, %v2389
  %v2391 = vpop.f32.mrf.mxu0
  %v2392 = vadd.f32 %v2223, %v2391
  %2393 = vmatmul.bf16.gmra.mxu0 %v909
  %v2394 = vpop.f32.mrf.mxu0
  %v2395 = vadd.f32 %v2226, %v2394
  %v2396 = vpop.f32.mrf.mxu0
  %v2397 = vadd.f32 %v2228, %v2396
  %2398 = vmatmul.bf16.gmra.mxu0 %v921
  %v2399 = vpop.f32.mrf.mxu0
  %v2400 = vadd.f32 %v2231, %v2399
  %v2401 = vpop.f32.mrf.mxu0
  %v2402 = vadd.f32 %v2233, %v2401
  %2403 = vmatmul.bf16.gmra.mxu0 0
  %v2404 = vpop.f32.mrf.mxu0
  %v2405 = vadd.f32 %v2236, %v2404
  %v2406 = vpop.f32.mrf.mxu0
  %v2407 = vadd.f32 %v2238, %v2406
  %2408 = vmatmul.bf16.gmra.mxu0 %v945
  %v2409 = vpop.f32.mrf.mxu0
  %v2410 = vadd.f32 %v2241, %v2409
  %v2411 = vpop.f32.mrf.mxu0
  %v2412 = vadd.f32 %v2243, %v2411
  %2413 = vmatmul.bf16.gmra.mxu0 %v957
  %v2414 = vpop.f32.mrf.mxu0
  %v2415 = vadd.f32 %v2246, %v2414
  %v2416 = vpop.f32.mrf.mxu0
  %v2417 = vadd.f32 %v2248, %v2416
  %2418 = vmatmul.bf16.gmra.mxu0 %v969
  %v2419 = vpop.f32.mrf.mxu0
  %v2420 = vadd.f32 %v2251, %v2419
  %v2421 = vpop.f32.mrf.mxu0
  %v2422 = vadd.f32 %v2253, %v2421
  %2423 = vmatmul.bf16.gmra.mxu0 %v981
  %v2424 = vpop.f32.mrf.mxu0
  %v2425 = vadd.f32 %v2256, %v2424
  %v2426 = vpop.f32.mrf.mxu0
  %v2427 = vadd.f32 %v2258, %v2426
  %2428 = vmatmul.bf16.gmra.mxu0 %v993
  %v2429 = vpop.f32.mrf.mxu0
  %v2430 = vadd.f32 %v2261, %v2429
  %v2431 = vpop.f32.mrf.mxu0
  %v2432 = vadd.f32 %v2263, %v2431
  %2433 = vmatmul.bf16.gmra.mxu0 %v1005
  %v2434 = vpop.f32.mrf.mxu0
  %v2435 = vadd.f32 %v2266, %v2434
  %v2436 = vpop.f32.mrf.mxu0
  %v2437 = vadd.f32 %v2268, %v2436
  %2438 = vmatmul.bf16.gmra.mxu0 %v1017
  %v2439 = vpop.f32.mrf.mxu0
  %v2440 = vadd.f32 %v2271, %v2439
  %v2441 = vpop.f32.mrf.mxu0
  %v2442 = vadd.f32 %v2273, %v2441
  %2443 = vmatmul.bf16.gmra.mxu0 %v1029
  %v2444 = vpop.f32.mrf.mxu0
  %v2445 = vadd.f32 %v2276, %v2444
  %v2446 = vpop.f32.mrf.mxu0
  %v2447 = vadd.f32 %v2278, %v2446
  %2448 = vmatmul.bf16.gmra.mxu0 %v1041
  %v2449 = vpop.f32.mrf.mxu0
  %v2450 = vadd.f32 %v2281, %v2449
  %v2451 = vpop.f32.mrf.mxu0
  %v2452 = vadd.f32 %v2283, %v2451
  %2453 = vmatmul.bf16.gmra.mxu0 %v1053
  %v2454 = vpop.f32.mrf.mxu0
  %v2455 = vadd.f32 %v2286, %v2454
  %v2456 = vpop.f32.mrf.mxu0
  %v2457 = vadd.f32 %v2288, %v2456
  %2458 = vmatmul.bf16.gmra.mxu0 %v1065
  %v2459 = vpop.f32.mrf.mxu0
  %v2460 = vadd.f32 %v2291, %v2459
  %v2461 = vpop.f32.mrf.mxu0
  %v2462 = vadd.f32 %v2293, %v2461
  %2463 = vmatmul.bf16.gmra.mxu0 %v1077
  %v2464 = vpop.f32.mrf.mxu0
  %v2465 = vadd.f32 %v2296, %v2464
  %v2466 = vpop.f32.mrf.mxu0
  %v2467 = vadd.f32 %v2298, %v2466
  %2468 = vmatmul.bf16.gmra.mxu0 %v1089
  %v2469 = vpop.f32.mrf.mxu0
  %v2470 = vadd.f32 %v2301, %v2469
  %v2471 = vpop.f32.mrf.mxu0
  %v2472 = vadd.f32 %v2303, %v2471
  %2473 = vmatmul.bf16.gmra.mxu0 %v1101
  %v2474 = vpop.f32.mrf.mxu0
  %v2475 = vadd.f32 %v2306, %v2474
  %v2476 = vpop.f32.mrf.mxu0
  %v2477 = vadd.f32 %v2308, %v2476
  %2478 = vmatmul.bf16.gmra.mxu0 %v1113
  %v2479 = vpop.f32.mrf.mxu0
  %v2480 = vadd.f32 %v2311, %v2479
  %v2481 = vpop.f32.mrf.mxu0
  %v2482 = vadd.f32 %v2313, %v2481
  %2483 = vdwg.mxu0
  %2484 = vmatpush.bf16.msra.mxu0 %v2121
  %2485 = vmatpush.bf16.msra.mxu0 %v2120
  %2486 = vmatpush.bf16.msra.mxu0 %v2119
  %2487 = vmatpush.bf16.msra.mxu0 %v2118
  %2488 = vmatpush.bf16.msra.mxu0 %v2117
  %2489 = vmatpush.bf16.msra.mxu0 %v2116
  %2490 = vmatpush.bf16.msra.mxu0 %v2115
  %2491 = vmatpush.bf16.msra.mxu0 %v2114
  %2492 = vmatmul.bf16.gmra.mxu0 0
  %v2493 = vpop.f32.mrf.mxu0
  %v2494 = vadd.f32 %v2325, %v2493
  %v2495 = vpop.f32.mrf.mxu0
  %v2496 = vadd.f32 %v2327, %v2495
  %2497 = vmatmul.bf16.gmra.mxu0 %v1225
  %v2498 = vpop.f32.mrf.mxu0
  %v2499 = vadd.f32 %v2330, %v2498
  %v2500 = vpop.f32.mrf.mxu0
  %v2501 = vadd.f32 %v2332, %v2500
  %2502 = vmatmul.bf16.gmra.mxu0 %v1228
  %v2503 = vpop.f32.mrf.mxu0
  %v2504 = vadd.f32 %v2335, %v2503
  %v2505 = vpop.f32.mrf.mxu0
  %v2506 = vadd.f32 %v2337, %v2505
  %2507 = vmatmul.bf16.gmra.mxu0 %v1231
  %v2508 = vpop.f32.mrf.mxu0
  %v2509 = vadd.f32 %v2340, %v2508
  %v2510 = vpop.f32.mrf.mxu0
  %v2511 = vadd.f32 %v2342, %v2510
  %2512 = vmatmul.bf16.gmra.mxu0 %v1234
  %v2513 = vpop.f32.mrf.mxu0
  %v2514 = vadd.f32 %v2345, %v2513
  %v2515 = vpop.f32.mrf.mxu0
  %v2516 = vadd.f32 %v2347, %v2515
  %2517 = vmatmul.bf16.gmra.mxu0 %v1237
  %v2518 = vpop.f32.mrf.mxu0
  %v2519 = vadd.f32 %v2350, %v2518
  %v2520 = vpop.f32.mrf.mxu0
  %v2521 = vadd.f32 %v2352, %v2520
  %2522 = vmatmul.bf16.gmra.mxu0 %v1240
  %v2523 = vpop.f32.mrf.mxu0
  %v2524 = vadd.f32 %v2355, %v2523
  %v2525 = vpop.f32.mrf.mxu0
  %v2526 = vadd.f32 %v2357, %v2525
  %2527 = vmatmul.bf16.gmra.mxu0 %v1243
  %v2528 = vpop.f32.mrf.mxu0
  %v2529 = vadd.f32 %v2360, %v2528
  %v2530 = vpop.f32.mrf.mxu0
  %v2531 = vadd.f32 %v2362, %v2530
  %2532 = vmatmul.bf16.gmra.mxu0 %v1246
  %v2533 = vpop.f32.mrf.mxu0
  %v2534 = vadd.f32 %v2365, %v2533
  %v2535 = vpop.f32.mrf.mxu0
  %v2536 = vadd.f32 %v2367, %v2535
  %2537 = vmatmul.bf16.gmra.mxu0 %v1249
  %v2538 = vpop.f32.mrf.mxu0
  %v2539 = vadd.f32 %v2370, %v2538
  %v2540 = vpop.f32.mrf.mxu0
  %v2541 = vadd.f32 %v2372, %v2540
  %2542 = vmatmul.bf16.gmra.mxu0 %v1252
  %v2543 = vpop.f32.mrf.mxu0
  %v2544 = vadd.f32 %v2375, %v2543
  %v2545 = vpop.f32.mrf.mxu0
  %v2546 = vadd.f32 %v2377, %v2545
  %2547 = vmatmul.bf16.gmra.mxu0 %v1255
  %v2548 = vpop.f32.mrf.mxu0
  %v2549 = vadd.f32 %v2380, %v2548
  %v2550 = vpop.f32.mrf.mxu0
  %v2551 = vadd.f32 %v2382, %v2550
  %2552 = vmatmul.bf16.gmra.mxu0 %v1258
  %v2553 = vpop.f32.mrf.mxu0
  %v2554 = vadd.f32 %v2385, %v2553
  %v2555 = vpop.f32.mrf.mxu0
  %v2556 = vadd.f32 %v2387, %v2555
  %2557 = vmatmul.bf16.gmra.mxu0 %v1261
  %v2558 = vpop.f32.mrf.mxu0
  %v2559 = vadd.f32 %v2390, %v2558
  %v2560 = vpop.f32.mrf.mxu0
  %v2561 = vadd.f32 %v2392, %v2560
  %2562 = vmatmul.bf16.gmra.mxu0 %v1264
  %v2563 = vpop.f32.mrf.mxu0
  %v2564 = vadd.f32 %v2395, %v2563
  %v2565 = vpop.f32.mrf.mxu0
  %v2566 = vadd.f32 %v2397, %v2565
  %2567 = vmatmul.bf16.gmra.mxu0 %v1267
  %v2568 = vpop.f32.mrf.mxu0
  %v2569 = vadd.f32 %v2400, %v2568
  %v2570 = vpop.f32.mrf.mxu0
  %v2571 = vadd.f32 %v2402, %v2570
  %2572 = vmatmul.bf16.gmra.mxu0 0
  %v2573 = vpop.f32.mrf.mxu0
  %v2574 = vadd.f32 %v2405, %v2573
  %v2575 = vpop.f32.mrf.mxu0
  %v2576 = vadd.f32 %v2407, %v2575
  %2577 = vmatmul.bf16.gmra.mxu0 %v1273
  %v2578 = vpop.f32.mrf.mxu0
  %v2579 = vadd.f32 %v2410, %v2578
  %v2580 = vpop.f32.mrf.mxu0
  %v2581 = vadd.f32 %v2412, %v2580
  %2582 = vmatmul.bf16.gmra.mxu0 %v1276
  %v2583 = vpop.f32.mrf.mxu0
  %v2584 = vadd.f32 %v2415, %v2583
  %v2585 = vpop.f32.mrf.mxu0
  %v2586 = vadd.f32 %v2417, %v2585
  %2587 = vmatmul.bf16.gmra.mxu0 %v1279
  %v2588 = vpop.f32.mrf.mxu0
  %v2589 = vadd.f32 %v2420, %v2588
  %v2590 = vpop.f32.mrf.mxu0
  %v2591 = vadd.f32 %v2422, %v2590
  %2592 = vmatmul.bf16.gmra.mxu0 %v1282
  %v2593 = vpop.f32.mrf.mxu0
  %v2594 = vadd.f32 %v2425, %v2593
  %v2595 = vpop.f32.mrf.mxu0
  %v2596 = vadd.f32 %v2427, %v2595
  %2597 = vmatmul.bf16.gmra.mxu0 %v1285
  %v2598 = vpop.f32.mrf.mxu0
  %v2599 = vadd.f32 %v2430, %v2598
  %v2600 = vpop.f32.mrf.mxu0
  %v2601 = vadd.f32 %v2432, %v2600
  %2602 = vmatmul.bf16.gmra.mxu0 %v1288
  %v2603 = vpop.f32.mrf.mxu0
  %v2604 = vadd.f32 %v2435, %v2603
  %v2605 = vpop.f32.mrf.mxu0
  %v2606 = vadd.f32 %v2437, %v2605
  %2607 = vmatmul.bf16.gmra.mxu0 %v1291
  %v2608 = vpop.f32.mrf.mxu0
  %v2609 = vadd.f32 %v2440, %v2608
  %v2610 = vpop.f32.mrf.mxu0
  %v2611 = vadd.f32 %v2442, %v2610
  %2612 = vmatmul.bf16.gmra.mxu0 %v1294
  %v2613 = vpop.f32.mrf.mxu0
  %v2614 = vadd.f32 %v2445, %v2613
  %v2615 = vpop.f32.mrf.mxu0
  %v2616 = vadd.f32 %v2447, %v2615
  %2617 = vmatmul.bf16.gmra.mxu0 %v1297
  %v2618 = vpop.f32.mrf.mxu0
  %v2619 = vadd.f32 %v2450, %v2618
  %v2620 = vpop.f32.mrf.mxu0
  %v2621 = vadd.f32 %v2452, %v2620
  %2622 = vmatmul.bf16.gmra.mxu0 %v1300
  %v2623 = vpop.f32.mrf.mxu0
  %v2624 = vadd.f32 %v2455, %v2623
  %v2625 = vpop.f32.mrf.mxu0
  %v2626 = vadd.f32 %v2457, %v2625
  %2627 = vmatmul.bf16.gmra.mxu0 %v1303
  %v2628 = vpop.f32.mrf.mxu0
  %v2629 = vadd.f32 %v2460, %v2628
  %v2630 = vpop.f32.mrf.mxu0
  %v2631 = vadd.f32 %v2462, %v2630
  %2632 = vmatmul.bf16.gmra.mxu0 %v1306
  %v2633 = vpop.f32.mrf.mxu0
  %v2634 = vadd.f32 %v2465, %v2633
  %v2635 = vpop.f32.mrf.mxu0
  %v2636 = vadd.f32 %v2467, %v2635
  %2637 = vmatmul.bf16.gmra.mxu0 %v1309
  %v2638 = vpop.f32.mrf.mxu0
  %v2639 = vadd.f32 %v2470, %v2638
  %v2640 = vpop.f32.mrf.mxu0
  %v2641 = vadd.f32 %v2472, %v2640
  %2642 = vmatmul.bf16.gmra.mxu0 %v1312
  %v2643 = vpop.f32.mrf.mxu0
  %v2644 = vadd.f32 %v2475, %v2643
  %v2645 = vpop.f32.mrf.mxu0
  %v2646 = vadd.f32 %v2477, %v2645
  %2647 = vmatmul.bf16.gmra.mxu0 %v1315
  %v2648 = vpop.f32.mrf.mxu0
  %v2649 = vadd.f32 %v2480, %v2648
  %v2650 = vpop.f32.mrf.mxu0
  %v2651 = vadd.f32 %v2482, %v2650
  %2652 = vdwg.mxu0
  %v2701 = vunpack.c.l.b16 %v178
  %v2702 = vunpack.c.l.b16 %v179
  %v2703 = vunpack.c.l.b16 %v180
  %v2704 = vunpack.c.l.b16 %v181
  %v2705 = vunpack.c.l.b16 %v182
  %v2706 = vunpack.c.l.b16 %v183
  %v2707 = vunpack.c.l.b16 %v184
  %v2708 = vunpack.c.l.b16 %v185
  %v2709 = vunpack.c.l.b16 %v186
  %v2710 = vunpack.c.l.b16 %v187
  %v2711 = vunpack.c.l.b16 %v188
  %v2712 = vunpack.c.l.b16 %v189
  %v2713 = vunpack.c.l.b16 %v190
  %v2714 = vunpack.c.l.b16 %v191
  %v2715 = vunpack.c.l.b16 %v192
  %v2716 = vunpack.c.l.b16 %v193
  %v2717 = vunpack.c.l.b16 %v194
  %v2718 = vunpack.c.l.b16 %v195
  %v2719 = vunpack.c.l.b16 %v196
  %v2720 = vunpack.c.l.b16 %v197
  %v2721 = vunpack.c.l.b16 %v198
  %v2722 = vunpack.c.l.b16 %v199
  %v2723 = vunpack.c.l.b16 %v200
  %v2724 = vunpack.c.l.b16 %v201
  %v2725 = vunpack.c.l.b16 %v202
  %v2726 = vunpack.c.l.b16 %v203
  %v2727 = vunpack.c.l.b16 %v204
  %v2728 = vunpack.c.l.b16 %v205
  %v2729 = vunpack.c.l.b16 %v206
  %v2730 = vunpack.c.l.b16 %v207
  %v2731 = vunpack.c.l.b16 %v208
  %v2732 = vunpack.c.l.b16 %v209
  %v2733 = vunpack.c.l.b16 %v210
  %v2734 = vunpack.c.l.b16 %v211
  %v2735 = vunpack.c.l.b16 %v212
  %v2736 = vunpack.c.l.b16 %v213
  %v2737 = vunpack.c.l.b16 %v214
  %v2738 = vunpack.c.l.b16 %v215
  %v2739 = vunpack.c.l.b16 %v216
  %v2740 = vunpack.c.l.b16 %v217
  %v2741 = vunpack.c.l.b16 %v218
  %v2742 = vunpack.c.l.b16 %v219
  %v2743 = vunpack.c.l.b16 %v220
  %v2744 = vunpack.c.l.b16 %v221
  %v2745 = vunpack.c.l.b16 %v222
  %v2746 = vunpack.c.l.b16 %v223
  %v2747 = vunpack.c.l.b16 %v224
  %v2748 = vunpack.c.l.b16 %v225
  %v2749 = vpack.c.b16 %v2702, %v2701
  %v2750 = vpack.c.b16 %v2704, %v2703
  %v2751 = vpack.c.b16 %v2706, %v2705
  %v2752 = vpack.c.b16 %v2708, %v2707
  %v2753 = vpack.c.b16 %v2710, %v2709
  %v2754 = vpack.c.b16 %v2712, %v2711
  %v2755 = vpack.c.b16 %v2714, %v2713
  %v2756 = vpack.c.b16 %v2716, %v2715
  %v2757 = vpack.c.b16 %v2718, %v2717
  %v2758 = vpack.c.b16 %v2720, %v2719
  %v2759 = vpack.c.b16 %v2722, %v2721
  %v2760 = vpack.c.b16 %v2724, %v2723
  %v2761 = vpack.c.b16 %v2726, %v2725
  %v2762 = vpack.c.b16 %v2728, %v2727
  %v2763 = vpack.c.b16 %v2730, %v2729
  %v2764 = vpack.c.b16 %v2732, %v2731
  %v2765 = vpack.c.b16 %v2734, %v2733
  %v2766 = vpack.c.b16 %v2736, %v2735
  %v2767 = vpack.c.b16 %v2738, %v2737
  %v2768 = vpack.c.b16 %v2740, %v2739
  %v2769 = vpack.c.b16 %v2742, %v2741
  %v2770 = vpack.c.b16 %v2744, %v2743
  %v2771 = vpack.c.b16 %v2746, %v2745
  %v2772 = vpack.c.b16 %v2748, %v2747
  %2797 = vmatpush.bf16.msra.mxu0 %v2756
  %2798 = vmatpush.bf16.msra.mxu0 %v2755
  %2799 = vmatpush.bf16.msra.mxu0 %v2754
  %2800 = vmatpush.bf16.msra.mxu0 %v2753
  %2801 = vmatpush.bf16.msra.mxu0 %v2752
  %2802 = vmatpush.bf16.msra.mxu0 %v2751
  %2803 = vmatpush.bf16.msra.mxu0 %v2750
  %2804 = vmatpush.bf16.msra.mxu0 %v2749
  %2805 = vmatmul.bf16.gmra.mxu0 %v678
  %v2806 = vpop.f32.mrf.mxu0
  %v2807 = vadd.f32 0.0, %v2806
  %v2808 = vpop.f32.mrf.mxu0
  %v2809 = vadd.f32 0.0, %v2808
  %2810 = vmatmul.bf16.gmra.mxu0 %v679
  %v2811 = vpop.f32.mrf.mxu0
  %v2812 = vadd.f32 0.0, %v2811
  %v2813 = vpop.f32.mrf.mxu0
  %v2814 = vadd.f32 0.0, %v2813
  %2815 = vmatmul.bf16.gmra.mxu0 %v680
  %v2816 = vpop.f32.mrf.mxu0
  %v2817 = vadd.f32 0.0, %v2816
  %v2818 = vpop.f32.mrf.mxu0
  %v2819 = vadd.f32 0.0, %v2818
  %2820 = vmatmul.bf16.gmra.mxu0 %v681
  %v2821 = vpop.f32.mrf.mxu0
  %v2822 = vadd.f32 0.0, %v2821
  %v2823 = vpop.f32.mrf.mxu0
  %v2824 = vadd.f32 0.0, %v2823
  %2825 = vmatmul.bf16.gmra.mxu0 %v682
  %v2826 = vpop.f32.mrf.mxu0
  %v2827 = vadd.f32 0.0, %v2826
  %v2828 = vpop.f32.mrf.mxu0
  %v2829 = vadd.f32 0.0, %v2828
  %2830 = vmatmul.bf16.gmra.mxu0 %v683
  %v2831 = vpop.f32.mrf.mxu0
  %v2832 = vadd.f32 0.0, %v2831
  %v2833 = vpop.f32.mrf.mxu0
  %v2834 = vadd.f32 0.0, %v2833
  %2835 = vmatmul.bf16.gmra.mxu0 %v684
  %v2836 = vpop.f32.mrf.mxu0
  %v2837 = vadd.f32 0.0, %v2836
  %v2838 = vpop.f32.mrf.mxu0
  %v2839 = vadd.f32 0.0, %v2838
  %2840 = vmatmul.bf16.gmra.mxu0 %v685
  %v2841 = vpop.f32.mrf.mxu0
  %v2842 = vadd.f32 0.0, %v2841
  %v2843 = vpop.f32.mrf.mxu0
  %v2844 = vadd.f32 0.0, %v2843
  %2845 = vmatmul.bf16.gmra.mxu0 %v686
  %v2846 = vpop.f32.mrf.mxu0
  %v2847 = vadd.f32 0.0, %v2846
  %v2848 = vpop.f32.mrf.mxu0
  %v2849 = vadd.f32 0.0, %v2848
  %2850 = vmatmul.bf16.gmra.mxu0 %v687
  %v2851 = vpop.f32.mrf.mxu0
  %v2852 = vadd.f32 0.0, %v2851
  %v2853 = vpop.f32.mrf.mxu0
  %v2854 = vadd.f32 0.0, %v2853
  %2855 = vmatmul.bf16.gmra.mxu0 %v688
  %v2856 = vpop.f32.mrf.mxu0
  %v2857 = vadd.f32 0.0, %v2856
  %v2858 = vpop.f32.mrf.mxu0
  %v2859 = vadd.f32 0.0, %v2858
  %2860 = vmatmul.bf16.gmra.mxu0 %v689
  %v2861 = vpop.f32.mrf.mxu0
  %v2862 = vadd.f32 0.0, %v2861
  %v2863 = vpop.f32.mrf.mxu0
  %v2864 = vadd.f32 0.0, %v2863
  %2865 = vmatmul.bf16.gmra.mxu0 %v690
  %v2866 = vpop.f32.mrf.mxu0
  %v2867 = vadd.f32 0.0, %v2866
  %v2868 = vpop.f32.mrf.mxu0
  %v2869 = vadd.f32 0.0, %v2868
  %2870 = vmatmul.bf16.gmra.mxu0 %v691
  %v2871 = vpop.f32.mrf.mxu0
  %v2872 = vadd.f32 0.0, %v2871
  %v2873 = vpop.f32.mrf.mxu0
  %v2874 = vadd.f32 0.0, %v2873
  %2875 = vmatmul.bf16.gmra.mxu0 %v692
  %v2876 = vpop.f32.mrf.mxu0
  %v2877 = vadd.f32 0.0, %v2876
  %v2878 = vpop.f32.mrf.mxu0
  %v2879 = vadd.f32 0.0, %v2878
  %2880 = vmatmul.bf16.gmra.mxu0 0
  %v2881 = vpop.f32.mrf.mxu0
  %v2882 = vadd.f32 0.0, %v2881
  %v2883 = vpop.f32.mrf.mxu0
  %v2884 = vadd.f32 0.0, %v2883
  %2885 = vmatmul.bf16.gmra.mxu0 %v694
  %v2886 = vpop.f32.mrf.mxu0
  %v2887 = vadd.f32 0.0, %v2886
  %v2888 = vpop.f32.mrf.mxu0
  %v2889 = vadd.f32 0.0, %v2888
  %2890 = vmatmul.bf16.gmra.mxu0 %v695
  %v2891 = vpop.f32.mrf.mxu0
  %v2892 = vadd.f32 0.0, %v2891
  %v2893 = vpop.f32.mrf.mxu0
  %v2894 = vadd.f32 0.0, %v2893
  %2895 = vmatmul.bf16.gmra.mxu0 %v696
  %v2896 = vpop.f32.mrf.mxu0
  %v2897 = vadd.f32 0.0, %v2896
  %v2898 = vpop.f32.mrf.mxu0
  %v2899 = vadd.f32 0.0, %v2898
  %2900 = vmatmul.bf16.gmra.mxu0 %v697
  %v2901 = vpop.f32.mrf.mxu0
  %v2902 = vadd.f32 0.0, %v2901
  %v2903 = vpop.f32.mrf.mxu0
  %v2904 = vadd.f32 0.0, %v2903
  %2905 = vmatmul.bf16.gmra.mxu0 %v698
  %v2906 = vpop.f32.mrf.mxu0
  %v2907 = vadd.f32 0.0, %v2906
  %v2908 = vpop.f32.mrf.mxu0
  %v2909 = vadd.f32 0.0, %v2908
  %2910 = vmatmul.bf16.gmra.mxu0 %v699
  %v2911 = vpop.f32.mrf.mxu0
  %v2912 = vadd.f32 0.0, %v2911
  %v2913 = vpop.f32.mrf.mxu0
  %v2914 = vadd.f32 0.0, %v2913
  %2915 = vmatmul.bf16.gmra.mxu0 %v700
  %v2916 = vpop.f32.mrf.mxu0
  %v2917 = vadd.f32 0.0, %v2916
  %v2918 = vpop.f32.mrf.mxu0
  %v2919 = vadd.f32 0.0, %v2918
  %2920 = vmatmul.bf16.gmra.mxu0 %v701
  %v2921 = vpop.f32.mrf.mxu0
  %v2922 = vadd.f32 0.0, %v2921
  %v2923 = vpop.f32.mrf.mxu0
  %v2924 = vadd.f32 0.0, %v2923
  %2925 = vmatmul.bf16.gmra.mxu0 %v702
  %v2926 = vpop.f32.mrf.mxu0
  %v2927 = vadd.f32 0.0, %v2926
  %v2928 = vpop.f32.mrf.mxu0
  %v2929 = vadd.f32 0.0, %v2928
  %2930 = vmatmul.bf16.gmra.mxu0 %v703
  %v2931 = vpop.f32.mrf.mxu0
  %v2932 = vadd.f32 0.0, %v2931
  %v2933 = vpop.f32.mrf.mxu0
  %v2934 = vadd.f32 0.0, %v2933
  %2935 = vmatmul.bf16.gmra.mxu0 %v704
  %v2936 = vpop.f32.mrf.mxu0
  %v2937 = vadd.f32 0.0, %v2936
  %v2938 = vpop.f32.mrf.mxu0
  %v2939 = vadd.f32 0.0, %v2938
  %2940 = vmatmul.bf16.gmra.mxu0 %v705
  %v2941 = vpop.f32.mrf.mxu0
  %v2942 = vadd.f32 0.0, %v2941
  %v2943 = vpop.f32.mrf.mxu0
  %v2944 = vadd.f32 0.0, %v2943
  %2945 = vmatmul.bf16.gmra.mxu0 %v706
  %v2946 = vpop.f32.mrf.mxu0
  %v2947 = vadd.f32 0.0, %v2946
  %v2948 = vpop.f32.mrf.mxu0
  %v2949 = vadd.f32 0.0, %v2948
  %2950 = vmatmul.bf16.gmra.mxu0 %v707
  %v2951 = vpop.f32.mrf.mxu0
  %v2952 = vadd.f32 0.0, %v2951
  %v2953 = vpop.f32.mrf.mxu0
  %v2954 = vadd.f32 0.0, %v2953
  %2955 = vmatmul.bf16.gmra.mxu0 %v708
  %v2956 = vpop.f32.mrf.mxu0
  %v2957 = vadd.f32 0.0, %v2956
  %v2958 = vpop.f32.mrf.mxu0
  %v2959 = vadd.f32 0.0, %v2958
  %2960 = vmatmul.bf16.gmra.mxu0 0
  %v2961 = vpop.f32.mrf.mxu0
  %v2962 = vadd.f32 0.0, %v2961
  %v2963 = vpop.f32.mrf.mxu0
  %v2964 = vadd.f32 0.0, %v2963
  %2965 = vdwg.mxu0
  %2966 = vmatpush.bf16.msra.mxu0 %v2764
  %2967 = vmatpush.bf16.msra.mxu0 %v2763
  %2968 = vmatpush.bf16.msra.mxu0 %v2762
  %2969 = vmatpush.bf16.msra.mxu0 %v2761
  %2970 = vmatpush.bf16.msra.mxu0 %v2760
  %2971 = vmatpush.bf16.msra.mxu0 %v2759
  %2972 = vmatpush.bf16.msra.mxu0 %v2758
  %2973 = vmatpush.bf16.msra.mxu0 %v2757
  %2974 = vmatmul.bf16.gmra.mxu0 %v765
  %v2975 = vpop.f32.mrf.mxu0
  %v2976 = vadd.f32 %v2807, %v2975
  %v2977 = vpop.f32.mrf.mxu0
  %v2978 = vadd.f32 %v2809, %v2977
  %2979 = vmatmul.bf16.gmra.mxu0 %v777
  %v2980 = vpop.f32.mrf.mxu0
  %v2981 = vadd.f32 %v2812, %v2980
  %v2982 = vpop.f32.mrf.mxu0
  %v2983 = vadd.f32 %v2814, %v2982
  %2984 = vmatmul.bf16.gmra.mxu0 %v789
  %v2985 = vpop.f32.mrf.mxu0
  %v2986 = vadd.f32 %v2817, %v2985
  %v2987 = vpop.f32.mrf.mxu0
  %v2988 = vadd.f32 %v2819, %v2987
  %2989 = vmatmul.bf16.gmra.mxu0 %v801
  %v2990 = vpop.f32.mrf.mxu0
  %v2991 = vadd.f32 %v2822, %v2990
  %v2992 = vpop.f32.mrf.mxu0
  %v2993 = vadd.f32 %v2824, %v2992
  %2994 = vmatmul.bf16.gmra.mxu0 %v813
  %v2995 = vpop.f32.mrf.mxu0
  %v2996 = vadd.f32 %v2827, %v2995
  %v2997 = vpop.f32.mrf.mxu0
  %v2998 = vadd.f32 %v2829, %v2997
  %2999 = vmatmul.bf16.gmra.mxu0 %v825
  %v3000 = vpop.f32.mrf.mxu0
  %v3001 = vadd.f32 %v2832, %v3000
  %v3002 = vpop.f32.mrf.mxu0
  %v3003 = vadd.f32 %v2834, %v3002
  %3004 = vmatmul.bf16.gmra.mxu0 %v837
  %v3005 = vpop.f32.mrf.mxu0
  %v3006 = vadd.f32 %v2837, %v3005
  %v3007 = vpop.f32.mrf.mxu0
  %v3008 = vadd.f32 %v2839, %v3007
  %3009 = vmatmul.bf16.gmra.mxu0 %v849
  %v3010 = vpop.f32.mrf.mxu0
  %v3011 = vadd.f32 %v2842, %v3010
  %v3012 = vpop.f32.mrf.mxu0
  %v3013 = vadd.f32 %v2844, %v3012
  %3014 = vmatmul.bf16.gmra.mxu0 %v861
  %v3015 = vpop.f32.mrf.mxu0
  %v3016 = vadd.f32 %v2847, %v3015
  %v3017 = vpop.f32.mrf.mxu0
  %v3018 = vadd.f32 %v2849, %v3017
  %3019 = vmatmul.bf16.gmra.mxu0 %v873
  %v3020 = vpop.f32.mrf.mxu0
  %v3021 = vadd.f32 %v2852, %v3020
  %v3022 = vpop.f32.mrf.mxu0
  %v3023 = vadd.f32 %v2854, %v3022
  %3024 = vmatmul.bf16.gmra.mxu0 %v885
  %v3025 = vpop.f32.mrf.mxu0
  %v3026 = vadd.f32 %v2857, %v3025
  %v3027 = vpop.f32.mrf.mxu0
  %v3028 = vadd.f32 %v2859, %v3027
  %3029 = vmatmul.bf16.gmra.mxu0 %v897
  %v3030 = vpop.f32.mrf.mxu0
  %v3031 = vadd.f32 %v2862, %v3030
  %v3032 = vpop.f32.mrf.mxu0
  %v3033 = vadd.f32 %v2864, %v3032
  %3034 = vmatmul.bf16.gmra.mxu0 %v909
  %v3035 = vpop.f32.mrf.mxu0
  %v3036 = vadd.f32 %v2867, %v3035
  %v3037 = vpop.f32.mrf.mxu0
  %v3038 = vadd.f32 %v2869, %v3037
  %3039 = vmatmul.bf16.gmra.mxu0 %v921
  %v3040 = vpop.f32.mrf.mxu0
  %v3041 = vadd.f32 %v2872, %v3040
  %v3042 = vpop.f32.mrf.mxu0
  %v3043 = vadd.f32 %v2874, %v3042
  %3044 = vmatmul.bf16.gmra.mxu0 %v933
  %v3045 = vpop.f32.mrf.mxu0
  %v3046 = vadd.f32 %v2877, %v3045
  %v3047 = vpop.f32.mrf.mxu0
  %v3048 = vadd.f32 %v2879, %v3047
  %3049 = vmatmul.bf16.gmra.mxu0 0
  %v3050 = vpop.f32.mrf.mxu0
  %v3051 = vadd.f32 %v2882, %v3050
  %v3052 = vpop.f32.mrf.mxu0
  %v3053 = vadd.f32 %v2884, %v3052
  %3054 = vmatmul.bf16.gmra.mxu0 %v957
  %v3055 = vpop.f32.mrf.mxu0
  %v3056 = vadd.f32 %v2887, %v3055
  %v3057 = vpop.f32.mrf.mxu0
  %v3058 = vadd.f32 %v2889, %v3057
  %3059 = vmatmul.bf16.gmra.mxu0 %v969
  %v3060 = vpop.f32.mrf.mxu0
  %v3061 = vadd.f32 %v2892, %v3060
  %v3062 = vpop.f32.mrf.mxu0
  %v3063 = vadd.f32 %v2894, %v3062
  %3064 = vmatmul.bf16.gmra.mxu0 %v981
  %v3065 = vpop.f32.mrf.mxu0
  %v3066 = vadd.f32 %v2897, %v3065
  %v3067 = vpop.f32.mrf.mxu0
  %v3068 = vadd.f32 %v2899, %v3067
  %3069 = vmatmul.bf16.gmra.mxu0 %v993
  %v3070 = vpop.f32.mrf.mxu0
  %v3071 = vadd.f32 %v2902, %v3070
  %v3072 = vpop.f32.mrf.mxu0
  %v3073 = vadd.f32 %v2904, %v3072
  %3074 = vmatmul.bf16.gmra.mxu0 %v1005
  %v3075 = vpop.f32.mrf.mxu0
  %v3076 = vadd.f32 %v2907, %v3075
  %v3077 = vpop.f32.mrf.mxu0
  %v3078 = vadd.f32 %v2909, %v3077
  %3079 = vmatmul.bf16.gmra.mxu0 %v1017
  %v3080 = vpop.f32.mrf.mxu0
  %v3081 = vadd.f32 %v2912, %v3080
  %v3082 = vpop.f32.mrf.mxu0
  %v3083 = vadd.f32 %v2914, %v3082
  %3084 = vmatmul.bf16.gmra.mxu0 %v1029
  %v3085 = vpop.f32.mrf.mxu0
  %v3086 = vadd.f32 %v2917, %v3085
  %v3087 = vpop.f32.mrf.mxu0
  %v3088 = vadd.f32 %v2919, %v3087
  %3089 = vmatmul.bf16.gmra.mxu0 %v1041
  %v3090 = vpop.f32.mrf.mxu0
  %v3091 = vadd.f32 %v2922, %v3090
  %v3092 = vpop.f32.mrf.mxu0
  %v3093 = vadd.f32 %v2924, %v3092
  %3094 = vmatmul.bf16.gmra.mxu0 %v1053
  %v3095 = vpop.f32.mrf.mxu0
  %v3096 = vadd.f32 %v2927, %v3095
  %v3097 = vpop.f32.mrf.mxu0
  %v3098 = vadd.f32 %v2929, %v3097
  %3099 = vmatmul.bf16.gmra.mxu0 %v1065
  %v3100 = vpop.f32.mrf.mxu0
  %v3101 = vadd.f32 %v2932, %v3100
  %v3102 = vpop.f32.mrf.mxu0
  %v3103 = vadd.f32 %v2934, %v3102
  %3104 = vmatmul.bf16.gmra.mxu0 %v1077
  %v3105 = vpop.f32.mrf.mxu0
  %v3106 = vadd.f32 %v2937, %v3105
  %v3107 = vpop.f32.mrf.mxu0
  %v3108 = vadd.f32 %v2939, %v3107
  %3109 = vmatmul.bf16.gmra.mxu0 %v1089
  %v3110 = vpop.f32.mrf.mxu0
  %v3111 = vadd.f32 %v2942, %v3110
  %v3112 = vpop.f32.mrf.mxu0
  %v3113 = vadd.f32 %v2944, %v3112
  %3114 = vmatmul.bf16.gmra.mxu0 %v1101
  %v3115 = vpop.f32.mrf.mxu0
  %v3116 = vadd.f32 %v2947, %v3115
  %v3117 = vpop.f32.mrf.mxu0
  %v3118 = vadd.f32 %v2949, %v3117
  %3119 = vmatmul.bf16.gmra.mxu0 %v1113
  %v3120 = vpop.f32.mrf.mxu0
  %v3121 = vadd.f32 %v2952, %v3120
  %v3122 = vpop.f32.mrf.mxu0
  %v3123 = vadd.f32 %v2954, %v3122
  %3124 = vmatmul.bf16.gmra.mxu0 %v1125
  %v3125 = vpop.f32.mrf.mxu0
  %v3126 = vadd.f32 %v2957, %v3125
  %v3127 = vpop.f32.mrf.mxu0
  %v3128 = vadd.f32 %v2959, %v3127
  %3129 = vmatmul.bf16.gmra.mxu0 0
  %v3130 = vpop.f32.mrf.mxu0
  %v3131 = vadd.f32 %v2962, %v3130
  %v3132 = vpop.f32.mrf.mxu0
  %v3133 = vadd.f32 %v2964, %v3132
  %3134 = vdwg.mxu0
  %3135 = vmatpush.bf16.msra.mxu0 %v2772
  %3136 = vmatpush.bf16.msra.mxu0 %v2771
  %3137 = vmatpush.bf16.msra.mxu0 %v2770
  %3138 = vmatpush.bf16.msra.mxu0 %v2769
  %3139 = vmatpush.bf16.msra.mxu0 %v2768
  %3140 = vmatpush.bf16.msra.mxu0 %v2767
  %3141 = vmatpush.bf16.msra.mxu0 %v2766
  %3142 = vmatpush.bf16.msra.mxu0 %v2765
  %3143 = vmatmul.bf16.gmra.mxu0 %v1228
  %v3144 = vpop.f32.mrf.mxu0
  %v3145 = vadd.f32 %v2976, %v3144
  %v3146 = vpop.f32.mrf.mxu0
  %v3147 = vadd.f32 %v2978, %v3146
  %3148 = vmatmul.bf16.gmra.mxu0 %v1231
  %v3149 = vpop.f32.mrf.mxu0
  %v3150 = vadd.f32 %v2981, %v3149
  %v3151 = vpop.f32.mrf.mxu0
  %v3152 = vadd.f32 %v2983, %v3151
  %3153 = vmatmul.bf16.gmra.mxu0 %v1234
  %v3154 = vpop.f32.mrf.mxu0
  %v3155 = vadd.f32 %v2986, %v3154
  %v3156 = vpop.f32.mrf.mxu0
  %v3157 = vadd.f32 %v2988, %v3156
  %3158 = vmatmul.bf16.gmra.mxu0 %v1237
  %v3159 = vpop.f32.mrf.mxu0
  %v3160 = vadd.f32 %v2991, %v3159
  %v3161 = vpop.f32.mrf.mxu0
  %v3162 = vadd.f32 %v2993, %v3161
  %3163 = vmatmul.bf16.gmra.mxu0 %v1240
  %v3164 = vpop.f32.mrf.mxu0
  %v3165 = vadd.f32 %v2996, %v3164
  %v3166 = vpop.f32.mrf.mxu0
  %v3167 = vadd.f32 %v2998, %v3166
  %3168 = vmatmul.bf16.gmra.mxu0 %v1243
  %v3169 = vpop.f32.mrf.mxu0
  %v3170 = vadd.f32 %v3001, %v3169
  %v3171 = vpop.f32.mrf.mxu0
  %v3172 = vadd.f32 %v3003, %v3171
  %3173 = vmatmul.bf16.gmra.mxu0 %v1246
  %v3174 = vpop.f32.mrf.mxu0
  %v3175 = vadd.f32 %v3006, %v3174
  %v3176 = vpop.f32.mrf.mxu0
  %v3177 = vadd.f32 %v3008, %v3176
  %3178 = vmatmul.bf16.gmra.mxu0 %v1249
  %v3179 = vpop.f32.mrf.mxu0
  %v3180 = vadd.f32 %v3011, %v3179
  %v3181 = vpop.f32.mrf.mxu0
  %v3182 = vadd.f32 %v3013, %v3181
  %3183 = vmatmul.bf16.gmra.mxu0 %v1252
  %v3184 = vpop.f32.mrf.mxu0
  %v3185 = vadd.f32 %v3016, %v3184
  %v3186 = vpop.f32.mrf.mxu0
  %v3187 = vadd.f32 %v3018, %v3186
  %3188 = vmatmul.bf16.gmra.mxu0 %v1255
  %v3189 = vpop.f32.mrf.mxu0
  %v3190 = vadd.f32 %v3021, %v3189
  %v3191 = vpop.f32.mrf.mxu0
  %v3192 = vadd.f32 %v3023, %v3191
  %3193 = vmatmul.bf16.gmra.mxu0 %v1258
  %v3194 = vpop.f32.mrf.mxu0
  %v3195 = vadd.f32 %v3026, %v3194
  %v3196 = vpop.f32.mrf.mxu0
  %v3197 = vadd.f32 %v3028, %v3196
  %3198 = vmatmul.bf16.gmra.mxu0 %v1261
  %v3199 = vpop.f32.mrf.mxu0
  %v3200 = vadd.f32 %v3031, %v3199
  %v3201 = vpop.f32.mrf.mxu0
  %v3202 = vadd.f32 %v3033, %v3201
  %3203 = vmatmul.bf16.gmra.mxu0 %v1264
  %v3204 = vpop.f32.mrf.mxu0
  %v3205 = vadd.f32 %v3036, %v3204
  %v3206 = vpop.f32.mrf.mxu0
  %v3207 = vadd.f32 %v3038, %v3206
  %3208 = vmatmul.bf16.gmra.mxu0 %v1267
  %v3209 = vpop.f32.mrf.mxu0
  %v3210 = vadd.f32 %v3041, %v3209
  %v3211 = vpop.f32.mrf.mxu0
  %v3212 = vadd.f32 %v3043, %v3211
  %3213 = vmatmul.bf16.gmra.mxu0 %v1270
  %v3214 = vpop.f32.mrf.mxu0
  %v3215 = vadd.f32 %v3046, %v3214
  %v3216 = vpop.f32.mrf.mxu0
  %v3217 = vadd.f32 %v3048, %v3216
  %3218 = vmatmul.bf16.gmra.mxu0 0
  %v3219 = vpop.f32.mrf.mxu0
  %v3220 = vadd.f32 %v3051, %v3219
  %v3221 = vpop.f32.mrf.mxu0
  %v3222 = vadd.f32 %v3053, %v3221
  %3223 = vmatmul.bf16.gmra.mxu0 %v1276
  %v3224 = vpop.f32.mrf.mxu0
  %v3225 = vadd.f32 %v3056, %v3224
  %v3226 = vpop.f32.mrf.mxu0
  %v3227 = vadd.f32 %v3058, %v3226
  %3228 = vmatmul.bf16.gmra.mxu0 %v1279
  %v3229 = vpop.f32.mrf.mxu0
  %v3230 = vadd.f32 %v3061, %v3229
  %v3231 = vpop.f32.mrf.mxu0
  %v3232 = vadd.f32 %v3063, %v3231
  %3233 = vmatmul.bf16.gmra.mxu0 %v1282
  %v3234 = vpop.f32.mrf.mxu0
  %v3235 = vadd.f32 %v3066, %v3234
  %v3236 = vpop.f32.mrf.mxu0
  %v3237 = vadd.f32 %v3068, %v3236
  %3238 = vmatmul.bf16.gmra.mxu0 %v1285
  %v3239 = vpop.f32.mrf.mxu0
  %v3240 = vadd.f32 %v3071, %v3239
  %v3241 = vpop.f32.mrf.mxu0
  %v3242 = vadd.f32 %v3073, %v3241
  %3243 = vmatmul.bf16.gmra.mxu0 %v1288
  %v3244 = vpop.f32.mrf.mxu0
  %v3245 = vadd.f32 %v3076, %v3244
  %v3246 = vpop.f32.mrf.mxu0
  %v3247 = vadd.f32 %v3078, %v3246
  %3248 = vmatmul.bf16.gmra.mxu0 %v1291
  %v3249 = vpop.f32.mrf.mxu0
  %v3250 = vadd.f32 %v3081, %v3249
  %v3251 = vpop.f32.mrf.mxu0
  %v3252 = vadd.f32 %v3083, %v3251
  %3253 = vmatmul.bf16.gmra.mxu0 %v1294
  %v3254 = vpop.f32.mrf.mxu0
  %v3255 = vadd.f32 %v3086, %v3254
  %v3256 = vpop.f32.mrf.mxu0
  %v3257 = vadd.f32 %v3088, %v3256
  %3258 = vmatmul.bf16.gmra.mxu0 %v1297
  %v3259 = vpop.f32.mrf.mxu0
  %v3260 = vadd.f32 %v3091, %v3259
  %v3261 = vpop.f32.mrf.mxu0
  %v3262 = vadd.f32 %v3093, %v3261
  %3263 = vmatmul.bf16.gmra.mxu0 %v1300
  %v3264 = vpop.f32.mrf.mxu0
  %v3265 = vadd.f32 %v3096, %v3264
  %v3266 = vpop.f32.mrf.mxu0
  %v3267 = vadd.f32 %v3098, %v3266
  %3268 = vmatmul.bf16.gmra.mxu0 %v1303
  %v3269 = vpop.f32.mrf.mxu0
  %v3270 = vadd.f32 %v3101, %v3269
  %v3271 = vpop.f32.mrf.mxu0
  %v3272 = vadd.f32 %v3103, %v3271
  %3273 = vmatmul.bf16.gmra.mxu0 %v1306
  %v3274 = vpop.f32.mrf.mxu0
  %v3275 = vadd.f32 %v3106, %v3274
  %v3276 = vpop.f32.mrf.mxu0
  %v3277 = vadd.f32 %v3108, %v3276
  %3278 = vmatmul.bf16.gmra.mxu0 %v1309
  %v3279 = vpop.f32.mrf.mxu0
  %v3280 = vadd.f32 %v3111, %v3279
  %v3281 = vpop.f32.mrf.mxu0
  %v3282 = vadd.f32 %v3113, %v3281
  %3283 = vmatmul.bf16.gmra.mxu0 %v1312
  %v3284 = vpop.f32.mrf.mxu0
  %v3285 = vadd.f32 %v3116, %v3284
  %v3286 = vpop.f32.mrf.mxu0
  %v3287 = vadd.f32 %v3118, %v3286
  %3288 = vmatmul.bf16.gmra.mxu0 %v1315
  %v3289 = vpop.f32.mrf.mxu0
  %v3290 = vadd.f32 %v3121, %v3289
  %v3291 = vpop.f32.mrf.mxu0
  %v3292 = vadd.f32 %v3123, %v3291
  %3293 = vmatmul.bf16.gmra.mxu0 %v1318
  %v3294 = vpop.f32.mrf.mxu0
  %v3295 = vadd.f32 %v3126, %v3294
  %v3296 = vpop.f32.mrf.mxu0
  %v3297 = vadd.f32 %v3128, %v3296
  %3298 = vmatmul.bf16.gmra.mxu0 0
  %v3299 = vpop.f32.mrf.mxu0
  %v3300 = vadd.f32 %v3131, %v3299
  %v3301 = vpop.f32.mrf.mxu0
  %v3302 = vadd.f32 %v3133, %v3301
  %3303 = vdwg.mxu0
  %v3304 = vadd.f32 %v2494, %v3145
  %v3305 = vadd.f32 %v2496, %v3147
  %v3306 = vadd.f32 %v2499, %v3150
  %v3307 = vadd.f32 %v2501, %v3152
  %v3308 = vadd.f32 %v2504, %v3155
  %v3309 = vadd.f32 %v2506, %v3157
  %v3310 = vadd.f32 %v2509, %v3160
  %v3311 = vadd.f32 %v2511, %v3162
  %v3312 = vadd.f32 %v2514, %v3165
  %v3313 = vadd.f32 %v2516, %v3167
  %v3314 = vadd.f32 %v2519, %v3170
  %v3315 = vadd.f32 %v2521, %v3172
  %v3316 = vadd.f32 %v2524, %v3175
  %v3317 = vadd.f32 %v2526, %v3177
  %v3318 = vadd.f32 %v2529, %v3180
  %v3319 = vadd.f32 %v2531, %v3182
  %v3320 = vadd.f32 %v2534, %v3185
  %v3321 = vadd.f32 %v2536, %v3187
  %v3322 = vadd.f32 %v2539, %v3190
  %v3323 = vadd.f32 %v2541, %v3192
  %v3324 = vadd.f32 %v2544, %v3195
  %v3325 = vadd.f32 %v2546, %v3197
  %v3326 = vadd.f32 %v2549, %v3200
  %v3327 = vadd.f32 %v2551, %v3202
  %v3328 = vadd.f32 %v2554, %v3205
  %v3329 = vadd.f32 %v2556, %v3207
  %v3330 = vadd.f32 %v2559, %v3210
  %v3331 = vadd.f32 %v2561, %v3212
  %v3332 = vadd.f32 %v2564, %v3215
  %v3333 = vadd.f32 %v2566, %v3217
  %v3334 = vadd.f32 %v2569, %v3220
  %v3335 = vadd.f32 %v2571, %v3222
  %v3336 = vadd.f32 %v2574, %v3225
  %v3337 = vadd.f32 %v2576, %v3227
  %v3338 = vadd.f32 %v2579, %v3230
  %v3339 = vadd.f32 %v2581, %v3232
  %v3340 = vadd.f32 %v2584, %v3235
  %v3341 = vadd.f32 %v2586, %v3237
  %v3342 = vadd.f32 %v2589, %v3240
  %v3343 = vadd.f32 %v2591, %v3242
  %v3344 = vadd.f32 %v2594, %v3245
  %v3345 = vadd.f32 %v2596, %v3247
  %v3346 = vadd.f32 %v2599, %v3250
  %v3347 = vadd.f32 %v2601, %v3252
  %v3348 = vadd.f32 %v2604, %v3255
  %v3349 = vadd.f32 %v2606, %v3257
  %v3350 = vadd.f32 %v2609, %v3260
  %v3351 = vadd.f32 %v2611, %v3262
  %v3352 = vadd.f32 %v2614, %v3265
  %v3353 = vadd.f32 %v2616, %v3267
  %v3354 = vadd.f32 %v2619, %v3270
  %v3355 = vadd.f32 %v2621, %v3272
  %v3356 = vadd.f32 %v2624, %v3275
  %v3357 = vadd.f32 %v2626, %v3277
  %v3358 = vadd.f32 %v2629, %v3280
  %v3359 = vadd.f32 %v2631, %v3282
  %v3360 = vadd.f32 %v2634, %v3285
  %v3361 = vadd.f32 %v2636, %v3287
  %v3362 = vadd.f32 %v2639, %v3290
  %v3363 = vadd.f32 %v2641, %v3292
  %v3364 = vadd.f32 %v2644, %v3295
  %v3365 = vadd.f32 %v2646, %v3297
  %v3366 = vadd.f32 %v2649, %v3300
  %v3367 = vadd.f32 %v2651, %v3302
  %v3368 = vld [vmem:[%s2] sm:$0x1]
  %v3369 = vld [vmem:[%s3] sm:$0x1]
  %vm3370 = vcmask 523264
  %v3371 = vsel %vm3370, %v3304, 0.0
  %v3372 = vsel %vm3370, %v3305, 0.0
  %v3373 = vadd.f32 %v3371, %v3372
  %v3374 = vsel %vm3370, %v3306, 0.0
  %v3375 = vadd.f32 %v3373, %v3374
  %v3376 = vsel %vm3370, %v3307, 0.0
  %v3377 = vadd.f32 %v3375, %v3376
  %v3378 = vsel %vm3370, %v3308, 0.0
  %v3379 = vadd.f32 %v3377, %v3378
  %v3380 = vsel %vm3370, %v3309, 0.0
  %v3381 = vadd.f32 %v3379, %v3380
  %v3382 = vsel %vm3370, %v3310, 0.0
  %v3383 = vadd.f32 %v3381, %v3382
  %v3384 = vsel %vm3370, %v3311, 0.0
  %v3385 = vadd.f32 %v3383, %v3384
  %v3386 = vsel %vm3370, %v3312, 0.0
  %v3387 = vadd.f32 %v3385, %v3386
  %v3388 = vsel %vm3370, %v3313, 0.0
  %v3389 = vadd.f32 %v3387, %v3388
  %v3390 = vsel %vm3370, %v3314, 0.0
  %v3391 = vadd.f32 %v3389, %v3390
  %v3392 = vsel %vm3370, %v3315, 0.0
  %v3393 = vadd.f32 %v3391, %v3392
  %v3394 = vsel %vm3370, %v3316, 0.0
  %v3395 = vadd.f32 %v3393, %v3394
  %v3396 = vsel %vm3370, %v3317, 0.0
  %v3397 = vadd.f32 %v3395, %v3396
  %v3398 = vsel %vm3370, %v3318, 0.0
  %v3399 = vadd.f32 %v3397, %v3398
  %v3400 = vsel %vm3370, %v3319, 0.0
  %v3401 = vadd.f32 %v3399, %v3400
  %v3402 = vsel %vm3370, %v3320, 0.0
  %v3403 = vadd.f32 %v3401, %v3402
  %v3404 = vsel %vm3370, %v3321, 0.0
  %v3405 = vadd.f32 %v3403, %v3404
  %v3406 = vsel %vm3370, %v3322, 0.0
  %v3407 = vadd.f32 %v3405, %v3406
  %v3408 = vsel %vm3370, %v3323, 0.0
  %v3409 = vadd.f32 %v3407, %v3408
  %v3410 = vsel %vm3370, %v3324, 0.0
  %v3411 = vadd.f32 %v3409, %v3410
  %v3412 = vsel %vm3370, %v3325, 0.0
  %v3413 = vadd.f32 %v3411, %v3412
  %v3414 = vsel %vm3370, %v3326, 0.0
  %v3415 = vadd.f32 %v3413, %v3414
  %v3416 = vsel %vm3370, %v3327, 0.0
  %v3417 = vadd.f32 %v3415, %v3416
  %v3418 = vsel %vm3370, %v3328, 0.0
  %v3419 = vadd.f32 %v3417, %v3418
  %v3420 = vsel %vm3370, %v3329, 0.0
  %v3421 = vadd.f32 %v3419, %v3420
  %v3422 = vsel %vm3370, %v3330, 0.0
  %v3423 = vadd.f32 %v3421, %v3422
  %v3424 = vsel %vm3370, %v3331, 0.0
  %v3425 = vadd.f32 %v3423, %v3424
  %v3426 = vsel %vm3370, %v3332, 0.0
  %v3427 = vadd.f32 %v3425, %v3426
  %v3428 = vsel %vm3370, %v3333, 0.0
  %v3429 = vadd.f32 %v3427, %v3428
  %v3430 = vsel %vm3370, %v3334, 0.0
  %v3431 = vadd.f32 %v3429, %v3430
  %v3432 = vsel %vm3370, %v3335, 0.0
  %v3433 = vadd.f32 %v3431, %v3432
  %v3434 = vsel %vm3370, %v3336, 0.0
  %v3435 = vadd.f32 %v3433, %v3434
  %v3436 = vsel %vm3370, %v3337, 0.0
  %v3437 = vadd.f32 %v3435, %v3436
  %v3438 = vsel %vm3370, %v3338, 0.0
  %v3439 = vadd.f32 %v3437, %v3438
  %v3440 = vsel %vm3370, %v3339, 0.0
  %v3441 = vadd.f32 %v3439, %v3440
  %v3442 = vsel %vm3370, %v3340, 0.0
  %v3443 = vadd.f32 %v3441, %v3442
  %v3444 = vsel %vm3370, %v3341, 0.0
  %v3445 = vadd.f32 %v3443, %v3444
  %v3446 = vsel %vm3370, %v3342, 0.0
  %v3447 = vadd.f32 %v3445, %v3446
  %v3448 = vsel %vm3370, %v3343, 0.0
  %v3449 = vadd.f32 %v3447, %v3448
  %v3450 = vsel %vm3370, %v3344, 0.0
  %v3451 = vadd.f32 %v3449, %v3450
  %v3452 = vsel %vm3370, %v3345, 0.0
  %v3453 = vadd.f32 %v3451, %v3452
  %v3454 = vsel %vm3370, %v3346, 0.0
  %v3455 = vadd.f32 %v3453, %v3454
  %v3456 = vsel %vm3370, %v3347, 0.0
  %v3457 = vadd.f32 %v3455, %v3456
  %v3458 = vsel %vm3370, %v3348, 0.0
  %v3459 = vadd.f32 %v3457, %v3458
  %v3460 = vsel %vm3370, %v3349, 0.0
  %v3461 = vadd.f32 %v3459, %v3460
  %v3462 = vsel %vm3370, %v3350, 0.0
  %v3463 = vadd.f32 %v3461, %v3462
  %v3464 = vsel %vm3370, %v3351, 0.0
  %v3465 = vadd.f32 %v3463, %v3464
  %v3466 = vsel %vm3370, %v3352, 0.0
  %v3467 = vadd.f32 %v3465, %v3466
  %v3468 = vsel %vm3370, %v3353, 0.0
  %v3469 = vadd.f32 %v3467, %v3468
  %v3470 = vsel %vm3370, %v3354, 0.0
  %v3471 = vadd.f32 %v3469, %v3470
  %v3472 = vsel %vm3370, %v3355, 0.0
  %v3473 = vadd.f32 %v3471, %v3472
  %v3474 = vsel %vm3370, %v3356, 0.0
  %v3475 = vadd.f32 %v3473, %v3474
  %v3476 = vsel %vm3370, %v3357, 0.0
  %v3477 = vadd.f32 %v3475, %v3476
  %v3478 = vsel %vm3370, %v3358, 0.0
  %v3479 = vadd.f32 %v3477, %v3478
  %v3480 = vsel %vm3370, %v3359, 0.0
  %v3481 = vadd.f32 %v3479, %v3480
  %v3482 = vsel %vm3370, %v3360, 0.0
  %v3483 = vadd.f32 %v3481, %v3482
  %v3484 = vsel %vm3370, %v3361, 0.0
  %v3485 = vadd.f32 %v3483, %v3484
  %v3486 = vsel %vm3370, %v3362, 0.0
  %v3487 = vadd.f32 %v3485, %v3486
  %v3488 = vsel %vm3370, %v3363, 0.0
  %v3489 = vadd.f32 %v3487, %v3488
  %v3490 = vsel %vm3370, %v3364, 0.0
  %v3491 = vadd.f32 %v3489, %v3490
  %v3492 = vsel %vm3370, %v3365, 0.0
  %v3493 = vadd.f32 %v3491, %v3492
  %v3494 = vsel %vm3370, %v3366, 0.0
  %v3495 = vadd.f32 %v3493, %v3494
  %v3496 = vsel %vm3370, %v3367, 0.0
  %v3497 = vadd.f32 %v3495, %v3496
  %v3498 = vrot.slane %v3497, 4
  %v3499 = vadd.f32 %v3497, %v3498
  %v3500 = vrot.slane %v3499, 2
  %v3501 = vadd.f32 %v3499, %v3500
  %v3502 = vrot.slane %v3501, 1
  %v3503 = vadd.f32 %v3501, %v3502
  %v3504 = vmul.f32 %v3503, 0.001953125
  %v3505 = vsub.f32 %v3304, %v3504
  %v3506 = vsub.f32 %v3305, %v3504
  %v3507 = vsub.f32 %v3306, %v3504
  %v3508 = vsub.f32 %v3307, %v3504
  %v3509 = vsub.f32 %v3308, %v3504
  %v3510 = vsub.f32 %v3309, %v3504
  %v3511 = vsub.f32 %v3310, %v3504
  %v3512 = vsub.f32 %v3311, %v3504
  %v3513 = vsub.f32 %v3312, %v3504
  %v3514 = vsub.f32 %v3313, %v3504
  %v3515 = vsub.f32 %v3314, %v3504
  %v3516 = vsub.f32 %v3315, %v3504
  %v3517 = vsub.f32 %v3316, %v3504
  %v3518 = vsub.f32 %v3317, %v3504
  %v3519 = vsub.f32 %v3318, %v3504
  %v3520 = vsub.f32 %v3319, %v3504
  %v3521 = vsub.f32 %v3320, %v3504
  %v3522 = vsub.f32 %v3321, %v3504
  %v3523 = vsub.f32 %v3322, %v3504
  %v3524 = vsub.f32 %v3323, %v3504
  %v3525 = vsub.f32 %v3324, %v3504
  %v3526 = vsub.f32 %v3325, %v3504
  %v3527 = vsub.f32 %v3326, %v3504
  %v3528 = vsub.f32 %v3327, %v3504
  %v3529 = vsub.f32 %v3328, %v3504
  %v3530 = vsub.f32 %v3329, %v3504
  %v3531 = vsub.f32 %v3330, %v3504
  %v3532 = vsub.f32 %v3331, %v3504
  %v3533 = vsub.f32 %v3332, %v3504
  %v3534 = vsub.f32 %v3333, %v3504
  %v3535 = vsub.f32 %v3334, %v3504
  %v3536 = vsub.f32 %v3335, %v3504
  %v3537 = vsub.f32 %v3336, %v3504
  %v3538 = vsub.f32 %v3337, %v3504
  %v3539 = vsub.f32 %v3338, %v3504
  %v3540 = vsub.f32 %v3339, %v3504
  %v3541 = vsub.f32 %v3340, %v3504
  %v3542 = vsub.f32 %v3341, %v3504
  %v3543 = vsub.f32 %v3342, %v3504
  %v3544 = vsub.f32 %v3343, %v3504
  %v3545 = vsub.f32 %v3344, %v3504
  %v3546 = vsub.f32 %v3345, %v3504
  %v3547 = vsub.f32 %v3346, %v3504
  %v3548 = vsub.f32 %v3347, %v3504
  %v3549 = vsub.f32 %v3348, %v3504
  %v3550 = vsub.f32 %v3349, %v3504
  %v3551 = vsub.f32 %v3350, %v3504
  %v3552 = vsub.f32 %v3351, %v3504
  %v3553 = vsub.f32 %v3352, %v3504
  %v3554 = vsub.f32 %v3353, %v3504
  %v3555 = vsub.f32 %v3354, %v3504
  %v3556 = vsub.f32 %v3355, %v3504
  %v3557 = vsub.f32 %v3356, %v3504
  %v3558 = vsub.f32 %v3357, %v3504
  %v3559 = vsub.f32 %v3358, %v3504
  %v3560 = vsub.f32 %v3359, %v3504
  %v3561 = vsub.f32 %v3360, %v3504
  %v3562 = vsub.f32 %v3361, %v3504
  %v3563 = vsub.f32 %v3362, %v3504
  %v3564 = vsub.f32 %v3363, %v3504
  %v3565 = vsub.f32 %v3364, %v3504
  %v3566 = vsub.f32 %v3365, %v3504
  %v3567 = vsub.f32 %v3366, %v3504
  %v3568 = vsub.f32 %v3367, %v3504
  %v3569 = vmul.f32 %v3505, %v3505
  %v3570 = vmul.f32 %v3506, %v3506
  %v3571 = vmul.f32 %v3507, %v3507
  %v3572 = vmul.f32 %v3508, %v3508
  %v3573 = vmul.f32 %v3509, %v3509
  %v3574 = vmul.f32 %v3510, %v3510
  %v3575 = vmul.f32 %v3511, %v3511
  %v3576 = vmul.f32 %v3512, %v3512
  %v3577 = vmul.f32 %v3513, %v3513
  %v3578 = vmul.f32 %v3514, %v3514
  %v3579 = vmul.f32 %v3515, %v3515
  %v3580 = vmul.f32 %v3516, %v3516
  %v3581 = vmul.f32 %v3517, %v3517
  %v3582 = vmul.f32 %v3518, %v3518
  %v3583 = vmul.f32 %v3519, %v3519
  %v3584 = vmul.f32 %v3520, %v3520
  %v3585 = vmul.f32 %v3521, %v3521
  %v3586 = vmul.f32 %v3522, %v3522
  %v3587 = vmul.f32 %v3523, %v3523
  %v3588 = vmul.f32 %v3524, %v3524
  %v3589 = vmul.f32 %v3525, %v3525
  %v3590 = vmul.f32 %v3526, %v3526
  %v3591 = vmul.f32 %v3527, %v3527
  %v3592 = vmul.f32 %v3528, %v3528
  %v3593 = vmul.f32 %v3529, %v3529
  %v3594 = vmul.f32 %v3530, %v3530
  %v3595 = vmul.f32 %v3531, %v3531
  %v3596 = vmul.f32 %v3532, %v3532
  %v3597 = vmul.f32 %v3533, %v3533
  %v3598 = vmul.f32 %v3534, %v3534
  %v3599 = vmul.f32 %v3535, %v3535
  %v3600 = vmul.f32 %v3536, %v3536
  %v3601 = vmul.f32 %v3537, %v3537
  %v3602 = vmul.f32 %v3538, %v3538
  %v3603 = vmul.f32 %v3539, %v3539
  %v3604 = vmul.f32 %v3540, %v3540
  %v3605 = vmul.f32 %v3541, %v3541
  %v3606 = vmul.f32 %v3542, %v3542
  %v3607 = vmul.f32 %v3543, %v3543
  %v3608 = vmul.f32 %v3544, %v3544
  %v3609 = vmul.f32 %v3545, %v3545
  %v3610 = vmul.f32 %v3546, %v3546
  %v3611 = vmul.f32 %v3547, %v3547
  %v3612 = vmul.f32 %v3548, %v3548
  %v3613 = vmul.f32 %v3549, %v3549
  %v3614 = vmul.f32 %v3550, %v3550
  %v3615 = vmul.f32 %v3551, %v3551
  %v3616 = vmul.f32 %v3552, %v3552
  %v3617 = vmul.f32 %v3553, %v3553
  %v3618 = vmul.f32 %v3554, %v3554
  %v3619 = vmul.f32 %v3555, %v3555
  %v3620 = vmul.f32 %v3556, %v3556
  %v3621 = vmul.f32 %v3557, %v3557
  %v3622 = vmul.f32 %v3558, %v3558
  %v3623 = vmul.f32 %v3559, %v3559
  %v3624 = vmul.f32 %v3560, %v3560
  %v3625 = vmul.f32 %v3561, %v3561
  %v3626 = vmul.f32 %v3562, %v3562
  %v3627 = vmul.f32 %v3563, %v3563
  %v3628 = vmul.f32 %v3564, %v3564
  %v3629 = vmul.f32 %v3565, %v3565
  %v3630 = vmul.f32 %v3566, %v3566
  %v3631 = vmul.f32 %v3567, %v3567
  %v3632 = vmul.f32 %v3568, %v3568
  %v3633 = vsel %vm3370, %v3569, 0.0
  %v3634 = vsel %vm3370, %v3570, 0.0
  %v3635 = vadd.f32 %v3633, %v3634
  %v3636 = vsel %vm3370, %v3571, 0.0
  %v3637 = vadd.f32 %v3635, %v3636
  %v3638 = vsel %vm3370, %v3572, 0.0
  %v3639 = vadd.f32 %v3637, %v3638
  %v3640 = vsel %vm3370, %v3573, 0.0
  %v3641 = vadd.f32 %v3639, %v3640
  %v3642 = vsel %vm3370, %v3574, 0.0
  %v3643 = vadd.f32 %v3641, %v3642
  %v3644 = vsel %vm3370, %v3575, 0.0
  %v3645 = vadd.f32 %v3643, %v3644
  %v3646 = vsel %vm3370, %v3576, 0.0
  %v3647 = vadd.f32 %v3645, %v3646
  %v3648 = vsel %vm3370, %v3577, 0.0
  %v3649 = vadd.f32 %v3647, %v3648
  %v3650 = vsel %vm3370, %v3578, 0.0
  %v3651 = vadd.f32 %v3649, %v3650
  %v3652 = vsel %vm3370, %v3579, 0.0
  %v3653 = vadd.f32 %v3651, %v3652
  %v3654 = vsel %vm3370, %v3580, 0.0
  %v3655 = vadd.f32 %v3653, %v3654
  %v3656 = vsel %vm3370, %v3581, 0.0
  %v3657 = vadd.f32 %v3655, %v3656
  %v3658 = vsel %vm3370, %v3582, 0.0
  %v3659 = vadd.f32 %v3657, %v3658
  %v3660 = vsel %vm3370, %v3583, 0.0
  %v3661 = vadd.f32 %v3659, %v3660
  %v3662 = vsel %vm3370, %v3584, 0.0
  %v3663 = vadd.f32 %v3661, %v3662
  %v3664 = vsel %vm3370, %v3585, 0.0
  %v3665 = vadd.f32 %v3663, %v3664
  %v3666 = vsel %vm3370, %v3586, 0.0
  %v3667 = vadd.f32 %v3665, %v3666
  %v3668 = vsel %vm3370, %v3587, 0.0
  %v3669 = vadd.f32 %v3667, %v3668
  %v3670 = vsel %vm3370, %v3588, 0.0
  %v3671 = vadd.f32 %v3669, %v3670
  %v3672 = vsel %vm3370, %v3589, 0.0
  %v3673 = vadd.f32 %v3671, %v3672
  %v3674 = vsel %vm3370, %v3590, 0.0
  %v3675 = vadd.f32 %v3673, %v3674
  %v3676 = vsel %vm3370, %v3591, 0.0
  %v3677 = vadd.f32 %v3675, %v3676
  %v3678 = vsel %vm3370, %v3592, 0.0
  %v3679 = vadd.f32 %v3677, %v3678
  %v3680 = vsel %vm3370, %v3593, 0.0
  %v3681 = vadd.f32 %v3679, %v3680
  %v3682 = vsel %vm3370, %v3594, 0.0
  %v3683 = vadd.f32 %v3681, %v3682
  %v3684 = vsel %vm3370, %v3595, 0.0
  %v3685 = vadd.f32 %v3683, %v3684
  %v3686 = vsel %vm3370, %v3596, 0.0
  %v3687 = vadd.f32 %v3685, %v3686
  %v3688 = vsel %vm3370, %v3597, 0.0
  %v3689 = vadd.f32 %v3687, %v3688
  %v3690 = vsel %vm3370, %v3598, 0.0
  %v3691 = vadd.f32 %v3689, %v3690
  %v3692 = vsel %vm3370, %v3599, 0.0
  %v3693 = vadd.f32 %v3691, %v3692
  %v3694 = vsel %vm3370, %v3600, 0.0
  %v3695 = vadd.f32 %v3693, %v3694
  %v3696 = vsel %vm3370, %v3601, 0.0
  %v3697 = vadd.f32 %v3695, %v3696
  %v3698 = vsel %vm3370, %v3602, 0.0
  %v3699 = vadd.f32 %v3697, %v3698
  %v3700 = vsel %vm3370, %v3603, 0.0
  %v3701 = vadd.f32 %v3699, %v3700
  %v3702 = vsel %vm3370, %v3604, 0.0
  %v3703 = vadd.f32 %v3701, %v3702
  %v3704 = vsel %vm3370, %v3605, 0.0
  %v3705 = vadd.f32 %v3703, %v3704
  %v3706 = vsel %vm3370, %v3606, 0.0
  %v3707 = vadd.f32 %v3705, %v3706
  %v3708 = vsel %vm3370, %v3607, 0.0
  %v3709 = vadd.f32 %v3707, %v3708
  %v3710 = vsel %vm3370, %v3608, 0.0
  %v3711 = vadd.f32 %v3709, %v3710
  %v3712 = vsel %vm3370, %v3609, 0.0
  %v3713 = vadd.f32 %v3711, %v3712
  %v3714 = vsel %vm3370, %v3610, 0.0
  %v3715 = vadd.f32 %v3713, %v3714
  %v3716 = vsel %vm3370, %v3611, 0.0
  %v3717 = vadd.f32 %v3715, %v3716
  %v3718 = vsel %vm3370, %v3612, 0.0
  %v3719 = vadd.f32 %v3717, %v3718
  %v3720 = vsel %vm3370, %v3613, 0.0
  %v3721 = vadd.f32 %v3719, %v3720
  %v3722 = vsel %vm3370, %v3614, 0.0
  %v3723 = vadd.f32 %v3721, %v3722
  %v3724 = vsel %vm3370, %v3615, 0.0
  %v3725 = vadd.f32 %v3723, %v3724
  %v3726 = vsel %vm3370, %v3616, 0.0
  %v3727 = vadd.f32 %v3725, %v3726
  %v3728 = vsel %vm3370, %v3617, 0.0
  %v3729 = vadd.f32 %v3727, %v3728
  %v3730 = vsel %vm3370, %v3618, 0.0
  %v3731 = vadd.f32 %v3729, %v3730
  %v3732 = vsel %vm3370, %v3619, 0.0
  %v3733 = vadd.f32 %v3731, %v3732
  %v3734 = vsel %vm3370, %v3620, 0.0
  %v3735 = vadd.f32 %v3733, %v3734
  %v3736 = vsel %vm3370, %v3621, 0.0
  %v3737 = vadd.f32 %v3735, %v3736
  %v3738 = vsel %vm3370, %v3622, 0.0
  %v3739 = vadd.f32 %v3737, %v3738
  %v3740 = vsel %vm3370, %v3623, 0.0
  %v3741 = vadd.f32 %v3739, %v3740
  %v3742 = vsel %vm3370, %v3624, 0.0
  %v3743 = vadd.f32 %v3741, %v3742
  %v3744 = vsel %vm3370, %v3625, 0.0
  %v3745 = vadd.f32 %v3743, %v3744
  %v3746 = vsel %vm3370, %v3626, 0.0
  %v3747 = vadd.f32 %v3745, %v3746
  %v3748 = vsel %vm3370, %v3627, 0.0
  %v3749 = vadd.f32 %v3747, %v3748
  %v3750 = vsel %vm3370, %v3628, 0.0
  %v3751 = vadd.f32 %v3749, %v3750
  %v3752 = vsel %vm3370, %v3629, 0.0
  %v3753 = vadd.f32 %v3751, %v3752
  %v3754 = vsel %vm3370, %v3630, 0.0
  %v3755 = vadd.f32 %v3753, %v3754
  %v3756 = vsel %vm3370, %v3631, 0.0
  %v3757 = vadd.f32 %v3755, %v3756
  %v3758 = vsel %vm3370, %v3632, 0.0
  %v3759 = vadd.f32 %v3757, %v3758
  %v3760 = vrot.slane %v3759, 4
  %v3761 = vadd.f32 %v3759, %v3760
  %v3762 = vrot.slane %v3761, 2
  %v3763 = vadd.f32 %v3761, %v3762
  %v3764 = vrot.slane %v3763, 1
  %v3765 = vadd.f32 %v3763, %v3764
  %v3766 = vmul.f32 %v3765, 0.001953125
  %v3767 = vadd.f32 %v3766, 0.8
  %v3768 = vrsqrt.pop %v3767
  %v3769 = vmul.f32 %v3768, %v3767
  %v3770 = vmul.f32 %v3769, %v3768
  %v3771 = vmul.f32 0.5, %v3770
  %v3772 = vsub.f32 1.5, %v3771
  %v3773 = vmul.f32 %v3768, %v3772
  %vm3774 = vweird.f32 %v3767
  %vm3775 = vweird.f32 %v3768
  %vm3776 = vmor %vm3774, %vm3775
  %v3777 = vsel %vm3776, %v3768, %v3773
  %v3778 = vmul.f32 %v3505, %v3777
  %v3779 = vmul.f32 %v3506, %v3777
  %v3780 = vmul.f32 %v3507, %v3777
  %v3781 = vmul.f32 %v3508, %v3777
  %v3782 = vmul.f32 %v3509, %v3777
  %v3783 = vmul.f32 %v3510, %v3777
  %v3784 = vmul.f32 %v3511, %v3777
  %v3785 = vmul.f32 %v3512, %v3777
  %v3786 = vmul.f32 %v3513, %v3777
  %v3787 = vmul.f32 %v3514, %v3777
  %v3788 = vmul.f32 %v3515, %v3777
  %v3789 = vmul.f32 %v3516, %v3777
  %v3790 = vmul.f32 %v3517, %v3777
  %v3791 = vmul.f32 %v3518, %v3777
  %v3792 = vmul.f32 %v3519, %v3777
  %v3793 = vmul.f32 %v3520, %v3777
  %v3794 = vmul.f32 %v3521, %v3777
  %v3795 = vmul.f32 %v3522, %v3777
  %v3796 = vmul.f32 %v3523, %v3777
  %v3797 = vmul.f32 %v3524, %v3777
  %v3798 = vmul.f32 %v3525, %v3777
  %v3799 = vmul.f32 %v3526, %v3777
  %v3800 = vmul.f32 %v3527, %v3777
  %v3801 = vmul.f32 %v3528, %v3777
  %v3802 = vmul.f32 %v3529, %v3777
  %v3803 = vmul.f32 %v3530, %v3777
  %v3804 = vmul.f32 %v3531, %v3777
  %v3805 = vmul.f32 %v3532, %v3777
  %v3806 = vmul.f32 %v3533, %v3777
  %v3807 = vmul.f32 %v3534, %v3777
  %v3808 = vmul.f32 %v3535, %v3777
  %v3809 = vmul.f32 %v3536, %v3777
  %v3810 = vmul.f32 %v3537, %v3777
  %v3811 = vmul.f32 %v3538, %v3777
  %v3812 = vmul.f32 %v3539, %v3777
  %v3813 = vmul.f32 %v3540, %v3777
  %v3814 = vmul.f32 %v3541, %v3777
  %v3815 = vmul.f32 %v3542, %v3777
  %v3816 = vmul.f32 %v3543, %v3777
  %v3817 = vmul.f32 %v3544, %v3777
  %v3818 = vmul.f32 %v3545, %v3777
  %v3819 = vmul.f32 %v3546, %v3777
  %v3820 = vmul.f32 %v3547, %v3777
  %v3821 = vmul.f32 %v3548, %v3777
  %v3822 = vmul.f32 %v3549, %v3777
  %v3823 = vmul.f32 %v3550, %v3777
  %v3824 = vmul.f32 %v3551, %v3777
  %v3825 = vmul.f32 %v3552, %v3777
  %v3826 = vmul.f32 %v3553, %v3777
  %v3827 = vmul.f32 %v3554, %v3777
  %v3828 = vmul.f32 %v3555, %v3777
  %v3829 = vmul.f32 %v3556, %v3777
  %v3830 = vmul.f32 %v3557, %v3777
  %v3831 = vmul.f32 %v3558, %v3777
  %v3832 = vmul.f32 %v3559, %v3777
  %v3833 = vmul.f32 %v3560, %v3777
  %v3834 = vmul.f32 %v3561, %v3777
  %v3835 = vmul.f32 %v3562, %v3777
  %v3836 = vmul.f32 %v3563, %v3777
  %v3837 = vmul.f32 %v3564, %v3777
  %v3838 = vmul.f32 %v3565, %v3777
  %v3839 = vmul.f32 %v3566, %v3777
  %v3840 = vmul.f32 %v3567, %v3777
  %v3841 = vmul.f32 %v3568, %v3777
  %v3843 = vperm.slane %v3368, 0
  %v3845 = vmul.f32 %v3778, %v3843
  %v3846 = vmul.f32 %v3779, %v3843
  %v3847 = vmul.f32 %v3780, %v3843
  %v3848 = vmul.f32 %v3781, %v3843
  %v3849 = vmul.f32 %v3782, %v3843
  %v3850 = vmul.f32 %v3783, %v3843
  %v3851 = vmul.f32 %v3784, %v3843
  %v3852 = vmul.f32 %v3785, %v3843
  %v3853 = vmul.f32 %v3786, %v3843
  %v3854 = vmul.f32 %v3787, %v3843
  %v3855 = vmul.f32 %v3788, %v3843
  %v3856 = vmul.f32 %v3789, %v3843
  %v3857 = vmul.f32 %v3790, %v3843
  %v3858 = vmul.f32 %v3791, %v3843
  %v3859 = vmul.f32 %v3792, %v3843
  %v3860 = vmul.f32 %v3793, %v3843
  %v3861 = vmul.f32 %v3794, %v3843
  %v3862 = vmul.f32 %v3795, %v3843
  %v3863 = vmul.f32 %v3796, %v3843
  %v3864 = vmul.f32 %v3797, %v3843
  %v3865 = vmul.f32 %v3798, %v3843
  %v3866 = vmul.f32 %v3799, %v3843
  %v3867 = vmul.f32 %v3800, %v3843
  %v3868 = vmul.f32 %v3801, %v3843
  %v3869 = vmul.f32 %v3802, %v3843
  %v3870 = vmul.f32 %v3803, %v3843
  %v3871 = vmul.f32 %v3804, %v3843
  %v3872 = vmul.f32 %v3805, %v3843
  %v3873 = vmul.f32 %v3806, %v3843
  %v3874 = vmul.f32 %v3807, %v3843
  %v3875 = vmul.f32 %v3808, %v3843
  %v3876 = vmul.f32 %v3809, %v3843
  %v3877 = vmul.f32 %v3810, %v3843
  %v3878 = vmul.f32 %v3811, %v3843
  %v3879 = vmul.f32 %v3812, %v3843
  %v3880 = vmul.f32 %v3813, %v3843
  %v3881 = vmul.f32 %v3814, %v3843
  %v3882 = vmul.f32 %v3815, %v3843
  %v3883 = vmul.f32 %v3816, %v3843
  %v3884 = vmul.f32 %v3817, %v3843
  %v3885 = vmul.f32 %v3818, %v3843
  %v3886 = vmul.f32 %v3819, %v3843
  %v3887 = vmul.f32 %v3820, %v3843
  %v3888 = vmul.f32 %v3821, %v3843
  %v3889 = vmul.f32 %v3822, %v3843
  %v3890 = vmul.f32 %v3823, %v3843
  %v3891 = vmul.f32 %v3824, %v3843
  %v3892 = vmul.f32 %v3825, %v3843
  %v3893 = vmul.f32 %v3826, %v3843
  %v3894 = vmul.f32 %v3827, %v3843
  %v3895 = vmul.f32 %v3828, %v3843
  %v3896 = vmul.f32 %v3829, %v3843
  %v3897 = vmul.f32 %v3830, %v3843
  %v3898 = vmul.f32 %v3831, %v3843
  %v3899 = vmul.f32 %v3832, %v3843
  %v3900 = vmul.f32 %v3833, %v3843
  %v3901 = vmul.f32 %v3834, %v3843
  %v3902 = vmul.f32 %v3835, %v3843
  %v3903 = vmul.f32 %v3836, %v3843
  %v3904 = vmul.f32 %v3837, %v3843
  %v3905 = vmul.f32 %v3838, %v3843
  %v3906 = vmul.f32 %v3839, %v3843
  %v3907 = vmul.f32 %v3840, %v3843
  %v3908 = vmul.f32 %v3841, %v3843
  %v3910 = vperm.slane %v3369, 0
  %v3912 = vadd.f32 %v3845, %v3910
  %v3913 = vadd.f32 %v3846, %v3910
  %v3914 = vadd.f32 %v3847, %v3910
  %v3915 = vadd.f32 %v3848, %v3910
  %v3916 = vadd.f32 %v3849, %v3910
  %v3917 = vadd.f32 %v3850, %v3910
  %v3918 = vadd.f32 %v3851, %v3910
  %v3919 = vadd.f32 %v3852, %v3910
  %v3920 = vadd.f32 %v3853, %v3910
  %v3921 = vadd.f32 %v3854, %v3910
  %v3922 = vadd.f32 %v3855, %v3910
  %v3923 = vadd.f32 %v3856, %v3910
  %v3924 = vadd.f32 %v3857, %v3910
  %v3925 = vadd.f32 %v3858, %v3910
  %v3926 = vadd.f32 %v3859, %v3910
  %v3927 = vadd.f32 %v3860, %v3910
  %v3928 = vadd.f32 %v3861, %v3910
  %v3929 = vadd.f32 %v3862, %v3910
  %v3930 = vadd.f32 %v3863, %v3910
  %v3931 = vadd.f32 %v3864, %v3910
  %v3932 = vadd.f32 %v3865, %v3910
  %v3933 = vadd.f32 %v3866, %v3910
  %v3934 = vadd.f32 %v3867, %v3910
  %v3935 = vadd.f32 %v3868, %v3910
  %v3936 = vadd.f32 %v3869, %v3910
  %v3937 = vadd.f32 %v3870, %v3910
  %v3938 = vadd.f32 %v3871, %v3910
  %v3939 = vadd.f32 %v3872, %v3910
  %v3940 = vadd.f32 %v3873, %v3910
  %v3941 = vadd.f32 %v3874, %v3910
  %v3942 = vadd.f32 %v3875, %v3910
  %v3943 = vadd.f32 %v3876, %v3910
  %v3944 = vadd.f32 %v3877, %v3910
  %v3945 = vadd.f32 %v3878, %v3910
  %v3946 = vadd.f32 %v3879, %v3910
  %v3947 = vadd.f32 %v3880, %v3910
  %v3948 = vadd.f32 %v3881, %v3910
  %v3949 = vadd.f32 %v3882, %v3910
  %v3950 = vadd.f32 %v3883, %v3910
  %v3951 = vadd.f32 %v3884, %v3910
  %v3952 = vadd.f32 %v3885, %v3910
  %v3953 = vadd.f32 %v3886, %v3910
  %v3954 = vadd.f32 %v3887, %v3910
  %v3955 = vadd.f32 %v3888, %v3910
  %v3956 = vadd.f32 %v3889, %v3910
  %v3957 = vadd.f32 %v3890, %v3910
  %v3958 = vadd.f32 %v3891, %v3910
  %v3959 = vadd.f32 %v3892, %v3910
  %v3960 = vadd.f32 %v3893, %v3910
  %v3961 = vadd.f32 %v3894, %v3910
  %v3962 = vadd.f32 %v3895, %v3910
  %v3963 = vadd.f32 %v3896, %v3910
  %v3964 = vadd.f32 %v3897, %v3910
  %v3965 = vadd.f32 %v3898, %v3910
  %v3966 = vadd.f32 %v3899, %v3910
  %v3967 = vadd.f32 %v3900, %v3910
  %v3968 = vadd.f32 %v3901, %v3910
  %v3969 = vadd.f32 %v3902, %v3910
  %v3970 = vadd.f32 %v3903, %v3910
  %v3971 = vadd.f32 %v3904, %v3910
  %v3972 = vadd.f32 %v3905, %v3910
  %v3973 = vadd.f32 %v3906, %v3910
  %v3974 = vadd.f32 %v3907, %v3910
  %v3975 = vadd.f32 %v3908, %v3910
  %vm3976 = vcmp.ge.f32.partialorder %v3912, 0.0
  %vm3977 = vcmp.ge.f32.partialorder %v3913, 0.0
  %vm3978 = vcmp.ge.f32.partialorder %v3914, 0.0
  %vm3979 = vcmp.ge.f32.partialorder %v3915, 0.0
  %vm3980 = vcmp.ge.f32.partialorder %v3916, 0.0
  %vm3981 = vcmp.ge.f32.partialorder %v3917, 0.0
  %vm3982 = vcmp.ge.f32.partialorder %v3918, 0.0
  %vm3983 = vcmp.ge.f32.partialorder %v3919, 0.0
  %vm3984 = vcmp.ge.f32.partialorder %v3920, 0.0
  %vm3985 = vcmp.ge.f32.partialorder %v3921, 0.0
  %vm3986 = vcmp.ge.f32.partialorder %v3922, 0.0
  %vm3987 = vcmp.ge.f32.partialorder %v3923, 0.0
  %vm3988 = vcmp.ge.f32.partialorder %v3924, 0.0
  %vm3989 = vcmp.ge.f32.partialorder %v3925, 0.0
  %vm3990 = vcmp.ge.f32.partialorder %v3926, 0.0
  %vm3991 = vcmp.ge.f32.partialorder %v3927, 0.0
  %vm3992 = vcmp.ge.f32.partialorder %v3928, 0.0
  %vm3993 = vcmp.ge.f32.partialorder %v3929, 0.0
  %vm3994 = vcmp.ge.f32.partialorder %v3930, 0.0
  %vm3995 = vcmp.ge.f32.partialorder %v3931, 0.0
  %vm3996 = vcmp.ge.f32.partialorder %v3932, 0.0
  %vm3997 = vcmp.ge.f32.partialorder %v3933, 0.0
  %vm3998 = vcmp.ge.f32.partialorder %v3934, 0.0
  %vm3999 = vcmp.ge.f32.partialorder %v3935, 0.0
  %vm4000 = vcmp.ge.f32.partialorder %v3936, 0.0
  %vm4001 = vcmp.ge.f32.partialorder %v3937, 0.0
  %vm4002 = vcmp.ge.f32.partialorder %v3938, 0.0
  %vm4003 = vcmp.ge.f32.partialorder %v3939, 0.0
  %vm4004 = vcmp.ge.f32.partialorder %v3940, 0.0
  %vm4005 = vcmp.ge.f32.partialorder %v3941, 0.0
  %vm4006 = vcmp.ge.f32.partialorder %v3942, 0.0
  %vm4007 = vcmp.ge.f32.partialorder %v3943, 0.0
  %vm4008 = vcmp.ge.f32.partialorder %v3944, 0.0
  %vm4009 = vcmp.ge.f32.partialorder %v3945, 0.0
  %vm4010 = vcmp.ge.f32.partialorder %v3946, 0.0
  %vm4011 = vcmp.ge.f32.partialorder %v3947, 0.0
  %vm4012 = vcmp.ge.f32.partialorder %v3948, 0.0
  %vm4013 = vcmp.ge.f32.partialorder %v3949, 0.0
  %vm4014 = vcmp.ge.f32.partialorder %v3950, 0.0
  %vm4015 = vcmp.ge.f32.partialorder %v3951, 0.0
  %vm4016 = vcmp.ge.f32.partialorder %v3952, 0.0
  %vm4017 = vcmp.ge.f32.partialorder %v3953, 0.0
  %vm4018 = vcmp.ge.f32.partialorder %v3954, 0.0
  %vm4019 = vcmp.ge.f32.partialorder %v3955, 0.0
  %vm4020 = vcmp.ge.f32.partialorder %v3956, 0.0
  %vm4021 = vcmp.ge.f32.partialorder %v3957, 0.0
  %vm4022 = vcmp.ge.f32.partialorder %v3958, 0.0
  %vm4023 = vcmp.ge.f32.partialorder %v3959, 0.0
  %vm4024 = vcmp.ge.f32.partialorder %v3960, 0.0
  %vm4025 = vcmp.ge.f32.partialorder %v3961, 0.0
  %vm4026 = vcmp.ge.f32.partialorder %v3962, 0.0
  %vm4027 = vcmp.ge.f32.partialorder %v3963, 0.0
  %vm4028 = vcmp.ge.f32.partialorder %v3964, 0.0
  %vm4029 = vcmp.ge.f32.partialorder %v3965, 0.0
  %vm4030 = vcmp.ge.f32.partialorder %v3966, 0.0
  %vm4031 = vcmp.ge.f32.partialorder %v3967, 0.0
  %vm4032 = vcmp.ge.f32.partialorder %v3968, 0.0
  %vm4033 = vcmp.ge.f32.partialorder %v3969, 0.0
  %vm4034 = vcmp.ge.f32.partialorder %v3970, 0.0
  %vm4035 = vcmp.ge.f32.partialorder %v3971, 0.0
  %vm4036 = vcmp.ge.f32.partialorder %v3972, 0.0
  %vm4037 = vcmp.ge.f32.partialorder %v3973, 0.0
  %vm4038 = vcmp.ge.f32.partialorder %v3974, 0.0
  %vm4039 = vcmp.ge.f32.partialorder %v3975, 0.0
  %v4040 = vmul.f32 %v3912, 0.2
  %v4041 = vmul.f32 %v3913, 0.2
  %v4042 = vmul.f32 %v3914, 0.2
  %v4043 = vmul.f32 %v3915, 0.2
  %v4044 = vmul.f32 %v3916, 0.2
  %v4045 = vmul.f32 %v3917, 0.2
  %v4046 = vmul.f32 %v3918, 0.2
  %v4047 = vmul.f32 %v3919, 0.2
  %v4048 = vmul.f32 %v3920, 0.2
  %v4049 = vmul.f32 %v3921, 0.2
  %v4050 = vmul.f32 %v3922, 0.2
  %v4051 = vmul.f32 %v3923, 0.2
  %v4052 = vmul.f32 %v3924, 0.2
  %v4053 = vmul.f32 %v3925, 0.2
  %v4054 = vmul.f32 %v3926, 0.2
  %v4055 = vmul.f32 %v3927, 0.2
  %v4056 = vmul.f32 %v3928, 0.2
  %v4057 = vmul.f32 %v3929, 0.2
  %v4058 = vmul.f32 %v3930, 0.2
  %v4059 = vmul.f32 %v3931, 0.2
  %v4060 = vmul.f32 %v3932, 0.2
  %v4061 = vmul.f32 %v3933, 0.2
  %v4062 = vmul.f32 %v3934, 0.2
  %v4063 = vmul.f32 %v3935, 0.2
  %v4064 = vmul.f32 %v3936, 0.2
  %v4065 = vmul.f32 %v3937, 0.2
  %v4066 = vmul.f32 %v3938, 0.2
  %v4067 = vmul.f32 %v3939, 0.2
  %v4068 = vmul.f32 %v3940, 0.2
  %v4069 = vmul.f32 %v3941, 0.2
  %v4070 = vmul.f32 %v3942, 0.2
  %v4071 = vmul.f32 %v3943, 0.2
  %v4072 = vmul.f32 %v3944, 0.2
  %v4073 = vmul.f32 %v3945, 0.2
  %v4074 = vmul.f32 %v3946, 0.2
  %v4075 = vmul.f32 %v3947, 0.2
  %v4076 = vmul.f32 %v3948, 0.2
  %v4077 = vmul.f32 %v3949, 0.2
  %v4078 = vmul.f32 %v3950, 0.2
  %v4079 = vmul.f32 %v3951, 0.2
  %v4080 = vmul.f32 %v3952, 0.2
  %v4081 = vmul.f32 %v3953, 0.2
  %v4082 = vmul.f32 %v3954, 0.2
  %v4083 = vmul.f32 %v3955, 0.2
  %v4084 = vmul.f32 %v3956, 0.2
  %v4085 = vmul.f32 %v3957, 0.2
  %v4086 = vmul.f32 %v3958, 0.2
  %v4087 = vmul.f32 %v3959, 0.2
  %v4088 = vmul.f32 %v3960, 0.2
  %v4089 = vmul.f32 %v3961, 0.2
  %v4090 = vmul.f32 %v3962, 0.2
  %v4091 = vmul.f32 %v3963, 0.2
  %v4092 = vmul.f32 %v3964, 0.2
  %v4093 = vmul.f32 %v3965, 0.2
  %v4094 = vmul.f32 %v3966, 0.2
  %v4095 = vmul.f32 %v3967, 0.2
  %v4096 = vmul.f32 %v3968, 0.2
  %v4097 = vmul.f32 %v3969, 0.2
  %v4098 = vmul.f32 %v3970, 0.2
  %v4099 = vmul.f32 %v3971, 0.2
  %v4100 = vmul.f32 %v3972, 0.2
  %v4101 = vmul.f32 %v3973, 0.2
  %v4102 = vmul.f32 %v3974, 0.2
  %v4103 = vmul.f32 %v3975, 0.2
  %v4104 = vsel %vm3976, %v3912, %v4040
  %v4105 = vsel %vm3977, %v3913, %v4041
  %v4106 = vsel %vm3978, %v3914, %v4042
  %v4107 = vsel %vm3979, %v3915, %v4043
  %v4108 = vsel %vm3980, %v3916, %v4044
  %v4109 = vsel %vm3981, %v3917, %v4045
  %v4110 = vsel %vm3982, %v3918, %v4046
  %v4111 = vsel %vm3983, %v3919, %v4047
  %v4112 = vsel %vm3984, %v3920, %v4048
  %v4113 = vsel %vm3985, %v3921, %v4049
  %v4114 = vsel %vm3986, %v3922, %v4050
  %v4115 = vsel %vm3987, %v3923, %v4051
  %v4116 = vsel %vm3988, %v3924, %v4052
  %v4117 = vsel %vm3989, %v3925, %v4053
  %v4118 = vsel %vm3990, %v3926, %v4054
  %v4119 = vsel %vm3991, %v3927, %v4055
  %v4120 = vsel %vm3992, %v3928, %v4056
  %v4121 = vsel %vm3993, %v3929, %v4057
  %v4122 = vsel %vm3994, %v3930, %v4058
  %v4123 = vsel %vm3995, %v3931, %v4059
  %v4124 = vsel %vm3996, %v3932, %v4060
  %v4125 = vsel %vm3997, %v3933, %v4061
  %v4126 = vsel %vm3998, %v3934, %v4062
  %v4127 = vsel %vm3999, %v3935, %v4063
  %v4128 = vsel %vm4000, %v3936, %v4064
  %v4129 = vsel %vm4001, %v3937, %v4065
  %v4130 = vsel %vm4002, %v3938, %v4066
  %v4131 = vsel %vm4003, %v3939, %v4067
  %v4132 = vsel %vm4004, %v3940, %v4068
  %v4133 = vsel %vm4005, %v3941, %v4069
  %v4134 = vsel %vm4006, %v3942, %v4070
  %v4135 = vsel %vm4007, %v3943, %v4071
  %v4136 = vsel %vm4008, %v3944, %v4072
  %v4137 = vsel %vm4009, %v3945, %v4073
  %v4138 = vsel %vm4010, %v3946, %v4074
  %v4139 = vsel %vm4011, %v3947, %v4075
  %v4140 = vsel %vm4012, %v3948, %v4076
  %v4141 = vsel %vm4013, %v3949, %v4077
  %v4142 = vsel %vm4014, %v3950, %v4078
  %v4143 = vsel %vm4015, %v3951, %v4079
  %v4144 = vsel %vm4016, %v3952, %v4080
  %v4145 = vsel %vm4017, %v3953, %v4081
  %v4146 = vsel %vm4018, %v3954, %v4082
  %v4147 = vsel %vm4019, %v3955, %v4083
  %v4148 = vsel %vm4020, %v3956, %v4084
  %v4149 = vsel %vm4021, %v3957, %v4085
  %v4150 = vsel %vm4022, %v3958, %v4086
  %v4151 = vsel %vm4023, %v3959, %v4087
  %v4152 = vsel %vm4024, %v3960, %v4088
  %v4153 = vsel %vm4025, %v3961, %v4089
  %v4154 = vsel %vm4026, %v3962, %v4090
  %v4155 = vsel %vm4027, %v3963, %v4091
  %v4156 = vsel %vm4028, %v3964, %v4092
  %v4157 = vsel %vm4029, %v3965, %v4093
  %v4158 = vsel %vm4030, %v3966, %v4094
  %v4159 = vsel %vm4031, %v3967, %v4095
  %v4160 = vsel %vm4032, %v3968, %v4096
  %v4161 = vsel %vm4033, %v3969, %v4097
  %v4162 = vsel %vm4034, %v3970, %v4098
  %v4163 = vsel %vm4035, %v3971, %v4099
  %v4164 = vsel %vm4036, %v3972, %v4100
  %v4165 = vsel %vm4037, %v3973, %v4101
  %v4166 = vsel %vm4038, %v3974, %v4102
  %v4167 = vsel %vm4039, %v3975, %v4103
  %v4168 = vpack.c.bf16 %v4104, %v4104
  %v4169 = vpack.c.bf16 %v4105, %v4105
  %v4170 = vpack.c.bf16 %v4106, %v4106
  %v4171 = vpack.c.bf16 %v4107, %v4107
  %v4172 = vpack.c.bf16 %v4108, %v4108
  %v4173 = vpack.c.bf16 %v4109, %v4109
  %v4174 = vpack.c.bf16 %v4110, %v4110
  %v4175 = vpack.c.bf16 %v4111, %v4111
  %v4176 = vpack.c.bf16 %v4112, %v4112
  %v4177 = vpack.c.bf16 %v4113, %v4113
  %v4178 = vpack.c.bf16 %v4114, %v4114
  %v4179 = vpack.c.bf16 %v4115, %v4115
  %v4180 = vpack.c.bf16 %v4116, %v4116
  %v4181 = vpack.c.bf16 %v4117, %v4117
  %v4182 = vpack.c.bf16 %v4118, %v4118
  %v4183 = vpack.c.bf16 %v4119, %v4119
  %v4184 = vpack.c.bf16 %v4120, %v4120
  %v4185 = vpack.c.bf16 %v4121, %v4121
  %v4186 = vpack.c.bf16 %v4122, %v4122
  %v4187 = vpack.c.bf16 %v4123, %v4123
  %v4188 = vpack.c.bf16 %v4124, %v4124
  %v4189 = vpack.c.bf16 %v4125, %v4125
  %v4190 = vpack.c.bf16 %v4126, %v4126
  %v4191 = vpack.c.bf16 %v4127, %v4127
  %v4192 = vpack.c.bf16 %v4128, %v4128
  %v4193 = vpack.c.bf16 %v4129, %v4129
  %v4194 = vpack.c.bf16 %v4130, %v4130
  %v4195 = vpack.c.bf16 %v4131, %v4131
  %v4196 = vpack.c.bf16 %v4132, %v4132
  %v4197 = vpack.c.bf16 %v4133, %v4133
  %v4198 = vpack.c.bf16 %v4134, %v4134
  %v4199 = vpack.c.bf16 %v4135, %v4135
  %v4200 = vpack.c.bf16 %v4136, %v4136
  %v4201 = vpack.c.bf16 %v4137, %v4137
  %v4202 = vpack.c.bf16 %v4138, %v4138
  %v4203 = vpack.c.bf16 %v4139, %v4139
  %v4204 = vpack.c.bf16 %v4140, %v4140
  %v4205 = vpack.c.bf16 %v4141, %v4141
  %v4206 = vpack.c.bf16 %v4142, %v4142
  %v4207 = vpack.c.bf16 %v4143, %v4143
  %v4208 = vpack.c.bf16 %v4144, %v4144
  %v4209 = vpack.c.bf16 %v4145, %v4145
  %v4210 = vpack.c.bf16 %v4146, %v4146
  %v4211 = vpack.c.bf16 %v4147, %v4147
  %v4212 = vpack.c.bf16 %v4148, %v4148
  %v4213 = vpack.c.bf16 %v4149, %v4149
  %v4214 = vpack.c.bf16 %v4150, %v4150
  %v4215 = vpack.c.bf16 %v4151, %v4151
  %v4216 = vpack.c.bf16 %v4152, %v4152
  %v4217 = vpack.c.bf16 %v4153, %v4153
  %v4218 = vpack.c.bf16 %v4154, %v4154
  %v4219 = vpack.c.bf16 %v4155, %v4155
  %v4220 = vpack.c.bf16 %v4156, %v4156
  %v4221 = vpack.c.bf16 %v4157, %v4157
  %v4222 = vpack.c.bf16 %v4158, %v4158
  %v4223 = vpack.c.bf16 %v4159, %v4159
  %v4224 = vpack.c.bf16 %v4160, %v4160
  %v4225 = vpack.c.bf16 %v4161, %v4161
  %v4226 = vpack.c.bf16 %v4162, %v4162
  %v4227 = vpack.c.bf16 %v4163, %v4163
  %v4228 = vpack.c.bf16 %v4164, %v4164
  %v4229 = vpack.c.bf16 %v4165, %v4165
  %v4230 = vpack.c.bf16 %v4166, %v4166
  %v4231 = vpack.c.bf16 %v4167, %v4167
  %vm4232 = vcmask 519168
  %4233 = vst.msk [vmem:[%s4] sm:$0xf] %vm4232, %v4168
  %4234 = vst.msk [vmem:[%s4 + $0x4] sm:$0xf] %vm4232, %v4169
  %4235 = vst.msk [vmem:[%s4 + $0x8] sm:$0xf] %vm4232, %v4170
  %4236 = vst.msk [vmem:[%s4 + $0xc] sm:$0xf] %vm4232, %v4171
  %4237 = vst.msk [vmem:[%s4 + $0x10] sm:$0xf] %vm4232, %v4172
  %4238 = vst.msk [vmem:[%s4 + $0x14] sm:$0xf] %vm4232, %v4173
  %4239 = vst.msk [vmem:[%s4 + $0x18] sm:$0xf] %vm4232, %v4174
  %4240 = vst.msk [vmem:[%s4 + $0x1c] sm:$0xf] %vm4232, %v4175
  %4241 = vst.msk [vmem:[%s4 + $0x20] sm:$0xf] %vm4232, %v4176
  %4242 = vst.msk [vmem:[%s4 + $0x24] sm:$0xf] %vm4232, %v4177
  %4243 = vst.msk [vmem:[%s4 + $0x28] sm:$0xf] %vm4232, %v4178
  %4244 = vst.msk [vmem:[%s4 + $0x2c] sm:$0xf] %vm4232, %v4179
  %4245 = vst.msk [vmem:[%s4 + $0x30] sm:$0xf] %vm4232, %v4180
  %4246 = vst.msk [vmem:[%s4 + $0x34] sm:$0xf] %vm4232, %v4181
  %4247 = vst.msk [vmem:[%s4 + $0x38] sm:$0xf] %vm4232, %v4182
  %4248 = vst.msk [vmem:[%s4 + $0x3c] sm:$0xf] %vm4232, %v4183
  %4249 = vst.msk [vmem:[%s4 + $0x40] sm:$0xf] %vm4232, %v4184
  %4250 = vst.msk [vmem:[%s4 + $0x44] sm:$0xf] %vm4232, %v4185
  %4251 = vst.msk [vmem:[%s4 + $0x48] sm:$0xf] %vm4232, %v4186
  %4252 = vst.msk [vmem:[%s4 + $0x4c] sm:$0xf] %vm4232, %v4187
  %4253 = vst.msk [vmem:[%s4 + $0x50] sm:$0xf] %vm4232, %v4188
  %4254 = vst.msk [vmem:[%s4 + $0x54] sm:$0xf] %vm4232, %v4189
  %4255 = vst.msk [vmem:[%s4 + $0x58] sm:$0xf] %vm4232, %v4190
  %4256 = vst.msk [vmem:[%s4 + $0x5c] sm:$0xf] %vm4232, %v4191
  %4257 = vst.msk [vmem:[%s4 + $0x60] sm:$0xf] %vm4232, %v4192
  %4258 = vst.msk [vmem:[%s4 + $0x64] sm:$0xf] %vm4232, %v4193
  %4259 = vst.msk [vmem:[%s4 + $0x68] sm:$0xf] %vm4232, %v4194
  %4260 = vst.msk [vmem:[%s4 + $0x6c] sm:$0xf] %vm4232, %v4195
  %4261 = vst.msk [vmem:[%s4 + $0x70] sm:$0xf] %vm4232, %v4196
  %4262 = vst.msk [vmem:[%s4 + $0x74] sm:$0xf] %vm4232, %v4197
  %4263 = vst.msk [vmem:[%s4 + $0x78] sm:$0xf] %vm4232, %v4198
  %4264 = vst.msk [vmem:[%s4 + $0x7c] sm:$0xf] %vm4232, %v4199
  %4265 = vst.msk [vmem:[%s4 + $0x80] sm:$0xf] %vm4232, %v4200
  %4266 = vst.msk [vmem:[%s4 + $0x84] sm:$0xf] %vm4232, %v4201
  %4267 = vst.msk [vmem:[%s4 + $0x88] sm:$0xf] %vm4232, %v4202
  %4268 = vst.msk [vmem:[%s4 + $0x8c] sm:$0xf] %vm4232, %v4203
  %4269 = vst.msk [vmem:[%s4 + $0x90] sm:$0xf] %vm4232, %v4204
  %4270 = vst.msk [vmem:[%s4 + $0x94] sm:$0xf] %vm4232, %v4205
  %4271 = vst.msk [vmem:[%s4 + $0x98] sm:$0xf] %vm4232, %v4206
  %4272 = vst.msk [vmem:[%s4 + $0x9c] sm:$0xf] %vm4232, %v4207
  %4273 = vst.msk [vmem:[%s4 + $0xa0] sm:$0xf] %vm4232, %v4208
  %4274 = vst.msk [vmem:[%s4 + $0xa4] sm:$0xf] %vm4232, %v4209
  %4275 = vst.msk [vmem:[%s4 + $0xa8] sm:$0xf] %vm4232, %v4210
  %4276 = vst.msk [vmem:[%s4 + $0xac] sm:$0xf] %vm4232, %v4211
  %4277 = vst.msk [vmem:[%s4 + $0xb0] sm:$0xf] %vm4232, %v4212
  %4278 = vst.msk [vmem:[%s4 + $0xb4] sm:$0xf] %vm4232, %v4213
  %4279 = vst.msk [vmem:[%s4 + $0xb8] sm:$0xf] %vm4232, %v4214
  %4280 = vst.msk [vmem:[%s4 + $0xbc] sm:$0xf] %vm4232, %v4215
  %4281 = vst.msk [vmem:[%s4 + $0xc0] sm:$0xf] %vm4232, %v4216
  %4282 = vst.msk [vmem:[%s4 + $0xc4] sm:$0xf] %vm4232, %v4217
  %4283 = vst.msk [vmem:[%s4 + $0xc8] sm:$0xf] %vm4232, %v4218
  %4284 = vst.msk [vmem:[%s4 + $0xcc] sm:$0xf] %vm4232, %v4219
  %4285 = vst.msk [vmem:[%s4 + $0xd0] sm:$0xf] %vm4232, %v4220
  %4286 = vst.msk [vmem:[%s4 + $0xd4] sm:$0xf] %vm4232, %v4221
  %4287 = vst.msk [vmem:[%s4 + $0xd8] sm:$0xf] %vm4232, %v4222
  %4288 = vst.msk [vmem:[%s4 + $0xdc] sm:$0xf] %vm4232, %v4223
  %4289 = vst.msk [vmem:[%s4 + $0xe0] sm:$0xf] %vm4232, %v4224
  %4290 = vst.msk [vmem:[%s4 + $0xe4] sm:$0xf] %vm4232, %v4225
  %4291 = vst.msk [vmem:[%s4 + $0xe8] sm:$0xf] %vm4232, %v4226
  %4292 = vst.msk [vmem:[%s4 + $0xec] sm:$0xf] %vm4232, %v4227
  %4293 = vst.msk [vmem:[%s4 + $0xf0] sm:$0xf] %vm4232, %v4228
  %4294 = vst.msk [vmem:[%s4 + $0xf4] sm:$0xf] %vm4232, %v4229
  %4295 = vst.msk [vmem:[%s4 + $0xf8] sm:$0xf] %vm4232, %v4230
  %4296 = vst.msk [vmem:[%s4 + $0xfc] sm:$0xf] %vm4232, %v4231
  // Predicated region
  $region18: #{generator_forward.6} parent=0 // pred_check
    _
  $region19: #{generator_forward.6} parent=0 // pred_check_branch
    %4298 = sbr.rel (0) target = $region21
  $region20: #{generator_forward.6} parent=0 // pred_region
    _
  $region21: #{generator_forward.6} parent=0 // pred_fallthru
    _
  // Predicated region
  $region22: #{generator_forward.6} parent=0 // pred_check
    _
  $region23: #{generator_forward.6} parent=0 // pred_check_branch
    %4300 = sbr.rel (0) target = $region25
  $region24: #{generator_forward.6} parent=0 // pred_region
    _
  $region25: #{generator_forward.6} parent=0 // pred_fallthru
    _

</llo_original>
